<compile_context>
chip_gen: v7x
topology: tpu7x:2x2x1
jax: 0.10.0
libtpu: 0.0.40
codegen_flags: <defaults>
</compile_context>

<pallas_src>
import functools

import jax
import jax.numpy as jnp
from jax.experimental import pallas as pl
from jax.experimental.pallas import tpu as pltpu

LANE = 128   # TPU lane width; all output-channel blocks are padded to this
HALO = 3     # max conv halo (kernel 7 -> padding 3)


def _round_up(n, m):
    return ((n + m - 1) // m) * m


# ----------------------------------------------------------------------------
# Fused kernel factory: whole forward pass in one pallas_call
# ----------------------------------------------------------------------------
def _make_kernel(layout, L, compute_dtype):
    f32 = jnp.float32
    cdt = compute_dtype

    def kernel(x_col_ref, w_ref, b_ref, o_ref, pad_ref):
        nb = pad_ref.shape[0]
        m = nb * L
        B = b_ref[...]                                    # (n_layers, 128) f32

        # Zero the halo rows of the shared staging buffer; interior rows are
        # fully overwritten before every read, so this provides the zero
        # padding of every stride-1 conv.  Done unconditionally: with a
        # multi-tile "parallel" grid each TensorCore owns its own scratch, so
        # a program_id==0 guard would be wrong on v7x.
        zeros_halo = jnp.zeros((nb, HALO, LANE), cdt)
        pad_ref[:, :HALO, :] = zeros_halo
        pad_ref[:, HALO + L:, :] = zeros_halo

        def mm(x2d, w_off, rows):
            # compute-dtype operands on the MXU, f32 accumulation.
            return jnp.dot(x2d, w_ref[w_off:w_off + rows, :],
                           preferred_element_type=f32)

        def lin(x2d_c, name):
            s = layout[name]
            return mm(x2d_c, s["w_off"], s["rows"]) + B[s["b_row"]]

        def conv_same(x, name, *, relu, residual=None):
            """Stride-1 'same' conv.  x: (nb, L, 128) f32 value (true channels
            in the leading `cin` lanes, zeros elsewhere)."""
            s = layout[name]
            K, cin, p = s["K"], s["cin"], (s["K"] - 1) // 2
            # Stage once (lane-dense store); the single activation cast to the
            # MXU dtype happens here.
            pad_ref[:, HALO:HALO + L, :] = x.astype(cdt)
            acc = jnp.zeros((m, LANE), f32) + B[s["b_row"]]
            for k in range(K):                      # K per-tap MXU matmuls,
                r0 = HALO - p + k                   # accumulated in f32; no
                tap = pad_ref[:, r0:r0 + L, :cin]   # im2col slab materialized
                acc = acc + mm(tap.reshape(m, cin), s["w_off"] + k * cin, cin)
            y = acc.reshape(nb, L, LANE)
            if residual is not None:
                y = y + residual
            if relu:
                y = jnp.maximum(y, 0.0)
            return y

        # -- in_net: Conv1d(in_dim, n_dim, 7, stride=2, padding=3); host im2col.
        st = layout["stem"]
        xc = x_col_ref[...]                               # (nb, L, kc_p) cdt
        h = (mm(xc.reshape(m, xc.shape[-1]), st["w_off"], st["rows"])
             + B[st["b_row"]]).reshape(nb, L, LANE)

        # -- block_0: n_dim -> n_dim, identity shortcut.
        # TODO(synk): Block_Standard.forward in the source lacks a `return`;
        # we implement the intended semantics relu(main_pass(x) + shortcut(x)).
        x0 = h
        h = conv_same(h, "b0_c0", relu=True)
        h = conv_same(h, "b0_c1", relu=True)
        h = conv_same(h, "b0_c2", relu=True, residual=x0)

        # -- block_1: n_dim -> 2*n_dim, 1x1-conv shortcut (plain matmul).
        sc_s = layout["b1_sc"]
        sc = (mm(h[..., :sc_s["cin"]].astype(cdt).reshape(m, sc_s["cin"]),
                 sc_s["w_off"], sc_s["rows"])
              + B[sc_s["b_row"]]).reshape(nb, L, LANE)
        h = conv_same(h, "b1_c0", relu=True)
        h = conv_same(h, "b1_c1", relu=True)
        h = conv_same(h, "b1_c2", relu=True, residual=sc)

        # -- block_2: 2*n_dim -> 2*n_dim, identity shortcut.
        x2 = h
        h = conv_same(h, "b2_c0", relu=True)
        h = conv_same(h, "b2_c1", relu=True)
        h = conv_same(h, "b2_c2", relu=True, residual=x2)

        # -- AdaptiveAvgPool1d(1) + out_net + projector, fused epilogue.
        pooled = jnp.mean(h, axis=1)                      # (nb, 128) f32
        t = lin(pooled.astype(cdt), "out_net")            # out_net (no act)
        tc = jnp.maximum(t, 0.0).astype(cdt)              # projector ReLU
        u1 = jnp.maximum(lin(tc, "p1a"), 0.0).astype(cdt)
        u2 = jnp.maximum(lin(tc, "p1b"), 0.0).astype(cdt)
        p2 = layout["p2"]
        # concat(u1, u2) @ Wp2  ==  u1 @ Wp2[:128] + u2 @ Wp2[128:]   (exact)
        o_ref[...] = (mm(u1, p2["w_off"], LANE)
                      + mm(u2, p2["w_off"] + LANE, LANE)
                      + B[p2["b_row"]])

    return kernel


# ----------------------------------------------------------------------------
# Host-side packing: all weights -> one slab, all biases -> one f32 slab
# ----------------------------------------------------------------------------
def _pack_params(params, kc_p, mxu_dtype):
    w_chunks, b_rows, layout = [], [], {}
    off = 0

    def add(name, w2d, b_vec, **extra):
        nonlocal off
        rows = int(w2d.shape[0])
        assert rows % 8 == 0, (name, rows)
        layout[name] = dict(w_off=off, rows=rows, b_row=len(b_rows), **extra)
        w_chunks.append(w2d.astype(mxu_dtype))
        b_vec = b_vec.reshape(-1).astype(jnp.float32)
        b_rows.append(jnp.pad(b_vec, (0, LANE - b_vec.shape[0])))
        off += rows

    # stem conv (host im2col'd): (K, in_dim, n_dim) -> (kc_p, LANE), k-major.
    w, b = params["in_net"]
    K, cin, cout = w.shape
    w2 = jnp.pad(w.reshape(K * cin, cout),
                 ((0, kc_p - K * cin), (0, LANE - cout)))
    add("stem", w2, b)

    # stride-1 convs: (K, cin, cout) -> (K*cin, LANE), row = k*cin + c.
    for name in ("b0_c0", "b0_c1", "b0_c2",
                 "b1_c0", "b1_c1", "b1_c2", "b1_sc",
                 "b2_c0", "b2_c1", "b2_c2"):
        w, b = params[name]
        K, cin, cout = w.shape
        w2 = jnp.pad(w, ((0, 0), (0, 0), (0, LANE - cout))).reshape(K * cin, LANE)
        add(name, w2, b, K=K, cin=cin)

    # out_net: (2*n_dim, out_dim) -> (LANE, LANE)
    w, b = params["out_net"]
    add("out_net",
        jnp.pad(w, ((0, LANE - w.shape[0]), (0, LANE - w.shape[1]))), b)

    # projector Linear(out_dim, 2*out_dim): split into two 128-lane col halves.
    w, b = params["proj1"]
    w2 = jnp.pad(w, ((0, LANE - w.shape[0]), (0, 2 * LANE - w.shape[1])))
    b2 = jnp.pad(b.reshape(-1).astype(jnp.float32), (0, 2 * LANE - b.shape[-1]))
    add("p1a", w2[:, :LANE], b2[:LANE])
    add("p1b", w2[:, LANE:], b2[LANE:])

    # projector Linear(2*out_dim, out_dim): 256 contraction rows.
    w, b = params["proj2"]
    add("p2", jnp.pad(w, ((0, 2 * LANE - w.shape[0]), (0, LANE - w.shape[1]))), b)

    return jnp.concatenate(w_chunks, axis=0), jnp.stack(b_rows, axis=0), layout


def _stem_im2col(x_nlc, K=7, stride=2, pad=3):
    """Strided-slice im2col for the stride-2 stem (no advanced-index gather)."""
    N, L, _ = x_nlc.shape
    L_out = (L + 2 * pad - K) // stride + 1
    xp = jnp.pad(x_nlc, ((0, 0), (pad, pad), (0, 0)))
    taps = [xp[:, k:k + stride * (L_out - 1) + 1:stride, :] for k in range(K)]
    return jnp.concatenate(taps, axis=-1)            # (N, L_out, K*Cin), k-major


# ----------------------------------------------------------------------------
# Parameter init (deterministic, synthetic)
# ----------------------------------------------------------------------------
def init_params(key, in_dim=1, n_dim=64, out_dim=128):
    keys = iter(jax.random.split(key, 64))

    def conv_p(cin, cout, k):
        w = jax.random.normal(next(keys), (k, cin, cout), jnp.float32) / jnp.sqrt(cin * k)
        b = 0.01 * jax.random.normal(next(keys), (cout,), jnp.float32)
        return w, b

    def lin_p(cin, cout):
        w = jax.random.normal(next(keys), (cin, cout), jnp.float32) / jnp.sqrt(cin)
        b = 0.01 * jax.random.normal(next(keys), (cout,), jnp.float32)
        return w, b

    p = {}
    p["in_net"] = conv_p(in_dim, n_dim, 7)
    # block_0: n_dim -> n_dim (identity shortcut)
    p["b0_c0"] = conv_p(n_dim, n_dim, 7)
    p["b0_c1"] = conv_p(n_dim, n_dim, 5)
    p["b0_c2"] = conv_p(n_dim, n_dim, 3)
    # block_1: n_dim -> 2*n_dim (conv1x1 shortcut)
    p["b1_c0"] = conv_p(n_dim, 2 * n_dim, 7)
    p["b1_c1"] = conv_p(2 * n_dim, 2 * n_dim, 5)
    p["b1_c2"] = conv_p(2 * n_dim, 2 * n_dim, 3)
    p["b1_sc"] = conv_p(n_dim, 2 * n_dim, 1)
    # block_2: 2*n_dim -> 2*n_dim (identity shortcut)
    p["b2_c0"] = conv_p(2 * n_dim, 2 * n_dim, 7)
    p["b2_c1"] = conv_p(2 * n_dim, 2 * n_dim, 5)
    p["b2_c2"] = conv_p(2 * n_dim, 2 * n_dim, 3)
    # out_net + projector (project_norm=None): ReLU, Lin, ReLU, Lin
    p["out_net"] = lin_p(2 * n_dim, out_dim)
    p["proj1"] = lin_p(out_dim, 2 * out_dim)
    p["proj2"] = lin_p(2 * out_dim, out_dim)
    return p


# ----------------------------------------------------------------------------
# Forward pass (norm=None, block_type='standard', is_projector=True)
# ----------------------------------------------------------------------------
def _normalize_t(ts_ncl, normalize):
    # TODO(synk): `_normalize_t` is not defined in the reference source; we use
    # per-sample, per-channel z-normalization over the time axis as a stand-in.
    if ts_ncl.ndim == 1:
        ts_ncl = ts_ncl[None, None, :]
    elif ts_ncl.ndim == 2:
        ts_ncl = ts_ncl[:, None, :]
    if not normalize:
        return ts_ncl
    mu = jnp.mean(ts_ncl, axis=-1, keepdims=True)
    sd = jnp.std(ts_ncl, axis=-1, keepdims=True)
    return (ts_ncl - mu) / (sd + 1e-8)


def resnet1d_forward(ts, params, normalize=True, mxu_dtype=jnp.bfloat16,
                     batch_tile=None):
    ts = _normalize_t(ts, normalize).astype(jnp.float32)   # (N, C_in, L)
    x = jnp.transpose(ts, (0, 2, 1))                        # NCL -> NLC
    N, L, _ = x.shape

    n_dim = params["in_net"][0].shape[-1]
    out_dim = params["proj2"][0].shape[-1]
    assert n_dim % 8 == 0 and 2 * n_dim <= LANE and out_dim <= LANE

    # Stride-2 stem im2col, pre-cast to the MXU dtype, last dim padded to 8k.
    x_col = _stem_im2col(x)                                 # (N, L1, 7*C_in)
    L1, kc = x_col.shape[1], x_col.shape[2]
    kc_p = _round_up(max(kc, 8), 8)
    x_col = jnp.pad(x_col, ((0, 0), (0, 0), (0, kc_p - kc))).astype(mxu_dtype)

    # Batch tiling: weights stay VMEM-resident across grid steps; only
    # x_col / out are streamed.  Multi-tile grids shard across v7x's 2 TCs.
    if batch_tile is None:
        batch_tile = N if N <= 128 else 128
    n_tiles = int(pl.cdiv(N, batch_tile))
    N_pad = n_tiles * batch_tile
    if N_pad != N:
        x_col = jnp.pad(x_col, ((0, N_pad - N), (0, 0), (0, 0)))

    w_slab, b_slab, layout = _pack_params(params, kc_p, mxu_dtype)
    kernel = _make_kernel(layout, L1, mxu_dtype)

    itemsize = jnp.dtype(mxu_dtype).itemsize
    w_bytes = w_slab.shape[0] * LANE * itemsize
    b_bytes = b_slab.shape[0] * LANE * 4

    # Advisory cost estimate so XLA schedules this call vs surrounding ops.
    head_names = ("out_net", "p1a", "p1b", "p2")
    conv_names = [n for n in layout if n not in head_names]
    flops = (sum(2 * N_pad * L1 * layout[n]["rows"] * LANE for n in conv_names)
             + sum(2 * N_pad * layout[n]["rows"] * LANE for n in head_names))
    bytes_accessed = (N_pad * L1 * kc_p * itemsize + w_bytes + b_bytes
                      + N_pad * LANE * 4)

    # Explicit VMEM budget (v5e scoped default is 16 MiB; v7x physical 64 MiB),
    # with headroom for the f32 activation temporaries.
    vmem_est = (w_bytes + b_bytes
                + 2 * batch_tile * L1 * kc_p * itemsize          # x_col (2 bufs)
                + 2 * batch_tile * LANE * 4                      # out   (2 bufs)
                + batch_tile * (L1 + 2 * HALO) * LANE * itemsize  # staging
                + 12 * batch_tile * L1 * LANE * 4)               # f32 temps
    vmem_limit = int(min(max(vmem_est + (4 << 20), 16 << 20), 64 << 20))

    out = pl.pallas_call(
        kernel,
        grid=(n_tiles,),
        in_specs=[
            pl.BlockSpec((batch_tile, L1, kc_p), lambda i: (i, 0, 0)),
            pl.BlockSpec(w_slab.shape, lambda i: (0, 0)),    # VMEM-resident
            pl.BlockSpec(b_slab.shape, lambda i: (0, 0)),    # VMEM-resident
        ],
        out_specs=pl.BlockSpec((batch_tile, LANE), lambda i: (i, 0)),
        out_shape=jax.ShapeDtypeStruct((N_pad, LANE), jnp.float32),
        scratch_shapes=[
            pltpu.VMEM((batch_tile, L1 + 2 * HALO, LANE), mxu_dtype)],
        compiler_params=pltpu.CompilerParams(
            dimension_semantics=("parallel",),
            vmem_limit_bytes=vmem_limit),
        cost_estimate=pl.CostEstimate(flops=int(flops), transcendentals=0,
                                      bytes_accessed=int(bytes_accessed)),
    )(x_col, w_slab, b_slab)
    return out[:N, :out_dim]


# ----------------------------------------------------------------------------
if __name__ == "__main__":
    key = jax.random.PRNGKey(0)
    k_in, k_par = jax.random.split(key)

    N, C_IN, L = 2, 1, 32
    N_DIM, OUT_DIM = 64, 128

    ts = jax.random.normal(k_in, (N, C_IN, L), jnp.float32)
    params = init_params(k_par, in_dim=C_IN, n_dim=N_DIM, out_dim=OUT_DIM)

    fwd = jax.jit(functools.partial(resnet1d_forward, normalize=True))
    out = jax.block_until_ready(fwd(ts, params))

    assert out.shape == (N, OUT_DIM), out.shape
    assert jnp.all(jnp.isfinite(out))
    print("KERNEL_OK")
</pallas_src>

<mosaic_0001>
module attributes {stable_mosaic.version = 11 : i64} {
  func.func @kernel(%arg0: i32, %arg1: memref<2x16x8xbf16, #tpu.memory_space<vmem>>, %arg2: memref<5064x128xbf16, #tpu.memory_space<vmem>>, %arg3: memref<15x128xf32, #tpu.memory_space<vmem>>, %arg4: memref<2x128xf32, #tpu.memory_space<vmem>>, %arg5: memref<2x22x128xbf16, #tpu.memory_space<vmem>>) attributes {dimension_semantics = [#tpu.dimension_semantics<parallel>], iteration_bounds = array<i64: 1>, scalar_prefetch = 0 : i64, scratch_operands = 1 : i64, tpu.core_type = #tpu.core_type<tc>, window_params = [{transform_indices = @transform_0, window_bounds = array<i64: 2, 16, 8>}, {pipeline_mode = #tpu.pipeline_mode<synchronous>, transform_indices = @transform_1, window_bounds = array<i64: 5064, 128>}, {pipeline_mode = #tpu.pipeline_mode<synchronous>, transform_indices = @transform_2, window_bounds = array<i64: 15, 128>}, {transform_indices = @transform_3, window_bounds = array<i64: 2, 128>}]} {
    %c0 = arith.constant 0 : index
    %c0_0 = arith.constant 0 : index
    %0 = vector.load %arg3[%c0, %c0_0] : memref<15x128xf32, #tpu.memory_space<vmem>>, vector<15x128xf32>
    %cst = arith.constant 0.000000e+00 : bf16
    %1 = vector.broadcast %cst : bf16 to vector<2x3x128xbf16>
    %c0_1 = arith.constant 0 : index
    %c0_2 = arith.constant 0 : index
    %c0_3 = arith.constant 0 : index
    %2 = vector.load %arg5[%c0_1, %c0_2, %c0_3] : memref<2x22x128xbf16, #tpu.memory_space<vmem>>, vector<2x3x128xbf16>
    tpu.vector_store %arg5[%c0_1, %c0_2, %c0_3], %1 {strides = array<i32>} : memref<2x22x128xbf16, #tpu.memory_space<vmem>>, vector<2x3x128xbf16>,
    %c0_4 = arith.constant 0 : index
    %c19 = arith.constant 19 : index
    %c0_5 = arith.constant 0 : index
    %3 = vector.load %arg5[%c0_4, %c19, %c0_5] : memref<2x22x128xbf16, #tpu.memory_space<vmem>>, vector<2x3x128xbf16>
    tpu.vector_store %arg5[%c0_4, %c19, %c0_5], %1 {strides = array<i32>} : memref<2x22x128xbf16, #tpu.memory_space<vmem>>, vector<2x3x128xbf16>,
    %c0_6 = arith.constant 0 : index
    %c0_7 = arith.constant 0 : index
    %c0_8 = arith.constant 0 : index
    %4 = vector.load %arg1[%c0_6, %c0_7, %c0_8] : memref<2x16x8xbf16, #tpu.memory_space<vmem>>, vector<2x16x8xbf16>
    %5 = vector.shape_cast %4 : vector<2x16x8xbf16> to vector<32x8xbf16>
    %c0_9 = arith.constant 0 : index
    %c0_10 = arith.constant 0 : index
    %6 = vector.load %arg2[%c0_9, %c0_10] : memref<5064x128xbf16, #tpu.memory_space<vmem>>, vector<8x128xbf16>
    %cst_11 = arith.constant dense<0.000000e+00> : vector<32x128xf32>
    %7 = tpu.matmul %5, %6, %cst_11 {dimension_numbers = #tpu.dot_dimension_numbers<[1], [0], [0], [1], [0, 0, 1, 1], [], []>} : vector<32x8xbf16>, vector<8x128xbf16>, vector<32x128xf32> -> vector<32x128xf32>
    %8 = vector.extract_strided_slice %0 {offsets = [0, 0], sizes = [1, 128], strides = [1, 1]} : vector<15x128xf32> to vector<1x128xf32>
    %9 = vector.shape_cast %8 : vector<1x128xf32> to vector<128xf32>
    %10 = vector.shape_cast %9 : vector<128xf32> to vector<1x128xf32>
    %11 = vector.broadcast %10 : vector<1x128xf32> to vector<32x128xf32>
    %12 = arith.addf %7, %11 : vector<32x128xf32>
    %13 = vector.shape_cast %12 : vector<32x128xf32> to vector<2x16x128xf32>
    %14 = arith.truncf %13 : vector<2x16x128xf32> to vector<2x16x128xbf16>
    %c0_12 = arith.constant 0 : index
    %c3 = arith.constant 3 : index
    %c0_13 = arith.constant 0 : index
    %15 = vector.load %arg5[%c0_12, %c3, %c0_13] : memref<2x22x128xbf16, #tpu.memory_space<vmem>>, vector<2x16x128xbf16>
    tpu.vector_store %arg5[%c0_12, %c3, %c0_13], %14 {strides = array<i32>} : memref<2x22x128xbf16, #tpu.memory_space<vmem>>, vector<2x16x128xbf16>,
    %cst_14 = arith.constant 0.000000e+00 : f32
    %16 = vector.broadcast %cst_14 : f32 to vector<32x128xf32>
    %17 = vector.extract_strided_slice %0 {offsets = [1, 0], sizes = [1, 128], strides = [1, 1]} : vector<15x128xf32> to vector<1x128xf32>
    %18 = vector.shape_cast %17 : vector<1x128xf32> to vector<128xf32>
    %19 = vector.shape_cast %18 : vector<128xf32> to vector<1x128xf32>
    %20 = vector.broadcast %19 : vector<1x128xf32> to vector<32x128xf32>
    %21 = arith.addf %16, %20 : vector<32x128xf32>
    %c0_15 = arith.constant 0 : index
    %c0_16 = arith.constant 0 : index
    %c0_17 = arith.constant 0 : index
    %22 = vector.load %arg5[%c0_15, %c0_16, %c0_17] : memref<2x22x128xbf16, #tpu.memory_space<vmem>>, vector<2x16x64xbf16>
    %23 = vector.shape_cast %22 : vector<2x16x64xbf16> to vector<32x64xbf16>
    %c8 = arith.constant 8 : index
    %c0_18 = arith.constant 0 : index
    %24 = vector.load %arg2[%c8, %c0_18] : memref<5064x128xbf16, #tpu.memory_space<vmem>>, vector<64x128xbf16>
    %cst_19 = arith.constant dense<0.000000e+00> : vector<32x128xf32>
    %25 = tpu.matmul %23, %24, %cst_19 {dimension_numbers = #tpu.dot_dimension_numbers<[1], [0], [0], [1], [0, 0, 1, 1], [], []>} : vector<32x64xbf16>, vector<64x128xbf16>, vector<32x128xf32> -> vector<32x128xf32>
    %26 = arith.addf %21, %25 : vector<32x128xf32>
    %c0_20 = arith.constant 0 : index
    %c1 = arith.constant 1 : index
    %c0_21 = arith.constant 0 : index
    %27 = vector.load %arg5[%c0_20, %c1, %c0_21] : memref<2x22x128xbf16, #tpu.memory_space<vmem>>, vector<2x16x64xbf16>
    %28 = vector.shape_cast %27 : vector<2x16x64xbf16> to vector<32x64xbf16>
    %c72 = arith.constant 72 : index
    %c0_22 = arith.constant 0 : index
    %29 = vector.load %arg2[%c72, %c0_22] : memref<5064x128xbf16, #tpu.memory_space<vmem>>, vector<64x128xbf16>
    %cst_23 = arith.constant dense<0.000000e+00> : vector<32x128xf32>
    %30 = tpu.matmul %28, %29, %cst_23 {dimension_numbers = #tpu.dot_dimension_numbers<[1], [0], [0], [1], [0, 0, 1, 1], [], []>} : vector<32x64xbf16>, vector<64x128xbf16>, vector<32x128xf32> -> vector<32x128xf32>
    %31 = arith.addf %26, %30 : vector<32x128xf32>
    %c0_24 = arith.constant 0 : index
    %c2 = arith.constant 2 : index
    %c0_25 = arith.constant 0 : index
    %32 = vector.load %arg5[%c0_24, %c2, %c0_25] : memref<2x22x128xbf16, #tpu.memory_space<vmem>>, vector<2x16x64xbf16>
    %33 = vector.shape_cast %32 : vector<2x16x64xbf16> to vector<32x64xbf16>
    %c136 = arith.constant 136 : index
    %c0_26 = arith.constant 0 : index
    %34 = vector.load %arg2[%c136, %c0_26] : memref<5064x128xbf16, #tpu.memory_space<vmem>>, vector<64x128xbf16>
    %cst_27 = arith.constant dense<0.000000e+00> : vector<32x128xf32>
    %35 = tpu.matmul %33, %34, %cst_27 {dimension_numbers = #tpu.dot_dimension_numbers<[1], [0], [0], [1], [0, 0, 1, 1], [], []>} : vector<32x64xbf16>, vector<64x128xbf16>, vector<32x128xf32> -> vector<32x128xf32>
    %36 = arith.addf %31, %35 : vector<32x128xf32>
    %c0_28 = arith.constant 0 : index
    %c3_29 = arith.constant 3 : index
    %c0_30 = arith.constant 0 : index
    %37 = vector.load %arg5[%c0_28, %c3_29, %c0_30] : memref<2x22x128xbf16, #tpu.memory_space<vmem>>, vector<2x16x64xbf16>
    %38 = vector.shape_cast %37 : vector<2x16x64xbf16> to vector<32x64xbf16>
    %c200 = arith.constant 200 : index
    %c0_31 = arith.constant 0 : index
    %39 = vector.load %arg2[%c200, %c0_31] : memref<5064x128xbf16, #tpu.memory_space<vmem>>, vector<64x128xbf16>
    %cst_32 = arith.constant dense<0.000000e+00> : vector<32x128xf32>
    %40 = tpu.matmul %38, %39, %cst_32 {dimension_numbers = #tpu.dot_dimension_numbers<[1], [0], [0], [1], [0, 0, 1, 1], [], []>} : vector<32x64xbf16>, vector<64x128xbf16>, vector<32x128xf32> -> vector<32x128xf32>
    %41 = arith.addf %36, %40 : vector<32x128xf32>
    %c0_33 = arith.constant 0 : index
    %c4 = arith.constant 4 : index
    %c0_34 = arith.constant 0 : index
    %42 = vector.load %arg5[%c0_33, %c4, %c0_34] : memref<2x22x128xbf16, #tpu.memory_space<vmem>>, vector<2x16x64xbf16>
    %43 = vector.shape_cast %42 : vector<2x16x64xbf16> to vector<32x64xbf16>
    %c264 = arith.constant 264 : index
    %c0_35 = arith.constant 0 : index
    %44 = vector.load %arg2[%c264, %c0_35] : memref<5064x128xbf16, #tpu.memory_space<vmem>>, vector<64x128xbf16>
    %cst_36 = arith.constant dense<0.000000e+00> : vector<32x128xf32>
    %45 = tpu.matmul %43, %44, %cst_36 {dimension_numbers = #tpu.dot_dimension_numbers<[1], [0], [0], [1], [0, 0, 1, 1], [], []>} : vector<32x64xbf16>, vector<64x128xbf16>, vector<32x128xf32> -> vector<32x128xf32>
    %46 = arith.addf %41, %45 : vector<32x128xf32>
    %c0_37 = arith.constant 0 : index
    %c5 = arith.constant 5 : index
    %c0_38 = arith.constant 0 : index
    %47 = vector.load %arg5[%c0_37, %c5, %c0_38] : memref<2x22x128xbf16, #tpu.memory_space<vmem>>, vector<2x16x64xbf16>
    %48 = vector.shape_cast %47 : vector<2x16x64xbf16> to vector<32x64xbf16>
    %c328 = arith.constant 328 : index
    %c0_39 = arith.constant 0 : index
    %49 = vector.load %arg2[%c328, %c0_39] : memref<5064x128xbf16, #tpu.memory_space<vmem>>, vector<64x128xbf16>
    %cst_40 = arith.constant dense<0.000000e+00> : vector<32x128xf32>
    %50 = tpu.matmul %48, %49, %cst_40 {dimension_numbers = #tpu.dot_dimension_numbers<[1], [0], [0], [1], [0, 0, 1, 1], [], []>} : vector<32x64xbf16>, vector<64x128xbf16>, vector<32x128xf32> -> vector<32x128xf32>
    %51 = arith.addf %46, %50 : vector<32x128xf32>
    %c0_41 = arith.constant 0 : index
    %c6 = arith.constant 6 : index
    %c0_42 = arith.constant 0 : index
    %52 = vector.load %arg5[%c0_41, %c6, %c0_42] : memref<2x22x128xbf16, #tpu.memory_space<vmem>>, vector<2x16x64xbf16>
    %53 = vector.shape_cast %52 : vector<2x16x64xbf16> to vector<32x64xbf16>
    %c392 = arith.constant 392 : index
    %c0_43 = arith.constant 0 : index
    %54 = vector.load %arg2[%c392, %c0_43] : memref<5064x128xbf16, #tpu.memory_space<vmem>>, vector<64x128xbf16>
    %cst_44 = arith.constant dense<0.000000e+00> : vector<32x128xf32>
    %55 = tpu.matmul %53, %54, %cst_44 {dimension_numbers = #tpu.dot_dimension_numbers<[1], [0], [0], [1], [0, 0, 1, 1], [], []>} : vector<32x64xbf16>, vector<64x128xbf16>, vector<32x128xf32> -> vector<32x128xf32>
    %56 = arith.addf %51, %55 : vector<32x128xf32>
    %57 = vector.shape_cast %56 : vector<32x128xf32> to vector<2x16x128xf32>
    %cst_45 = arith.constant 0.000000e+00 : f32
    %58 = vector.broadcast %cst_45 : f32 to vector<2x16x128xf32>
    %59 = arith.maximumf %57, %58 : vector<2x16x128xf32>
    %60 = arith.truncf %59 : vector<2x16x128xf32> to vector<2x16x128xbf16>
    %c0_46 = arith.constant 0 : index
    %c3_47 = arith.constant 3 : index
    %c0_48 = arith.constant 0 : index
    %61 = vector.load %arg5[%c0_46, %c3_47, %c0_48] : memref<2x22x128xbf16, #tpu.memory_space<vmem>>, vector<2x16x128xbf16>
    tpu.vector_store %arg5[%c0_46, %c3_47, %c0_48], %60 {strides = array<i32>} : memref<2x22x128xbf16, #tpu.memory_space<vmem>>, vector<2x16x128xbf16>,
    %cst_49 = arith.constant 0.000000e+00 : f32
    %62 = vector.broadcast %cst_49 : f32 to vector<32x128xf32>
    %63 = vector.extract_strided_slice %0 {offsets = [2, 0], sizes = [1, 128], strides = [1, 1]} : vector<15x128xf32> to vector<1x128xf32>
    %64 = vector.shape_cast %63 : vector<1x128xf32> to vector<128xf32>
    %65 = vector.shape_cast %64 : vector<128xf32> to vector<1x128xf32>
    %66 = vector.broadcast %65 : vector<1x128xf32> to vector<32x128xf32>
    %67 = arith.addf %62, %66 : vector<32x128xf32>
    %c0_50 = arith.constant 0 : index
    %c1_51 = arith.constant 1 : index
    %c0_52 = arith.constant 0 : index
    %68 = vector.load %arg5[%c0_50, %c1_51, %c0_52] : memref<2x22x128xbf16, #tpu.memory_space<vmem>>, vector<2x16x64xbf16>
    %69 = vector.shape_cast %68 : vector<2x16x64xbf16> to vector<32x64xbf16>
    %c456 = arith.constant 456 : index
    %c0_53 = arith.constant 0 : index
    %70 = vector.load %arg2[%c456, %c0_53] : memref<5064x128xbf16, #tpu.memory_space<vmem>>, vector<64x128xbf16>
    %cst_54 = arith.constant dense<0.000000e+00> : vector<32x128xf32>
    %71 = tpu.matmul %69, %70, %cst_54 {dimension_numbers = #tpu.dot_dimension_numbers<[1], [0], [0], [1], [0, 0, 1, 1], [], []>} : vector<32x64xbf16>, vector<64x128xbf16>, vector<32x128xf32> -> vector<32x128xf32>
    %72 = arith.addf %67, %71 : vector<32x128xf32>
    %c0_55 = arith.constant 0 : index
    %c2_56 = arith.constant 2 : index
    %c0_57 = arith.constant 0 : index
    %73 = vector.load %arg5[%c0_55, %c2_56, %c0_57] : memref<2x22x128xbf16, #tpu.memory_space<vmem>>, vector<2x16x64xbf16>
    %74 = vector.shape_cast %73 : vector<2x16x64xbf16> to vector<32x64xbf16>
    %c520 = arith.constant 520 : index
    %c0_58 = arith.constant 0 : index
    %75 = vector.load %arg2[%c520, %c0_58] : memref<5064x128xbf16, #tpu.memory_space<vmem>>, vector<64x128xbf16>
    %cst_59 = arith.constant dense<0.000000e+00> : vector<32x128xf32>
    %76 = tpu.matmul %74, %75, %cst_59 {dimension_numbers = #tpu.dot_dimension_numbers<[1], [0], [0], [1], [0, 0, 1, 1], [], []>} : vector<32x64xbf16>, vector<64x128xbf16>, vector<32x128xf32> -> vector<32x128xf32>
    %77 = arith.addf %72, %76 : vector<32x128xf32>
    %c0_60 = arith.constant 0 : index
    %c3_61 = arith.constant 3 : index
    %c0_62 = arith.constant 0 : index
    %78 = vector.load %arg5[%c0_60, %c3_61, %c0_62] : memref<2x22x128xbf16, #tpu.memory_space<vmem>>, vector<2x16x64xbf16>
    %79 = vector.shape_cast %78 : vector<2x16x64xbf16> to vector<32x64xbf16>
    %c584 = arith.constant 584 : index
    %c0_63 = arith.constant 0 : index
    %80 = vector.load %arg2[%c584, %c0_63] : memref<5064x128xbf16, #tpu.memory_space<vmem>>, vector<64x128xbf16>
    %cst_64 = arith.constant dense<0.000000e+00> : vector<32x128xf32>
    %81 = tpu.matmul %79, %80, %cst_64 {dimension_numbers = #tpu.dot_dimension_numbers<[1], [0], [0], [1], [0, 0, 1, 1], [], []>} : vector<32x64xbf16>, vector<64x128xbf16>, vector<32x128xf32> -> vector<32x128xf32>
    %82 = arith.addf %77, %81 : vector<32x128xf32>
    %c0_65 = arith.constant 0 : index
    %c4_66 = arith.constant 4 : index
    %c0_67 = arith.constant 0 : index
    %83 = vector.load %arg5[%c0_65, %c4_66, %c0_67] : memref<2x22x128xbf16, #tpu.memory_space<vmem>>, vector<2x16x64xbf16>
    %84 = vector.shape_cast %83 : vector<2x16x64xbf16> to vector<32x64xbf16>
    %c648 = arith.constant 648 : index
    %c0_68 = arith.constant 0 : index
    %85 = vector.load %arg2[%c648, %c0_68] : memref<5064x128xbf16, #tpu.memory_space<vmem>>, vector<64x128xbf16>
    %cst_69 = arith.constant dense<0.000000e+00> : vector<32x128xf32>
    %86 = tpu.matmul %84, %85, %cst_69 {dimension_numbers = #tpu.dot_dimension_numbers<[1], [0], [0], [1], [0, 0, 1, 1], [], []>} : vector<32x64xbf16>, vector<64x128xbf16>, vector<32x128xf32> -> vector<32x128xf32>
    %87 = arith.addf %82, %86 : vector<32x128xf32>
    %c0_70 = arith.constant 0 : index
    %c5_71 = arith.constant 5 : index
    %c0_72 = arith.constant 0 : index
    %88 = vector.load %arg5[%c0_70, %c5_71, %c0_72] : memref<2x22x128xbf16, #tpu.memory_space<vmem>>, vector<2x16x64xbf16>
    %89 = vector.shape_cast %88 : vector<2x16x64xbf16> to vector<32x64xbf16>
    %c712 = arith.constant 712 : index
    %c0_73 = arith.constant 0 : index
    %90 = vector.load %arg2[%c712, %c0_73] : memref<5064x128xbf16, #tpu.memory_space<vmem>>, vector<64x128xbf16>
    %cst_74 = arith.constant dense<0.000000e+00> : vector<32x128xf32>
    %91 = tpu.matmul %89, %90, %cst_74 {dimension_numbers = #tpu.dot_dimension_numbers<[1], [0], [0], [1], [0, 0, 1, 1], [], []>} : vector<32x64xbf16>, vector<64x128xbf16>, vector<32x128xf32> -> vector<32x128xf32>
    %92 = arith.addf %87, %91 : vector<32x128xf32>
    %93 = vector.shape_cast %92 : vector<32x128xf32> to vector<2x16x128xf32>
    %cst_75 = arith.constant 0.000000e+00 : f32
    %94 = vector.broadcast %cst_75 : f32 to vector<2x16x128xf32>
    %95 = arith.maximumf %93, %94 : vector<2x16x128xf32>
    %96 = arith.truncf %95 : vector<2x16x128xf32> to vector<2x16x128xbf16>
    %c0_76 = arith.constant 0 : index
    %c3_77 = arith.constant 3 : index
    %c0_78 = arith.constant 0 : index
    %97 = vector.load %arg5[%c0_76, %c3_77, %c0_78] : memref<2x22x128xbf16, #tpu.memory_space<vmem>>, vector<2x16x128xbf16>
    tpu.vector_store %arg5[%c0_76, %c3_77, %c0_78], %96 {strides = array<i32>} : memref<2x22x128xbf16, #tpu.memory_space<vmem>>, vector<2x16x128xbf16>,
    %cst_79 = arith.constant 0.000000e+00 : f32
    %98 = vector.broadcast %cst_79 : f32 to vector<32x128xf32>
    %99 = vector.extract_strided_slice %0 {offsets = [3, 0], sizes = [1, 128], strides = [1, 1]} : vector<15x128xf32> to vector<1x128xf32>
    %100 = vector.shape_cast %99 : vector<1x128xf32> to vector<128xf32>
    %101 = vector.shape_cast %100 : vector<128xf32> to vector<1x128xf32>
    %102 = vector.broadcast %101 : vector<1x128xf32> to vector<32x128xf32>
    %103 = arith.addf %98, %102 : vector<32x128xf32>
    %c0_80 = arith.constant 0 : index
    %c2_81 = arith.constant 2 : index
    %c0_82 = arith.constant 0 : index
    %104 = vector.load %arg5[%c0_80, %c2_81, %c0_82] : memref<2x22x128xbf16, #tpu.memory_space<vmem>>, vector<2x16x64xbf16>
    %105 = vector.shape_cast %104 : vector<2x16x64xbf16> to vector<32x64xbf16>
    %c776 = arith.constant 776 : index
    %c0_83 = arith.constant 0 : index
    %106 = vector.load %arg2[%c776, %c0_83] : memref<5064x128xbf16, #tpu.memory_space<vmem>>, vector<64x128xbf16>
    %cst_84 = arith.constant dense<0.000000e+00> : vector<32x128xf32>
    %107 = tpu.matmul %105, %106, %cst_84 {dimension_numbers = #tpu.dot_dimension_numbers<[1], [0], [0], [1], [0, 0, 1, 1], [], []>} : vector<32x64xbf16>, vector<64x128xbf16>, vector<32x128xf32> -> vector<32x128xf32>
    %108 = arith.addf %103, %107 : vector<32x128xf32>
    %c0_85 = arith.constant 0 : index
    %c3_86 = arith.constant 3 : index
    %c0_87 = arith.constant 0 : index
    %109 = vector.load %arg5[%c0_85, %c3_86, %c0_87] : memref<2x22x128xbf16, #tpu.memory_space<vmem>>, vector<2x16x64xbf16>
    %110 = vector.shape_cast %109 : vector<2x16x64xbf16> to vector<32x64xbf16>
    %c840 = arith.constant 840 : index
    %c0_88 = arith.constant 0 : index
    %111 = vector.load %arg2[%c840, %c0_88] : memref<5064x128xbf16, #tpu.memory_space<vmem>>, vector<64x128xbf16>
    %cst_89 = arith.constant dense<0.000000e+00> : vector<32x128xf32>
    %112 = tpu.matmul %110, %111, %cst_89 {dimension_numbers = #tpu.dot_dimension_numbers<[1], [0], [0], [1], [0, 0, 1, 1], [], []>} : vector<32x64xbf16>, vector<64x128xbf16>, vector<32x128xf32> -> vector<32x128xf32>
    %113 = arith.addf %108, %112 : vector<32x128xf32>
    %c0_90 = arith.constant 0 : index
    %c4_91 = arith.constant 4 : index
    %c0_92 = arith.constant 0 : index
    %114 = vector.load %arg5[%c0_90, %c4_91, %c0_92] : memref<2x22x128xbf16, #tpu.memory_space<vmem>>, vector<2x16x64xbf16>
    %115 = vector.shape_cast %114 : vector<2x16x64xbf16> to vector<32x64xbf16>
    %c904 = arith.constant 904 : index
    %c0_93 = arith.constant 0 : index
    %116 = vector.load %arg2[%c904, %c0_93] : memref<5064x128xbf16, #tpu.memory_space<vmem>>, vector<64x128xbf16>
    %cst_94 = arith.constant dense<0.000000e+00> : vector<32x128xf32>
    %117 = tpu.matmul %115, %116, %cst_94 {dimension_numbers = #tpu.dot_dimension_numbers<[1], [0], [0], [1], [0, 0, 1, 1], [], []>} : vector<32x64xbf16>, vector<64x128xbf16>, vector<32x128xf32> -> vector<32x128xf32>
    %118 = arith.addf %113, %117 : vector<32x128xf32>
    %119 = vector.shape_cast %118 : vector<32x128xf32> to vector<2x16x128xf32>
    %120 = arith.addf %119, %13 : vector<2x16x128xf32>
    %cst_95 = arith.constant 0.000000e+00 : f32
    %121 = vector.broadcast %cst_95 : f32 to vector<2x16x128xf32>
    %122 = arith.maximumf %120, %121 : vector<2x16x128xf32>
    %123 = vector.extract_strided_slice %122 {offsets = [0, 0, 0], sizes = [2, 16, 64], strides = [1, 1, 1]} : vector<2x16x128xf32> to vector<2x16x64xf32>
    %124 = arith.truncf %123 : vector<2x16x64xf32> to vector<2x16x64xbf16>
    %125 = vector.shape_cast %124 : vector<2x16x64xbf16> to vector<32x64xbf16>
    %c2440 = arith.constant 2440 : index
    %c0_96 = arith.constant 0 : index
    %126 = vector.load %arg2[%c2440, %c0_96] : memref<5064x128xbf16, #tpu.memory_space<vmem>>, vector<64x128xbf16>
    %cst_97 = arith.constant dense<0.000000e+00> : vector<32x128xf32>
    %127 = tpu.matmul %125, %126, %cst_97 {dimension_numbers = #tpu.dot_dimension_numbers<[1], [0], [0], [1], [0, 0, 1, 1], [], []>} : vector<32x64xbf16>, vector<64x128xbf16>, vector<32x128xf32> -> vector<32x128xf32>
    %128 = vector.extract_strided_slice %0 {offsets = [7, 0], sizes = [1, 128], strides = [1, 1]} : vector<15x128xf32> to vector<1x128xf32>
    %129 = vector.shape_cast %128 : vector<1x128xf32> to vector<128xf32>
    %130 = vector.shape_cast %129 : vector<128xf32> to vector<1x128xf32>
    %131 = vector.broadcast %130 : vector<1x128xf32> to vector<32x128xf32>
    %132 = arith.addf %127, %131 : vector<32x128xf32>
    %133 = vector.shape_cast %132 : vector<32x128xf32> to vector<2x16x128xf32>
    %134 = arith.truncf %122 : vector<2x16x128xf32> to vector<2x16x128xbf16>
    %c0_98 = arith.constant 0 : index
    %c3_99 = arith.constant 3 : index
    %c0_100 = arith.constant 0 : index
    %135 = vector.load %arg5[%c0_98, %c3_99, %c0_100] : memref<2x22x128xbf16, #tpu.memory_space<vmem>>, vector<2x16x128xbf16>
    tpu.vector_store %arg5[%c0_98, %c3_99, %c0_100], %134 {strides = array<i32>} : memref<2x22x128xbf16, #tpu.memory_space<vmem>>, vector<2x16x128xbf16>,
    %cst_101 = arith.constant 0.000000e+00 : f32
    %136 = vector.broadcast %cst_101 : f32 to vector<32x128xf32>
    %137 = vector.extract_strided_slice %0 {offsets = [4, 0], sizes = [1, 128], strides = [1, 1]} : vector<15x128xf32> to vector<1x128xf32>
    %138 = vector.shape_cast %137 : vector<1x128xf32> to vector<128xf32>
    %139 = vector.shape_cast %138 : vector<128xf32> to vector<1x128xf32>
    %140 = vector.broadcast %139 : vector<1x128xf32> to vector<32x128xf32>
    %141 = arith.addf %136, %140 : vector<32x128xf32>
    %c0_102 = arith.constant 0 : index
    %c0_103 = arith.constant 0 : index
    %c0_104 = arith.constant 0 : index
    %142 = vector.load %arg5[%c0_102, %c0_103, %c0_104] : memref<2x22x128xbf16, #tpu.memory_space<vmem>>, vector<2x16x64xbf16>
    %143 = vector.shape_cast %142 : vector<2x16x64xbf16> to vector<32x64xbf16>
    %c968 = arith.constant 968 : index
    %c0_105 = arith.constant 0 : index
    %144 = vector.load %arg2[%c968, %c0_105] : memref<5064x128xbf16, #tpu.memory_space<vmem>>, vector<64x128xbf16>
    %cst_106 = arith.constant dense<0.000000e+00> : vector<32x128xf32>
    %145 = tpu.matmul %143, %144, %cst_106 {dimension_numbers = #tpu.dot_dimension_numbers<[1], [0], [0], [1], [0, 0, 1, 1], [], []>} : vector<32x64xbf16>, vector<64x128xbf16>, vector<32x128xf32> -> vector<32x128xf32>
    %146 = arith.addf %141, %145 : vector<32x128xf32>
    %c0_107 = arith.constant 0 : index
    %c1_108 = arith.constant 1 : index
    %c0_109 = arith.constant 0 : index
    %147 = vector.load %arg5[%c0_107, %c1_108, %c0_109] : memref<2x22x128xbf16, #tpu.memory_space<vmem>>, vector<2x16x64xbf16>
    %148 = vector.shape_cast %147 : vector<2x16x64xbf16> to vector<32x64xbf16>
    %c1032 = arith.constant 1032 : index
    %c0_110 = arith.constant 0 : index
    %149 = vector.load %arg2[%c1032, %c0_110] : memref<5064x128xbf16, #tpu.memory_space<vmem>>, vector<64x128xbf16>
    %cst_111 = arith.constant dense<0.000000e+00> : vector<32x128xf32>
    %150 = tpu.matmul %148, %149, %cst_111 {dimension_numbers = #tpu.dot_dimension_numbers<[1], [0], [0], [1], [0, 0, 1, 1], [], []>} : vector<32x64xbf16>, vector<64x128xbf16>, vector<32x128xf32> -> vector<32x128xf32>
    %151 = arith.addf %146, %150 : vector<32x128xf32>
    %c0_112 = arith.constant 0 : index
    %c2_113 = arith.constant 2 : index
    %c0_114 = arith.constant 0 : index
    %152 = vector.load %arg5[%c0_112, %c2_113, %c0_114] : memref<2x22x128xbf16, #tpu.memory_space<vmem>>, vector<2x16x64xbf16>
    %153 = vector.shape_cast %152 : vector<2x16x64xbf16> to vector<32x64xbf16>
    %c1096 = arith.constant 1096 : index
    %c0_115 = arith.constant 0 : index
    %154 = vector.load %arg2[%c1096, %c0_115] : memref<5064x128xbf16, #tpu.memory_space<vmem>>, vector<64x128xbf16>
    %cst_116 = arith.constant dense<0.000000e+00> : vector<32x128xf32>
    %155 = tpu.matmul %153, %154, %cst_116 {dimension_numbers = #tpu.dot_dimension_numbers<[1], [0], [0], [1], [0, 0, 1, 1], [], []>} : vector<32x64xbf16>, vector<64x128xbf16>, vector<32x128xf32> -> vector<32x128xf32>
    %156 = arith.addf %151, %155 : vector<32x128xf32>
    %c0_117 = arith.constant 0 : index
    %c3_118 = arith.constant 3 : index
    %c0_119 = arith.constant 0 : index
    %157 = vector.load %arg5[%c0_117, %c3_118, %c0_119] : memref<2x22x128xbf16, #tpu.memory_space<vmem>>, vector<2x16x64xbf16>
    %158 = vector.shape_cast %157 : vector<2x16x64xbf16> to vector<32x64xbf16>
    %c1160 = arith.constant 1160 : index
    %c0_120 = arith.constant 0 : index
    %159 = vector.load %arg2[%c1160, %c0_120] : memref<5064x128xbf16, #tpu.memory_space<vmem>>, vector<64x128xbf16>
    %cst_121 = arith.constant dense<0.000000e+00> : vector<32x128xf32>
    %160 = tpu.matmul %158, %159, %cst_121 {dimension_numbers = #tpu.dot_dimension_numbers<[1], [0], [0], [1], [0, 0, 1, 1], [], []>} : vector<32x64xbf16>, vector<64x128xbf16>, vector<32x128xf32> -> vector<32x128xf32>
    %161 = arith.addf %156, %160 : vector<32x128xf32>
    %c0_122 = arith.constant 0 : index
    %c4_123 = arith.constant 4 : index
    %c0_124 = arith.constant 0 : index
    %162 = vector.load %arg5[%c0_122, %c4_123, %c0_124] : memref<2x22x128xbf16, #tpu.memory_space<vmem>>, vector<2x16x64xbf16>
    %163 = vector.shape_cast %162 : vector<2x16x64xbf16> to vector<32x64xbf16>
    %c1224 = arith.constant 1224 : index
    %c0_125 = arith.constant 0 : index
    %164 = vector.load %arg2[%c1224, %c0_125] : memref<5064x128xbf16, #tpu.memory_space<vmem>>, vector<64x128xbf16>
    %cst_126 = arith.constant dense<0.000000e+00> : vector<32x128xf32>
    %165 = tpu.matmul %163, %164, %cst_126 {dimension_numbers = #tpu.dot_dimension_numbers<[1], [0], [0], [1], [0, 0, 1, 1], [], []>} : vector<32x64xbf16>, vector<64x128xbf16>, vector<32x128xf32> -> vector<32x128xf32>
    %166 = arith.addf %161, %165 : vector<32x128xf32>
    %c0_127 = arith.constant 0 : index
    %c5_128 = arith.constant 5 : index
    %c0_129 = arith.constant 0 : index
    %167 = vector.load %arg5[%c0_127, %c5_128, %c0_129] : memref<2x22x128xbf16, #tpu.memory_space<vmem>>, vector<2x16x64xbf16>
    %168 = vector.shape_cast %167 : vector<2x16x64xbf16> to vector<32x64xbf16>
    %c1288 = arith.constant 1288 : index
    %c0_130 = arith.constant 0 : index
    %169 = vector.load %arg2[%c1288, %c0_130] : memref<5064x128xbf16, #tpu.memory_space<vmem>>, vector<64x128xbf16>
    %cst_131 = arith.constant dense<0.000000e+00> : vector<32x128xf32>
    %170 = tpu.matmul %168, %169, %cst_131 {dimension_numbers = #tpu.dot_dimension_numbers<[1], [0], [0], [1], [0, 0, 1, 1], [], []>} : vector<32x64xbf16>, vector<64x128xbf16>, vector<32x128xf32> -> vector<32x128xf32>
    %171 = arith.addf %166, %170 : vector<32x128xf32>
    %c0_132 = arith.constant 0 : index
    %c6_133 = arith.constant 6 : index
    %c0_134 = arith.constant 0 : index
    %172 = vector.load %arg5[%c0_132, %c6_133, %c0_134] : memref<2x22x128xbf16, #tpu.memory_space<vmem>>, vector<2x16x64xbf16>
    %173 = vector.shape_cast %172 : vector<2x16x64xbf16> to vector<32x64xbf16>
    %c1352 = arith.constant 1352 : index
    %c0_135 = arith.constant 0 : index
    %174 = vector.load %arg2[%c1352, %c0_135] : memref<5064x128xbf16, #tpu.memory_space<vmem>>, vector<64x128xbf16>
    %cst_136 = arith.constant dense<0.000000e+00> : vector<32x128xf32>
    %175 = tpu.matmul %173, %174, %cst_136 {dimension_numbers = #tpu.dot_dimension_numbers<[1], [0], [0], [1], [0, 0, 1, 1], [], []>} : vector<32x64xbf16>, vector<64x128xbf16>, vector<32x128xf32> -> vector<32x128xf32>
    %176 = arith.addf %171, %175 : vector<32x128xf32>
    %177 = vector.shape_cast %176 : vector<32x128xf32> to vector<2x16x128xf32>
    %cst_137 = arith.constant 0.000000e+00 : f32
    %178 = vector.broadcast %cst_137 : f32 to vector<2x16x128xf32>
    %179 = arith.maximumf %177, %178 : vector<2x16x128xf32>
    %180 = arith.truncf %179 : vector<2x16x128xf32> to vector<2x16x128xbf16>
    %c0_138 = arith.constant 0 : index
    %c3_139 = arith.constant 3 : index
    %c0_140 = arith.constant 0 : index
    %181 = vector.load %arg5[%c0_138, %c3_139, %c0_140] : memref<2x22x128xbf16, #tpu.memory_space<vmem>>, vector<2x16x128xbf16>
    tpu.vector_store %arg5[%c0_138, %c3_139, %c0_140], %180 {strides = array<i32>} : memref<2x22x128xbf16, #tpu.memory_space<vmem>>, vector<2x16x128xbf16>,
    %cst_141 = arith.constant 0.000000e+00 : f32
    %182 = vector.broadcast %cst_141 : f32 to vector<32x128xf32>
    %183 = vector.extract_strided_slice %0 {offsets = [5, 0], sizes = [1, 128], strides = [1, 1]} : vector<15x128xf32> to vector<1x128xf32>
    %184 = vector.shape_cast %183 : vector<1x128xf32> to vector<128xf32>
    %185 = vector.shape_cast %184 : vector<128xf32> to vector<1x128xf32>
    %186 = vector.broadcast %185 : vector<1x128xf32> to vector<32x128xf32>
    %187 = arith.addf %182, %186 : vector<32x128xf32>
    %c0_142 = arith.constant 0 : index
    %c1_143 = arith.constant 1 : index
    %c0_144 = arith.constant 0 : index
    %188 = vector.load %arg5[%c0_142, %c1_143, %c0_144] : memref<2x22x128xbf16, #tpu.memory_space<vmem>>, vector<2x16x128xbf16>
    %189 = vector.shape_cast %188 : vector<2x16x128xbf16> to vector<32x128xbf16>
    %c1416 = arith.constant 1416 : index
    %c0_145 = arith.constant 0 : index
    %190 = vector.load %arg2[%c1416, %c0_145] : memref<5064x128xbf16, #tpu.memory_space<vmem>>, vector<128x128xbf16>
    %cst_146 = arith.constant dense<0.000000e+00> : vector<32x128xf32>
    %191 = tpu.matmul %189, %190, %cst_146 {dimension_numbers = #tpu.dot_dimension_numbers<[1], [0], [0], [1], [0, 0, 1, 1], [], []>} : vector<32x128xbf16>, vector<128x128xbf16>, vector<32x128xf32> -> vector<32x128xf32>
    %192 = arith.addf %187, %191 : vector<32x128xf32>
    %c0_147 = arith.constant 0 : index
    %c2_148 = arith.constant 2 : index
    %c0_149 = arith.constant 0 : index
    %193 = vector.load %arg5[%c0_147, %c2_148, %c0_149] : memref<2x22x128xbf16, #tpu.memory_space<vmem>>, vector<2x16x128xbf16>
    %194 = vector.shape_cast %193 : vector<2x16x128xbf16> to vector<32x128xbf16>
    %c1544 = arith.constant 1544 : index
    %c0_150 = arith.constant 0 : index
    %195 = vector.load %arg2[%c1544, %c0_150] : memref<5064x128xbf16, #tpu.memory_space<vmem>>, vector<128x128xbf16>
    %cst_151 = arith.constant dense<0.000000e+00> : vector<32x128xf32>
    %196 = tpu.matmul %194, %195, %cst_151 {dimension_numbers = #tpu.dot_dimension_numbers<[1], [0], [0], [1], [0, 0, 1, 1], [], []>} : vector<32x128xbf16>, vector<128x128xbf16>, vector<32x128xf32> -> vector<32x128xf32>
    %197 = arith.addf %192, %196 : vector<32x128xf32>
    %c0_152 = arith.constant 0 : index
    %c3_153 = arith.constant 3 : index
    %c0_154 = arith.constant 0 : index
    %198 = vector.load %arg5[%c0_152, %c3_153, %c0_154] : memref<2x22x128xbf16, #tpu.memory_space<vmem>>, vector<2x16x128xbf16>
    %199 = vector.shape_cast %198 : vector<2x16x128xbf16> to vector<32x128xbf16>
    %c1672 = arith.constant 1672 : index
    %c0_155 = arith.constant 0 : index
    %200 = vector.load %arg2[%c1672, %c0_155] : memref<5064x128xbf16, #tpu.memory_space<vmem>>, vector<128x128xbf16>
    %cst_156 = arith.constant dense<0.000000e+00> : vector<32x128xf32>
    %201 = tpu.matmul %199, %200, %cst_156 {dimension_numbers = #tpu.dot_dimension_numbers<[1], [0], [0], [1], [0, 0, 1, 1], [], []>} : vector<32x128xbf16>, vector<128x128xbf16>, vector<32x128xf32> -> vector<32x128xf32>
    %202 = arith.addf %197, %201 : vector<32x128xf32>
    %c0_157 = arith.constant 0 : index
    %c4_158 = arith.constant 4 : index
    %c0_159 = arith.constant 0 : index
    %203 = vector.load %arg5[%c0_157, %c4_158, %c0_159] : memref<2x22x128xbf16, #tpu.memory_space<vmem>>, vector<2x16x128xbf16>
    %204 = vector.shape_cast %203 : vector<2x16x128xbf16> to vector<32x128xbf16>
    %c1800 = arith.constant 1800 : index
    %c0_160 = arith.constant 0 : index
    %205 = vector.load %arg2[%c1800, %c0_160] : memref<5064x128xbf16, #tpu.memory_space<vmem>>, vector<128x128xbf16>
    %cst_161 = arith.constant dense<0.000000e+00> : vector<32x128xf32>
    %206 = tpu.matmul %204, %205, %cst_161 {dimension_numbers = #tpu.dot_dimension_numbers<[1], [0], [0], [1], [0, 0, 1, 1], [], []>} : vector<32x128xbf16>, vector<128x128xbf16>, vector<32x128xf32> -> vector<32x128xf32>
    %207 = arith.addf %202, %206 : vector<32x128xf32>
    %c0_162 = arith.constant 0 : index
    %c5_163 = arith.constant 5 : index
    %c0_164 = arith.constant 0 : index
    %208 = vector.load %arg5[%c0_162, %c5_163, %c0_164] : memref<2x22x128xbf16, #tpu.memory_space<vmem>>, vector<2x16x128xbf16>
    %209 = vector.shape_cast %208 : vector<2x16x128xbf16> to vector<32x128xbf16>
    %c1928 = arith.constant 1928 : index
    %c0_165 = arith.constant 0 : index
    %210 = vector.load %arg2[%c1928, %c0_165] : memref<5064x128xbf16, #tpu.memory_space<vmem>>, vector<128x128xbf16>
    %cst_166 = arith.constant dense<0.000000e+00> : vector<32x128xf32>
    %211 = tpu.matmul %209, %210, %cst_166 {dimension_numbers = #tpu.dot_dimension_numbers<[1], [0], [0], [1], [0, 0, 1, 1], [], []>} : vector<32x128xbf16>, vector<128x128xbf16>, vector<32x128xf32> -> vector<32x128xf32>
    %212 = arith.addf %207, %211 : vector<32x128xf32>
    %213 = vector.shape_cast %212 : vector<32x128xf32> to vector<2x16x128xf32>
    %cst_167 = arith.constant 0.000000e+00 : f32
    %214 = vector.broadcast %cst_167 : f32 to vector<2x16x128xf32>
    %215 = arith.maximumf %213, %214 : vector<2x16x128xf32>
    %216 = arith.truncf %215 : vector<2x16x128xf32> to vector<2x16x128xbf16>
    %c0_168 = arith.constant 0 : index
    %c3_169 = arith.constant 3 : index
    %c0_170 = arith.constant 0 : index
    %217 = vector.load %arg5[%c0_168, %c3_169, %c0_170] : memref<2x22x128xbf16, #tpu.memory_space<vmem>>, vector<2x16x128xbf16>
    tpu.vector_store %arg5[%c0_168, %c3_169, %c0_170], %216 {strides = array<i32>} : memref<2x22x128xbf16, #tpu.memory_space<vmem>>, vector<2x16x128xbf16>,
    %cst_171 = arith.constant 0.000000e+00 : f32
    %218 = vector.broadcast %cst_171 : f32 to vector<32x128xf32>
    %219 = vector.extract_strided_slice %0 {offsets = [6, 0], sizes = [1, 128], strides = [1, 1]} : vector<15x128xf32> to vector<1x128xf32>
    %220 = vector.shape_cast %219 : vector<1x128xf32> to vector<128xf32>
    %221 = vector.shape_cast %220 : vector<128xf32> to vector<1x128xf32>
    %222 = vector.broadcast %221 : vector<1x128xf32> to vector<32x128xf32>
    %223 = arith.addf %218, %222 : vector<32x128xf32>
    %c0_172 = arith.constant 0 : index
    %c2_173 = arith.constant 2 : index
    %c0_174 = arith.constant 0 : index
    %224 = vector.load %arg5[%c0_172, %c2_173, %c0_174] : memref<2x22x128xbf16, #tpu.memory_space<vmem>>, vector<2x16x128xbf16>
    %225 = vector.shape_cast %224 : vector<2x16x128xbf16> to vector<32x128xbf16>
    %c2056 = arith.constant 2056 : index
    %c0_175 = arith.constant 0 : index
    %226 = vector.load %arg2[%c2056, %c0_175] : memref<5064x128xbf16, #tpu.memory_space<vmem>>, vector<128x128xbf16>
    %cst_176 = arith.constant dense<0.000000e+00> : vector<32x128xf32>
    %227 = tpu.matmul %225, %226, %cst_176 {dimension_numbers = #tpu.dot_dimension_numbers<[1], [0], [0], [1], [0, 0, 1, 1], [], []>} : vector<32x128xbf16>, vector<128x128xbf16>, vector<32x128xf32> -> vector<32x128xf32>
    %228 = arith.addf %223, %227 : vector<32x128xf32>
    %c0_177 = arith.constant 0 : index
    %c3_178 = arith.constant 3 : index
    %c0_179 = arith.constant 0 : index
    %229 = vector.load %arg5[%c0_177, %c3_178, %c0_179] : memref<2x22x128xbf16, #tpu.memory_space<vmem>>, vector<2x16x128xbf16>
    %230 = vector.shape_cast %229 : vector<2x16x128xbf16> to vector<32x128xbf16>
    %c2184 = arith.constant 2184 : index
    %c0_180 = arith.constant 0 : index
    %231 = vector.load %arg2[%c2184, %c0_180] : memref<5064x128xbf16, #tpu.memory_space<vmem>>, vector<128x128xbf16>
    %cst_181 = arith.constant dense<0.000000e+00> : vector<32x128xf32>
    %232 = tpu.matmul %230, %231, %cst_181 {dimension_numbers = #tpu.dot_dimension_numbers<[1], [0], [0], [1], [0, 0, 1, 1], [], []>} : vector<32x128xbf16>, vector<128x128xbf16>, vector<32x128xf32> -> vector<32x128xf32>
    %233 = arith.addf %228, %232 : vector<32x128xf32>
    %c0_182 = arith.constant 0 : index
    %c4_183 = arith.constant 4 : index
    %c0_184 = arith.constant 0 : index
    %234 = vector.load %arg5[%c0_182, %c4_183, %c0_184] : memref<2x22x128xbf16, #tpu.memory_space<vmem>>, vector<2x16x128xbf16>
    %235 = vector.shape_cast %234 : vector<2x16x128xbf16> to vector<32x128xbf16>
    %c2312 = arith.constant 2312 : index
    %c0_185 = arith.constant 0 : index
    %236 = vector.load %arg2[%c2312, %c0_185] : memref<5064x128xbf16, #tpu.memory_space<vmem>>, vector<128x128xbf16>
    %cst_186 = arith.constant dense<0.000000e+00> : vector<32x128xf32>
    %237 = tpu.matmul %235, %236, %cst_186 {dimension_numbers = #tpu.dot_dimension_numbers<[1], [0], [0], [1], [0, 0, 1, 1], [], []>} : vector<32x128xbf16>, vector<128x128xbf16>, vector<32x128xf32> -> vector<32x128xf32>
    %238 = arith.addf %233, %237 : vector<32x128xf32>
    %239 = vector.shape_cast %238 : vector<32x128xf32> to vector<2x16x128xf32>
    %240 = arith.addf %239, %133 : vector<2x16x128xf32>
    %cst_187 = arith.constant 0.000000e+00 : f32
    %241 = vector.broadcast %cst_187 : f32 to vector<2x16x128xf32>
    %242 = arith.maximumf %240, %241 : vector<2x16x128xf32>
    %243 = arith.truncf %242 : vector<2x16x128xf32> to vector<2x16x128xbf16>
    %c0_188 = arith.constant 0 : index
    %c3_189 = arith.constant 3 : index
    %c0_190 = arith.constant 0 : index
    %244 = vector.load %arg5[%c0_188, %c3_189, %c0_190] : memref<2x22x128xbf16, #tpu.memory_space<vmem>>, vector<2x16x128xbf16>
    tpu.vector_store %arg5[%c0_188, %c3_189, %c0_190], %243 {strides = array<i32>} : memref<2x22x128xbf16, #tpu.memory_space<vmem>>, vector<2x16x128xbf16>,
    %cst_191 = arith.constant 0.000000e+00 : f32
    %245 = vector.broadcast %cst_191 : f32 to vector<32x128xf32>
    %246 = vector.extract_strided_slice %0 {offsets = [8, 0], sizes = [1, 128], strides = [1, 1]} : vector<15x128xf32> to vector<1x128xf32>
    %247 = vector.shape_cast %246 : vector<1x128xf32> to vector<128xf32>
    %248 = vector.shape_cast %247 : vector<128xf32> to vector<1x128xf32>
    %249 = vector.broadcast %248 : vector<1x128xf32> to vector<32x128xf32>
    %250 = arith.addf %245, %249 : vector<32x128xf32>
    %c0_192 = arith.constant 0 : index
    %c0_193 = arith.constant 0 : index
    %c0_194 = arith.constant 0 : index
    %251 = vector.load %arg5[%c0_192, %c0_193, %c0_194] : memref<2x22x128xbf16, #tpu.memory_space<vmem>>, vector<2x16x128xbf16>
    %252 = vector.shape_cast %251 : vector<2x16x128xbf16> to vector<32x128xbf16>
    %c2504 = arith.constant 2504 : index
    %c0_195 = arith.constant 0 : index
    %253 = vector.load %arg2[%c2504, %c0_195] : memref<5064x128xbf16, #tpu.memory_space<vmem>>, vector<128x128xbf16>
    %cst_196 = arith.constant dense<0.000000e+00> : vector<32x128xf32>
    %254 = tpu.matmul %252, %253, %cst_196 {dimension_numbers = #tpu.dot_dimension_numbers<[1], [0], [0], [1], [0, 0, 1, 1], [], []>} : vector<32x128xbf16>, vector<128x128xbf16>, vector<32x128xf32> -> vector<32x128xf32>
    %255 = arith.addf %250, %254 : vector<32x128xf32>
    %c0_197 = arith.constant 0 : index
    %c1_198 = arith.constant 1 : index
    %c0_199 = arith.constant 0 : index
    %256 = vector.load %arg5[%c0_197, %c1_198, %c0_199] : memref<2x22x128xbf16, #tpu.memory_space<vmem>>, vector<2x16x128xbf16>
    %257 = vector.shape_cast %256 : vector<2x16x128xbf16> to vector<32x128xbf16>
    %c2632 = arith.constant 2632 : index
    %c0_200 = arith.constant 0 : index
    %258 = vector.load %arg2[%c2632, %c0_200] : memref<5064x128xbf16, #tpu.memory_space<vmem>>, vector<128x128xbf16>
    %cst_201 = arith.constant dense<0.000000e+00> : vector<32x128xf32>
    %259 = tpu.matmul %257, %258, %cst_201 {dimension_numbers = #tpu.dot_dimension_numbers<[1], [0], [0], [1], [0, 0, 1, 1], [], []>} : vector<32x128xbf16>, vector<128x128xbf16>, vector<32x128xf32> -> vector<32x128xf32>
    %260 = arith.addf %255, %259 : vector<32x128xf32>
    %c0_202 = arith.constant 0 : index
    %c2_203 = arith.constant 2 : index
    %c0_204 = arith.constant 0 : index
    %261 = vector.load %arg5[%c0_202, %c2_203, %c0_204] : memref<2x22x128xbf16, #tpu.memory_space<vmem>>, vector<2x16x128xbf16>
    %262 = vector.shape_cast %261 : vector<2x16x128xbf16> to vector<32x128xbf16>
    %c2760 = arith.constant 2760 : index
    %c0_205 = arith.constant 0 : index
    %263 = vector.load %arg2[%c2760, %c0_205] : memref<5064x128xbf16, #tpu.memory_space<vmem>>, vector<128x128xbf16>
    %cst_206 = arith.constant dense<0.000000e+00> : vector<32x128xf32>
    %264 = tpu.matmul %262, %263, %cst_206 {dimension_numbers = #tpu.dot_dimension_numbers<[1], [0], [0], [1], [0, 0, 1, 1], [], []>} : vector<32x128xbf16>, vector<128x128xbf16>, vector<32x128xf32> -> vector<32x128xf32>
    %265 = arith.addf %260, %264 : vector<32x128xf32>
    %c0_207 = arith.constant 0 : index
    %c3_208 = arith.constant 3 : index
    %c0_209 = arith.constant 0 : index
    %266 = vector.load %arg5[%c0_207, %c3_208, %c0_209] : memref<2x22x128xbf16, #tpu.memory_space<vmem>>, vector<2x16x128xbf16>
    %267 = vector.shape_cast %266 : vector<2x16x128xbf16> to vector<32x128xbf16>
    %c2888 = arith.constant 2888 : index
    %c0_210 = arith.constant 0 : index
    %268 = vector.load %arg2[%c2888, %c0_210] : memref<5064x128xbf16, #tpu.memory_space<vmem>>, vector<128x128xbf16>
    %cst_211 = arith.constant dense<0.000000e+00> : vector<32x128xf32>
    %269 = tpu.matmul %267, %268, %cst_211 {dimension_numbers = #tpu.dot_dimension_numbers<[1], [0], [0], [1], [0, 0, 1, 1], [], []>} : vector<32x128xbf16>, vector<128x128xbf16>, vector<32x128xf32> -> vector<32x128xf32>
    %270 = arith.addf %265, %269 : vector<32x128xf32>
    %c0_212 = arith.constant 0 : index
    %c4_213 = arith.constant 4 : index
    %c0_214 = arith.constant 0 : index
    %271 = vector.load %arg5[%c0_212, %c4_213, %c0_214] : memref<2x22x128xbf16, #tpu.memory_space<vmem>>, vector<2x16x128xbf16>
    %272 = vector.shape_cast %271 : vector<2x16x128xbf16> to vector<32x128xbf16>
    %c3016 = arith.constant 3016 : index
    %c0_215 = arith.constant 0 : index
    %273 = vector.load %arg2[%c3016, %c0_215] : memref<5064x128xbf16, #tpu.memory_space<vmem>>, vector<128x128xbf16>
    %cst_216 = arith.constant dense<0.000000e+00> : vector<32x128xf32>
    %274 = tpu.matmul %272, %273, %cst_216 {dimension_numbers = #tpu.dot_dimension_numbers<[1], [0], [0], [1], [0, 0, 1, 1], [], []>} : vector<32x128xbf16>, vector<128x128xbf16>, vector<32x128xf32> -> vector<32x128xf32>
    %275 = arith.addf %270, %274 : vector<32x128xf32>
    %c0_217 = arith.constant 0 : index
    %c5_218 = arith.constant 5 : index
    %c0_219 = arith.constant 0 : index
    %276 = vector.load %arg5[%c0_217, %c5_218, %c0_219] : memref<2x22x128xbf16, #tpu.memory_space<vmem>>, vector<2x16x128xbf16>
    %277 = vector.shape_cast %276 : vector<2x16x128xbf16> to vector<32x128xbf16>
    %c3144 = arith.constant 3144 : index
    %c0_220 = arith.constant 0 : index
    %278 = vector.load %arg2[%c3144, %c0_220] : memref<5064x128xbf16, #tpu.memory_space<vmem>>, vector<128x128xbf16>
    %cst_221 = arith.constant dense<0.000000e+00> : vector<32x128xf32>
    %279 = tpu.matmul %277, %278, %cst_221 {dimension_numbers = #tpu.dot_dimension_numbers<[1], [0], [0], [1], [0, 0, 1, 1], [], []>} : vector<32x128xbf16>, vector<128x128xbf16>, vector<32x128xf32> -> vector<32x128xf32>
    %280 = arith.addf %275, %279 : vector<32x128xf32>
    %c0_222 = arith.constant 0 : index
    %c6_223 = arith.constant 6 : index
    %c0_224 = arith.constant 0 : index
    %281 = vector.load %arg5[%c0_222, %c6_223, %c0_224] : memref<2x22x128xbf16, #tpu.memory_space<vmem>>, vector<2x16x128xbf16>
    %282 = vector.shape_cast %281 : vector<2x16x128xbf16> to vector<32x128xbf16>
    %c3272 = arith.constant 3272 : index
    %c0_225 = arith.constant 0 : index
    %283 = vector.load %arg2[%c3272, %c0_225] : memref<5064x128xbf16, #tpu.memory_space<vmem>>, vector<128x128xbf16>
    %cst_226 = arith.constant dense<0.000000e+00> : vector<32x128xf32>
    %284 = tpu.matmul %282, %283, %cst_226 {dimension_numbers = #tpu.dot_dimension_numbers<[1], [0], [0], [1], [0, 0, 1, 1], [], []>} : vector<32x128xbf16>, vector<128x128xbf16>, vector<32x128xf32> -> vector<32x128xf32>
    %285 = arith.addf %280, %284 : vector<32x128xf32>
    %286 = vector.shape_cast %285 : vector<32x128xf32> to vector<2x16x128xf32>
    %cst_227 = arith.constant 0.000000e+00 : f32
    %287 = vector.broadcast %cst_227 : f32 to vector<2x16x128xf32>
    %288 = arith.maximumf %286, %287 : vector<2x16x128xf32>
    %289 = arith.truncf %288 : vector<2x16x128xf32> to vector<2x16x128xbf16>
    %c0_228 = arith.constant 0 : index
    %c3_229 = arith.constant 3 : index
    %c0_230 = arith.constant 0 : index
    %290 = vector.load %arg5[%c0_228, %c3_229, %c0_230] : memref<2x22x128xbf16, #tpu.memory_space<vmem>>, vector<2x16x128xbf16>
    tpu.vector_store %arg5[%c0_228, %c3_229, %c0_230], %289 {strides = array<i32>} : memref<2x22x128xbf16, #tpu.memory_space<vmem>>, vector<2x16x128xbf16>,
    %cst_231 = arith.constant 0.000000e+00 : f32
    %291 = vector.broadcast %cst_231 : f32 to vector<32x128xf32>
    %292 = vector.extract_strided_slice %0 {offsets = [9, 0], sizes = [1, 128], strides = [1, 1]} : vector<15x128xf32> to vector<1x128xf32>
    %293 = vector.shape_cast %292 : vector<1x128xf32> to vector<128xf32>
    %294 = vector.shape_cast %293 : vector<128xf32> to vector<1x128xf32>
    %295 = vector.broadcast %294 : vector<1x128xf32> to vector<32x128xf32>
    %296 = arith.addf %291, %295 : vector<32x128xf32>
    %c0_232 = arith.constant 0 : index
    %c1_233 = arith.constant 1 : index
    %c0_234 = arith.constant 0 : index
    %297 = vector.load %arg5[%c0_232, %c1_233, %c0_234] : memref<2x22x128xbf16, #tpu.memory_space<vmem>>, vector<2x16x128xbf16>
    %298 = vector.shape_cast %297 : vector<2x16x128xbf16> to vector<32x128xbf16>
    %c3400 = arith.constant 3400 : index
    %c0_235 = arith.constant 0 : index
    %299 = vector.load %arg2[%c3400, %c0_235] : memref<5064x128xbf16, #tpu.memory_space<vmem>>, vector<128x128xbf16>
    %cst_236 = arith.constant dense<0.000000e+00> : vector<32x128xf32>
    %300 = tpu.matmul %298, %299, %cst_236 {dimension_numbers = #tpu.dot_dimension_numbers<[1], [0], [0], [1], [0, 0, 1, 1], [], []>} : vector<32x128xbf16>, vector<128x128xbf16>, vector<32x128xf32> -> vector<32x128xf32>
    %301 = arith.addf %296, %300 : vector<32x128xf32>
    %c0_237 = arith.constant 0 : index
    %c2_238 = arith.constant 2 : index
    %c0_239 = arith.constant 0 : index
    %302 = vector.load %arg5[%c0_237, %c2_238, %c0_239] : memref<2x22x128xbf16, #tpu.memory_space<vmem>>, vector<2x16x128xbf16>
    %303 = vector.shape_cast %302 : vector<2x16x128xbf16> to vector<32x128xbf16>
    %c3528 = arith.constant 3528 : index
    %c0_240 = arith.constant 0 : index
    %304 = vector.load %arg2[%c3528, %c0_240] : memref<5064x128xbf16, #tpu.memory_space<vmem>>, vector<128x128xbf16>
    %cst_241 = arith.constant dense<0.000000e+00> : vector<32x128xf32>
    %305 = tpu.matmul %303, %304, %cst_241 {dimension_numbers = #tpu.dot_dimension_numbers<[1], [0], [0], [1], [0, 0, 1, 1], [], []>} : vector<32x128xbf16>, vector<128x128xbf16>, vector<32x128xf32> -> vector<32x128xf32>
    %306 = arith.addf %301, %305 : vector<32x128xf32>
    %c0_242 = arith.constant 0 : index
    %c3_243 = arith.constant 3 : index
    %c0_244 = arith.constant 0 : index
    %307 = vector.load %arg5[%c0_242, %c3_243, %c0_244] : memref<2x22x128xbf16, #tpu.memory_space<vmem>>, vector<2x16x128xbf16>
    %308 = vector.shape_cast %307 : vector<2x16x128xbf16> to vector<32x128xbf16>
    %c3656 = arith.constant 3656 : index
    %c0_245 = arith.constant 0 : index
    %309 = vector.load %arg2[%c3656, %c0_245] : memref<5064x128xbf16, #tpu.memory_space<vmem>>, vector<128x128xbf16>
    %cst_246 = arith.constant dense<0.000000e+00> : vector<32x128xf32>
    %310 = tpu.matmul %308, %309, %cst_246 {dimension_numbers = #tpu.dot_dimension_numbers<[1], [0], [0], [1], [0, 0, 1, 1], [], []>} : vector<32x128xbf16>, vector<128x128xbf16>, vector<32x128xf32> -> vector<32x128xf32>
    %311 = arith.addf %306, %310 : vector<32x128xf32>
    %c0_247 = arith.constant 0 : index
    %c4_248 = arith.constant 4 : index
    %c0_249 = arith.constant 0 : index
    %312 = vector.load %arg5[%c0_247, %c4_248, %c0_249] : memref<2x22x128xbf16, #tpu.memory_space<vmem>>, vector<2x16x128xbf16>
    %313 = vector.shape_cast %312 : vector<2x16x128xbf16> to vector<32x128xbf16>
    %c3784 = arith.constant 3784 : index
    %c0_250 = arith.constant 0 : index
    %314 = vector.load %arg2[%c3784, %c0_250] : memref<5064x128xbf16, #tpu.memory_space<vmem>>, vector<128x128xbf16>
    %cst_251 = arith.constant dense<0.000000e+00> : vector<32x128xf32>
    %315 = tpu.matmul %313, %314, %cst_251 {dimension_numbers = #tpu.dot_dimension_numbers<[1], [0], [0], [1], [0, 0, 1, 1], [], []>} : vector<32x128xbf16>, vector<128x128xbf16>, vector<32x128xf32> -> vector<32x128xf32>
    %316 = arith.addf %311, %315 : vector<32x128xf32>
    %c0_252 = arith.constant 0 : index
    %c5_253 = arith.constant 5 : index
    %c0_254 = arith.constant 0 : index
    %317 = vector.load %arg5[%c0_252, %c5_253, %c0_254] : memref<2x22x128xbf16, #tpu.memory_space<vmem>>, vector<2x16x128xbf16>
    %318 = vector.shape_cast %317 : vector<2x16x128xbf16> to vector<32x128xbf16>
    %c3912 = arith.constant 3912 : index
    %c0_255 = arith.constant 0 : index
    %319 = vector.load %arg2[%c3912, %c0_255] : memref<5064x128xbf16, #tpu.memory_space<vmem>>, vector<128x128xbf16>
    %cst_256 = arith.constant dense<0.000000e+00> : vector<32x128xf32>
    %320 = tpu.matmul %318, %319, %cst_256 {dimension_numbers = #tpu.dot_dimension_numbers<[1], [0], [0], [1], [0, 0, 1, 1], [], []>} : vector<32x128xbf16>, vector<128x128xbf16>, vector<32x128xf32> -> vector<32x128xf32>
    %321 = arith.addf %316, %320 : vector<32x128xf32>
    %322 = vector.shape_cast %321 : vector<32x128xf32> to vector<2x16x128xf32>
    %cst_257 = arith.constant 0.000000e+00 : f32
    %323 = vector.broadcast %cst_257 : f32 to vector<2x16x128xf32>
    %324 = arith.maximumf %322, %323 : vector<2x16x128xf32>
    %325 = arith.truncf %324 : vector<2x16x128xf32> to vector<2x16x128xbf16>
    %c0_258 = arith.constant 0 : index
    %c3_259 = arith.constant 3 : index
    %c0_260 = arith.constant 0 : index
    %326 = vector.load %arg5[%c0_258, %c3_259, %c0_260] : memref<2x22x128xbf16, #tpu.memory_space<vmem>>, vector<2x16x128xbf16>
    tpu.vector_store %arg5[%c0_258, %c3_259, %c0_260], %325 {strides = array<i32>} : memref<2x22x128xbf16, #tpu.memory_space<vmem>>, vector<2x16x128xbf16>,
    %cst_261 = arith.constant 0.000000e+00 : f32
    %327 = vector.broadcast %cst_261 : f32 to vector<32x128xf32>
    %328 = vector.extract_strided_slice %0 {offsets = [10, 0], sizes = [1, 128], strides = [1, 1]} : vector<15x128xf32> to vector<1x128xf32>
    %329 = vector.shape_cast %328 : vector<1x128xf32> to vector<128xf32>
    %330 = vector.shape_cast %329 : vector<128xf32> to vector<1x128xf32>
    %331 = vector.broadcast %330 : vector<1x128xf32> to vector<32x128xf32>
    %332 = arith.addf %327, %331 : vector<32x128xf32>
    %c0_262 = arith.constant 0 : index
    %c2_263 = arith.constant 2 : index
    %c0_264 = arith.constant 0 : index
    %333 = vector.load %arg5[%c0_262, %c2_263, %c0_264] : memref<2x22x128xbf16, #tpu.memory_space<vmem>>, vector<2x16x128xbf16>
    %334 = vector.shape_cast %333 : vector<2x16x128xbf16> to vector<32x128xbf16>
    %c4040 = arith.constant 4040 : index
    %c0_265 = arith.constant 0 : index
    %335 = vector.load %arg2[%c4040, %c0_265] : memref<5064x128xbf16, #tpu.memory_space<vmem>>, vector<128x128xbf16>
    %cst_266 = arith.constant dense<0.000000e+00> : vector<32x128xf32>
    %336 = tpu.matmul %334, %335, %cst_266 {dimension_numbers = #tpu.dot_dimension_numbers<[1], [0], [0], [1], [0, 0, 1, 1], [], []>} : vector<32x128xbf16>, vector<128x128xbf16>, vector<32x128xf32> -> vector<32x128xf32>
    %337 = arith.addf %332, %336 : vector<32x128xf32>
    %c0_267 = arith.constant 0 : index
    %c3_268 = arith.constant 3 : index
    %c0_269 = arith.constant 0 : index
    %338 = vector.load %arg5[%c0_267, %c3_268, %c0_269] : memref<2x22x128xbf16, #tpu.memory_space<vmem>>, vector<2x16x128xbf16>
    %339 = vector.shape_cast %338 : vector<2x16x128xbf16> to vector<32x128xbf16>
    %c4168 = arith.constant 4168 : index
    %c0_270 = arith.constant 0 : index
    %340 = vector.load %arg2[%c4168, %c0_270] : memref<5064x128xbf16, #tpu.memory_space<vmem>>, vector<128x128xbf16>
    %cst_271 = arith.constant dense<0.000000e+00> : vector<32x128xf32>
    %341 = tpu.matmul %339, %340, %cst_271 {dimension_numbers = #tpu.dot_dimension_numbers<[1], [0], [0], [1], [0, 0, 1, 1], [], []>} : vector<32x128xbf16>, vector<128x128xbf16>, vector<32x128xf32> -> vector<32x128xf32>
    %342 = arith.addf %337, %341 : vector<32x128xf32>
    %c0_272 = arith.constant 0 : index
    %c4_273 = arith.constant 4 : index
    %c0_274 = arith.constant 0 : index
    %343 = vector.load %arg5[%c0_272, %c4_273, %c0_274] : memref<2x22x128xbf16, #tpu.memory_space<vmem>>, vector<2x16x128xbf16>
    %344 = vector.shape_cast %343 : vector<2x16x128xbf16> to vector<32x128xbf16>
    %c4296 = arith.constant 4296 : index
    %c0_275 = arith.constant 0 : index
    %345 = vector.load %arg2[%c4296, %c0_275] : memref<5064x128xbf16, #tpu.memory_space<vmem>>, vector<128x128xbf16>
    %cst_276 = arith.constant dense<0.000000e+00> : vector<32x128xf32>
    %346 = tpu.matmul %344, %345, %cst_276 {dimension_numbers = #tpu.dot_dimension_numbers<[1], [0], [0], [1], [0, 0, 1, 1], [], []>} : vector<32x128xbf16>, vector<128x128xbf16>, vector<32x128xf32> -> vector<32x128xf32>
    %347 = arith.addf %342, %346 : vector<32x128xf32>
    %348 = vector.shape_cast %347 : vector<32x128xf32> to vector<2x16x128xf32>
    %349 = arith.addf %348, %242 : vector<2x16x128xf32>
    %cst_277 = arith.constant 0.000000e+00 : f32
    %350 = vector.broadcast %cst_277 : f32 to vector<2x16x128xf32>
    %351 = arith.maximumf %349, %350 : vector<2x16x128xf32>
    %cst_278 = arith.constant dense<0.000000e+00> : vector<2x128xf32>
    %352 = vector.multi_reduction <add>, %351, %cst_278 [1] : vector<2x16x128xf32> to vector<2x128xf32>
    %cst_279 = arith.constant 1.600000e+01 : f32
    %353 = vector.broadcast %cst_279 : f32 to vector<2x128xf32>
    %354 = arith.divf %352, %353 : vector<2x128xf32>
    %355 = arith.truncf %354 : vector<2x128xf32> to vector<2x128xbf16>
    %c4424 = arith.constant 4424 : index
    %c0_280 = arith.constant 0 : index
    %356 = vector.load %arg2[%c4424, %c0_280] : memref<5064x128xbf16, #tpu.memory_space<vmem>>, vector<128x128xbf16>
    %cst_281 = arith.constant dense<0.000000e+00> : vector<2x128xf32>
    %357 = tpu.matmul %355, %356, %cst_281 {dimension_numbers = #tpu.dot_dimension_numbers<[1], [0], [0], [1], [0, 0, 1, 1], [], []>} : vector<2x128xbf16>, vector<128x128xbf16>, vector<2x128xf32> -> vector<2x128xf32>
    %358 = vector.extract_strided_slice %0 {offsets = [11, 0], sizes = [1, 128], strides = [1, 1]} : vector<15x128xf32> to vector<1x128xf32>
    %359 = vector.shape_cast %358 : vector<1x128xf32> to vector<128xf32>
    %360 = vector.shape_cast %359 : vector<128xf32> to vector<1x128xf32>
    %361 = vector.broadcast %360 : vector<1x128xf32> to vector<2x128xf32>
    %362 = arith.addf %357, %361 : vector<2x128xf32>
    %cst_282 = arith.constant 0.000000e+00 : f32
    %363 = vector.broadcast %cst_282 : f32 to vector<2x128xf32>
    %364 = arith.maximumf %362, %363 : vector<2x128xf32>
    %365 = arith.truncf %364 : vector<2x128xf32> to vector<2x128xbf16>
    %c4552 = arith.constant 4552 : index
    %c0_283 = arith.constant 0 : index
    %366 = vector.load %arg2[%c4552, %c0_283] : memref<5064x128xbf16, #tpu.memory_space<vmem>>, vector<128x128xbf16>
    %cst_284 = arith.constant dense<0.000000e+00> : vector<2x128xf32>
    %367 = tpu.matmul %365, %366, %cst_284 {dimension_numbers = #tpu.dot_dimension_numbers<[1], [0], [0], [1], [0, 0, 1, 1], [], []>} : vector<2x128xbf16>, vector<128x128xbf16>, vector<2x128xf32> -> vector<2x128xf32>
    %368 = vector.extract_strided_slice %0 {offsets = [12, 0], sizes = [1, 128], strides = [1, 1]} : vector<15x128xf32> to vector<1x128xf32>
    %369 = vector.shape_cast %368 : vector<1x128xf32> to vector<128xf32>
    %370 = vector.shape_cast %369 : vector<128xf32> to vector<1x128xf32>
    %371 = vector.broadcast %370 : vector<1x128xf32> to vector<2x128xf32>
    %372 = arith.addf %367, %371 : vector<2x128xf32>
    %cst_285 = arith.constant 0.000000e+00 : f32
    %373 = vector.broadcast %cst_285 : f32 to vector<2x128xf32>
    %374 = arith.maximumf %372, %373 : vector<2x128xf32>
    %375 = arith.truncf %374 : vector<2x128xf32> to vector<2x128xbf16>
    %c4680 = arith.constant 4680 : index
    %c0_286 = arith.constant 0 : index
    %376 = vector.load %arg2[%c4680, %c0_286] : memref<5064x128xbf16, #tpu.memory_space<vmem>>, vector<128x128xbf16>
    %cst_287 = arith.constant dense<0.000000e+00> : vector<2x128xf32>
    %377 = tpu.matmul %365, %376, %cst_287 {dimension_numbers = #tpu.dot_dimension_numbers<[1], [0], [0], [1], [0, 0, 1, 1], [], []>} : vector<2x128xbf16>, vector<128x128xbf16>, vector<2x128xf32> -> vector<2x128xf32>
    %378 = vector.extract_strided_slice %0 {offsets = [13, 0], sizes = [1, 128], strides = [1, 1]} : vector<15x128xf32> to vector<1x128xf32>
    %379 = vector.shape_cast %378 : vector<1x128xf32> to vector<128xf32>
    %380 = vector.shape_cast %379 : vector<128xf32> to vector<1x128xf32>
    %381 = vector.broadcast %380 : vector<1x128xf32> to vector<2x128xf32>
    %382 = arith.addf %377, %381 : vector<2x128xf32>
    %cst_288 = arith.constant 0.000000e+00 : f32
    %383 = vector.broadcast %cst_288 : f32 to vector<2x128xf32>
    %384 = arith.maximumf %382, %383 : vector<2x128xf32>
    %385 = arith.truncf %384 : vector<2x128xf32> to vector<2x128xbf16>
    %c4808 = arith.constant 4808 : index
    %c0_289 = arith.constant 0 : index
    %386 = vector.load %arg2[%c4808, %c0_289] : memref<5064x128xbf16, #tpu.memory_space<vmem>>, vector<128x128xbf16>
    %cst_290 = arith.constant dense<0.000000e+00> : vector<2x128xf32>
    %387 = tpu.matmul %375, %386, %cst_290 {dimension_numbers = #tpu.dot_dimension_numbers<[1], [0], [0], [1], [0, 0, 1, 1], [], []>} : vector<2x128xbf16>, vector<128x128xbf16>, vector<2x128xf32> -> vector<2x128xf32>
    %c4936 = arith.constant 4936 : index
    %c0_291 = arith.constant 0 : index
    %388 = vector.load %arg2[%c4936, %c0_291] : memref<5064x128xbf16, #tpu.memory_space<vmem>>, vector<128x128xbf16>
    %cst_292 = arith.constant dense<0.000000e+00> : vector<2x128xf32>
    %389 = tpu.matmul %385, %388, %cst_292 {dimension_numbers = #tpu.dot_dimension_numbers<[1], [0], [0], [1], [0, 0, 1, 1], [], []>} : vector<2x128xbf16>, vector<128x128xbf16>, vector<2x128xf32> -> vector<2x128xf32>
    %390 = arith.addf %387, %389 : vector<2x128xf32>
    %391 = vector.extract_strided_slice %0 {offsets = [14, 0], sizes = [1, 128], strides = [1, 1]} : vector<15x128xf32> to vector<1x128xf32>
    %392 = vector.shape_cast %391 : vector<1x128xf32> to vector<128xf32>
    %393 = vector.shape_cast %392 : vector<128xf32> to vector<1x128xf32>
    %394 = vector.broadcast %393 : vector<1x128xf32> to vector<2x128xf32>
    %395 = arith.addf %390, %394 : vector<2x128xf32>
    %c0_293 = arith.constant 0 : index
    %c0_294 = arith.constant 0 : index
    %396 = vector.load %arg4[%c0_293, %c0_294] : memref<2x128xf32, #tpu.memory_space<vmem>>, vector<2x128xf32>
    tpu.vector_store %arg4[%c0_293, %c0_294], %395 {strides = array<i32>} : memref<2x128xf32, #tpu.memory_space<vmem>>, vector<2x128xf32>,
    return
  }
  func.func @transform_0(%arg0: i32) -> (i32, i32, i32) {
    %c0_i32 = arith.constant 0 : i32
    %c0_i32_0 = arith.constant 0 : i32
    %c0_i32_1 = arith.constant 0 : i32
    return %arg0, %c0_i32, %c0_i32_0 : i32, i32, i32
  }
  func.func @transform_1(%arg0: i32) -> (i32, i32) {
    %c0_i32 = arith.constant 0 : i32
    %c0_i32_0 = arith.constant 0 : i32
    %c0_i32_1 = arith.constant 0 : i32
    return %c0_i32, %c0_i32_0 : i32, i32
  }
  func.func @transform_2(%arg0: i32) -> (i32, i32) {
    %c0_i32 = arith.constant 0 : i32
    %c0_i32_0 = arith.constant 0 : i32
    %c0_i32_1 = arith.constant 0 : i32
    return %c0_i32, %c0_i32_0 : i32, i32
  }
  func.func @transform_3(%arg0: i32) -> (i32, i32) {
    %c0_i32 = arith.constant 0 : i32
    %c0_i32_0 = arith.constant 0 : i32
    return %arg0, %c0_i32 : i32, i32
  }
}

</mosaic_0001>

<llo_original>
// kernel: resnet1d_forward.1
$region0: #{resnet1d_forward.1}
  #allocation0 [shape = 'u32[]', space=smem, size = 0x4, offset = 0x4, fixed_abs, tag = 'smem constant byte address 0x4 - core index']
  #allocation1 [shape = 'u32[144,128]{1,0:T(1,128)}', space=vmem, size = 0x12000, scoped, tag = 'internal scratch']
  #allocation2 [shape = 'bf16[2,22,128]{2,1,0:T(8,128)(2,1)}', space=vmem, size = 0x3000, scoped, tag = 'scratch operand']
  %s0 = inlined_call_operand.vmem [shape: bf16[2,16,8], index: 0, kind: input, shape index: {}]
  %s1 = inlined_call_operand.vmem [shape: bf16[5064,128], index: 1, kind: input, shape index: {}]
  %s2 = inlined_call_operand.vmem [shape: f32[15,128], index: 2, kind: input, shape index: {}]
  %s3 = inlined_call_operand.hbm [shape: f32[2,128], index: 3, kind: output, shape index: {}]
  %s4 = sld [smem:[#allocation0]]
  $region22: #{resnet1d_forward.1} parent=0
    _
  %s6 = ssub.s32 1, %s4
  %s7 = scalar_select 0, %s6, %s4
  $region1: #{resnet1d_forward.1} parent=0
    #allocation3 [shape = 'u8[1024]{0}', space=vmem, size = 0x400, scoped, tag = 'output window, operand 0, single buffered']
    #allocation4 [shape = 's32[1]{0}', space=sflag, size = 0x4, scoped, tag = 'scoped memory for resnet1d_forward.1']
    %8 = vsyncpa [#allocation4], 0
    // Predicated region
    $region2: #{resnet1d_forward.1} parent=1 // pred_check
      _
    $region3: #{resnet1d_forward.1} parent=1 // pred_check_branch
      %10 = sbr.rel (0) target = $region5
    $region4: #{resnet1d_forward.1} parent=1 // pred_region
      _
    $region5: #{resnet1d_forward.1} parent=1 // pred_fallthru
      _
    // Predicated region
    $region6: #{resnet1d_forward.1} parent=1 // pred_check
      _
    $region7: #{resnet1d_forward.1} parent=1 // pred_check_branch
      %12 = sbr.rel (0) target = $region9
    $region8: #{resnet1d_forward.1} parent=1 // pred_region
      _
    $region9: #{resnet1d_forward.1} parent=1 // pred_fallthru
      _
    // Predicated region
    $region10: #{resnet1d_forward.1} parent=1 // pred_check
      _
    $region11: #{resnet1d_forward.1} parent=1 // pred_check_branch
      %14 = sbr.rel (0) target = $region13
    $region12: #{resnet1d_forward.1} parent=1 // pred_region
      _
    $region13: #{resnet1d_forward.1} parent=1 // pred_fallthru
      _
    %v16 = vld [vmem:[%s2] sm:$0xff]
    %v17 = vld [vmem:[%s2 + $0x8] sm:$0x7f]
    %vm18 = vcmask 1041408
    %vm19 = vsmask.f32 1280
    %vm20 = vmand %vm18, %vm19
    %v21 = vld [vmem:[#allocation2] sm:$0x3]
    %v22 = vsel %vm20, 0, %v21
    %23 = vst [vmem:[#allocation2] sm:$0x3] %v22
    %v24 = vld [vmem:[#allocation2 + $0xc] sm:$0x3]
    %v25 = vsel %vm20, 0, %v24
    %26 = vst [vmem:[#allocation2 + $0xc] sm:$0x3] %v25
    %vm27 = vcmask 1042433
    %vm28 = vsmask.f32 7942
    %vm29 = vmand %vm27, %vm28
    %v30 = vld [vmem:[#allocation2 + $0x8] sm:$0x6]
    %v31 = vsel %vm29, 0, %v30
    %32 = vst [vmem:[#allocation2 + $0x8] sm:$0x6] %v31
    %v33 = vld [vmem:[#allocation2 + $0x14] sm:$0x6]
    %v34 = vsel %vm29, 0, %v33
    %35 = vst [vmem:[#allocation2 + $0x14] sm:$0x6] %v34
    %v36 = vld [vmem:[%s0] sm:$0xf]
    %v37 = vld [vmem:[%s0 + $0x4] sm:$0xf]
    %v38 = vld [vmem:[%s0 + $0x8] sm:$0xf]
    %v39 = vld [vmem:[%s0 + $0xc] sm:$0xf]
    %v40 = vld [vmem:[%s1] sm:$0xf]
    %v41 = vlaneseq
    %v42 = vshrl.u32 %v41, 7
    %v43 = vsub.s32 0, %v42
    %v44 = vrot.slane %v16, %v43
    %v49 = vunpack.c.l.b16 %v36
    %v50 = vunpack.c.l.b16 %v37
    %v51 = vunpack.c.l.b16 %v38
    %v52 = vunpack.c.l.b16 %v39
    %v53 = vpack.c.b16 %v50, %v49
    %v54 = vpack.c.b16 %v52, %v51
    %vm55 = vcmask 64512
    %v57 = vsel %vm55, %v53, 0
    %v60 = vsel %vm55, %v54, 0
    %vm62 = vcmask 1043456
    %v64 = vsel %vm62, %v40, 0
    %66 = vmatprep.subr.bf16.mxu0 0
    %67 = vmatpush1.bf16.msra.mxu0 %v64
    %68 = vmatprep.subr.bf16.mxu0 0
    %69 = vmatpush1.bf16.msra.mxu0 0
    %70 = vmatprep.subr.bf16.mxu0 0
    %71 = vmatpush1.bf16.msra.mxu0 0
    %72 = vmatprep.subr.bf16.mxu0 0
    %73 = vmatpush1.bf16.msra.mxu0 0
    %74 = vmatprep.subr.bf16.mxu0 0
    %75 = vmatpush1.bf16.msra.mxu0 0
    %76 = vmatprep.subr.bf16.mxu0 0
    %77 = vmatpush1.bf16.msra.mxu0 0
    %78 = vmatprep.subr.bf16.mxu0 0
    %79 = vmatpush1.bf16.msra.mxu0 0
    %80 = vmatprep.subr.bf16.mxu0 0
    %81 = vmatpush1.bf16.msra.mxu0 0
    %82 = vmatprep.subr.bf16.mxu0 0
    %83 = vmatpush1.bf16.msra.mxu0 0
    %84 = vmatprep.subr.bf16.mxu0 0
    %85 = vmatpush1.bf16.msra.mxu0 0
    %86 = vmatprep.subr.bf16.mxu0 0
    %87 = vmatpush1.bf16.msra.mxu0 0
    %88 = vmatprep.subr.bf16.mxu0 0
    %89 = vmatpush1.bf16.msra.mxu0 0
    %90 = vmatprep.subr.bf16.mxu0 0
    %91 = vmatpush1.bf16.msra.mxu0 0
    %92 = vmatprep.subr.bf16.mxu0 0
    %93 = vmatpush1.bf16.msra.mxu0 0
    %94 = vmatprep.subr.bf16.mxu0 0
    %95 = vmatpush1.bf16.msra.mxu0 0
    %96 = vmatprep.subr.bf16.mxu0 0
    %97 = vmatpush1.bf16.msra.mxu0 0
    %98 = vmatprep.mubr.bf16.mxu0 0
    %99 = vmatmul.mubr.bf16.gmra.mrb[0].mxu0 %v57
    %v100 = vpop.f32.mrb[0].mxu0
    %v101 = vadd.f32 %v44, %v100
    %v102 = vpop.f32.mrb[0].mxu0
    %v103 = vpop.f32.mrb[0].mxu0
    %v104 = vadd.f32 %v44, %v103
    %v105 = vpop.f32.mrb[0].mxu0
    %106 = vmatprep.mubr.bf16.mxu0 0
    %107 = vmatmul.mubr.bf16.gmra.mrb[0].mxu0 %v60
    %v108 = vpop.f32.mrb[0].mxu0
    %v109 = vadd.f32 %v44, %v108
    %v110 = vpop.f32.mrb[0].mxu0
    %v111 = vpop.f32.mrb[0].mxu0
    %v112 = vadd.f32 %v44, %v111
    %v113 = vpop.f32.mrb[0].mxu0
    %114 = vdwg.mxu0
    %v115 = vpack.c.bf16 %v104, %v101
    %v116 = vpack.c.bf16 %v112, %v109
    %v119 = vunpack.c.l.b16 %v115
    %v120 = vunpack.c.h.b16 %v115
    %v121 = vunpack.c.l.b16 %v116
    %v122 = vunpack.c.h.b16 %v116
    %v123 = vpack.c.b16 %v119, %v119
    %v124 = vpack.c.b16 %v120, %v120
    %v125 = vpack.c.b16 %v121, %v121
    %v126 = vpack.c.b16 %v122, %v122
    %vm127 = vsmask.f32 5392
    %vm128 = vmor %vm19, %vm127
    %v130 = vshrl.u32 %v123, 16
    %v132 = vrot.slane %v130, 6
    %v133 = vshll.u32 %v123, 16
    %v135 = vrot.slane %v133, 7
    %v136 = vor.u32 %v132, %v135
    %v137 = vrot.slane %v136, 4
    %v139 = vshrl.u32 %v124, 16
    %v141 = vrot.slane %v139, 6
    %v142 = vshll.u32 %v124, 16
    %v144 = vrot.slane %v142, 7
    %v145 = vor.u32 %v141, %v144
    %v146 = vsel %vm128, %v137, %v145
    %v147 = vrot.slane %v145, 4
    %v149 = vshrl.u32 %v125, 16
    %v151 = vrot.slane %v149, 6
    %v152 = vshll.u32 %v125, 16
    %v154 = vrot.slane %v152, 7
    %v155 = vor.u32 %v151, %v154
    %v156 = vrot.slane %v155, 4
    %v158 = vshrl.u32 %v126, 16
    %v160 = vrot.slane %v158, 6
    %v161 = vshll.u32 %v126, 16
    %v163 = vrot.slane %v161, 7
    %v164 = vor.u32 %v160, %v163
    %v165 = vsel %vm128, %v156, %v164
    %v166 = vrot.slane %v164, 4
    %vm173 = vcmask 1043457
    %vm174 = vmand %vm173, %vm28
    %v175 = vld [vmem:[#allocation2] sm:$0xe]
    %v176 = vsel %vm174, %v136, %v175
    %177 = vst [vmem:[#allocation2] sm:$0xe] %v176
    %178 = vst [vmem:[#allocation2 + $0x4] sm:$0xf] %v146
    %v179 = vld [vmem:[#allocation2 + $0x8] sm:$0x3]
    %v180 = vsel %vm20, %v147, %v179
    %181 = vst [vmem:[#allocation2 + $0x8] sm:$0x3] %v180
    %v182 = vld [vmem:[#allocation2 + $0xc] sm:$0xe]
    %v183 = vsel %vm174, %v155, %v182
    %184 = vst [vmem:[#allocation2 + $0xc] sm:$0xe] %v183
    %185 = vst [vmem:[#allocation2 + $0x10] sm:$0xf] %v165
    %v186 = vld [vmem:[#allocation2 + $0x14] sm:$0x3]
    %v187 = vsel %vm20, %v166, %v186
    %188 = vst [vmem:[#allocation2 + $0x14] sm:$0x3] %v187
    %v189 = vlaneseq
    %v190 = vshrl.u32 %v189, 7
    %v191 = vsub.s32 1, %v190
    %v192 = vrot.slane %v16, %v191
    %v193 = vadd.f32 %v192, 0.0
    %v194 = vld [vmem:[#allocation2] sm:$0xf]
    %v195 = vld [vmem:[#allocation2 + $0x4] sm:$0xf]
    %v196 = vld [vmem:[#allocation2 + $0xc] sm:$0xf]
    %v197 = vld [vmem:[#allocation2 + $0x10] sm:$0xf]
    %v198 = vld [vmem:[%s1 + $0x4] sm:$0xf]
    %v199 = vld [vmem:[%s1 + $0x8] sm:$0xf]
    %v200 = vld [vmem:[%s1 + $0xc] sm:$0xf]
    %v201 = vld [vmem:[%s1 + $0x10] sm:$0xf]
    %v202 = vld [vmem:[%s1 + $0x14] sm:$0xf]
    %v203 = vld [vmem:[%s1 + $0x18] sm:$0xf]
    %v204 = vld [vmem:[%s1 + $0x1c] sm:$0xf]
    %v205 = vld [vmem:[%s1 + $0x20] sm:$0xf]
    %v210 = vunpack.c.l.b16 %v194
    %v211 = vunpack.c.l.b16 %v195
    %v212 = vunpack.c.l.b16 %v196
    %v213 = vunpack.c.l.b16 %v197
    %v214 = vpack.c.b16 %v211, %v210
    %v215 = vpack.c.b16 %v213, %v212
    %v224 = vunpack.c.l.b16 %v198
    %v225 = vunpack.c.l.b16 %v199
    %v226 = vunpack.c.l.b16 %v200
    %v227 = vunpack.c.l.b16 %v201
    %v228 = vunpack.c.l.b16 %v202
    %v229 = vunpack.c.l.b16 %v203
    %v230 = vunpack.c.l.b16 %v204
    %v231 = vunpack.c.l.b16 %v205
    %v232 = vpack.c.b16 %v225, %v224
    %v233 = vpack.c.b16 %v227, %v226
    %v234 = vpack.c.b16 %v229, %v228
    %v235 = vpack.c.b16 %v231, %v230
    %vm240 = vcmask 523264
    %v242 = vsel %vm240, %v214, 0
    %v245 = vsel %vm240, %v215, 0
    %247 = vmatprep.subr.bf16.mxu0 0
    %248 = vmatpush1.bf16.msra.mxu0 %v232
    %249 = vmatprep.subr.bf16.mxu0 0
    %250 = vmatpush1.bf16.msra.mxu0 %v233
    %251 = vmatprep.subr.bf16.mxu0 0
    %252 = vmatpush1.bf16.msra.mxu0 %v234
    %253 = vmatprep.subr.bf16.mxu0 0
    %254 = vmatpush1.bf16.msra.mxu0 %v235
    %255 = vmatprep.subr.bf16.mxu0 0
    %256 = vmatpush1.bf16.msra.mxu0 0
    %257 = vmatprep.subr.bf16.mxu0 0
    %258 = vmatpush1.bf16.msra.mxu0 0
    %259 = vmatprep.subr.bf16.mxu0 0
    %260 = vmatpush1.bf16.msra.mxu0 0
    %261 = vmatprep.subr.bf16.mxu0 0
    %262 = vmatpush1.bf16.msra.mxu0 0
    %263 = vmatprep.subr.bf16.mxu0 0
    %264 = vmatpush1.bf16.msra.mxu0 0
    %265 = vmatprep.subr.bf16.mxu0 0
    %266 = vmatpush1.bf16.msra.mxu0 0
    %267 = vmatprep.subr.bf16.mxu0 0
    %268 = vmatpush1.bf16.msra.mxu0 0
    %269 = vmatprep.subr.bf16.mxu0 0
    %270 = vmatpush1.bf16.msra.mxu0 0
    %271 = vmatprep.subr.bf16.mxu0 0
    %272 = vmatpush1.bf16.msra.mxu0 0
    %273 = vmatprep.subr.bf16.mxu0 0
    %274 = vmatpush1.bf16.msra.mxu0 0
    %275 = vmatprep.subr.bf16.mxu0 0
    %276 = vmatpush1.bf16.msra.mxu0 0
    %277 = vmatprep.subr.bf16.mxu0 0
    %278 = vmatpush1.bf16.msra.mxu0 0
    %279 = vmatprep.mubr.bf16.mxu0 0
    %280 = vmatmul.mubr.bf16.gmra.mrb[0].mxu0 %v242
    %v281 = vpop.f32.mrb[0].mxu0
    %v282 = vadd.f32 0.0, %v281
    %v283 = vpop.f32.mrb[0].mxu0
    %v284 = vpop.f32.mrb[0].mxu0
    %v285 = vadd.f32 0.0, %v284
    %v286 = vpop.f32.mrb[0].mxu0
    %287 = vmatprep.mubr.bf16.mxu0 0
    %288 = vmatmul.mubr.bf16.gmra.mrb[0].mxu0 %v245
    %v289 = vpop.f32.mrb[0].mxu0
    %v290 = vadd.f32 0.0, %v289
    %v291 = vpop.f32.mrb[0].mxu0
    %v292 = vpop.f32.mrb[0].mxu0
    %v293 = vadd.f32 0.0, %v292
    %v294 = vpop.f32.mrb[0].mxu0
    %295 = vdwg.mxu0
    %v296 = vadd.f32 %v193, %v282
    %v297 = vadd.f32 %v193, %v285
    %v298 = vadd.f32 %v193, %v290
    %v299 = vadd.f32 %v193, %v293
    %v300 = vld [vmem:[#allocation2] sm:$0xf]
    %v301 = vld [vmem:[#allocation2 + $0x4] sm:$0xf]
    %v302 = vld [vmem:[#allocation2 + $0x8] sm:$0x1]
    %v303 = vld [vmem:[#allocation2 + $0xc] sm:$0xf]
    %v304 = vld [vmem:[#allocation2 + $0x10] sm:$0xf]
    %v305 = vld [vmem:[#allocation2 + $0x14] sm:$0x1]
    %vm306 = vsmask.f32 3328
    %vm307 = vsmask.f32 7440
    %vm308 = vmor %vm306, %vm307
    %v310 = vshrl.u32 %v300, 16
    %v312 = vrot.slane %v310, 4
    %v313 = vshll.u32 %v300, 16
    %v315 = vrot.slane %v313, 5
    %v316 = vor.u32 %v312, %v315
    %v317 = vrot.slane %v316, 4
    %v319 = vshll.u32 %v301, 16
    %v321 = vrot.slane %v319, 5
    %v322 = vsel %vm308, %v317, %v321
    %v323 = vshrl.u32 %v301, 16
    %v325 = vrot.slane %v323, 4
    %v326 = vor.u32 %v325, %v321
    %v327 = vrot.slane %v326, 4
    %v329 = vshll.u32 %v302, 16
    %v331 = vrot.slane %v329, 5
    %v332 = vsel %vm308, %v327, %v331
    %v334 = vshrl.u32 %v303, 16
    %v336 = vrot.slane %v334, 4
    %v337 = vshll.u32 %v303, 16
    %v339 = vrot.slane %v337, 5
    %v340 = vor.u32 %v336, %v339
    %v341 = vrot.slane %v340, 4
    %v343 = vshll.u32 %v304, 16
    %v345 = vrot.slane %v343, 5
    %v346 = vsel %vm308, %v341, %v345
    %v347 = vshrl.u32 %v304, 16
    %v349 = vrot.slane %v347, 4
    %v350 = vor.u32 %v349, %v345
    %v351 = vrot.slane %v350, 4
    %v353 = vshll.u32 %v305, 16
    %v355 = vrot.slane %v353, 5
    %v356 = vsel %vm308, %v351, %v355
    %v357 = vld [vmem:[%s1 + $0x24] sm:$0xf]
    %v358 = vld [vmem:[%s1 + $0x28] sm:$0xf]
    %v359 = vld [vmem:[%s1 + $0x2c] sm:$0xf]
    %v360 = vld [vmem:[%s1 + $0x30] sm:$0xf]
    %v361 = vld [vmem:[%s1 + $0x34] sm:$0xf]
    %v362 = vld [vmem:[%s1 + $0x38] sm:$0xf]
    %v363 = vld [vmem:[%s1 + $0x3c] sm:$0xf]
    %v364 = vld [vmem:[%s1 + $0x40] sm:$0xf]
    %v365 = vunpack.c.l.b16 %v322
    %v366 = vunpack.c.l.b16 %v332
    %v367 = vunpack.c.l.b16 %v346
    %v368 = vunpack.c.l.b16 %v356
    %v369 = vpack.c.b16 %v366, %v365
    %v370 = vpack.c.b16 %v368, %v367
    %v379 = vunpack.c.l.b16 %v357
    %v380 = vunpack.c.l.b16 %v358
    %v381 = vunpack.c.l.b16 %v359
    %v382 = vunpack.c.l.b16 %v360
    %v383 = vunpack.c.l.b16 %v361
    %v384 = vunpack.c.l.b16 %v362
    %v385 = vunpack.c.l.b16 %v363
    %v386 = vunpack.c.l.b16 %v364
    %v387 = vpack.c.b16 %v380, %v379
    %v388 = vpack.c.b16 %v382, %v381
    %v389 = vpack.c.b16 %v384, %v383
    %v390 = vpack.c.b16 %v386, %v385
    %v396 = vsel %vm240, %v369, 0
    %v399 = vsel %vm240, %v370, 0
    %401 = vmatprep.subr.bf16.mxu0 0
    %402 = vmatpush1.bf16.msra.mxu0 %v387
    %403 = vmatprep.subr.bf16.mxu0 0
    %404 = vmatpush1.bf16.msra.mxu0 %v388
    %405 = vmatprep.subr.bf16.mxu0 0
    %406 = vmatpush1.bf16.msra.mxu0 %v389
    %407 = vmatprep.subr.bf16.mxu0 0
    %408 = vmatpush1.bf16.msra.mxu0 %v390
    %409 = vmatprep.subr.bf16.mxu0 0
    %410 = vmatpush1.bf16.msra.mxu0 0
    %411 = vmatprep.subr.bf16.mxu0 0
    %412 = vmatpush1.bf16.msra.mxu0 0
    %413 = vmatprep.subr.bf16.mxu0 0
    %414 = vmatpush1.bf16.msra.mxu0 0
    %415 = vmatprep.subr.bf16.mxu0 0
    %416 = vmatpush1.bf16.msra.mxu0 0
    %417 = vmatprep.subr.bf16.mxu0 0
    %418 = vmatpush1.bf16.msra.mxu0 0
    %419 = vmatprep.subr.bf16.mxu0 0
    %420 = vmatpush1.bf16.msra.mxu0 0
    %421 = vmatprep.subr.bf16.mxu0 0
    %422 = vmatpush1.bf16.msra.mxu0 0
    %423 = vmatprep.subr.bf16.mxu0 0
    %424 = vmatpush1.bf16.msra.mxu0 0
    %425 = vmatprep.subr.bf16.mxu0 0
    %426 = vmatpush1.bf16.msra.mxu0 0
    %427 = vmatprep.subr.bf16.mxu0 0
    %428 = vmatpush1.bf16.msra.mxu0 0
    %429 = vmatprep.subr.bf16.mxu0 0
    %430 = vmatpush1.bf16.msra.mxu0 0
    %431 = vmatprep.subr.bf16.mxu0 0
    %432 = vmatpush1.bf16.msra.mxu0 0
    %433 = vmatprep.mubr.bf16.mxu0 0
    %434 = vmatmul.mubr.bf16.gmra.mrb[0].mxu0 %v396
    %v435 = vpop.f32.mrb[0].mxu0
    %v436 = vadd.f32 0.0, %v435
    %v437 = vpop.f32.mrb[0].mxu0
    %v438 = vpop.f32.mrb[0].mxu0
    %v439 = vadd.f32 0.0, %v438
    %v440 = vpop.f32.mrb[0].mxu0
    %441 = vmatprep.mubr.bf16.mxu0 0
    %442 = vmatmul.mubr.bf16.gmra.mrb[0].mxu0 %v399
    %v443 = vpop.f32.mrb[0].mxu0
    %v444 = vadd.f32 0.0, %v443
    %v445 = vpop.f32.mrb[0].mxu0
    %v446 = vpop.f32.mrb[0].mxu0
    %v447 = vadd.f32 0.0, %v446
    %v448 = vpop.f32.mrb[0].mxu0
    %449 = vdwg.mxu0
    %v450 = vadd.f32 %v296, %v436
    %v451 = vadd.f32 %v297, %v439
    %v452 = vadd.f32 %v298, %v444
    %v453 = vadd.f32 %v299, %v447
    %v454 = vld [vmem:[#allocation2] sm:$0xe]
    %v455 = vld [vmem:[#allocation2 + $0xc] sm:$0xe]
    %vm462 = vcmask 1042432
    %vm463 = vcmask 1046532
    %vm464 = vmor %vm462, %vm463
    %v465 = vrot.slane %v454, 5
    %v466 = vrot.slane %v465, 4
    %v467 = vrot.slane %v301, 5
    %v468 = vsel %vm464, %v466, %v467
    %v469 = vrot.slane %v467, 4
    %v470 = vrot.slane %v302, 5
    %v471 = vsel %vm464, %v469, %v470
    %v472 = vrot.slane %v455, 5
    %v473 = vrot.slane %v472, 4
    %v474 = vrot.slane %v304, 5
    %v475 = vsel %vm464, %v473, %v474
    %v476 = vrot.slane %v474, 4
    %v477 = vrot.slane %v305, 5
    %v478 = vsel %vm464, %v476, %v477
    %v479 = vld [vmem:[%s1 + $0x44] sm:$0xf]
    %v480 = vld [vmem:[%s1 + $0x48] sm:$0xf]
    %v481 = vld [vmem:[%s1 + $0x4c] sm:$0xf]
    %v482 = vld [vmem:[%s1 + $0x50] sm:$0xf]
    %v483 = vld [vmem:[%s1 + $0x54] sm:$0xf]
    %v484 = vld [vmem:[%s1 + $0x58] sm:$0xf]
    %v485 = vld [vmem:[%s1 + $0x5c] sm:$0xf]
    %v486 = vld [vmem:[%s1 + $0x60] sm:$0xf]
    %v487 = vunpack.c.l.b16 %v468
    %v488 = vunpack.c.l.b16 %v471
    %v489 = vunpack.c.l.b16 %v475
    %v490 = vunpack.c.l.b16 %v478
    %v491 = vpack.c.b16 %v488, %v487
    %v492 = vpack.c.b16 %v490, %v489
    %v501 = vunpack.c.l.b16 %v479
    %v502 = vunpack.c.l.b16 %v480
    %v503 = vunpack.c.l.b16 %v481
    %v504 = vunpack.c.l.b16 %v482
    %v505 = vunpack.c.l.b16 %v483
    %v506 = vunpack.c.l.b16 %v484
    %v507 = vunpack.c.l.b16 %v485
    %v508 = vunpack.c.l.b16 %v486
    %v509 = vpack.c.b16 %v502, %v501
    %v510 = vpack.c.b16 %v504, %v503
    %v511 = vpack.c.b16 %v506, %v505
    %v512 = vpack.c.b16 %v508, %v507
    %v518 = vsel %vm240, %v491, 0
    %v521 = vsel %vm240, %v492, 0
    %523 = vmatprep.subr.bf16.mxu0 0
    %524 = vmatpush1.bf16.msra.mxu0 %v509
    %525 = vmatprep.subr.bf16.mxu0 0
    %526 = vmatpush1.bf16.msra.mxu0 %v510
    %527 = vmatprep.subr.bf16.mxu0 0
    %528 = vmatpush1.bf16.msra.mxu0 %v511
    %529 = vmatprep.subr.bf16.mxu0 0
    %530 = vmatpush1.bf16.msra.mxu0 %v512
    %531 = vmatprep.subr.bf16.mxu0 0
    %532 = vmatpush1.bf16.msra.mxu0 0
    %533 = vmatprep.subr.bf16.mxu0 0
    %534 = vmatpush1.bf16.msra.mxu0 0
    %535 = vmatprep.subr.bf16.mxu0 0
    %536 = vmatpush1.bf16.msra.mxu0 0
    %537 = vmatprep.subr.bf16.mxu0 0
    %538 = vmatpush1.bf16.msra.mxu0 0
    %539 = vmatprep.subr.bf16.mxu0 0
    %540 = vmatpush1.bf16.msra.mxu0 0
    %541 = vmatprep.subr.bf16.mxu0 0
    %542 = vmatpush1.bf16.msra.mxu0 0
    %543 = vmatprep.subr.bf16.mxu0 0
    %544 = vmatpush1.bf16.msra.mxu0 0
    %545 = vmatprep.subr.bf16.mxu0 0
    %546 = vmatpush1.bf16.msra.mxu0 0
    %547 = vmatprep.subr.bf16.mxu0 0
    %548 = vmatpush1.bf16.msra.mxu0 0
    %549 = vmatprep.subr.bf16.mxu0 0
    %550 = vmatpush1.bf16.msra.mxu0 0
    %551 = vmatprep.subr.bf16.mxu0 0
    %552 = vmatpush1.bf16.msra.mxu0 0
    %553 = vmatprep.subr.bf16.mxu0 0
    %554 = vmatpush1.bf16.msra.mxu0 0
    %555 = vmatprep.mubr.bf16.mxu0 0
    %556 = vmatmul.mubr.bf16.gmra.mrb[0].mxu0 %v518
    %v557 = vpop.f32.mrb[0].mxu0
    %v558 = vadd.f32 0.0, %v557
    %v559 = vpop.f32.mrb[0].mxu0
    %v560 = vpop.f32.mrb[0].mxu0
    %v561 = vadd.f32 0.0, %v560
    %v562 = vpop.f32.mrb[0].mxu0
    %563 = vmatprep.mubr.bf16.mxu0 0
    %564 = vmatmul.mubr.bf16.gmra.mrb[0].mxu0 %v521
    %v565 = vpop.f32.mrb[0].mxu0
    %v566 = vadd.f32 0.0, %v565
    %v567 = vpop.f32.mrb[0].mxu0
    %v568 = vpop.f32.mrb[0].mxu0
    %v569 = vadd.f32 0.0, %v568
    %v570 = vpop.f32.mrb[0].mxu0
    %571 = vdwg.mxu0
    %v572 = vadd.f32 %v450, %v558
    %v573 = vadd.f32 %v451, %v561
    %v574 = vadd.f32 %v452, %v566
    %v575 = vadd.f32 %v453, %v569
    %v576 = vld [vmem:[#allocation2 + $0x8] sm:$0x3]
    %v577 = vld [vmem:[#allocation2 + $0x14] sm:$0x3]
    %vm578 = vsmask.f32 2304
    %vm579 = vsmask.f32 6416
    %vm580 = vmor %vm578, %vm579
    %v582 = vshrl.u32 %v454, 16
    %v584 = vrot.slane %v582, 5
    %v585 = vshll.u32 %v454, 16
    %v587 = vrot.slane %v585, 6
    %v588 = vor.u32 %v584, %v587
    %v589 = vrot.slane %v588, 4
    %v590 = vrot.slane %v323, 5
    %v591 = vrot.slane %v319, 6
    %v592 = vor.u32 %v590, %v591
    %v593 = vsel %vm580, %v589, %v592
    %v594 = vrot.slane %v592, 4
    %v596 = vshrl.u32 %v576, 16
    %v598 = vrot.slane %v596, 5
    %v599 = vshll.u32 %v576, 16
    %v601 = vrot.slane %v599, 6
    %v602 = vor.u32 %v598, %v601
    %v603 = vsel %vm580, %v594, %v602
    %v605 = vshrl.u32 %v455, 16
    %v607 = vrot.slane %v605, 5
    %v608 = vshll.u32 %v455, 16
    %v610 = vrot.slane %v608, 6
    %v611 = vor.u32 %v607, %v610
    %v612 = vrot.slane %v611, 4
    %v613 = vrot.slane %v347, 5
    %v614 = vrot.slane %v343, 6
    %v615 = vor.u32 %v613, %v614
    %v616 = vsel %vm580, %v612, %v615
    %v617 = vrot.slane %v615, 4
    %v619 = vshrl.u32 %v577, 16
    %v621 = vrot.slane %v619, 5
    %v622 = vshll.u32 %v577, 16
    %v624 = vrot.slane %v622, 6
    %v625 = vor.u32 %v621, %v624
    %v626 = vsel %vm580, %v617, %v625
    %v627 = vld [vmem:[%s1 + $0x64] sm:$0xf]
    %v628 = vld [vmem:[%s1 + $0x68] sm:$0xf]
    %v629 = vld [vmem:[%s1 + $0x6c] sm:$0xf]
    %v630 = vld [vmem:[%s1 + $0x70] sm:$0xf]
    %v631 = vld [vmem:[%s1 + $0x74] sm:$0xf]
    %v632 = vld [vmem:[%s1 + $0x78] sm:$0xf]
    %v633 = vld [vmem:[%s1 + $0x7c] sm:$0xf]
    %v634 = vld [vmem:[%s1 + $0x80] sm:$0xf]
    %v635 = vunpack.c.l.b16 %v593
    %v636 = vunpack.c.l.b16 %v603
    %v637 = vunpack.c.l.b16 %v616
    %v638 = vunpack.c.l.b16 %v626
    %v639 = vpack.c.b16 %v636, %v635
    %v640 = vpack.c.b16 %v638, %v637
    %v649 = vunpack.c.l.b16 %v627
    %v650 = vunpack.c.l.b16 %v628
    %v651 = vunpack.c.l.b16 %v629
    %v652 = vunpack.c.l.b16 %v630
    %v653 = vunpack.c.l.b16 %v631
    %v654 = vunpack.c.l.b16 %v632
    %v655 = vunpack.c.l.b16 %v633
    %v656 = vunpack.c.l.b16 %v634
    %v657 = vpack.c.b16 %v650, %v649
    %v658 = vpack.c.b16 %v652, %v651
    %v659 = vpack.c.b16 %v654, %v653
    %v660 = vpack.c.b16 %v656, %v655
    %v666 = vsel %vm240, %v639, 0
    %v669 = vsel %vm240, %v640, 0
    %671 = vmatprep.subr.bf16.mxu0 0
    %672 = vmatpush1.bf16.msra.mxu0 %v657
    %673 = vmatprep.subr.bf16.mxu0 0
    %674 = vmatpush1.bf16.msra.mxu0 %v658
    %675 = vmatprep.subr.bf16.mxu0 0
    %676 = vmatpush1.bf16.msra.mxu0 %v659
    %677 = vmatprep.subr.bf16.mxu0 0
    %678 = vmatpush1.bf16.msra.mxu0 %v660
    %679 = vmatprep.subr.bf16.mxu0 0
    %680 = vmatpush1.bf16.msra.mxu0 0
    %681 = vmatprep.subr.bf16.mxu0 0
    %682 = vmatpush1.bf16.msra.mxu0 0
    %683 = vmatprep.subr.bf16.mxu0 0
    %684 = vmatpush1.bf16.msra.mxu0 0
    %685 = vmatprep.subr.bf16.mxu0 0
    %686 = vmatpush1.bf16.msra.mxu0 0
    %687 = vmatprep.subr.bf16.mxu0 0
    %688 = vmatpush1.bf16.msra.mxu0 0
    %689 = vmatprep.subr.bf16.mxu0 0
    %690 = vmatpush1.bf16.msra.mxu0 0
    %691 = vmatprep.subr.bf16.mxu0 0
    %692 = vmatpush1.bf16.msra.mxu0 0
    %693 = vmatprep.subr.bf16.mxu0 0
    %694 = vmatpush1.bf16.msra.mxu0 0
    %695 = vmatprep.subr.bf16.mxu0 0
    %696 = vmatpush1.bf16.msra.mxu0 0
    %697 = vmatprep.subr.bf16.mxu0 0
    %698 = vmatpush1.bf16.msra.mxu0 0
    %699 = vmatprep.subr.bf16.mxu0 0
    %700 = vmatpush1.bf16.msra.mxu0 0
    %701 = vmatprep.subr.bf16.mxu0 0
    %702 = vmatpush1.bf16.msra.mxu0 0
    %703 = vmatprep.mubr.bf16.mxu0 0
    %704 = vmatmul.mubr.bf16.gmra.mrb[0].mxu0 %v666
    %v705 = vpop.f32.mrb[0].mxu0
    %v706 = vadd.f32 0.0, %v705
    %v707 = vpop.f32.mrb[0].mxu0
    %v708 = vpop.f32.mrb[0].mxu0
    %v709 = vadd.f32 0.0, %v708
    %v710 = vpop.f32.mrb[0].mxu0
    %711 = vmatprep.mubr.bf16.mxu0 0
    %712 = vmatmul.mubr.bf16.gmra.mrb[0].mxu0 %v669
    %v713 = vpop.f32.mrb[0].mxu0
    %v714 = vadd.f32 0.0, %v713
    %v715 = vpop.f32.mrb[0].mxu0
    %v716 = vpop.f32.mrb[0].mxu0
    %v717 = vadd.f32 0.0, %v716
    %v718 = vpop.f32.mrb[0].mxu0
    %719 = vdwg.mxu0
    %v720 = vadd.f32 %v572, %v706
    %v721 = vadd.f32 %v573, %v709
    %v722 = vadd.f32 %v574, %v714
    %v723 = vadd.f32 %v575, %v717
    %v724 = vld [vmem:[#allocation2] sm:$0xc]
    %v725 = vld [vmem:[#allocation2 + $0xc] sm:$0xc]
    %vm730 = vcmask 1045508
    %vm731 = vmor %vm18, %vm730
    %v732 = vrot.slane %v724, 6
    %v733 = vrot.slane %v732, 4
    %v734 = vrot.slane %v301, 6
    %v735 = vsel %vm731, %v733, %v734
    %v736 = vrot.slane %v734, 4
    %v737 = vrot.slane %v576, 6
    %v738 = vsel %vm731, %v736, %v737
    %v739 = vrot.slane %v725, 6
    %v740 = vrot.slane %v739, 4
    %v741 = vrot.slane %v304, 6
    %v742 = vsel %vm731, %v740, %v741
    %v743 = vrot.slane %v741, 4
    %v744 = vrot.slane %v577, 6
    %v745 = vsel %vm731, %v743, %v744
    %v746 = vld [vmem:[%s1 + $0x84] sm:$0xf]
    %v747 = vld [vmem:[%s1 + $0x88] sm:$0xf]
    %v748 = vld [vmem:[%s1 + $0x8c] sm:$0xf]
    %v749 = vld [vmem:[%s1 + $0x90] sm:$0xf]
    %v750 = vld [vmem:[%s1 + $0x94] sm:$0xf]
    %v751 = vld [vmem:[%s1 + $0x98] sm:$0xf]
    %v752 = vld [vmem:[%s1 + $0x9c] sm:$0xf]
    %v753 = vld [vmem:[%s1 + $0xa0] sm:$0xf]
    %v754 = vunpack.c.l.b16 %v735
    %v755 = vunpack.c.l.b16 %v738
    %v756 = vunpack.c.l.b16 %v742
    %v757 = vunpack.c.l.b16 %v745
    %v758 = vpack.c.b16 %v755, %v754
    %v759 = vpack.c.b16 %v757, %v756
    %v768 = vunpack.c.l.b16 %v746
    %v769 = vunpack.c.l.b16 %v747
    %v770 = vunpack.c.l.b16 %v748
    %v771 = vunpack.c.l.b16 %v749
    %v772 = vunpack.c.l.b16 %v750
    %v773 = vunpack.c.l.b16 %v751
    %v774 = vunpack.c.l.b16 %v752
    %v775 = vunpack.c.l.b16 %v753
    %v776 = vpack.c.b16 %v769, %v768
    %v777 = vpack.c.b16 %v771, %v770
    %v778 = vpack.c.b16 %v773, %v772
    %v779 = vpack.c.b16 %v775, %v774
    %v785 = vsel %vm240, %v758, 0
    %v788 = vsel %vm240, %v759, 0
    %790 = vmatprep.subr.bf16.mxu0 0
    %791 = vmatpush1.bf16.msra.mxu0 %v776
    %792 = vmatprep.subr.bf16.mxu0 0
    %793 = vmatpush1.bf16.msra.mxu0 %v777
    %794 = vmatprep.subr.bf16.mxu0 0
    %795 = vmatpush1.bf16.msra.mxu0 %v778
    %796 = vmatprep.subr.bf16.mxu0 0
    %797 = vmatpush1.bf16.msra.mxu0 %v779
    %798 = vmatprep.subr.bf16.mxu0 0
    %799 = vmatpush1.bf16.msra.mxu0 0
    %800 = vmatprep.subr.bf16.mxu0 0
    %801 = vmatpush1.bf16.msra.mxu0 0
    %802 = vmatprep.subr.bf16.mxu0 0
    %803 = vmatpush1.bf16.msra.mxu0 0
    %804 = vmatprep.subr.bf16.mxu0 0
    %805 = vmatpush1.bf16.msra.mxu0 0
    %806 = vmatprep.subr.bf16.mxu0 0
    %807 = vmatpush1.bf16.msra.mxu0 0
    %808 = vmatprep.subr.bf16.mxu0 0
    %809 = vmatpush1.bf16.msra.mxu0 0
    %810 = vmatprep.subr.bf16.mxu0 0
    %811 = vmatpush1.bf16.msra.mxu0 0
    %812 = vmatprep.subr.bf16.mxu0 0
    %813 = vmatpush1.bf16.msra.mxu0 0
    %814 = vmatprep.subr.bf16.mxu0 0
    %815 = vmatpush1.bf16.msra.mxu0 0
    %816 = vmatprep.subr.bf16.mxu0 0
    %817 = vmatpush1.bf16.msra.mxu0 0
    %818 = vmatprep.subr.bf16.mxu0 0
    %819 = vmatpush1.bf16.msra.mxu0 0
    %820 = vmatprep.subr.bf16.mxu0 0
    %821 = vmatpush1.bf16.msra.mxu0 0
    %822 = vmatprep.mubr.bf16.mxu0 0
    %823 = vmatmul.mubr.bf16.gmra.mrb[0].mxu0 %v785
    %v824 = vpop.f32.mrb[0].mxu0
    %v825 = vadd.f32 0.0, %v824
    %v826 = vpop.f32.mrb[0].mxu0
    %v827 = vpop.f32.mrb[0].mxu0
    %v828 = vadd.f32 0.0, %v827
    %v829 = vpop.f32.mrb[0].mxu0
    %830 = vmatprep.mubr.bf16.mxu0 0
    %831 = vmatmul.mubr.bf16.gmra.mrb[0].mxu0 %v788
    %v832 = vpop.f32.mrb[0].mxu0
    %v833 = vadd.f32 0.0, %v832
    %v834 = vpop.f32.mrb[0].mxu0
    %v835 = vpop.f32.mrb[0].mxu0
    %v836 = vadd.f32 0.0, %v835
    %v837 = vpop.f32.mrb[0].mxu0
    %838 = vdwg.mxu0
    %v839 = vadd.f32 %v720, %v825
    %v840 = vadd.f32 %v721, %v828
    %v841 = vadd.f32 %v722, %v833
    %v842 = vadd.f32 %v723, %v836
    %v843 = vld [vmem:[#allocation2 + $0x8] sm:$0x7]
    %v844 = vld [vmem:[#allocation2 + $0x14] sm:$0x7]
    %v846 = vshrl.u32 %v724, 16
    %v848 = vrot.slane %v846, 6
    %v849 = vshll.u32 %v724, 16
    %v851 = vrot.slane %v849, 7
    %v852 = vor.u32 %v848, %v851
    %v853 = vrot.slane %v852, 4
    %v854 = vrot.slane %v323, 6
    %v855 = vrot.slane %v319, 7
    %v856 = vor.u32 %v854, %v855
    %v857 = vsel %vm128, %v853, %v856
    %v858 = vrot.slane %v856, 4
    %v860 = vshrl.u32 %v843, 16
    %v862 = vrot.slane %v860, 6
    %v863 = vshll.u32 %v843, 16
    %v865 = vrot.slane %v863, 7
    %v866 = vor.u32 %v862, %v865
    %v867 = vsel %vm128, %v858, %v866
    %v869 = vshrl.u32 %v725, 16
    %v871 = vrot.slane %v869, 6
    %v872 = vshll.u32 %v725, 16
    %v874 = vrot.slane %v872, 7
    %v875 = vor.u32 %v871, %v874
    %v876 = vrot.slane %v875, 4
    %v877 = vrot.slane %v347, 6
    %v878 = vrot.slane %v343, 7
    %v879 = vor.u32 %v877, %v878
    %v880 = vsel %vm128, %v876, %v879
    %v881 = vrot.slane %v879, 4
    %v883 = vshrl.u32 %v844, 16
    %v885 = vrot.slane %v883, 6
    %v886 = vshll.u32 %v844, 16
    %v888 = vrot.slane %v886, 7
    %v889 = vor.u32 %v885, %v888
    %v890 = vsel %vm128, %v881, %v889
    %v891 = vld [vmem:[%s1 + $0xa4] sm:$0xf]
    %v892 = vld [vmem:[%s1 + $0xa8] sm:$0xf]
    %v893 = vld [vmem:[%s1 + $0xac] sm:$0xf]
    %v894 = vld [vmem:[%s1 + $0xb0] sm:$0xf]
    %v895 = vld [vmem:[%s1 + $0xb4] sm:$0xf]
    %v896 = vld [vmem:[%s1 + $0xb8] sm:$0xf]
    %v897 = vld [vmem:[%s1 + $0xbc] sm:$0xf]
    %v898 = vld [vmem:[%s1 + $0xc0] sm:$0xf]
    %v899 = vunpack.c.l.b16 %v857
    %v900 = vunpack.c.l.b16 %v867
    %v901 = vunpack.c.l.b16 %v880
    %v902 = vunpack.c.l.b16 %v890
    %v903 = vpack.c.b16 %v900, %v899
    %v904 = vpack.c.b16 %v902, %v901
    %v913 = vunpack.c.l.b16 %v891
    %v914 = vunpack.c.l.b16 %v892
    %v915 = vunpack.c.l.b16 %v893
    %v916 = vunpack.c.l.b16 %v894
    %v917 = vunpack.c.l.b16 %v895
    %v918 = vunpack.c.l.b16 %v896
    %v919 = vunpack.c.l.b16 %v897
    %v920 = vunpack.c.l.b16 %v898
    %v921 = vpack.c.b16 %v914, %v913
    %v922 = vpack.c.b16 %v916, %v915
    %v923 = vpack.c.b16 %v918, %v917
    %v924 = vpack.c.b16 %v920, %v919
    %v930 = vsel %vm240, %v903, 0
    %v933 = vsel %vm240, %v904, 0
    %935 = vmatprep.subr.bf16.mxu0 0
    %936 = vmatpush1.bf16.msra.mxu0 %v921
    %937 = vmatprep.subr.bf16.mxu0 0
    %938 = vmatpush1.bf16.msra.mxu0 %v922
    %939 = vmatprep.subr.bf16.mxu0 0
    %940 = vmatpush1.bf16.msra.mxu0 %v923
    %941 = vmatprep.subr.bf16.mxu0 0
    %942 = vmatpush1.bf16.msra.mxu0 %v924
    %943 = vmatprep.subr.bf16.mxu0 0
    %944 = vmatpush1.bf16.msra.mxu0 0
    %945 = vmatprep.subr.bf16.mxu0 0
    %946 = vmatpush1.bf16.msra.mxu0 0
    %947 = vmatprep.subr.bf16.mxu0 0
    %948 = vmatpush1.bf16.msra.mxu0 0
    %949 = vmatprep.subr.bf16.mxu0 0
    %950 = vmatpush1.bf16.msra.mxu0 0
    %951 = vmatprep.subr.bf16.mxu0 0
    %952 = vmatpush1.bf16.msra.mxu0 0
    %953 = vmatprep.subr.bf16.mxu0 0
    %954 = vmatpush1.bf16.msra.mxu0 0
    %955 = vmatprep.subr.bf16.mxu0 0
    %956 = vmatpush1.bf16.msra.mxu0 0
    %957 = vmatprep.subr.bf16.mxu0 0
    %958 = vmatpush1.bf16.msra.mxu0 0
    %959 = vmatprep.subr.bf16.mxu0 0
    %960 = vmatpush1.bf16.msra.mxu0 0
    %961 = vmatprep.subr.bf16.mxu0 0
    %962 = vmatpush1.bf16.msra.mxu0 0
    %963 = vmatprep.subr.bf16.mxu0 0
    %964 = vmatpush1.bf16.msra.mxu0 0
    %965 = vmatprep.subr.bf16.mxu0 0
    %966 = vmatpush1.bf16.msra.mxu0 0
    %967 = vmatprep.mubr.bf16.mxu0 0
    %968 = vmatmul.mubr.bf16.gmra.mrb[0].mxu0 %v930
    %v969 = vpop.f32.mrb[0].mxu0
    %v970 = vadd.f32 0.0, %v969
    %v971 = vpop.f32.mrb[0].mxu0
    %v972 = vpop.f32.mrb[0].mxu0
    %v973 = vadd.f32 0.0, %v972
    %v974 = vpop.f32.mrb[0].mxu0
    %975 = vmatprep.mubr.bf16.mxu0 0
    %976 = vmatmul.mubr.bf16.gmra.mrb[0].mxu0 %v933
    %v977 = vpop.f32.mrb[0].mxu0
    %v978 = vadd.f32 0.0, %v977
    %v979 = vpop.f32.mrb[0].mxu0
    %v980 = vpop.f32.mrb[0].mxu0
    %v981 = vadd.f32 0.0, %v980
    %v982 = vpop.f32.mrb[0].mxu0
    %983 = vdwg.mxu0
    %v984 = vadd.f32 %v839, %v970
    %v985 = vadd.f32 %v840, %v973
    %v986 = vadd.f32 %v841, %v978
    %v987 = vadd.f32 %v842, %v981
    %v988 = vld [vmem:[#allocation2] sm:$0x8]
    %v989 = vld [vmem:[#allocation2 + $0xc] sm:$0x8]
    %vm994 = vcmask 1040384
    %vm995 = vcmask 1044484
    %vm996 = vmor %vm994, %vm995
    %v997 = vrot.slane %v988, 7
    %v998 = vrot.slane %v997, 4
    %v999 = vrot.slane %v301, 7
    %v1000 = vsel %vm996, %v998, %v999
    %v1001 = vrot.slane %v999, 4
    %v1002 = vrot.slane %v843, 7
    %v1003 = vsel %vm996, %v1001, %v1002
    %v1004 = vrot.slane %v989, 7
    %v1005 = vrot.slane %v1004, 4
    %v1006 = vrot.slane %v304, 7
    %v1007 = vsel %vm996, %v1005, %v1006
    %v1008 = vrot.slane %v1006, 4
    %v1009 = vrot.slane %v844, 7
    %v1010 = vsel %vm996, %v1008, %v1009
    %v1011 = vld [vmem:[%s1 + $0xc4] sm:$0xf]
    %v1012 = vld [vmem:[%s1 + $0xc8] sm:$0xf]
    %v1013 = vld [vmem:[%s1 + $0xcc] sm:$0xf]
    %v1014 = vld [vmem:[%s1 + $0xd0] sm:$0xf]
    %v1015 = vld [vmem:[%s1 + $0xd4] sm:$0xf]
    %v1016 = vld [vmem:[%s1 + $0xd8] sm:$0xf]
    %v1017 = vld [vmem:[%s1 + $0xdc] sm:$0xf]
    %v1018 = vld [vmem:[%s1 + $0xe0] sm:$0xf]
    %v1019 = vunpack.c.l.b16 %v1000
    %v1020 = vunpack.c.l.b16 %v1003
    %v1021 = vunpack.c.l.b16 %v1007
    %v1022 = vunpack.c.l.b16 %v1010
    %v1023 = vpack.c.b16 %v1020, %v1019
    %v1024 = vpack.c.b16 %v1022, %v1021
    %v1033 = vunpack.c.l.b16 %v1011
    %v1034 = vunpack.c.l.b16 %v1012
    %v1035 = vunpack.c.l.b16 %v1013
    %v1036 = vunpack.c.l.b16 %v1014
    %v1037 = vunpack.c.l.b16 %v1015
    %v1038 = vunpack.c.l.b16 %v1016
    %v1039 = vunpack.c.l.b16 %v1017
    %v1040 = vunpack.c.l.b16 %v1018
    %v1041 = vpack.c.b16 %v1034, %v1033
    %v1042 = vpack.c.b16 %v1036, %v1035
    %v1043 = vpack.c.b16 %v1038, %v1037
    %v1044 = vpack.c.b16 %v1040, %v1039
    %v1050 = vsel %vm240, %v1023, 0
    %v1053 = vsel %vm240, %v1024, 0
    %1055 = vmatprep.subr.bf16.mxu0 0
    %1056 = vmatpush1.bf16.msra.mxu0 %v1041
    %1057 = vmatprep.subr.bf16.mxu0 0
    %1058 = vmatpush1.bf16.msra.mxu0 %v1042
    %1059 = vmatprep.subr.bf16.mxu0 0
    %1060 = vmatpush1.bf16.msra.mxu0 %v1043
    %1061 = vmatprep.subr.bf16.mxu0 0
    %1062 = vmatpush1.bf16.msra.mxu0 %v1044
    %1063 = vmatprep.subr.bf16.mxu0 0
    %1064 = vmatpush1.bf16.msra.mxu0 0
    %1065 = vmatprep.subr.bf16.mxu0 0
    %1066 = vmatpush1.bf16.msra.mxu0 0
    %1067 = vmatprep.subr.bf16.mxu0 0
    %1068 = vmatpush1.bf16.msra.mxu0 0
    %1069 = vmatprep.subr.bf16.mxu0 0
    %1070 = vmatpush1.bf16.msra.mxu0 0
    %1071 = vmatprep.subr.bf16.mxu0 0
    %1072 = vmatpush1.bf16.msra.mxu0 0
    %1073 = vmatprep.subr.bf16.mxu0 0
    %1074 = vmatpush1.bf16.msra.mxu0 0
    %1075 = vmatprep.subr.bf16.mxu0 0
    %1076 = vmatpush1.bf16.msra.mxu0 0
    %1077 = vmatprep.subr.bf16.mxu0 0
    %1078 = vmatpush1.bf16.msra.mxu0 0
    %1079 = vmatprep.subr.bf16.mxu0 0
    %1080 = vmatpush1.bf16.msra.mxu0 0
    %1081 = vmatprep.subr.bf16.mxu0 0
    %1082 = vmatpush1.bf16.msra.mxu0 0
    %1083 = vmatprep.subr.bf16.mxu0 0
    %1084 = vmatpush1.bf16.msra.mxu0 0
    %1085 = vmatprep.subr.bf16.mxu0 0
    %1086 = vmatpush1.bf16.msra.mxu0 0
    %1087 = vmatprep.mubr.bf16.mxu0 0
    %1088 = vmatmul.mubr.bf16.gmra.mrb[0].mxu0 %v1050
    %v1089 = vpop.f32.mrb[0].mxu0
    %v1090 = vadd.f32 0.0, %v1089
    %v1091 = vpop.f32.mrb[0].mxu0
    %v1092 = vpop.f32.mrb[0].mxu0
    %v1093 = vadd.f32 0.0, %v1092
    %v1094 = vpop.f32.mrb[0].mxu0
    %1095 = vmatprep.mubr.bf16.mxu0 0
    %1096 = vmatmul.mubr.bf16.gmra.mrb[0].mxu0 %v1053
    %v1097 = vpop.f32.mrb[0].mxu0
    %v1098 = vadd.f32 0.0, %v1097
    %v1099 = vpop.f32.mrb[0].mxu0
    %v1100 = vpop.f32.mrb[0].mxu0
    %v1101 = vadd.f32 0.0, %v1100
    %v1102 = vpop.f32.mrb[0].mxu0
    %1103 = vdwg.mxu0
    %v1104 = vadd.f32 %v984, %v1090
    %v1105 = vadd.f32 %v985, %v1093
    %v1106 = vadd.f32 %v986, %v1098
    %v1107 = vadd.f32 %v987, %v1101
    %v1108 = vmax.f32 %v1104, 0.0
    %v1109 = vmax.f32 %v1105, 0.0
    %v1110 = vmax.f32 %v1106, 0.0
    %v1111 = vmax.f32 %v1107, 0.0
    %v1112 = vpack.c.bf16 %v1109, %v1108
    %v1113 = vpack.c.bf16 %v1111, %v1110
    %v1116 = vunpack.c.l.b16 %v1112
    %v1117 = vunpack.c.h.b16 %v1112
    %v1118 = vunpack.c.l.b16 %v1113
    %v1119 = vunpack.c.h.b16 %v1113
    %v1120 = vpack.c.b16 %v1116, %v1116
    %v1121 = vpack.c.b16 %v1117, %v1117
    %v1122 = vpack.c.b16 %v1118, %v1118
    %v1123 = vpack.c.b16 %v1119, %v1119
    %v1125 = vshrl.u32 %v1120, 16
    %v1127 = vrot.slane %v1125, 6
    %v1128 = vshll.u32 %v1120, 16
    %v1130 = vrot.slane %v1128, 7
    %v1131 = vor.u32 %v1127, %v1130
    %v1132 = vrot.slane %v1131, 4
    %v1134 = vshrl.u32 %v1121, 16
    %v1136 = vrot.slane %v1134, 6
    %v1137 = vshll.u32 %v1121, 16
    %v1139 = vrot.slane %v1137, 7
    %v1140 = vor.u32 %v1136, %v1139
    %v1141 = vsel %vm128, %v1132, %v1140
    %v1142 = vrot.slane %v1140, 4
    %v1144 = vshrl.u32 %v1122, 16
    %v1146 = vrot.slane %v1144, 6
    %v1147 = vshll.u32 %v1122, 16
    %v1149 = vrot.slane %v1147, 7
    %v1150 = vor.u32 %v1146, %v1149
    %v1151 = vrot.slane %v1150, 4
    %v1153 = vshrl.u32 %v1123, 16
    %v1155 = vrot.slane %v1153, 6
    %v1156 = vshll.u32 %v1123, 16
    %v1158 = vrot.slane %v1156, 7
    %v1159 = vor.u32 %v1155, %v1158
    %v1160 = vsel %vm128, %v1151, %v1159
    %v1161 = vrot.slane %v1159, 4
    %v1168 = vsel %vm174, %v1131, %v454
    %1169 = vst [vmem:[#allocation2] sm:$0xe] %v1168
    %1170 = vst [vmem:[#allocation2 + $0x4] sm:$0xf] %v1141
    %v1171 = vld [vmem:[#allocation2 + $0x8] sm:$0x3]
    %v1172 = vsel %vm20, %v1142, %v1171
    %1173 = vst [vmem:[#allocation2 + $0x8] sm:$0x3] %v1172
    %v1174 = vld [vmem:[#allocation2 + $0xc] sm:$0xe]
    %v1175 = vsel %vm174, %v1150, %v1174
    %1176 = vst [vmem:[#allocation2 + $0xc] sm:$0xe] %v1175
    %1177 = vst [vmem:[#allocation2 + $0x10] sm:$0xf] %v1160
    %v1178 = vld [vmem:[#allocation2 + $0x14] sm:$0x3]
    %v1179 = vsel %vm20, %v1161, %v1178
    %1180 = vst [vmem:[#allocation2 + $0x14] sm:$0x3] %v1179
    %v1181 = vlaneseq
    %v1182 = vshrl.u32 %v1181, 7
    %v1183 = vsub.s32 2, %v1182
    %v1184 = vrot.slane %v16, %v1183
    %v1185 = vadd.f32 %v1184, 0.0
    %v1186 = vld [vmem:[#allocation2] sm:$0xf]
    %v1187 = vld [vmem:[#allocation2 + $0x4] sm:$0xf]
    %v1188 = vld [vmem:[#allocation2 + $0x8] sm:$0x1]
    %v1189 = vld [vmem:[#allocation2 + $0xc] sm:$0xf]
    %v1190 = vld [vmem:[#allocation2 + $0x10] sm:$0xf]
    %v1191 = vld [vmem:[#allocation2 + $0x14] sm:$0x1]
    %v1193 = vshrl.u32 %v1186, 16
    %v1195 = vrot.slane %v1193, 4
    %v1196 = vshll.u32 %v1186, 16
    %v1198 = vrot.slane %v1196, 5
    %v1199 = vor.u32 %v1195, %v1198
    %v1200 = vrot.slane %v1199, 4
    %v1202 = vshll.u32 %v1187, 16
    %v1204 = vrot.slane %v1202, 5
    %v1205 = vsel %vm308, %v1200, %v1204
    %v1206 = vshrl.u32 %v1187, 16
    %v1208 = vrot.slane %v1206, 4
    %v1209 = vor.u32 %v1208, %v1204
    %v1210 = vrot.slane %v1209, 4
    %v1212 = vshll.u32 %v1188, 16
    %v1214 = vrot.slane %v1212, 5
    %v1215 = vsel %vm308, %v1210, %v1214
    %v1217 = vshrl.u32 %v1189, 16
    %v1219 = vrot.slane %v1217, 4
    %v1220 = vshll.u32 %v1189, 16
    %v1222 = vrot.slane %v1220, 5
    %v1223 = vor.u32 %v1219, %v1222
    %v1224 = vrot.slane %v1223, 4
    %v1226 = vshll.u32 %v1190, 16
    %v1228 = vrot.slane %v1226, 5
    %v1229 = vsel %vm308, %v1224, %v1228
    %v1230 = vshrl.u32 %v1190, 16
    %v1232 = vrot.slane %v1230, 4
    %v1233 = vor.u32 %v1232, %v1228
    %v1234 = vrot.slane %v1233, 4
    %v1236 = vshll.u32 %v1191, 16
    %v1238 = vrot.slane %v1236, 5
    %v1239 = vsel %vm308, %v1234, %v1238
    %v1240 = vld [vmem:[%s1 + $0xe4] sm:$0xf]
    %v1241 = vld [vmem:[%s1 + $0xe8] sm:$0xf]
    %v1242 = vld [vmem:[%s1 + $0xec] sm:$0xf]
    %v1243 = vld [vmem:[%s1 + $0xf0] sm:$0xf]
    %v1244 = vld [vmem:[%s1 + $0xf4] sm:$0xf]
    %v1245 = vld [vmem:[%s1 + $0xf8] sm:$0xf]
    %v1246 = vld [vmem:[%s1 + $0xfc] sm:$0xf]
    %v1247 = vld [vmem:[%s1 + $0x100] sm:$0xf]
    %v1248 = vunpack.c.l.b16 %v1205
    %v1249 = vunpack.c.l.b16 %v1215
    %v1250 = vunpack.c.l.b16 %v1229
    %v1251 = vunpack.c.l.b16 %v1239
    %v1252 = vpack.c.b16 %v1249, %v1248
    %v1253 = vpack.c.b16 %v1251, %v1250
    %v1262 = vunpack.c.l.b16 %v1240
    %v1263 = vunpack.c.l.b16 %v1241
    %v1264 = vunpack.c.l.b16 %v1242
    %v1265 = vunpack.c.l.b16 %v1243
    %v1266 = vunpack.c.l.b16 %v1244
    %v1267 = vunpack.c.l.b16 %v1245
    %v1268 = vunpack.c.l.b16 %v1246
    %v1269 = vunpack.c.l.b16 %v1247
    %v1270 = vpack.c.b16 %v1263, %v1262
    %v1271 = vpack.c.b16 %v1265, %v1264
    %v1272 = vpack.c.b16 %v1267, %v1266
    %v1273 = vpack.c.b16 %v1269, %v1268
    %v1279 = vsel %vm240, %v1252, 0
    %v1282 = vsel %vm240, %v1253, 0
    %1284 = vmatprep.subr.bf16.mxu0 0
    %1285 = vmatpush1.bf16.msra.mxu0 %v1270
    %1286 = vmatprep.subr.bf16.mxu0 0
    %1287 = vmatpush1.bf16.msra.mxu0 %v1271
    %1288 = vmatprep.subr.bf16.mxu0 0
    %1289 = vmatpush1.bf16.msra.mxu0 %v1272
    %1290 = vmatprep.subr.bf16.mxu0 0
    %1291 = vmatpush1.bf16.msra.mxu0 %v1273
    %1292 = vmatprep.subr.bf16.mxu0 0
    %1293 = vmatpush1.bf16.msra.mxu0 0
    %1294 = vmatprep.subr.bf16.mxu0 0
    %1295 = vmatpush1.bf16.msra.mxu0 0
    %1296 = vmatprep.subr.bf16.mxu0 0
    %1297 = vmatpush1.bf16.msra.mxu0 0
    %1298 = vmatprep.subr.bf16.mxu0 0
    %1299 = vmatpush1.bf16.msra.mxu0 0
    %1300 = vmatprep.subr.bf16.mxu0 0
    %1301 = vmatpush1.bf16.msra.mxu0 0
    %1302 = vmatprep.subr.bf16.mxu0 0
    %1303 = vmatpush1.bf16.msra.mxu0 0
    %1304 = vmatprep.subr.bf16.mxu0 0
    %1305 = vmatpush1.bf16.msra.mxu0 0
    %1306 = vmatprep.subr.bf16.mxu0 0
    %1307 = vmatpush1.bf16.msra.mxu0 0
    %1308 = vmatprep.subr.bf16.mxu0 0
    %1309 = vmatpush1.bf16.msra.mxu0 0
    %1310 = vmatprep.subr.bf16.mxu0 0
    %1311 = vmatpush1.bf16.msra.mxu0 0
    %1312 = vmatprep.subr.bf16.mxu0 0
    %1313 = vmatpush1.bf16.msra.mxu0 0
    %1314 = vmatprep.subr.bf16.mxu0 0
    %1315 = vmatpush1.bf16.msra.mxu0 0
    %1316 = vmatprep.mubr.bf16.mxu0 0
    %1317 = vmatmul.mubr.bf16.gmra.mrb[0].mxu0 %v1279
    %v1318 = vpop.f32.mrb[0].mxu0
    %v1319 = vadd.f32 0.0, %v1318
    %v1320 = vpop.f32.mrb[0].mxu0
    %v1321 = vpop.f32.mrb[0].mxu0
    %v1322 = vadd.f32 0.0, %v1321
    %v1323 = vpop.f32.mrb[0].mxu0
    %1324 = vmatprep.mubr.bf16.mxu0 0
    %1325 = vmatmul.mubr.bf16.gmra.mrb[0].mxu0 %v1282
    %v1326 = vpop.f32.mrb[0].mxu0
    %v1327 = vadd.f32 0.0, %v1326
    %v1328 = vpop.f32.mrb[0].mxu0
    %v1329 = vpop.f32.mrb[0].mxu0
    %v1330 = vadd.f32 0.0, %v1329
    %v1331 = vpop.f32.mrb[0].mxu0
    %1332 = vdwg.mxu0
    %v1333 = vadd.f32 %v1185, %v1319
    %v1334 = vadd.f32 %v1185, %v1322
    %v1335 = vadd.f32 %v1185, %v1327
    %v1336 = vadd.f32 %v1185, %v1330
    %v1337 = vld [vmem:[#allocation2] sm:$0xe]
    %v1338 = vld [vmem:[#allocation2 + $0xc] sm:$0xe]
    %v1345 = vrot.slane %v1337, 5
    %v1346 = vrot.slane %v1345, 4
    %v1347 = vrot.slane %v1187, 5
    %v1348 = vsel %vm464, %v1346, %v1347
    %v1349 = vrot.slane %v1347, 4
    %v1350 = vrot.slane %v1188, 5
    %v1351 = vsel %vm464, %v1349, %v1350
    %v1352 = vrot.slane %v1338, 5
    %v1353 = vrot.slane %v1352, 4
    %v1354 = vrot.slane %v1190, 5
    %v1355 = vsel %vm464, %v1353, %v1354
    %v1356 = vrot.slane %v1354, 4
    %v1357 = vrot.slane %v1191, 5
    %v1358 = vsel %vm464, %v1356, %v1357
    %v1359 = vld [vmem:[%s1 + $0x104] sm:$0xf]
    %v1360 = vld [vmem:[%s1 + $0x108] sm:$0xf]
    %v1361 = vld [vmem:[%s1 + $0x10c] sm:$0xf]
    %v1362 = vld [vmem:[%s1 + $0x110] sm:$0xf]
    %v1363 = vld [vmem:[%s1 + $0x114] sm:$0xf]
    %v1364 = vld [vmem:[%s1 + $0x118] sm:$0xf]
    %v1365 = vld [vmem:[%s1 + $0x11c] sm:$0xf]
    %v1366 = vld [vmem:[%s1 + $0x120] sm:$0xf]
    %v1367 = vunpack.c.l.b16 %v1348
    %v1368 = vunpack.c.l.b16 %v1351
    %v1369 = vunpack.c.l.b16 %v1355
    %v1370 = vunpack.c.l.b16 %v1358
    %v1371 = vpack.c.b16 %v1368, %v1367
    %v1372 = vpack.c.b16 %v1370, %v1369
    %v1381 = vunpack.c.l.b16 %v1359
    %v1382 = vunpack.c.l.b16 %v1360
    %v1383 = vunpack.c.l.b16 %v1361
    %v1384 = vunpack.c.l.b16 %v1362
    %v1385 = vunpack.c.l.b16 %v1363
    %v1386 = vunpack.c.l.b16 %v1364
    %v1387 = vunpack.c.l.b16 %v1365
    %v1388 = vunpack.c.l.b16 %v1366
    %v1389 = vpack.c.b16 %v1382, %v1381
    %v1390 = vpack.c.b16 %v1384, %v1383
    %v1391 = vpack.c.b16 %v1386, %v1385
    %v1392 = vpack.c.b16 %v1388, %v1387
    %v1398 = vsel %vm240, %v1371, 0
    %v1401 = vsel %vm240, %v1372, 0
    %1403 = vmatprep.subr.bf16.mxu0 0
    %1404 = vmatpush1.bf16.msra.mxu0 %v1389
    %1405 = vmatprep.subr.bf16.mxu0 0
    %1406 = vmatpush1.bf16.msra.mxu0 %v1390
    %1407 = vmatprep.subr.bf16.mxu0 0
    %1408 = vmatpush1.bf16.msra.mxu0 %v1391
    %1409 = vmatprep.subr.bf16.mxu0 0
    %1410 = vmatpush1.bf16.msra.mxu0 %v1392
    %1411 = vmatprep.subr.bf16.mxu0 0
    %1412 = vmatpush1.bf16.msra.mxu0 0
    %1413 = vmatprep.subr.bf16.mxu0 0
    %1414 = vmatpush1.bf16.msra.mxu0 0
    %1415 = vmatprep.subr.bf16.mxu0 0
    %1416 = vmatpush1.bf16.msra.mxu0 0
    %1417 = vmatprep.subr.bf16.mxu0 0
    %1418 = vmatpush1.bf16.msra.mxu0 0
    %1419 = vmatprep.subr.bf16.mxu0 0
    %1420 = vmatpush1.bf16.msra.mxu0 0
    %1421 = vmatprep.subr.bf16.mxu0 0
    %1422 = vmatpush1.bf16.msra.mxu0 0
    %1423 = vmatprep.subr.bf16.mxu0 0
    %1424 = vmatpush1.bf16.msra.mxu0 0
    %1425 = vmatprep.subr.bf16.mxu0 0
    %1426 = vmatpush1.bf16.msra.mxu0 0
    %1427 = vmatprep.subr.bf16.mxu0 0
    %1428 = vmatpush1.bf16.msra.mxu0 0
    %1429 = vmatprep.subr.bf16.mxu0 0
    %1430 = vmatpush1.bf16.msra.mxu0 0
    %1431 = vmatprep.subr.bf16.mxu0 0
    %1432 = vmatpush1.bf16.msra.mxu0 0
    %1433 = vmatprep.subr.bf16.mxu0 0
    %1434 = vmatpush1.bf16.msra.mxu0 0
    %1435 = vmatprep.mubr.bf16.mxu0 0
    %1436 = vmatmul.mubr.bf16.gmra.mrb[0].mxu0 %v1398
    %v1437 = vpop.f32.mrb[0].mxu0
    %v1438 = vadd.f32 0.0, %v1437
    %v1439 = vpop.f32.mrb[0].mxu0
    %v1440 = vpop.f32.mrb[0].mxu0
    %v1441 = vadd.f32 0.0, %v1440
    %v1442 = vpop.f32.mrb[0].mxu0
    %1443 = vmatprep.mubr.bf16.mxu0 0
    %1444 = vmatmul.mubr.bf16.gmra.mrb[0].mxu0 %v1401
    %v1445 = vpop.f32.mrb[0].mxu0
    %v1446 = vadd.f32 0.0, %v1445
    %v1447 = vpop.f32.mrb[0].mxu0
    %v1448 = vpop.f32.mrb[0].mxu0
    %v1449 = vadd.f32 0.0, %v1448
    %v1450 = vpop.f32.mrb[0].mxu0
    %1451 = vdwg.mxu0
    %v1452 = vadd.f32 %v1333, %v1438
    %v1453 = vadd.f32 %v1334, %v1441
    %v1454 = vadd.f32 %v1335, %v1446
    %v1455 = vadd.f32 %v1336, %v1449
    %v1456 = vld [vmem:[#allocation2 + $0x8] sm:$0x3]
    %v1457 = vld [vmem:[#allocation2 + $0x14] sm:$0x3]
    %v1459 = vshrl.u32 %v1337, 16
    %v1461 = vrot.slane %v1459, 5
    %v1462 = vshll.u32 %v1337, 16
    %v1464 = vrot.slane %v1462, 6
    %v1465 = vor.u32 %v1461, %v1464
    %v1466 = vrot.slane %v1465, 4
    %v1467 = vrot.slane %v1206, 5
    %v1468 = vrot.slane %v1202, 6
    %v1469 = vor.u32 %v1467, %v1468
    %v1470 = vsel %vm580, %v1466, %v1469
    %v1471 = vrot.slane %v1469, 4
    %v1473 = vshrl.u32 %v1456, 16
    %v1475 = vrot.slane %v1473, 5
    %v1476 = vshll.u32 %v1456, 16
    %v1478 = vrot.slane %v1476, 6
    %v1479 = vor.u32 %v1475, %v1478
    %v1480 = vsel %vm580, %v1471, %v1479
    %v1482 = vshrl.u32 %v1338, 16
    %v1484 = vrot.slane %v1482, 5
    %v1485 = vshll.u32 %v1338, 16
    %v1487 = vrot.slane %v1485, 6
    %v1488 = vor.u32 %v1484, %v1487
    %v1489 = vrot.slane %v1488, 4
    %v1490 = vrot.slane %v1230, 5
    %v1491 = vrot.slane %v1226, 6
    %v1492 = vor.u32 %v1490, %v1491
    %v1493 = vsel %vm580, %v1489, %v1492
    %v1494 = vrot.slane %v1492, 4
    %v1496 = vshrl.u32 %v1457, 16
    %v1498 = vrot.slane %v1496, 5
    %v1499 = vshll.u32 %v1457, 16
    %v1501 = vrot.slane %v1499, 6
    %v1502 = vor.u32 %v1498, %v1501
    %v1503 = vsel %vm580, %v1494, %v1502
    %v1504 = vld [vmem:[%s1 + $0x124] sm:$0xf]
    %v1505 = vld [vmem:[%s1 + $0x128] sm:$0xf]
    %v1506 = vld [vmem:[%s1 + $0x12c] sm:$0xf]
    %v1507 = vld [vmem:[%s1 + $0x130] sm:$0xf]
    %v1508 = vld [vmem:[%s1 + $0x134] sm:$0xf]
    %v1509 = vld [vmem:[%s1 + $0x138] sm:$0xf]
    %v1510 = vld [vmem:[%s1 + $0x13c] sm:$0xf]
    %v1511 = vld [vmem:[%s1 + $0x140] sm:$0xf]
    %v1512 = vunpack.c.l.b16 %v1470
    %v1513 = vunpack.c.l.b16 %v1480
    %v1514 = vunpack.c.l.b16 %v1493
    %v1515 = vunpack.c.l.b16 %v1503
    %v1516 = vpack.c.b16 %v1513, %v1512
    %v1517 = vpack.c.b16 %v1515, %v1514
    %v1526 = vunpack.c.l.b16 %v1504
    %v1527 = vunpack.c.l.b16 %v1505
    %v1528 = vunpack.c.l.b16 %v1506
    %v1529 = vunpack.c.l.b16 %v1507
    %v1530 = vunpack.c.l.b16 %v1508
    %v1531 = vunpack.c.l.b16 %v1509
    %v1532 = vunpack.c.l.b16 %v1510
    %v1533 = vunpack.c.l.b16 %v1511
    %v1534 = vpack.c.b16 %v1527, %v1526
    %v1535 = vpack.c.b16 %v1529, %v1528
    %v1536 = vpack.c.b16 %v1531, %v1530
    %v1537 = vpack.c.b16 %v1533, %v1532
    %v1543 = vsel %vm240, %v1516, 0
    %v1546 = vsel %vm240, %v1517, 0
    %1548 = vmatprep.subr.bf16.mxu0 0
    %1549 = vmatpush1.bf16.msra.mxu0 %v1534
    %1550 = vmatprep.subr.bf16.mxu0 0
    %1551 = vmatpush1.bf16.msra.mxu0 %v1535
    %1552 = vmatprep.subr.bf16.mxu0 0
    %1553 = vmatpush1.bf16.msra.mxu0 %v1536
    %1554 = vmatprep.subr.bf16.mxu0 0
    %1555 = vmatpush1.bf16.msra.mxu0 %v1537
    %1556 = vmatprep.subr.bf16.mxu0 0
    %1557 = vmatpush1.bf16.msra.mxu0 0
    %1558 = vmatprep.subr.bf16.mxu0 0
    %1559 = vmatpush1.bf16.msra.mxu0 0
    %1560 = vmatprep.subr.bf16.mxu0 0
    %1561 = vmatpush1.bf16.msra.mxu0 0
    %1562 = vmatprep.subr.bf16.mxu0 0
    %1563 = vmatpush1.bf16.msra.mxu0 0
    %1564 = vmatprep.subr.bf16.mxu0 0
    %1565 = vmatpush1.bf16.msra.mxu0 0
    %1566 = vmatprep.subr.bf16.mxu0 0
    %1567 = vmatpush1.bf16.msra.mxu0 0
    %1568 = vmatprep.subr.bf16.mxu0 0
    %1569 = vmatpush1.bf16.msra.mxu0 0
    %1570 = vmatprep.subr.bf16.mxu0 0
    %1571 = vmatpush1.bf16.msra.mxu0 0
    %1572 = vmatprep.subr.bf16.mxu0 0
    %1573 = vmatpush1.bf16.msra.mxu0 0
    %1574 = vmatprep.subr.bf16.mxu0 0
    %1575 = vmatpush1.bf16.msra.mxu0 0
    %1576 = vmatprep.subr.bf16.mxu0 0
    %1577 = vmatpush1.bf16.msra.mxu0 0
    %1578 = vmatprep.subr.bf16.mxu0 0
    %1579 = vmatpush1.bf16.msra.mxu0 0
    %1580 = vmatprep.mubr.bf16.mxu0 0
    %1581 = vmatmul.mubr.bf16.gmra.mrb[0].mxu0 %v1543
    %v1582 = vpop.f32.mrb[0].mxu0
    %v1583 = vadd.f32 0.0, %v1582
    %v1584 = vpop.f32.mrb[0].mxu0
    %v1585 = vpop.f32.mrb[0].mxu0
    %v1586 = vadd.f32 0.0, %v1585
    %v1587 = vpop.f32.mrb[0].mxu0
    %1588 = vmatprep.mubr.bf16.mxu0 0
    %1589 = vmatmul.mubr.bf16.gmra.mrb[0].mxu0 %v1546
    %v1590 = vpop.f32.mrb[0].mxu0
    %v1591 = vadd.f32 0.0, %v1590
    %v1592 = vpop.f32.mrb[0].mxu0
    %v1593 = vpop.f32.mrb[0].mxu0
    %v1594 = vadd.f32 0.0, %v1593
    %v1595 = vpop.f32.mrb[0].mxu0
    %1596 = vdwg.mxu0
    %v1597 = vadd.f32 %v1452, %v1583
    %v1598 = vadd.f32 %v1453, %v1586
    %v1599 = vadd.f32 %v1454, %v1591
    %v1600 = vadd.f32 %v1455, %v1594
    %v1601 = vld [vmem:[#allocation2] sm:$0xc]
    %v1602 = vld [vmem:[#allocation2 + $0xc] sm:$0xc]
    %v1607 = vrot.slane %v1601, 6
    %v1608 = vrot.slane %v1607, 4
    %v1609 = vrot.slane %v1187, 6
    %v1610 = vsel %vm731, %v1608, %v1609
    %v1611 = vrot.slane %v1609, 4
    %v1612 = vrot.slane %v1456, 6
    %v1613 = vsel %vm731, %v1611, %v1612
    %v1614 = vrot.slane %v1602, 6
    %v1615 = vrot.slane %v1614, 4
    %v1616 = vrot.slane %v1190, 6
    %v1617 = vsel %vm731, %v1615, %v1616
    %v1618 = vrot.slane %v1616, 4
    %v1619 = vrot.slane %v1457, 6
    %v1620 = vsel %vm731, %v1618, %v1619
    %v1621 = vld [vmem:[%s1 + $0x144] sm:$0xf]
    %v1622 = vld [vmem:[%s1 + $0x148] sm:$0xf]
    %v1623 = vld [vmem:[%s1 + $0x14c] sm:$0xf]
    %v1624 = vld [vmem:[%s1 + $0x150] sm:$0xf]
    %v1625 = vld [vmem:[%s1 + $0x154] sm:$0xf]
    %v1626 = vld [vmem:[%s1 + $0x158] sm:$0xf]
    %v1627 = vld [vmem:[%s1 + $0x15c] sm:$0xf]
    %v1628 = vld [vmem:[%s1 + $0x160] sm:$0xf]
    %v1629 = vunpack.c.l.b16 %v1610
    %v1630 = vunpack.c.l.b16 %v1613
    %v1631 = vunpack.c.l.b16 %v1617
    %v1632 = vunpack.c.l.b16 %v1620
    %v1633 = vpack.c.b16 %v1630, %v1629
    %v1634 = vpack.c.b16 %v1632, %v1631
    %v1643 = vunpack.c.l.b16 %v1621
    %v1644 = vunpack.c.l.b16 %v1622
    %v1645 = vunpack.c.l.b16 %v1623
    %v1646 = vunpack.c.l.b16 %v1624
    %v1647 = vunpack.c.l.b16 %v1625
    %v1648 = vunpack.c.l.b16 %v1626
    %v1649 = vunpack.c.l.b16 %v1627
    %v1650 = vunpack.c.l.b16 %v1628
    %v1651 = vpack.c.b16 %v1644, %v1643
    %v1652 = vpack.c.b16 %v1646, %v1645
    %v1653 = vpack.c.b16 %v1648, %v1647
    %v1654 = vpack.c.b16 %v1650, %v1649
    %v1660 = vsel %vm240, %v1633, 0
    %v1663 = vsel %vm240, %v1634, 0
    %1665 = vmatprep.subr.bf16.mxu0 0
    %1666 = vmatpush1.bf16.msra.mxu0 %v1651
    %1667 = vmatprep.subr.bf16.mxu0 0
    %1668 = vmatpush1.bf16.msra.mxu0 %v1652
    %1669 = vmatprep.subr.bf16.mxu0 0
    %1670 = vmatpush1.bf16.msra.mxu0 %v1653
    %1671 = vmatprep.subr.bf16.mxu0 0
    %1672 = vmatpush1.bf16.msra.mxu0 %v1654
    %1673 = vmatprep.subr.bf16.mxu0 0
    %1674 = vmatpush1.bf16.msra.mxu0 0
    %1675 = vmatprep.subr.bf16.mxu0 0
    %1676 = vmatpush1.bf16.msra.mxu0 0
    %1677 = vmatprep.subr.bf16.mxu0 0
    %1678 = vmatpush1.bf16.msra.mxu0 0
    %1679 = vmatprep.subr.bf16.mxu0 0
    %1680 = vmatpush1.bf16.msra.mxu0 0
    %1681 = vmatprep.subr.bf16.mxu0 0
    %1682 = vmatpush1.bf16.msra.mxu0 0
    %1683 = vmatprep.subr.bf16.mxu0 0
    %1684 = vmatpush1.bf16.msra.mxu0 0
    %1685 = vmatprep.subr.bf16.mxu0 0
    %1686 = vmatpush1.bf16.msra.mxu0 0
    %1687 = vmatprep.subr.bf16.mxu0 0
    %1688 = vmatpush1.bf16.msra.mxu0 0
    %1689 = vmatprep.subr.bf16.mxu0 0
    %1690 = vmatpush1.bf16.msra.mxu0 0
    %1691 = vmatprep.subr.bf16.mxu0 0
    %1692 = vmatpush1.bf16.msra.mxu0 0
    %1693 = vmatprep.subr.bf16.mxu0 0
    %1694 = vmatpush1.bf16.msra.mxu0 0
    %1695 = vmatprep.subr.bf16.mxu0 0
    %1696 = vmatpush1.bf16.msra.mxu0 0
    %1697 = vmatprep.mubr.bf16.mxu0 0
    %1698 = vmatmul.mubr.bf16.gmra.mrb[0].mxu0 %v1660
    %v1699 = vpop.f32.mrb[0].mxu0
    %v1700 = vadd.f32 0.0, %v1699
    %v1701 = vpop.f32.mrb[0].mxu0
    %v1702 = vpop.f32.mrb[0].mxu0
    %v1703 = vadd.f32 0.0, %v1702
    %v1704 = vpop.f32.mrb[0].mxu0
    %1705 = vmatprep.mubr.bf16.mxu0 0
    %1706 = vmatmul.mubr.bf16.gmra.mrb[0].mxu0 %v1663
    %v1707 = vpop.f32.mrb[0].mxu0
    %v1708 = vadd.f32 0.0, %v1707
    %v1709 = vpop.f32.mrb[0].mxu0
    %v1710 = vpop.f32.mrb[0].mxu0
    %v1711 = vadd.f32 0.0, %v1710
    %v1712 = vpop.f32.mrb[0].mxu0
    %1713 = vdwg.mxu0
    %v1714 = vadd.f32 %v1597, %v1700
    %v1715 = vadd.f32 %v1598, %v1703
    %v1716 = vadd.f32 %v1599, %v1708
    %v1717 = vadd.f32 %v1600, %v1711
    %v1718 = vld [vmem:[#allocation2 + $0x8] sm:$0x7]
    %v1719 = vld [vmem:[#allocation2 + $0x14] sm:$0x7]
    %v1721 = vshrl.u32 %v1601, 16
    %v1723 = vrot.slane %v1721, 6
    %v1724 = vshll.u32 %v1601, 16
    %v1726 = vrot.slane %v1724, 7
    %v1727 = vor.u32 %v1723, %v1726
    %v1728 = vrot.slane %v1727, 4
    %v1729 = vrot.slane %v1206, 6
    %v1730 = vrot.slane %v1202, 7
    %v1731 = vor.u32 %v1729, %v1730
    %v1732 = vsel %vm128, %v1728, %v1731
    %v1733 = vrot.slane %v1731, 4
    %v1735 = vshrl.u32 %v1718, 16
    %v1737 = vrot.slane %v1735, 6
    %v1738 = vshll.u32 %v1718, 16
    %v1740 = vrot.slane %v1738, 7
    %v1741 = vor.u32 %v1737, %v1740
    %v1742 = vsel %vm128, %v1733, %v1741
    %v1744 = vshrl.u32 %v1602, 16
    %v1746 = vrot.slane %v1744, 6
    %v1747 = vshll.u32 %v1602, 16
    %v1749 = vrot.slane %v1747, 7
    %v1750 = vor.u32 %v1746, %v1749
    %v1751 = vrot.slane %v1750, 4
    %v1752 = vrot.slane %v1230, 6
    %v1753 = vrot.slane %v1226, 7
    %v1754 = vor.u32 %v1752, %v1753
    %v1755 = vsel %vm128, %v1751, %v1754
    %v1756 = vrot.slane %v1754, 4
    %v1758 = vshrl.u32 %v1719, 16
    %v1760 = vrot.slane %v1758, 6
    %v1761 = vshll.u32 %v1719, 16
    %v1763 = vrot.slane %v1761, 7
    %v1764 = vor.u32 %v1760, %v1763
    %v1765 = vsel %vm128, %v1756, %v1764
    %v1766 = vld [vmem:[%s1 + $0x164] sm:$0xf]
    %v1767 = vld [vmem:[%s1 + $0x168] sm:$0xf]
    %v1768 = vld [vmem:[%s1 + $0x16c] sm:$0xf]
    %v1769 = vld [vmem:[%s1 + $0x170] sm:$0xf]
    %v1770 = vld [vmem:[%s1 + $0x174] sm:$0xf]
    %v1771 = vld [vmem:[%s1 + $0x178] sm:$0xf]
    %v1772 = vld [vmem:[%s1 + $0x17c] sm:$0xf]
    %v1773 = vld [vmem:[%s1 + $0x180] sm:$0xf]
    %v1774 = vunpack.c.l.b16 %v1732
    %v1775 = vunpack.c.l.b16 %v1742
    %v1776 = vunpack.c.l.b16 %v1755
    %v1777 = vunpack.c.l.b16 %v1765
    %v1778 = vpack.c.b16 %v1775, %v1774
    %v1779 = vpack.c.b16 %v1777, %v1776
    %v1788 = vunpack.c.l.b16 %v1766
    %v1789 = vunpack.c.l.b16 %v1767
    %v1790 = vunpack.c.l.b16 %v1768
    %v1791 = vunpack.c.l.b16 %v1769
    %v1792 = vunpack.c.l.b16 %v1770
    %v1793 = vunpack.c.l.b16 %v1771
    %v1794 = vunpack.c.l.b16 %v1772
    %v1795 = vunpack.c.l.b16 %v1773
    %v1796 = vpack.c.b16 %v1789, %v1788
    %v1797 = vpack.c.b16 %v1791, %v1790
    %v1798 = vpack.c.b16 %v1793, %v1792
    %v1799 = vpack.c.b16 %v1795, %v1794
    %v1805 = vsel %vm240, %v1778, 0
    %v1808 = vsel %vm240, %v1779, 0
    %1810 = vmatprep.subr.bf16.mxu0 0
    %1811 = vmatpush1.bf16.msra.mxu0 %v1796
    %1812 = vmatprep.subr.bf16.mxu0 0
    %1813 = vmatpush1.bf16.msra.mxu0 %v1797
    %1814 = vmatprep.subr.bf16.mxu0 0
    %1815 = vmatpush1.bf16.msra.mxu0 %v1798
    %1816 = vmatprep.subr.bf16.mxu0 0
    %1817 = vmatpush1.bf16.msra.mxu0 %v1799
    %1818 = vmatprep.subr.bf16.mxu0 0
    %1819 = vmatpush1.bf16.msra.mxu0 0
    %1820 = vmatprep.subr.bf16.mxu0 0
    %1821 = vmatpush1.bf16.msra.mxu0 0
    %1822 = vmatprep.subr.bf16.mxu0 0
    %1823 = vmatpush1.bf16.msra.mxu0 0
    %1824 = vmatprep.subr.bf16.mxu0 0
    %1825 = vmatpush1.bf16.msra.mxu0 0
    %1826 = vmatprep.subr.bf16.mxu0 0
    %1827 = vmatpush1.bf16.msra.mxu0 0
    %1828 = vmatprep.subr.bf16.mxu0 0
    %1829 = vmatpush1.bf16.msra.mxu0 0
    %1830 = vmatprep.subr.bf16.mxu0 0
    %1831 = vmatpush1.bf16.msra.mxu0 0
    %1832 = vmatprep.subr.bf16.mxu0 0
    %1833 = vmatpush1.bf16.msra.mxu0 0
    %1834 = vmatprep.subr.bf16.mxu0 0
    %1835 = vmatpush1.bf16.msra.mxu0 0
    %1836 = vmatprep.subr.bf16.mxu0 0
    %1837 = vmatpush1.bf16.msra.mxu0 0
    %1838 = vmatprep.subr.bf16.mxu0 0
    %1839 = vmatpush1.bf16.msra.mxu0 0
    %1840 = vmatprep.subr.bf16.mxu0 0
    %1841 = vmatpush1.bf16.msra.mxu0 0
    %1842 = vmatprep.mubr.bf16.mxu0 0
    %1843 = vmatmul.mubr.bf16.gmra.mrb[0].mxu0 %v1805
    %v1844 = vpop.f32.mrb[0].mxu0
    %v1845 = vadd.f32 0.0, %v1844
    %v1846 = vpop.f32.mrb[0].mxu0
    %v1847 = vpop.f32.mrb[0].mxu0
    %v1848 = vadd.f32 0.0, %v1847
    %v1849 = vpop.f32.mrb[0].mxu0
    %1850 = vmatprep.mubr.bf16.mxu0 0
    %1851 = vmatmul.mubr.bf16.gmra.mrb[0].mxu0 %v1808
    %v1852 = vpop.f32.mrb[0].mxu0
    %v1853 = vadd.f32 0.0, %v1852
    %v1854 = vpop.f32.mrb[0].mxu0
    %v1855 = vpop.f32.mrb[0].mxu0
    %v1856 = vadd.f32 0.0, %v1855
    %v1857 = vpop.f32.mrb[0].mxu0
    %1858 = vdwg.mxu0
    %v1859 = vadd.f32 %v1714, %v1845
    %v1860 = vadd.f32 %v1715, %v1848
    %v1861 = vadd.f32 %v1716, %v1853
    %v1862 = vadd.f32 %v1717, %v1856
    %v1863 = vmax.f32 %v1859, 0.0
    %v1864 = vmax.f32 %v1860, 0.0
    %v1865 = vmax.f32 %v1861, 0.0
    %v1866 = vmax.f32 %v1862, 0.0
    %v1867 = vpack.c.bf16 %v1864, %v1863
    %v1868 = vpack.c.bf16 %v1866, %v1865
    %v1871 = vunpack.c.l.b16 %v1867
    %v1872 = vunpack.c.h.b16 %v1867
    %v1873 = vunpack.c.l.b16 %v1868
    %v1874 = vunpack.c.h.b16 %v1868
    %v1875 = vpack.c.b16 %v1871, %v1871
    %v1876 = vpack.c.b16 %v1872, %v1872
    %v1877 = vpack.c.b16 %v1873, %v1873
    %v1878 = vpack.c.b16 %v1874, %v1874
    %v1880 = vshrl.u32 %v1875, 16
    %v1882 = vrot.slane %v1880, 6
    %v1883 = vshll.u32 %v1875, 16
    %v1885 = vrot.slane %v1883, 7
    %v1886 = vor.u32 %v1882, %v1885
    %v1887 = vrot.slane %v1886, 4
    %v1889 = vshrl.u32 %v1876, 16
    %v1891 = vrot.slane %v1889, 6
    %v1892 = vshll.u32 %v1876, 16
    %v1894 = vrot.slane %v1892, 7
    %v1895 = vor.u32 %v1891, %v1894
    %v1896 = vsel %vm128, %v1887, %v1895
    %v1897 = vrot.slane %v1895, 4
    %v1899 = vshrl.u32 %v1877, 16
    %v1901 = vrot.slane %v1899, 6
    %v1902 = vshll.u32 %v1877, 16
    %v1904 = vrot.slane %v1902, 7
    %v1905 = vor.u32 %v1901, %v1904
    %v1906 = vrot.slane %v1905, 4
    %v1908 = vshrl.u32 %v1878, 16
    %v1910 = vrot.slane %v1908, 6
    %v1911 = vshll.u32 %v1878, 16
    %v1913 = vrot.slane %v1911, 7
    %v1914 = vor.u32 %v1910, %v1913
    %v1915 = vsel %vm128, %v1906, %v1914
    %v1916 = vrot.slane %v1914, 4
    %v1923 = vsel %vm174, %v1886, %v1337
    %1924 = vst [vmem:[#allocation2] sm:$0xe] %v1923
    %1925 = vst [vmem:[#allocation2 + $0x4] sm:$0xf] %v1896
    %v1926 = vld [vmem:[#allocation2 + $0x8] sm:$0x3]
    %v1927 = vsel %vm20, %v1897, %v1926
    %1928 = vst [vmem:[#allocation2 + $0x8] sm:$0x3] %v1927
    %v1929 = vld [vmem:[#allocation2 + $0xc] sm:$0xe]
    %v1930 = vsel %vm174, %v1905, %v1929
    %1931 = vst [vmem:[#allocation2 + $0xc] sm:$0xe] %v1930
    %1932 = vst [vmem:[#allocation2 + $0x10] sm:$0xf] %v1915
    %v1933 = vld [vmem:[#allocation2 + $0x14] sm:$0x3]
    %v1934 = vsel %vm20, %v1916, %v1933
    %1935 = vst [vmem:[#allocation2 + $0x14] sm:$0x3] %v1934
    %v1936 = vlaneseq
    %v1937 = vshrl.u32 %v1936, 7
    %v1938 = vsub.s32 3, %v1937
    %v1939 = vrot.slane %v16, %v1938
    %v1940 = vadd.f32 %v1939, 0.0
    %v1941 = vld [vmem:[#allocation2] sm:$0xe]
    %v1942 = vld [vmem:[#allocation2 + $0x4] sm:$0xf]
    %v1943 = vld [vmem:[#allocation2 + $0x8] sm:$0x1]
    %v1944 = vld [vmem:[#allocation2 + $0xc] sm:$0xe]
    %v1945 = vld [vmem:[#allocation2 + $0x10] sm:$0xf]
    %v1946 = vld [vmem:[#allocation2 + $0x14] sm:$0x1]
    %v1953 = vrot.slane %v1941, 5
    %v1954 = vrot.slane %v1953, 4
    %v1955 = vrot.slane %v1942, 5
    %v1956 = vsel %vm464, %v1954, %v1955
    %v1957 = vrot.slane %v1955, 4
    %v1958 = vrot.slane %v1943, 5
    %v1959 = vsel %vm464, %v1957, %v1958
    %v1960 = vrot.slane %v1944, 5
    %v1961 = vrot.slane %v1960, 4
    %v1962 = vrot.slane %v1945, 5
    %v1963 = vsel %vm464, %v1961, %v1962
    %v1964 = vrot.slane %v1962, 4
    %v1965 = vrot.slane %v1946, 5
    %v1966 = vsel %vm464, %v1964, %v1965
    %v1967 = vld [vmem:[%s1 + $0x184] sm:$0xf]
    %v1968 = vld [vmem:[%s1 + $0x188] sm:$0xf]
    %v1969 = vld [vmem:[%s1 + $0x18c] sm:$0xf]
    %v1970 = vld [vmem:[%s1 + $0x190] sm:$0xf]
    %v1971 = vld [vmem:[%s1 + $0x194] sm:$0xf]
    %v1972 = vld [vmem:[%s1 + $0x198] sm:$0xf]
    %v1973 = vld [vmem:[%s1 + $0x19c] sm:$0xf]
    %v1974 = vld [vmem:[%s1 + $0x1a0] sm:$0xf]
    %v1975 = vunpack.c.l.b16 %v1956
    %v1976 = vunpack.c.l.b16 %v1959
    %v1977 = vunpack.c.l.b16 %v1963
    %v1978 = vunpack.c.l.b16 %v1966
    %v1979 = vpack.c.b16 %v1976, %v1975
    %v1980 = vpack.c.b16 %v1978, %v1977
    %v1989 = vunpack.c.l.b16 %v1967
    %v1990 = vunpack.c.l.b16 %v1968
    %v1991 = vunpack.c.l.b16 %v1969
    %v1992 = vunpack.c.l.b16 %v1970
    %v1993 = vunpack.c.l.b16 %v1971
    %v1994 = vunpack.c.l.b16 %v1972
    %v1995 = vunpack.c.l.b16 %v1973
    %v1996 = vunpack.c.l.b16 %v1974
    %v1997 = vpack.c.b16 %v1990, %v1989
    %v1998 = vpack.c.b16 %v1992, %v1991
    %v1999 = vpack.c.b16 %v1994, %v1993
    %v2000 = vpack.c.b16 %v1996, %v1995
    %v2006 = vsel %vm240, %v1979, 0
    %v2009 = vsel %vm240, %v1980, 0
    %2011 = vmatprep.subr.bf16.mxu0 0
    %2012 = vmatpush1.bf16.msra.mxu0 %v1997
    %2013 = vmatprep.subr.bf16.mxu0 0
    %2014 = vmatpush1.bf16.msra.mxu0 %v1998
    %2015 = vmatprep.subr.bf16.mxu0 0
    %2016 = vmatpush1.bf16.msra.mxu0 %v1999
    %2017 = vmatprep.subr.bf16.mxu0 0
    %2018 = vmatpush1.bf16.msra.mxu0 %v2000
    %2019 = vmatprep.subr.bf16.mxu0 0
    %2020 = vmatpush1.bf16.msra.mxu0 0
    %2021 = vmatprep.subr.bf16.mxu0 0
    %2022 = vmatpush1.bf16.msra.mxu0 0
    %2023 = vmatprep.subr.bf16.mxu0 0
    %2024 = vmatpush1.bf16.msra.mxu0 0
    %2025 = vmatprep.subr.bf16.mxu0 0
    %2026 = vmatpush1.bf16.msra.mxu0 0
    %2027 = vmatprep.subr.bf16.mxu0 0
    %2028 = vmatpush1.bf16.msra.mxu0 0
    %2029 = vmatprep.subr.bf16.mxu0 0
    %2030 = vmatpush1.bf16.msra.mxu0 0
    %2031 = vmatprep.subr.bf16.mxu0 0
    %2032 = vmatpush1.bf16.msra.mxu0 0
    %2033 = vmatprep.subr.bf16.mxu0 0
    %2034 = vmatpush1.bf16.msra.mxu0 0
    %2035 = vmatprep.subr.bf16.mxu0 0
    %2036 = vmatpush1.bf16.msra.mxu0 0
    %2037 = vmatprep.subr.bf16.mxu0 0
    %2038 = vmatpush1.bf16.msra.mxu0 0
    %2039 = vmatprep.subr.bf16.mxu0 0
    %2040 = vmatpush1.bf16.msra.mxu0 0
    %2041 = vmatprep.subr.bf16.mxu0 0
    %2042 = vmatpush1.bf16.msra.mxu0 0
    %2043 = vmatprep.mubr.bf16.mxu0 0
    %2044 = vmatmul.mubr.bf16.gmra.mrb[0].mxu0 %v2006
    %v2045 = vpop.f32.mrb[0].mxu0
    %v2046 = vadd.f32 0.0, %v2045
    %v2047 = vpop.f32.mrb[0].mxu0
    %v2048 = vpop.f32.mrb[0].mxu0
    %v2049 = vadd.f32 0.0, %v2048
    %v2050 = vpop.f32.mrb[0].mxu0
    %2051 = vmatprep.mubr.bf16.mxu0 0
    %2052 = vmatmul.mubr.bf16.gmra.mrb[0].mxu0 %v2009
    %v2053 = vpop.f32.mrb[0].mxu0
    %v2054 = vadd.f32 0.0, %v2053
    %v2055 = vpop.f32.mrb[0].mxu0
    %v2056 = vpop.f32.mrb[0].mxu0
    %v2057 = vadd.f32 0.0, %v2056
    %v2058 = vpop.f32.mrb[0].mxu0
    %2059 = vdwg.mxu0
    %v2060 = vadd.f32 %v1940, %v2046
    %v2061 = vadd.f32 %v1940, %v2049
    %v2062 = vadd.f32 %v1940, %v2054
    %v2063 = vadd.f32 %v1940, %v2057
    %v2064 = vld [vmem:[#allocation2 + $0x8] sm:$0x3]
    %v2065 = vld [vmem:[#allocation2 + $0x14] sm:$0x3]
    %v2067 = vshrl.u32 %v1941, 16
    %v2069 = vrot.slane %v2067, 5
    %v2070 = vshll.u32 %v1941, 16
    %v2072 = vrot.slane %v2070, 6
    %v2073 = vor.u32 %v2069, %v2072
    %v2074 = vrot.slane %v2073, 4
    %v2076 = vshrl.u32 %v1942, 16
    %v2078 = vrot.slane %v2076, 5
    %v2079 = vshll.u32 %v1942, 16
    %v2081 = vrot.slane %v2079, 6
    %v2082 = vor.u32 %v2078, %v2081
    %v2083 = vsel %vm580, %v2074, %v2082
    %v2084 = vrot.slane %v2082, 4
    %v2086 = vshrl.u32 %v2064, 16
    %v2088 = vrot.slane %v2086, 5
    %v2089 = vshll.u32 %v2064, 16
    %v2091 = vrot.slane %v2089, 6
    %v2092 = vor.u32 %v2088, %v2091
    %v2093 = vsel %vm580, %v2084, %v2092
    %v2095 = vshrl.u32 %v1944, 16
    %v2097 = vrot.slane %v2095, 5
    %v2098 = vshll.u32 %v1944, 16
    %v2100 = vrot.slane %v2098, 6
    %v2101 = vor.u32 %v2097, %v2100
    %v2102 = vrot.slane %v2101, 4
    %v2104 = vshrl.u32 %v1945, 16
    %v2106 = vrot.slane %v2104, 5
    %v2107 = vshll.u32 %v1945, 16
    %v2109 = vrot.slane %v2107, 6
    %v2110 = vor.u32 %v2106, %v2109
    %v2111 = vsel %vm580, %v2102, %v2110
    %v2112 = vrot.slane %v2110, 4
    %v2114 = vshrl.u32 %v2065, 16
    %v2116 = vrot.slane %v2114, 5
    %v2117 = vshll.u32 %v2065, 16
    %v2119 = vrot.slane %v2117, 6
    %v2120 = vor.u32 %v2116, %v2119
    %v2121 = vsel %vm580, %v2112, %v2120
    %v2122 = vld [vmem:[%s1 + $0x1a4] sm:$0xf]
    %v2123 = vld [vmem:[%s1 + $0x1a8] sm:$0xf]
    %v2124 = vld [vmem:[%s1 + $0x1ac] sm:$0xf]
    %v2125 = vld [vmem:[%s1 + $0x1b0] sm:$0xf]
    %v2126 = vld [vmem:[%s1 + $0x1b4] sm:$0xf]
    %v2127 = vld [vmem:[%s1 + $0x1b8] sm:$0xf]
    %v2128 = vld [vmem:[%s1 + $0x1bc] sm:$0xf]
    %v2129 = vld [vmem:[%s1 + $0x1c0] sm:$0xf]
    %v2130 = vunpack.c.l.b16 %v2083
    %v2131 = vunpack.c.l.b16 %v2093
    %v2132 = vunpack.c.l.b16 %v2111
    %v2133 = vunpack.c.l.b16 %v2121
    %v2134 = vpack.c.b16 %v2131, %v2130
    %v2135 = vpack.c.b16 %v2133, %v2132
    %v2144 = vunpack.c.l.b16 %v2122
    %v2145 = vunpack.c.l.b16 %v2123
    %v2146 = vunpack.c.l.b16 %v2124
    %v2147 = vunpack.c.l.b16 %v2125
    %v2148 = vunpack.c.l.b16 %v2126
    %v2149 = vunpack.c.l.b16 %v2127
    %v2150 = vunpack.c.l.b16 %v2128
    %v2151 = vunpack.c.l.b16 %v2129
    %v2152 = vpack.c.b16 %v2145, %v2144
    %v2153 = vpack.c.b16 %v2147, %v2146
    %v2154 = vpack.c.b16 %v2149, %v2148
    %v2155 = vpack.c.b16 %v2151, %v2150
    %v2161 = vsel %vm240, %v2134, 0
    %v2164 = vsel %vm240, %v2135, 0
    %2166 = vmatprep.subr.bf16.mxu0 0
    %2167 = vmatpush1.bf16.msra.mxu0 %v2152
    %2168 = vmatprep.subr.bf16.mxu0 0
    %2169 = vmatpush1.bf16.msra.mxu0 %v2153
    %2170 = vmatprep.subr.bf16.mxu0 0
    %2171 = vmatpush1.bf16.msra.mxu0 %v2154
    %2172 = vmatprep.subr.bf16.mxu0 0
    %2173 = vmatpush1.bf16.msra.mxu0 %v2155
    %2174 = vmatprep.subr.bf16.mxu0 0
    %2175 = vmatpush1.bf16.msra.mxu0 0
    %2176 = vmatprep.subr.bf16.mxu0 0
    %2177 = vmatpush1.bf16.msra.mxu0 0
    %2178 = vmatprep.subr.bf16.mxu0 0
    %2179 = vmatpush1.bf16.msra.mxu0 0
    %2180 = vmatprep.subr.bf16.mxu0 0
    %2181 = vmatpush1.bf16.msra.mxu0 0
    %2182 = vmatprep.subr.bf16.mxu0 0
    %2183 = vmatpush1.bf16.msra.mxu0 0
    %2184 = vmatprep.subr.bf16.mxu0 0
    %2185 = vmatpush1.bf16.msra.mxu0 0
    %2186 = vmatprep.subr.bf16.mxu0 0
    %2187 = vmatpush1.bf16.msra.mxu0 0
    %2188 = vmatprep.subr.bf16.mxu0 0
    %2189 = vmatpush1.bf16.msra.mxu0 0
    %2190 = vmatprep.subr.bf16.mxu0 0
    %2191 = vmatpush1.bf16.msra.mxu0 0
    %2192 = vmatprep.subr.bf16.mxu0 0
    %2193 = vmatpush1.bf16.msra.mxu0 0
    %2194 = vmatprep.subr.bf16.mxu0 0
    %2195 = vmatpush1.bf16.msra.mxu0 0
    %2196 = vmatprep.subr.bf16.mxu0 0
    %2197 = vmatpush1.bf16.msra.mxu0 0
    %2198 = vmatprep.mubr.bf16.mxu0 0
    %2199 = vmatmul.mubr.bf16.gmra.mrb[0].mxu0 %v2161
    %v2200 = vpop.f32.mrb[0].mxu0
    %v2201 = vadd.f32 0.0, %v2200
    %v2202 = vpop.f32.mrb[0].mxu0
    %v2203 = vpop.f32.mrb[0].mxu0
    %v2204 = vadd.f32 0.0, %v2203
    %v2205 = vpop.f32.mrb[0].mxu0
    %2206 = vmatprep.mubr.bf16.mxu0 0
    %2207 = vmatmul.mubr.bf16.gmra.mrb[0].mxu0 %v2164
    %v2208 = vpop.f32.mrb[0].mxu0
    %v2209 = vadd.f32 0.0, %v2208
    %v2210 = vpop.f32.mrb[0].mxu0
    %v2211 = vpop.f32.mrb[0].mxu0
    %v2212 = vadd.f32 0.0, %v2211
    %v2213 = vpop.f32.mrb[0].mxu0
    %2214 = vdwg.mxu0
    %v2215 = vadd.f32 %v2060, %v2201
    %v2216 = vadd.f32 %v2061, %v2204
    %v2217 = vadd.f32 %v2062, %v2209
    %v2218 = vadd.f32 %v2063, %v2212
    %v2219 = vld [vmem:[#allocation2] sm:$0xc]
    %v2220 = vld [vmem:[#allocation2 + $0xc] sm:$0xc]
    %v2225 = vrot.slane %v2219, 6
    %v2226 = vrot.slane %v2225, 4
    %v2227 = vrot.slane %v1942, 6
    %v2228 = vsel %vm731, %v2226, %v2227
    %v2229 = vrot.slane %v2227, 4
    %v2230 = vrot.slane %v2064, 6
    %v2231 = vsel %vm731, %v2229, %v2230
    %v2232 = vrot.slane %v2220, 6
    %v2233 = vrot.slane %v2232, 4
    %v2234 = vrot.slane %v1945, 6
    %v2235 = vsel %vm731, %v2233, %v2234
    %v2236 = vrot.slane %v2234, 4
    %v2237 = vrot.slane %v2065, 6
    %v2238 = vsel %vm731, %v2236, %v2237
    %v2239 = vld [vmem:[%s1 + $0x1c4] sm:$0xf]
    %v2240 = vld [vmem:[%s1 + $0x1c8] sm:$0xf]
    %v2241 = vld [vmem:[%s1 + $0x1cc] sm:$0xf]
    %v2242 = vld [vmem:[%s1 + $0x1d0] sm:$0xf]
    %v2243 = vld [vmem:[%s1 + $0x1d4] sm:$0xf]
    %v2244 = vld [vmem:[%s1 + $0x1d8] sm:$0xf]
    %v2245 = vld [vmem:[%s1 + $0x1dc] sm:$0xf]
    %v2246 = vld [vmem:[%s1 + $0x1e0] sm:$0xf]
    %v2247 = vunpack.c.l.b16 %v2228
    %v2248 = vunpack.c.l.b16 %v2231
    %v2249 = vunpack.c.l.b16 %v2235
    %v2250 = vunpack.c.l.b16 %v2238
    %v2251 = vpack.c.b16 %v2248, %v2247
    %v2252 = vpack.c.b16 %v2250, %v2249
    %v2261 = vunpack.c.l.b16 %v2239
    %v2262 = vunpack.c.l.b16 %v2240
    %v2263 = vunpack.c.l.b16 %v2241
    %v2264 = vunpack.c.l.b16 %v2242
    %v2265 = vunpack.c.l.b16 %v2243
    %v2266 = vunpack.c.l.b16 %v2244
    %v2267 = vunpack.c.l.b16 %v2245
    %v2268 = vunpack.c.l.b16 %v2246
    %v2269 = vpack.c.b16 %v2262, %v2261
    %v2270 = vpack.c.b16 %v2264, %v2263
    %v2271 = vpack.c.b16 %v2266, %v2265
    %v2272 = vpack.c.b16 %v2268, %v2267
    %v2278 = vsel %vm240, %v2251, 0
    %v2281 = vsel %vm240, %v2252, 0
    %2283 = vmatprep.subr.bf16.mxu0 0
    %2284 = vmatpush1.bf16.msra.mxu0 %v2269
    %2285 = vmatprep.subr.bf16.mxu0 0
    %2286 = vmatpush1.bf16.msra.mxu0 %v2270
    %2287 = vmatprep.subr.bf16.mxu0 0
    %2288 = vmatpush1.bf16.msra.mxu0 %v2271
    %2289 = vmatprep.subr.bf16.mxu0 0
    %2290 = vmatpush1.bf16.msra.mxu0 %v2272
    %2291 = vmatprep.subr.bf16.mxu0 0
    %2292 = vmatpush1.bf16.msra.mxu0 0
    %2293 = vmatprep.subr.bf16.mxu0 0
    %2294 = vmatpush1.bf16.msra.mxu0 0
    %2295 = vmatprep.subr.bf16.mxu0 0
    %2296 = vmatpush1.bf16.msra.mxu0 0
    %2297 = vmatprep.subr.bf16.mxu0 0
    %2298 = vmatpush1.bf16.msra.mxu0 0
    %2299 = vmatprep.subr.bf16.mxu0 0
    %2300 = vmatpush1.bf16.msra.mxu0 0
    %2301 = vmatprep.subr.bf16.mxu0 0
    %2302 = vmatpush1.bf16.msra.mxu0 0
    %2303 = vmatprep.subr.bf16.mxu0 0
    %2304 = vmatpush1.bf16.msra.mxu0 0
    %2305 = vmatprep.subr.bf16.mxu0 0
    %2306 = vmatpush1.bf16.msra.mxu0 0
    %2307 = vmatprep.subr.bf16.mxu0 0
    %2308 = vmatpush1.bf16.msra.mxu0 0
    %2309 = vmatprep.subr.bf16.mxu0 0
    %2310 = vmatpush1.bf16.msra.mxu0 0
    %2311 = vmatprep.subr.bf16.mxu0 0
    %2312 = vmatpush1.bf16.msra.mxu0 0
    %2313 = vmatprep.subr.bf16.mxu0 0
    %2314 = vmatpush1.bf16.msra.mxu0 0
    %2315 = vmatprep.mubr.bf16.mxu0 0
    %2316 = vmatmul.mubr.bf16.gmra.mrb[0].mxu0 %v2278
    %v2317 = vpop.f32.mrb[0].mxu0
    %v2318 = vadd.f32 0.0, %v2317
    %v2319 = vpop.f32.mrb[0].mxu0
    %v2320 = vpop.f32.mrb[0].mxu0
    %v2321 = vadd.f32 0.0, %v2320
    %v2322 = vpop.f32.mrb[0].mxu0
    %2323 = vmatprep.mubr.bf16.mxu0 0
    %2324 = vmatmul.mubr.bf16.gmra.mrb[0].mxu0 %v2281
    %v2325 = vpop.f32.mrb[0].mxu0
    %v2326 = vadd.f32 0.0, %v2325
    %v2327 = vpop.f32.mrb[0].mxu0
    %v2328 = vpop.f32.mrb[0].mxu0
    %v2329 = vadd.f32 0.0, %v2328
    %v2330 = vpop.f32.mrb[0].mxu0
    %2331 = vdwg.mxu0
    %v2332 = vadd.f32 %v2215, %v2318
    %v2333 = vadd.f32 %v2216, %v2321
    %v2334 = vadd.f32 %v2217, %v2326
    %v2335 = vadd.f32 %v2218, %v2329
    %v2336 = vadd.f32 %v2332, %v101
    %v2337 = vadd.f32 %v2333, %v104
    %v2338 = vadd.f32 %v2334, %v109
    %v2339 = vadd.f32 %v2335, %v112
    %v2340 = vmax.f32 %v2336, 0.0
    %v2341 = vmax.f32 %v2337, 0.0
    %v2342 = vmax.f32 %v2338, 0.0
    %v2343 = vmax.f32 %v2339, 0.0
    %v2344 = vpack.c.bf16 %v2341, %v2340
    %v2345 = vpack.c.bf16 %v2343, %v2342
    %v2346 = vld [vmem:[%s1 + $0x4c4] sm:$0xf]
    %v2347 = vld [vmem:[%s1 + $0x4c8] sm:$0xf]
    %v2348 = vld [vmem:[%s1 + $0x4cc] sm:$0xf]
    %v2349 = vld [vmem:[%s1 + $0x4d0] sm:$0xf]
    %v2350 = vld [vmem:[%s1 + $0x4d4] sm:$0xf]
    %v2351 = vld [vmem:[%s1 + $0x4d8] sm:$0xf]
    %v2352 = vld [vmem:[%s1 + $0x4dc] sm:$0xf]
    %v2353 = vld [vmem:[%s1 + $0x4e0] sm:$0xf]
    %v2354 = vlaneseq
    %v2355 = vshrl.u32 %v2354, 7
    %v2356 = vsub.s32 7, %v2355
    %v2357 = vrot.slane %v16, %v2356
    %v2366 = vunpack.c.l.b16 %v2346
    %v2367 = vunpack.c.l.b16 %v2347
    %v2368 = vunpack.c.l.b16 %v2348
    %v2369 = vunpack.c.l.b16 %v2349
    %v2370 = vunpack.c.l.b16 %v2350
    %v2371 = vunpack.c.l.b16 %v2351
    %v2372 = vunpack.c.l.b16 %v2352
    %v2373 = vunpack.c.l.b16 %v2353
    %v2374 = vpack.c.b16 %v2367, %v2366
    %v2375 = vpack.c.b16 %v2369, %v2368
    %v2376 = vpack.c.b16 %v2371, %v2370
    %v2377 = vpack.c.b16 %v2373, %v2372
    %v2383 = vsel %vm240, %v2344, 0
    %v2386 = vsel %vm240, %v2345, 0
    %2388 = vmatprep.subr.bf16.mxu0 0
    %2389 = vmatpush1.bf16.msra.mxu0 %v2374
    %2390 = vmatprep.subr.bf16.mxu0 0
    %2391 = vmatpush1.bf16.msra.mxu0 %v2375
    %2392 = vmatprep.subr.bf16.mxu0 0
    %2393 = vmatpush1.bf16.msra.mxu0 %v2376
    %2394 = vmatprep.subr.bf16.mxu0 0
    %2395 = vmatpush1.bf16.msra.mxu0 %v2377
    %2396 = vmatprep.subr.bf16.mxu0 0
    %2397 = vmatpush1.bf16.msra.mxu0 0
    %2398 = vmatprep.subr.bf16.mxu0 0
    %2399 = vmatpush1.bf16.msra.mxu0 0
    %2400 = vmatprep.subr.bf16.mxu0 0
    %2401 = vmatpush1.bf16.msra.mxu0 0
    %2402 = vmatprep.subr.bf16.mxu0 0
    %2403 = vmatpush1.bf16.msra.mxu0 0
    %2404 = vmatprep.subr.bf16.mxu0 0
    %2405 = vmatpush1.bf16.msra.mxu0 0
    %2406 = vmatprep.subr.bf16.mxu0 0
    %2407 = vmatpush1.bf16.msra.mxu0 0
    %2408 = vmatprep.subr.bf16.mxu0 0
    %2409 = vmatpush1.bf16.msra.mxu0 0
    %2410 = vmatprep.subr.bf16.mxu0 0
    %2411 = vmatpush1.bf16.msra.mxu0 0
    %2412 = vmatprep.subr.bf16.mxu0 0
    %2413 = vmatpush1.bf16.msra.mxu0 0
    %2414 = vmatprep.subr.bf16.mxu0 0
    %2415 = vmatpush1.bf16.msra.mxu0 0
    %2416 = vmatprep.subr.bf16.mxu0 0
    %2417 = vmatpush1.bf16.msra.mxu0 0
    %2418 = vmatprep.subr.bf16.mxu0 0
    %2419 = vmatpush1.bf16.msra.mxu0 0
    %2420 = vmatprep.mubr.bf16.mxu0 0
    %2421 = vmatmul.mubr.bf16.gmra.mrb[0].mxu0 %v2383
    %v2422 = vpop.f32.mrb[0].mxu0
    %v2423 = vadd.f32 %v2357, %v2422
    %v2424 = vpop.f32.mrb[0].mxu0
    %v2425 = vpop.f32.mrb[0].mxu0
    %v2426 = vadd.f32 %v2357, %v2425
    %v2427 = vpop.f32.mrb[0].mxu0
    %2428 = vmatprep.mubr.bf16.mxu0 0
    %2429 = vmatmul.mubr.bf16.gmra.mrb[0].mxu0 %v2386
    %v2430 = vpop.f32.mrb[0].mxu0
    %v2431 = vadd.f32 %v2357, %v2430
    %v2432 = vpop.f32.mrb[0].mxu0
    %v2433 = vpop.f32.mrb[0].mxu0
    %v2434 = vadd.f32 %v2357, %v2433
    %v2435 = vpop.f32.mrb[0].mxu0
    %2436 = vdwg.mxu0
    %v2439 = vunpack.c.l.b16 %v2344
    %v2440 = vunpack.c.h.b16 %v2344
    %v2441 = vunpack.c.l.b16 %v2345
    %v2442 = vunpack.c.h.b16 %v2345
    %v2443 = vpack.c.b16 %v2439, %v2439
    %v2444 = vpack.c.b16 %v2440, %v2440
    %v2445 = vpack.c.b16 %v2441, %v2441
    %v2446 = vpack.c.b16 %v2442, %v2442
    %v2448 = vshrl.u32 %v2443, 16
    %v2450 = vrot.slane %v2448, 6
    %v2451 = vshll.u32 %v2443, 16
    %v2453 = vrot.slane %v2451, 7
    %v2454 = vor.u32 %v2450, %v2453
    %v2455 = vrot.slane %v2454, 4
    %v2457 = vshrl.u32 %v2444, 16
    %v2459 = vrot.slane %v2457, 6
    %v2460 = vshll.u32 %v2444, 16
    %v2462 = vrot.slane %v2460, 7
    %v2463 = vor.u32 %v2459, %v2462
    %v2464 = vsel %vm128, %v2455, %v2463
    %v2465 = vrot.slane %v2463, 4
    %v2467 = vshrl.u32 %v2445, 16
    %v2469 = vrot.slane %v2467, 6
    %v2470 = vshll.u32 %v2445, 16
    %v2472 = vrot.slane %v2470, 7
    %v2473 = vor.u32 %v2469, %v2472
    %v2474 = vrot.slane %v2473, 4
    %v2476 = vshrl.u32 %v2446, 16
    %v2478 = vrot.slane %v2476, 6
    %v2479 = vshll.u32 %v2446, 16
    %v2481 = vrot.slane %v2479, 7
    %v2482 = vor.u32 %v2478, %v2481
    %v2483 = vsel %vm128, %v2474, %v2482
    %v2484 = vrot.slane %v2482, 4
    %v2491 = vsel %vm174, %v2454, %v1941
    %2492 = vst [vmem:[#allocation2] sm:$0xe] %v2491
    %2493 = vst [vmem:[#allocation2 + $0x4] sm:$0xf] %v2464
    %v2494 = vld [vmem:[#allocation2 + $0x8] sm:$0x3]
    %v2495 = vsel %vm20, %v2465, %v2494
    %2496 = vst [vmem:[#allocation2 + $0x8] sm:$0x3] %v2495
    %v2497 = vld [vmem:[#allocation2 + $0xc] sm:$0xe]
    %v2498 = vsel %vm174, %v2473, %v2497
    %2499 = vst [vmem:[#allocation2 + $0xc] sm:$0xe] %v2498
    %2500 = vst [vmem:[#allocation2 + $0x10] sm:$0xf] %v2483
    %v2501 = vld [vmem:[#allocation2 + $0x14] sm:$0x3]
    %v2502 = vsel %vm20, %v2484, %v2501
    %2503 = vst [vmem:[#allocation2 + $0x14] sm:$0x3] %v2502
    %v2504 = vlaneseq
    %v2505 = vshrl.u32 %v2504, 7
    %v2506 = vsub.s32 4, %v2505
    %v2507 = vrot.slane %v16, %v2506
    %v2508 = vadd.f32 %v2507, 0.0
    %v2509 = vld [vmem:[#allocation2] sm:$0xf]
    %v2510 = vld [vmem:[#allocation2 + $0x4] sm:$0xf]
    %v2511 = vld [vmem:[#allocation2 + $0xc] sm:$0xf]
    %v2512 = vld [vmem:[#allocation2 + $0x10] sm:$0xf]
    %v2513 = vld [vmem:[%s1 + $0x1e4] sm:$0xf]
    %v2514 = vld [vmem:[%s1 + $0x1e8] sm:$0xf]
    %v2515 = vld [vmem:[%s1 + $0x1ec] sm:$0xf]
    %v2516 = vld [vmem:[%s1 + $0x1f0] sm:$0xf]
    %v2517 = vld [vmem:[%s1 + $0x1f4] sm:$0xf]
    %v2518 = vld [vmem:[%s1 + $0x1f8] sm:$0xf]
    %v2519 = vld [vmem:[%s1 + $0x1fc] sm:$0xf]
    %v2520 = vld [vmem:[%s1 + $0x200] sm:$0xf]
    %v2525 = vunpack.c.l.b16 %v2509
    %v2526 = vunpack.c.l.b16 %v2510
    %v2527 = vunpack.c.l.b16 %v2511
    %v2528 = vunpack.c.l.b16 %v2512
    %v2529 = vpack.c.b16 %v2526, %v2525
    %v2530 = vpack.c.b16 %v2528, %v2527
    %v2539 = vunpack.c.l.b16 %v2513
    %v2540 = vunpack.c.l.b16 %v2514
    %v2541 = vunpack.c.l.b16 %v2515
    %v2542 = vunpack.c.l.b16 %v2516
    %v2543 = vunpack.c.l.b16 %v2517
    %v2544 = vunpack.c.l.b16 %v2518
    %v2545 = vunpack.c.l.b16 %v2519
    %v2546 = vunpack.c.l.b16 %v2520
    %v2547 = vpack.c.b16 %v2540, %v2539
    %v2548 = vpack.c.b16 %v2542, %v2541
    %v2549 = vpack.c.b16 %v2544, %v2543
    %v2550 = vpack.c.b16 %v2546, %v2545
    %v2556 = vsel %vm240, %v2529, 0
    %v2559 = vsel %vm240, %v2530, 0
    %2561 = vmatprep.subr.bf16.mxu0 0
    %2562 = vmatpush1.bf16.msra.mxu0 %v2547
    %2563 = vmatprep.subr.bf16.mxu0 0
    %2564 = vmatpush1.bf16.msra.mxu0 %v2548
    %2565 = vmatprep.subr.bf16.mxu0 0
    %2566 = vmatpush1.bf16.msra.mxu0 %v2549
    %2567 = vmatprep.subr.bf16.mxu0 0
    %2568 = vmatpush1.bf16.msra.mxu0 %v2550
    %2569 = vmatprep.subr.bf16.mxu0 0
    %2570 = vmatpush1.bf16.msra.mxu0 0
    %2571 = vmatprep.subr.bf16.mxu0 0
    %2572 = vmatpush1.bf16.msra.mxu0 0
    %2573 = vmatprep.subr.bf16.mxu0 0
    %2574 = vmatpush1.bf16.msra.mxu0 0
    %2575 = vmatprep.subr.bf16.mxu0 0
    %2576 = vmatpush1.bf16.msra.mxu0 0
    %2577 = vmatprep.subr.bf16.mxu0 0
    %2578 = vmatpush1.bf16.msra.mxu0 0
    %2579 = vmatprep.subr.bf16.mxu0 0
    %2580 = vmatpush1.bf16.msra.mxu0 0
    %2581 = vmatprep.subr.bf16.mxu0 0
    %2582 = vmatpush1.bf16.msra.mxu0 0
    %2583 = vmatprep.subr.bf16.mxu0 0
    %2584 = vmatpush1.bf16.msra.mxu0 0
    %2585 = vmatprep.subr.bf16.mxu0 0
    %2586 = vmatpush1.bf16.msra.mxu0 0
    %2587 = vmatprep.subr.bf16.mxu0 0
    %2588 = vmatpush1.bf16.msra.mxu0 0
    %2589 = vmatprep.subr.bf16.mxu0 0
    %2590 = vmatpush1.bf16.msra.mxu0 0
    %2591 = vmatprep.subr.bf16.mxu0 0
    %2592 = vmatpush1.bf16.msra.mxu0 0
    %2593 = vmatprep.mubr.bf16.mxu0 0
    %2594 = vmatmul.mubr.bf16.gmra.mrb[0].mxu0 %v2556
    %v2595 = vpop.f32.mrb[0].mxu0
    %v2596 = vadd.f32 0.0, %v2595
    %v2597 = vpop.f32.mrb[0].mxu0
    %v2598 = vpop.f32.mrb[0].mxu0
    %v2599 = vadd.f32 0.0, %v2598
    %v2600 = vpop.f32.mrb[0].mxu0
    %2601 = vmatprep.mubr.bf16.mxu0 0
    %2602 = vmatmul.mubr.bf16.gmra.mrb[0].mxu0 %v2559
    %v2603 = vpop.f32.mrb[0].mxu0
    %v2604 = vadd.f32 0.0, %v2603
    %v2605 = vpop.f32.mrb[0].mxu0
    %v2606 = vpop.f32.mrb[0].mxu0
    %v2607 = vadd.f32 0.0, %v2606
    %v2608 = vpop.f32.mrb[0].mxu0
    %2609 = vdwg.mxu0
    %v2610 = vadd.f32 %v2508, %v2596
    %v2611 = vadd.f32 %v2508, %v2599
    %v2612 = vadd.f32 %v2508, %v2604
    %v2613 = vadd.f32 %v2508, %v2607
    %v2614 = vld [vmem:[#allocation2] sm:$0xf]
    %v2615 = vld [vmem:[#allocation2 + $0x4] sm:$0xf]
    %v2616 = vld [vmem:[#allocation2 + $0x8] sm:$0x1]
    %v2617 = vld [vmem:[#allocation2 + $0xc] sm:$0xf]
    %v2618 = vld [vmem:[#allocation2 + $0x10] sm:$0xf]
    %v2619 = vld [vmem:[#allocation2 + $0x14] sm:$0x1]
    %v2621 = vshrl.u32 %v2614, 16
    %v2623 = vrot.slane %v2621, 4
    %v2624 = vshll.u32 %v2614, 16
    %v2626 = vrot.slane %v2624, 5
    %v2627 = vor.u32 %v2623, %v2626
    %v2628 = vrot.slane %v2627, 4
    %v2630 = vshll.u32 %v2615, 16
    %v2632 = vrot.slane %v2630, 5
    %v2633 = vsel %vm308, %v2628, %v2632
    %v2634 = vshrl.u32 %v2615, 16
    %v2636 = vrot.slane %v2634, 4
    %v2637 = vor.u32 %v2636, %v2632
    %v2638 = vrot.slane %v2637, 4
    %v2640 = vshll.u32 %v2616, 16
    %v2642 = vrot.slane %v2640, 5
    %v2643 = vsel %vm308, %v2638, %v2642
    %v2645 = vshrl.u32 %v2617, 16
    %v2647 = vrot.slane %v2645, 4
    %v2648 = vshll.u32 %v2617, 16
    %v2650 = vrot.slane %v2648, 5
    %v2651 = vor.u32 %v2647, %v2650
    %v2652 = vrot.slane %v2651, 4
    %v2654 = vshll.u32 %v2618, 16
    %v2656 = vrot.slane %v2654, 5
    %v2657 = vsel %vm308, %v2652, %v2656
    %v2658 = vshrl.u32 %v2618, 16
    %v2660 = vrot.slane %v2658, 4
    %v2661 = vor.u32 %v2660, %v2656
    %v2662 = vrot.slane %v2661, 4
    %v2664 = vshll.u32 %v2619, 16
    %v2666 = vrot.slane %v2664, 5
    %v2667 = vsel %vm308, %v2662, %v2666
    %v2668 = vld [vmem:[%s1 + $0x204] sm:$0xf]
    %v2669 = vld [vmem:[%s1 + $0x208] sm:$0xf]
    %v2670 = vld [vmem:[%s1 + $0x20c] sm:$0xf]
    %v2671 = vld [vmem:[%s1 + $0x210] sm:$0xf]
    %v2672 = vld [vmem:[%s1 + $0x214] sm:$0xf]
    %v2673 = vld [vmem:[%s1 + $0x218] sm:$0xf]
    %v2674 = vld [vmem:[%s1 + $0x21c] sm:$0xf]
    %v2675 = vld [vmem:[%s1 + $0x220] sm:$0xf]
    %v2676 = vunpack.c.l.b16 %v2633
    %v2677 = vunpack.c.l.b16 %v2643
    %v2678 = vunpack.c.l.b16 %v2657
    %v2679 = vunpack.c.l.b16 %v2667
    %v2680 = vpack.c.b16 %v2677, %v2676
    %v2681 = vpack.c.b16 %v2679, %v2678
    %v2690 = vunpack.c.l.b16 %v2668
    %v2691 = vunpack.c.l.b16 %v2669
    %v2692 = vunpack.c.l.b16 %v2670
    %v2693 = vunpack.c.l.b16 %v2671
    %v2694 = vunpack.c.l.b16 %v2672
    %v2695 = vunpack.c.l.b16 %v2673
    %v2696 = vunpack.c.l.b16 %v2674
    %v2697 = vunpack.c.l.b16 %v2675
    %v2698 = vpack.c.b16 %v2691, %v2690
    %v2699 = vpack.c.b16 %v2693, %v2692
    %v2700 = vpack.c.b16 %v2695, %v2694
    %v2701 = vpack.c.b16 %v2697, %v2696
    %v2707 = vsel %vm240, %v2680, 0
    %v2710 = vsel %vm240, %v2681, 0
    %2712 = vmatprep.subr.bf16.mxu0 0
    %2713 = vmatpush1.bf16.msra.mxu0 %v2698
    %2714 = vmatprep.subr.bf16.mxu0 0
    %2715 = vmatpush1.bf16.msra.mxu0 %v2699
    %2716 = vmatprep.subr.bf16.mxu0 0
    %2717 = vmatpush1.bf16.msra.mxu0 %v2700
    %2718 = vmatprep.subr.bf16.mxu0 0
    %2719 = vmatpush1.bf16.msra.mxu0 %v2701
    %2720 = vmatprep.subr.bf16.mxu0 0
    %2721 = vmatpush1.bf16.msra.mxu0 0
    %2722 = vmatprep.subr.bf16.mxu0 0
    %2723 = vmatpush1.bf16.msra.mxu0 0
    %2724 = vmatprep.subr.bf16.mxu0 0
    %2725 = vmatpush1.bf16.msra.mxu0 0
    %2726 = vmatprep.subr.bf16.mxu0 0
    %2727 = vmatpush1.bf16.msra.mxu0 0
    %2728 = vmatprep.subr.bf16.mxu0 0
    %2729 = vmatpush1.bf16.msra.mxu0 0
    %2730 = vmatprep.subr.bf16.mxu0 0
    %2731 = vmatpush1.bf16.msra.mxu0 0
    %2732 = vmatprep.subr.bf16.mxu0 0
    %2733 = vmatpush1.bf16.msra.mxu0 0
    %2734 = vmatprep.subr.bf16.mxu0 0
    %2735 = vmatpush1.bf16.msra.mxu0 0
    %2736 = vmatprep.subr.bf16.mxu0 0
    %2737 = vmatpush1.bf16.msra.mxu0 0
    %2738 = vmatprep.subr.bf16.mxu0 0
    %2739 = vmatpush1.bf16.msra.mxu0 0
    %2740 = vmatprep.subr.bf16.mxu0 0
    %2741 = vmatpush1.bf16.msra.mxu0 0
    %2742 = vmatprep.subr.bf16.mxu0 0
    %2743 = vmatpush1.bf16.msra.mxu0 0
    %2744 = vmatprep.mubr.bf16.mxu0 0
    %2745 = vmatmul.mubr.bf16.gmra.mrb[0].mxu0 %v2707
    %v2746 = vpop.f32.mrb[0].mxu0
    %v2747 = vadd.f32 0.0, %v2746
    %v2748 = vpop.f32.mrb[0].mxu0
    %v2749 = vpop.f32.mrb[0].mxu0
    %v2750 = vadd.f32 0.0, %v2749
    %v2751 = vpop.f32.mrb[0].mxu0
    %2752 = vmatprep.mubr.bf16.mxu0 0
    %2753 = vmatmul.mubr.bf16.gmra.mrb[0].mxu0 %v2710
    %v2754 = vpop.f32.mrb[0].mxu0
    %v2755 = vadd.f32 0.0, %v2754
    %v2756 = vpop.f32.mrb[0].mxu0
    %v2757 = vpop.f32.mrb[0].mxu0
    %v2758 = vadd.f32 0.0, %v2757
    %v2759 = vpop.f32.mrb[0].mxu0
    %2760 = vdwg.mxu0
    %v2761 = vadd.f32 %v2610, %v2747
    %v2762 = vadd.f32 %v2611, %v2750
    %v2763 = vadd.f32 %v2612, %v2755
    %v2764 = vadd.f32 %v2613, %v2758
    %v2765 = vld [vmem:[#allocation2] sm:$0xe]
    %v2766 = vld [vmem:[#allocation2 + $0xc] sm:$0xe]
    %v2773 = vrot.slane %v2765, 5
    %v2774 = vrot.slane %v2773, 4
    %v2775 = vrot.slane %v2615, 5
    %v2776 = vsel %vm464, %v2774, %v2775
    %v2777 = vrot.slane %v2775, 4
    %v2778 = vrot.slane %v2616, 5
    %v2779 = vsel %vm464, %v2777, %v2778
    %v2780 = vrot.slane %v2766, 5
    %v2781 = vrot.slane %v2780, 4
    %v2782 = vrot.slane %v2618, 5
    %v2783 = vsel %vm464, %v2781, %v2782
    %v2784 = vrot.slane %v2782, 4
    %v2785 = vrot.slane %v2619, 5
    %v2786 = vsel %vm464, %v2784, %v2785
    %v2787 = vld [vmem:[%s1 + $0x224] sm:$0xf]
    %v2788 = vld [vmem:[%s1 + $0x228] sm:$0xf]
    %v2789 = vld [vmem:[%s1 + $0x22c] sm:$0xf]
    %v2790 = vld [vmem:[%s1 + $0x230] sm:$0xf]
    %v2791 = vld [vmem:[%s1 + $0x234] sm:$0xf]
    %v2792 = vld [vmem:[%s1 + $0x238] sm:$0xf]
    %v2793 = vld [vmem:[%s1 + $0x23c] sm:$0xf]
    %v2794 = vld [vmem:[%s1 + $0x240] sm:$0xf]
    %v2795 = vunpack.c.l.b16 %v2776
    %v2796 = vunpack.c.l.b16 %v2779
    %v2797 = vunpack.c.l.b16 %v2783
    %v2798 = vunpack.c.l.b16 %v2786
    %v2799 = vpack.c.b16 %v2796, %v2795
    %v2800 = vpack.c.b16 %v2798, %v2797
    %v2809 = vunpack.c.l.b16 %v2787
    %v2810 = vunpack.c.l.b16 %v2788
    %v2811 = vunpack.c.l.b16 %v2789
    %v2812 = vunpack.c.l.b16 %v2790
    %v2813 = vunpack.c.l.b16 %v2791
    %v2814 = vunpack.c.l.b16 %v2792
    %v2815 = vunpack.c.l.b16 %v2793
    %v2816 = vunpack.c.l.b16 %v2794
    %v2817 = vpack.c.b16 %v2810, %v2809
    %v2818 = vpack.c.b16 %v2812, %v2811
    %v2819 = vpack.c.b16 %v2814, %v2813
    %v2820 = vpack.c.b16 %v2816, %v2815
    %v2826 = vsel %vm240, %v2799, 0
    %v2829 = vsel %vm240, %v2800, 0
    %2831 = vmatprep.subr.bf16.mxu0 0
    %2832 = vmatpush1.bf16.msra.mxu0 %v2817
    %2833 = vmatprep.subr.bf16.mxu0 0
    %2834 = vmatpush1.bf16.msra.mxu0 %v2818
    %2835 = vmatprep.subr.bf16.mxu0 0
    %2836 = vmatpush1.bf16.msra.mxu0 %v2819
    %2837 = vmatprep.subr.bf16.mxu0 0
    %2838 = vmatpush1.bf16.msra.mxu0 %v2820
    %2839 = vmatprep.subr.bf16.mxu0 0
    %2840 = vmatpush1.bf16.msra.mxu0 0
    %2841 = vmatprep.subr.bf16.mxu0 0
    %2842 = vmatpush1.bf16.msra.mxu0 0
    %2843 = vmatprep.subr.bf16.mxu0 0
    %2844 = vmatpush1.bf16.msra.mxu0 0
    %2845 = vmatprep.subr.bf16.mxu0 0
    %2846 = vmatpush1.bf16.msra.mxu0 0
    %2847 = vmatprep.subr.bf16.mxu0 0
    %2848 = vmatpush1.bf16.msra.mxu0 0
    %2849 = vmatprep.subr.bf16.mxu0 0
    %2850 = vmatpush1.bf16.msra.mxu0 0
    %2851 = vmatprep.subr.bf16.mxu0 0
    %2852 = vmatpush1.bf16.msra.mxu0 0
    %2853 = vmatprep.subr.bf16.mxu0 0
    %2854 = vmatpush1.bf16.msra.mxu0 0
    %2855 = vmatprep.subr.bf16.mxu0 0
    %2856 = vmatpush1.bf16.msra.mxu0 0
    %2857 = vmatprep.subr.bf16.mxu0 0
    %2858 = vmatpush1.bf16.msra.mxu0 0
    %2859 = vmatprep.subr.bf16.mxu0 0
    %2860 = vmatpush1.bf16.msra.mxu0 0
    %2861 = vmatprep.subr.bf16.mxu0 0
    %2862 = vmatpush1.bf16.msra.mxu0 0
    %2863 = vmatprep.mubr.bf16.mxu0 0
    %2864 = vmatmul.mubr.bf16.gmra.mrb[0].mxu0 %v2826
    %v2865 = vpop.f32.mrb[0].mxu0
    %v2866 = vadd.f32 0.0, %v2865
    %v2867 = vpop.f32.mrb[0].mxu0
    %v2868 = vpop.f32.mrb[0].mxu0
    %v2869 = vadd.f32 0.0, %v2868
    %v2870 = vpop.f32.mrb[0].mxu0
    %2871 = vmatprep.mubr.bf16.mxu0 0
    %2872 = vmatmul.mubr.bf16.gmra.mrb[0].mxu0 %v2829
    %v2873 = vpop.f32.mrb[0].mxu0
    %v2874 = vadd.f32 0.0, %v2873
    %v2875 = vpop.f32.mrb[0].mxu0
    %v2876 = vpop.f32.mrb[0].mxu0
    %v2877 = vadd.f32 0.0, %v2876
    %v2878 = vpop.f32.mrb[0].mxu0
    %2879 = vdwg.mxu0
    %v2880 = vadd.f32 %v2761, %v2866
    %v2881 = vadd.f32 %v2762, %v2869
    %v2882 = vadd.f32 %v2763, %v2874
    %v2883 = vadd.f32 %v2764, %v2877
    %v2884 = vld [vmem:[#allocation2 + $0x8] sm:$0x3]
    %v2885 = vld [vmem:[#allocation2 + $0x14] sm:$0x3]
    %v2887 = vshrl.u32 %v2765, 16
    %v2889 = vrot.slane %v2887, 5
    %v2890 = vshll.u32 %v2765, 16
    %v2892 = vrot.slane %v2890, 6
    %v2893 = vor.u32 %v2889, %v2892
    %v2894 = vrot.slane %v2893, 4
    %v2895 = vrot.slane %v2634, 5
    %v2896 = vrot.slane %v2630, 6
    %v2897 = vor.u32 %v2895, %v2896
    %v2898 = vsel %vm580, %v2894, %v2897
    %v2899 = vrot.slane %v2897, 4
    %v2901 = vshrl.u32 %v2884, 16
    %v2903 = vrot.slane %v2901, 5
    %v2904 = vshll.u32 %v2884, 16
    %v2906 = vrot.slane %v2904, 6
    %v2907 = vor.u32 %v2903, %v2906
    %v2908 = vsel %vm580, %v2899, %v2907
    %v2910 = vshrl.u32 %v2766, 16
    %v2912 = vrot.slane %v2910, 5
    %v2913 = vshll.u32 %v2766, 16
    %v2915 = vrot.slane %v2913, 6
    %v2916 = vor.u32 %v2912, %v2915
    %v2917 = vrot.slane %v2916, 4
    %v2918 = vrot.slane %v2658, 5
    %v2919 = vrot.slane %v2654, 6
    %v2920 = vor.u32 %v2918, %v2919
    %v2921 = vsel %vm580, %v2917, %v2920
    %v2922 = vrot.slane %v2920, 4
    %v2924 = vshrl.u32 %v2885, 16
    %v2926 = vrot.slane %v2924, 5
    %v2927 = vshll.u32 %v2885, 16
    %v2929 = vrot.slane %v2927, 6
    %v2930 = vor.u32 %v2926, %v2929
    %v2931 = vsel %vm580, %v2922, %v2930
    %v2932 = vld [vmem:[%s1 + $0x244] sm:$0xf]
    %v2933 = vld [vmem:[%s1 + $0x248] sm:$0xf]
    %v2934 = vld [vmem:[%s1 + $0x24c] sm:$0xf]
    %v2935 = vld [vmem:[%s1 + $0x250] sm:$0xf]
    %v2936 = vld [vmem:[%s1 + $0x254] sm:$0xf]
    %v2937 = vld [vmem:[%s1 + $0x258] sm:$0xf]
    %v2938 = vld [vmem:[%s1 + $0x25c] sm:$0xf]
    %v2939 = vld [vmem:[%s1 + $0x260] sm:$0xf]
    %v2940 = vunpack.c.l.b16 %v2898
    %v2941 = vunpack.c.l.b16 %v2908
    %v2942 = vunpack.c.l.b16 %v2921
    %v2943 = vunpack.c.l.b16 %v2931
    %v2944 = vpack.c.b16 %v2941, %v2940
    %v2945 = vpack.c.b16 %v2943, %v2942
    %v2954 = vunpack.c.l.b16 %v2932
    %v2955 = vunpack.c.l.b16 %v2933
    %v2956 = vunpack.c.l.b16 %v2934
    %v2957 = vunpack.c.l.b16 %v2935
    %v2958 = vunpack.c.l.b16 %v2936
    %v2959 = vunpack.c.l.b16 %v2937
    %v2960 = vunpack.c.l.b16 %v2938
    %v2961 = vunpack.c.l.b16 %v2939
    %v2962 = vpack.c.b16 %v2955, %v2954
    %v2963 = vpack.c.b16 %v2957, %v2956
    %v2964 = vpack.c.b16 %v2959, %v2958
    %v2965 = vpack.c.b16 %v2961, %v2960
    %v2971 = vsel %vm240, %v2944, 0
    %v2974 = vsel %vm240, %v2945, 0
    %2976 = vmatprep.subr.bf16.mxu0 0
    %2977 = vmatpush1.bf16.msra.mxu0 %v2962
    %2978 = vmatprep.subr.bf16.mxu0 0
    %2979 = vmatpush1.bf16.msra.mxu0 %v2963
    %2980 = vmatprep.subr.bf16.mxu0 0
    %2981 = vmatpush1.bf16.msra.mxu0 %v2964
    %2982 = vmatprep.subr.bf16.mxu0 0
    %2983 = vmatpush1.bf16.msra.mxu0 %v2965
    %2984 = vmatprep.subr.bf16.mxu0 0
    %2985 = vmatpush1.bf16.msra.mxu0 0
    %2986 = vmatprep.subr.bf16.mxu0 0
    %2987 = vmatpush1.bf16.msra.mxu0 0
    %2988 = vmatprep.subr.bf16.mxu0 0
    %2989 = vmatpush1.bf16.msra.mxu0 0
    %2990 = vmatprep.subr.bf16.mxu0 0
    %2991 = vmatpush1.bf16.msra.mxu0 0
    %2992 = vmatprep.subr.bf16.mxu0 0
    %2993 = vmatpush1.bf16.msra.mxu0 0
    %2994 = vmatprep.subr.bf16.mxu0 0
    %2995 = vmatpush1.bf16.msra.mxu0 0
    %2996 = vmatprep.subr.bf16.mxu0 0
    %2997 = vmatpush1.bf16.msra.mxu0 0
    %2998 = vmatprep.subr.bf16.mxu0 0
    %2999 = vmatpush1.bf16.msra.mxu0 0
    %3000 = vmatprep.subr.bf16.mxu0 0
    %3001 = vmatpush1.bf16.msra.mxu0 0
    %3002 = vmatprep.subr.bf16.mxu0 0
    %3003 = vmatpush1.bf16.msra.mxu0 0
    %3004 = vmatprep.subr.bf16.mxu0 0
    %3005 = vmatpush1.bf16.msra.mxu0 0
    %3006 = vmatprep.subr.bf16.mxu0 0
    %3007 = vmatpush1.bf16.msra.mxu0 0
    %3008 = vmatprep.mubr.bf16.mxu0 0
    %3009 = vmatmul.mubr.bf16.gmra.mrb[0].mxu0 %v2971
    %v3010 = vpop.f32.mrb[0].mxu0
    %v3011 = vadd.f32 0.0, %v3010
    %v3012 = vpop.f32.mrb[0].mxu0
    %v3013 = vpop.f32.mrb[0].mxu0
    %v3014 = vadd.f32 0.0, %v3013
    %v3015 = vpop.f32.mrb[0].mxu0
    %3016 = vmatprep.mubr.bf16.mxu0 0
    %3017 = vmatmul.mubr.bf16.gmra.mrb[0].mxu0 %v2974
    %v3018 = vpop.f32.mrb[0].mxu0
    %v3019 = vadd.f32 0.0, %v3018
    %v3020 = vpop.f32.mrb[0].mxu0
    %v3021 = vpop.f32.mrb[0].mxu0
    %v3022 = vadd.f32 0.0, %v3021
    %v3023 = vpop.f32.mrb[0].mxu0
    %3024 = vdwg.mxu0
    %v3025 = vadd.f32 %v2880, %v3011
    %v3026 = vadd.f32 %v2881, %v3014
    %v3027 = vadd.f32 %v2882, %v3019
    %v3028 = vadd.f32 %v2883, %v3022
    %v3029 = vld [vmem:[#allocation2] sm:$0xc]
    %v3030 = vld [vmem:[#allocation2 + $0xc] sm:$0xc]
    %v3035 = vrot.slane %v3029, 6
    %v3036 = vrot.slane %v3035, 4
    %v3037 = vrot.slane %v2615, 6
    %v3038 = vsel %vm731, %v3036, %v3037
    %v3039 = vrot.slane %v3037, 4
    %v3040 = vrot.slane %v2884, 6
    %v3041 = vsel %vm731, %v3039, %v3040
    %v3042 = vrot.slane %v3030, 6
    %v3043 = vrot.slane %v3042, 4
    %v3044 = vrot.slane %v2618, 6
    %v3045 = vsel %vm731, %v3043, %v3044
    %v3046 = vrot.slane %v3044, 4
    %v3047 = vrot.slane %v2885, 6
    %v3048 = vsel %vm731, %v3046, %v3047
    %v3049 = vld [vmem:[%s1 + $0x264] sm:$0xf]
    %v3050 = vld [vmem:[%s1 + $0x268] sm:$0xf]
    %v3051 = vld [vmem:[%s1 + $0x26c] sm:$0xf]
    %v3052 = vld [vmem:[%s1 + $0x270] sm:$0xf]
    %v3053 = vld [vmem:[%s1 + $0x274] sm:$0xf]
    %v3054 = vld [vmem:[%s1 + $0x278] sm:$0xf]
    %v3055 = vld [vmem:[%s1 + $0x27c] sm:$0xf]
    %v3056 = vld [vmem:[%s1 + $0x280] sm:$0xf]
    %v3057 = vunpack.c.l.b16 %v3038
    %v3058 = vunpack.c.l.b16 %v3041
    %v3059 = vunpack.c.l.b16 %v3045
    %v3060 = vunpack.c.l.b16 %v3048
    %v3061 = vpack.c.b16 %v3058, %v3057
    %v3062 = vpack.c.b16 %v3060, %v3059
    %v3071 = vunpack.c.l.b16 %v3049
    %v3072 = vunpack.c.l.b16 %v3050
    %v3073 = vunpack.c.l.b16 %v3051
    %v3074 = vunpack.c.l.b16 %v3052
    %v3075 = vunpack.c.l.b16 %v3053
    %v3076 = vunpack.c.l.b16 %v3054
    %v3077 = vunpack.c.l.b16 %v3055
    %v3078 = vunpack.c.l.b16 %v3056
    %v3079 = vpack.c.b16 %v3072, %v3071
    %v3080 = vpack.c.b16 %v3074, %v3073
    %v3081 = vpack.c.b16 %v3076, %v3075
    %v3082 = vpack.c.b16 %v3078, %v3077
    %v3088 = vsel %vm240, %v3061, 0
    %v3091 = vsel %vm240, %v3062, 0
    %3093 = vmatprep.subr.bf16.mxu0 0
    %3094 = vmatpush1.bf16.msra.mxu0 %v3079
    %3095 = vmatprep.subr.bf16.mxu0 0
    %3096 = vmatpush1.bf16.msra.mxu0 %v3080
    %3097 = vmatprep.subr.bf16.mxu0 0
    %3098 = vmatpush1.bf16.msra.mxu0 %v3081
    %3099 = vmatprep.subr.bf16.mxu0 0
    %3100 = vmatpush1.bf16.msra.mxu0 %v3082
    %3101 = vmatprep.subr.bf16.mxu0 0
    %3102 = vmatpush1.bf16.msra.mxu0 0
    %3103 = vmatprep.subr.bf16.mxu0 0
    %3104 = vmatpush1.bf16.msra.mxu0 0
    %3105 = vmatprep.subr.bf16.mxu0 0
    %3106 = vmatpush1.bf16.msra.mxu0 0
    %3107 = vmatprep.subr.bf16.mxu0 0
    %3108 = vmatpush1.bf16.msra.mxu0 0
    %3109 = vmatprep.subr.bf16.mxu0 0
    %3110 = vmatpush1.bf16.msra.mxu0 0
    %3111 = vmatprep.subr.bf16.mxu0 0
    %3112 = vmatpush1.bf16.msra.mxu0 0
    %3113 = vmatprep.subr.bf16.mxu0 0
    %3114 = vmatpush1.bf16.msra.mxu0 0
    %3115 = vmatprep.subr.bf16.mxu0 0
    %3116 = vmatpush1.bf16.msra.mxu0 0
    %3117 = vmatprep.subr.bf16.mxu0 0
    %3118 = vmatpush1.bf16.msra.mxu0 0
    %3119 = vmatprep.subr.bf16.mxu0 0
    %3120 = vmatpush1.bf16.msra.mxu0 0
    %3121 = vmatprep.subr.bf16.mxu0 0
    %3122 = vmatpush1.bf16.msra.mxu0 0
    %3123 = vmatprep.subr.bf16.mxu0 0
    %3124 = vmatpush1.bf16.msra.mxu0 0
    %3125 = vmatprep.mubr.bf16.mxu0 0
    %3126 = vmatmul.mubr.bf16.gmra.mrb[0].mxu0 %v3088
    %v3127 = vpop.f32.mrb[0].mxu0
    %v3128 = vadd.f32 0.0, %v3127
    %v3129 = vpop.f32.mrb[0].mxu0
    %v3130 = vpop.f32.mrb[0].mxu0
    %v3131 = vadd.f32 0.0, %v3130
    %v3132 = vpop.f32.mrb[0].mxu0
    %3133 = vmatprep.mubr.bf16.mxu0 0
    %3134 = vmatmul.mubr.bf16.gmra.mrb[0].mxu0 %v3091
    %v3135 = vpop.f32.mrb[0].mxu0
    %v3136 = vadd.f32 0.0, %v3135
    %v3137 = vpop.f32.mrb[0].mxu0
    %v3138 = vpop.f32.mrb[0].mxu0
    %v3139 = vadd.f32 0.0, %v3138
    %v3140 = vpop.f32.mrb[0].mxu0
    %3141 = vdwg.mxu0
    %v3142 = vadd.f32 %v3025, %v3128
    %v3143 = vadd.f32 %v3026, %v3131
    %v3144 = vadd.f32 %v3027, %v3136
    %v3145 = vadd.f32 %v3028, %v3139
    %v3146 = vld [vmem:[#allocation2 + $0x8] sm:$0x7]
    %v3147 = vld [vmem:[#allocation2 + $0x14] sm:$0x7]
    %v3149 = vshrl.u32 %v3029, 16
    %v3151 = vrot.slane %v3149, 6
    %v3152 = vshll.u32 %v3029, 16
    %v3154 = vrot.slane %v3152, 7
    %v3155 = vor.u32 %v3151, %v3154
    %v3156 = vrot.slane %v3155, 4
    %v3157 = vrot.slane %v2634, 6
    %v3158 = vrot.slane %v2630, 7
    %v3159 = vor.u32 %v3157, %v3158
    %v3160 = vsel %vm128, %v3156, %v3159
    %v3161 = vrot.slane %v3159, 4
    %v3163 = vshrl.u32 %v3146, 16
    %v3165 = vrot.slane %v3163, 6
    %v3166 = vshll.u32 %v3146, 16
    %v3168 = vrot.slane %v3166, 7
    %v3169 = vor.u32 %v3165, %v3168
    %v3170 = vsel %vm128, %v3161, %v3169
    %v3172 = vshrl.u32 %v3030, 16
    %v3174 = vrot.slane %v3172, 6
    %v3175 = vshll.u32 %v3030, 16
    %v3177 = vrot.slane %v3175, 7
    %v3178 = vor.u32 %v3174, %v3177
    %v3179 = vrot.slane %v3178, 4
    %v3180 = vrot.slane %v2658, 6
    %v3181 = vrot.slane %v2654, 7
    %v3182 = vor.u32 %v3180, %v3181
    %v3183 = vsel %vm128, %v3179, %v3182
    %v3184 = vrot.slane %v3182, 4
    %v3186 = vshrl.u32 %v3147, 16
    %v3188 = vrot.slane %v3186, 6
    %v3189 = vshll.u32 %v3147, 16
    %v3191 = vrot.slane %v3189, 7
    %v3192 = vor.u32 %v3188, %v3191
    %v3193 = vsel %vm128, %v3184, %v3192
    %v3194 = vld [vmem:[%s1 + $0x284] sm:$0xf]
    %v3195 = vld [vmem:[%s1 + $0x288] sm:$0xf]
    %v3196 = vld [vmem:[%s1 + $0x28c] sm:$0xf]
    %v3197 = vld [vmem:[%s1 + $0x290] sm:$0xf]
    %v3198 = vld [vmem:[%s1 + $0x294] sm:$0xf]
    %v3199 = vld [vmem:[%s1 + $0x298] sm:$0xf]
    %v3200 = vld [vmem:[%s1 + $0x29c] sm:$0xf]
    %v3201 = vld [vmem:[%s1 + $0x2a0] sm:$0xf]
    %v3202 = vunpack.c.l.b16 %v3160
    %v3203 = vunpack.c.l.b16 %v3170
    %v3204 = vunpack.c.l.b16 %v3183
    %v3205 = vunpack.c.l.b16 %v3193
    %v3206 = vpack.c.b16 %v3203, %v3202
    %v3207 = vpack.c.b16 %v3205, %v3204
    %v3216 = vunpack.c.l.b16 %v3194
    %v3217 = vunpack.c.l.b16 %v3195
    %v3218 = vunpack.c.l.b16 %v3196
    %v3219 = vunpack.c.l.b16 %v3197
    %v3220 = vunpack.c.l.b16 %v3198
    %v3221 = vunpack.c.l.b16 %v3199
    %v3222 = vunpack.c.l.b16 %v3200
    %v3223 = vunpack.c.l.b16 %v3201
    %v3224 = vpack.c.b16 %v3217, %v3216
    %v3225 = vpack.c.b16 %v3219, %v3218
    %v3226 = vpack.c.b16 %v3221, %v3220
    %v3227 = vpack.c.b16 %v3223, %v3222
    %v3233 = vsel %vm240, %v3206, 0
    %v3236 = vsel %vm240, %v3207, 0
    %3238 = vmatprep.subr.bf16.mxu0 0
    %3239 = vmatpush1.bf16.msra.mxu0 %v3224
    %3240 = vmatprep.subr.bf16.mxu0 0
    %3241 = vmatpush1.bf16.msra.mxu0 %v3225
    %3242 = vmatprep.subr.bf16.mxu0 0
    %3243 = vmatpush1.bf16.msra.mxu0 %v3226
    %3244 = vmatprep.subr.bf16.mxu0 0
    %3245 = vmatpush1.bf16.msra.mxu0 %v3227
    %3246 = vmatprep.subr.bf16.mxu0 0
    %3247 = vmatpush1.bf16.msra.mxu0 0
    %3248 = vmatprep.subr.bf16.mxu0 0
    %3249 = vmatpush1.bf16.msra.mxu0 0
    %3250 = vmatprep.subr.bf16.mxu0 0
    %3251 = vmatpush1.bf16.msra.mxu0 0
    %3252 = vmatprep.subr.bf16.mxu0 0
    %3253 = vmatpush1.bf16.msra.mxu0 0
    %3254 = vmatprep.subr.bf16.mxu0 0
    %3255 = vmatpush1.bf16.msra.mxu0 0
    %3256 = vmatprep.subr.bf16.mxu0 0
    %3257 = vmatpush1.bf16.msra.mxu0 0
    %3258 = vmatprep.subr.bf16.mxu0 0
    %3259 = vmatpush1.bf16.msra.mxu0 0
    %3260 = vmatprep.subr.bf16.mxu0 0
    %3261 = vmatpush1.bf16.msra.mxu0 0
    %3262 = vmatprep.subr.bf16.mxu0 0
    %3263 = vmatpush1.bf16.msra.mxu0 0
    %3264 = vmatprep.subr.bf16.mxu0 0
    %3265 = vmatpush1.bf16.msra.mxu0 0
    %3266 = vmatprep.subr.bf16.mxu0 0
    %3267 = vmatpush1.bf16.msra.mxu0 0
    %3268 = vmatprep.subr.bf16.mxu0 0
    %3269 = vmatpush1.bf16.msra.mxu0 0
    %3270 = vmatprep.mubr.bf16.mxu0 0
    %3271 = vmatmul.mubr.bf16.gmra.mrb[0].mxu0 %v3233
    %v3272 = vpop.f32.mrb[0].mxu0
    %v3273 = vadd.f32 0.0, %v3272
    %v3274 = vpop.f32.mrb[0].mxu0
    %v3275 = vpop.f32.mrb[0].mxu0
    %v3276 = vadd.f32 0.0, %v3275
    %v3277 = vpop.f32.mrb[0].mxu0
    %3278 = vmatprep.mubr.bf16.mxu0 0
    %3279 = vmatmul.mubr.bf16.gmra.mrb[0].mxu0 %v3236
    %v3280 = vpop.f32.mrb[0].mxu0
    %v3281 = vadd.f32 0.0, %v3280
    %v3282 = vpop.f32.mrb[0].mxu0
    %v3283 = vpop.f32.mrb[0].mxu0
    %v3284 = vadd.f32 0.0, %v3283
    %v3285 = vpop.f32.mrb[0].mxu0
    %3286 = vdwg.mxu0
    %v3287 = vadd.f32 %v3142, %v3273
    %v3288 = vadd.f32 %v3143, %v3276
    %v3289 = vadd.f32 %v3144, %v3281
    %v3290 = vadd.f32 %v3145, %v3284
    %v3291 = vld [vmem:[#allocation2] sm:$0x8]
    %v3292 = vld [vmem:[#allocation2 + $0xc] sm:$0x8]
    %v3297 = vrot.slane %v3291, 7
    %v3298 = vrot.slane %v3297, 4
    %v3299 = vrot.slane %v2615, 7
    %v3300 = vsel %vm996, %v3298, %v3299
    %v3301 = vrot.slane %v3299, 4
    %v3302 = vrot.slane %v3146, 7
    %v3303 = vsel %vm996, %v3301, %v3302
    %v3304 = vrot.slane %v3292, 7
    %v3305 = vrot.slane %v3304, 4
    %v3306 = vrot.slane %v2618, 7
    %v3307 = vsel %vm996, %v3305, %v3306
    %v3308 = vrot.slane %v3306, 4
    %v3309 = vrot.slane %v3147, 7
    %v3310 = vsel %vm996, %v3308, %v3309
    %v3311 = vld [vmem:[%s1 + $0x2a4] sm:$0xf]
    %v3312 = vld [vmem:[%s1 + $0x2a8] sm:$0xf]
    %v3313 = vld [vmem:[%s1 + $0x2ac] sm:$0xf]
    %v3314 = vld [vmem:[%s1 + $0x2b0] sm:$0xf]
    %v3315 = vld [vmem:[%s1 + $0x2b4] sm:$0xf]
    %v3316 = vld [vmem:[%s1 + $0x2b8] sm:$0xf]
    %v3317 = vld [vmem:[%s1 + $0x2bc] sm:$0xf]
    %v3318 = vld [vmem:[%s1 + $0x2c0] sm:$0xf]
    %v3319 = vunpack.c.l.b16 %v3300
    %v3320 = vunpack.c.l.b16 %v3303
    %v3321 = vunpack.c.l.b16 %v3307
    %v3322 = vunpack.c.l.b16 %v3310
    %v3323 = vpack.c.b16 %v3320, %v3319
    %v3324 = vpack.c.b16 %v3322, %v3321
    %v3333 = vunpack.c.l.b16 %v3311
    %v3334 = vunpack.c.l.b16 %v3312
    %v3335 = vunpack.c.l.b16 %v3313
    %v3336 = vunpack.c.l.b16 %v3314
    %v3337 = vunpack.c.l.b16 %v3315
    %v3338 = vunpack.c.l.b16 %v3316
    %v3339 = vunpack.c.l.b16 %v3317
    %v3340 = vunpack.c.l.b16 %v3318
    %v3341 = vpack.c.b16 %v3334, %v3333
    %v3342 = vpack.c.b16 %v3336, %v3335
    %v3343 = vpack.c.b16 %v3338, %v3337
    %v3344 = vpack.c.b16 %v3340, %v3339
    %v3350 = vsel %vm240, %v3323, 0
    %v3353 = vsel %vm240, %v3324, 0
    %3355 = vmatprep.subr.bf16.mxu0 0
    %3356 = vmatpush1.bf16.msra.mxu0 %v3341
    %3357 = vmatprep.subr.bf16.mxu0 0
    %3358 = vmatpush1.bf16.msra.mxu0 %v3342
    %3359 = vmatprep.subr.bf16.mxu0 0
    %3360 = vmatpush1.bf16.msra.mxu0 %v3343
    %3361 = vmatprep.subr.bf16.mxu0 0
    %3362 = vmatpush1.bf16.msra.mxu0 %v3344
    %3363 = vmatprep.subr.bf16.mxu0 0
    %3364 = vmatpush1.bf16.msra.mxu0 0
    %3365 = vmatprep.subr.bf16.mxu0 0
    %3366 = vmatpush1.bf16.msra.mxu0 0
    %3367 = vmatprep.subr.bf16.mxu0 0
    %3368 = vmatpush1.bf16.msra.mxu0 0
    %3369 = vmatprep.subr.bf16.mxu0 0
    %3370 = vmatpush1.bf16.msra.mxu0 0
    %3371 = vmatprep.subr.bf16.mxu0 0
    %3372 = vmatpush1.bf16.msra.mxu0 0
    %3373 = vmatprep.subr.bf16.mxu0 0
    %3374 = vmatpush1.bf16.msra.mxu0 0
    %3375 = vmatprep.subr.bf16.mxu0 0
    %3376 = vmatpush1.bf16.msra.mxu0 0
    %3377 = vmatprep.subr.bf16.mxu0 0
    %3378 = vmatpush1.bf16.msra.mxu0 0
    %3379 = vmatprep.subr.bf16.mxu0 0
    %3380 = vmatpush1.bf16.msra.mxu0 0
    %3381 = vmatprep.subr.bf16.mxu0 0
    %3382 = vmatpush1.bf16.msra.mxu0 0
    %3383 = vmatprep.subr.bf16.mxu0 0
    %3384 = vmatpush1.bf16.msra.mxu0 0
    %3385 = vmatprep.subr.bf16.mxu0 0
    %3386 = vmatpush1.bf16.msra.mxu0 0
    %3387 = vmatprep.mubr.bf16.mxu0 0
    %3388 = vmatmul.mubr.bf16.gmra.mrb[0].mxu0 %v3350
    %v3389 = vpop.f32.mrb[0].mxu0
    %v3390 = vadd.f32 0.0, %v3389
    %v3391 = vpop.f32.mrb[0].mxu0
    %v3392 = vpop.f32.mrb[0].mxu0
    %v3393 = vadd.f32 0.0, %v3392
    %v3394 = vpop.f32.mrb[0].mxu0
    %3395 = vmatprep.mubr.bf16.mxu0 0
    %3396 = vmatmul.mubr.bf16.gmra.mrb[0].mxu0 %v3353
    %v3397 = vpop.f32.mrb[0].mxu0
    %v3398 = vadd.f32 0.0, %v3397
    %v3399 = vpop.f32.mrb[0].mxu0
    %v3400 = vpop.f32.mrb[0].mxu0
    %v3401 = vadd.f32 0.0, %v3400
    %v3402 = vpop.f32.mrb[0].mxu0
    %3403 = vdwg.mxu0
    %v3404 = vadd.f32 %v3287, %v3390
    %v3405 = vadd.f32 %v3288, %v3393
    %v3406 = vadd.f32 %v3289, %v3398
    %v3407 = vadd.f32 %v3290, %v3401
    %v3408 = vmax.f32 %v3404, 0.0
    %v3409 = vmax.f32 %v3405, 0.0
    %v3410 = vmax.f32 %v3406, 0.0
    %v3411 = vmax.f32 %v3407, 0.0
    %v3412 = vpack.c.bf16 %v3409, %v3408
    %v3413 = vpack.c.bf16 %v3411, %v3410
    %v3416 = vunpack.c.l.b16 %v3412
    %v3417 = vunpack.c.h.b16 %v3412
    %v3418 = vunpack.c.l.b16 %v3413
    %v3419 = vunpack.c.h.b16 %v3413
    %v3420 = vpack.c.b16 %v3416, %v3416
    %v3421 = vpack.c.b16 %v3417, %v3417
    %v3422 = vpack.c.b16 %v3418, %v3418
    %v3423 = vpack.c.b16 %v3419, %v3419
    %v3425 = vshrl.u32 %v3420, 16
    %v3427 = vrot.slane %v3425, 6
    %v3428 = vshll.u32 %v3420, 16
    %v3430 = vrot.slane %v3428, 7
    %v3431 = vor.u32 %v3427, %v3430
    %v3432 = vrot.slane %v3431, 4
    %v3434 = vshrl.u32 %v3421, 16
    %v3436 = vrot.slane %v3434, 6
    %v3437 = vshll.u32 %v3421, 16
    %v3439 = vrot.slane %v3437, 7
    %v3440 = vor.u32 %v3436, %v3439
    %v3441 = vsel %vm128, %v3432, %v3440
    %v3442 = vrot.slane %v3440, 4
    %v3444 = vshrl.u32 %v3422, 16
    %v3446 = vrot.slane %v3444, 6
    %v3447 = vshll.u32 %v3422, 16
    %v3449 = vrot.slane %v3447, 7
    %v3450 = vor.u32 %v3446, %v3449
    %v3451 = vrot.slane %v3450, 4
    %v3453 = vshrl.u32 %v3423, 16
    %v3455 = vrot.slane %v3453, 6
    %v3456 = vshll.u32 %v3423, 16
    %v3458 = vrot.slane %v3456, 7
    %v3459 = vor.u32 %v3455, %v3458
    %v3460 = vsel %vm128, %v3451, %v3459
    %v3461 = vrot.slane %v3459, 4
    %v3468 = vsel %vm174, %v3431, %v2765
    %3469 = vst [vmem:[#allocation2] sm:$0xe] %v3468
    %3470 = vst [vmem:[#allocation2 + $0x4] sm:$0xf] %v3441
    %v3471 = vld [vmem:[#allocation2 + $0x8] sm:$0x3]
    %v3472 = vsel %vm20, %v3442, %v3471
    %3473 = vst [vmem:[#allocation2 + $0x8] sm:$0x3] %v3472
    %v3474 = vld [vmem:[#allocation2 + $0xc] sm:$0xe]
    %v3475 = vsel %vm174, %v3450, %v3474
    %3476 = vst [vmem:[#allocation2 + $0xc] sm:$0xe] %v3475
    %3477 = vst [vmem:[#allocation2 + $0x10] sm:$0xf] %v3460
    %v3478 = vld [vmem:[#allocation2 + $0x14] sm:$0x3]
    %v3479 = vsel %vm20, %v3461, %v3478
    %3480 = vst [vmem:[#allocation2 + $0x14] sm:$0x3] %v3479
    %v3481 = vlaneseq
    %v3482 = vshrl.u32 %v3481, 7
    %v3483 = vsub.s32 5, %v3482
    %v3484 = vrot.slane %v16, %v3483
    %v3485 = vadd.f32 %v3484, 0.0
    %v3486 = vld [vmem:[#allocation2] sm:$0xf]
    %v3487 = vld [vmem:[#allocation2 + $0x4] sm:$0xf]
    %v3488 = vld [vmem:[#allocation2 + $0x8] sm:$0x1]
    %v3489 = vld [vmem:[#allocation2 + $0xc] sm:$0xf]
    %v3490 = vld [vmem:[#allocation2 + $0x10] sm:$0xf]
    %v3491 = vld [vmem:[#allocation2 + $0x14] sm:$0x1]
    %v3493 = vshrl.u32 %v3486, 16
    %v3495 = vrot.slane %v3493, 4
    %v3496 = vshll.u32 %v3486, 16
    %v3498 = vrot.slane %v3496, 5
    %v3499 = vor.u32 %v3495, %v3498
    %v3500 = vrot.slane %v3499, 4
    %v3502 = vshll.u32 %v3487, 16
    %v3504 = vrot.slane %v3502, 5
    %v3505 = vsel %vm308, %v3500, %v3504
    %v3506 = vshrl.u32 %v3487, 16
    %v3508 = vrot.slane %v3506, 4
    %v3509 = vor.u32 %v3508, %v3504
    %v3510 = vrot.slane %v3509, 4
    %v3512 = vshll.u32 %v3488, 16
    %v3514 = vrot.slane %v3512, 5
    %v3515 = vsel %vm308, %v3510, %v3514
    %v3517 = vshrl.u32 %v3489, 16
    %v3519 = vrot.slane %v3517, 4
    %v3520 = vshll.u32 %v3489, 16
    %v3522 = vrot.slane %v3520, 5
    %v3523 = vor.u32 %v3519, %v3522
    %v3524 = vrot.slane %v3523, 4
    %v3526 = vshll.u32 %v3490, 16
    %v3528 = vrot.slane %v3526, 5
    %v3529 = vsel %vm308, %v3524, %v3528
    %v3530 = vshrl.u32 %v3490, 16
    %v3532 = vrot.slane %v3530, 4
    %v3533 = vor.u32 %v3532, %v3528
    %v3534 = vrot.slane %v3533, 4
    %v3536 = vshll.u32 %v3491, 16
    %v3538 = vrot.slane %v3536, 5
    %v3539 = vsel %vm308, %v3534, %v3538
    %v3540 = vld [vmem:[%s1 + $0x2c4] sm:$0xf]
    %v3541 = vld [vmem:[%s1 + $0x2c8] sm:$0xf]
    %v3542 = vld [vmem:[%s1 + $0x2cc] sm:$0xf]
    %v3543 = vld [vmem:[%s1 + $0x2d0] sm:$0xf]
    %v3544 = vld [vmem:[%s1 + $0x2d4] sm:$0xf]
    %v3545 = vld [vmem:[%s1 + $0x2d8] sm:$0xf]
    %v3546 = vld [vmem:[%s1 + $0x2dc] sm:$0xf]
    %v3547 = vld [vmem:[%s1 + $0x2e0] sm:$0xf]
    %v3548 = vld [vmem:[%s1 + $0x2e4] sm:$0xf]
    %v3549 = vld [vmem:[%s1 + $0x2e8] sm:$0xf]
    %v3550 = vld [vmem:[%s1 + $0x2ec] sm:$0xf]
    %v3551 = vld [vmem:[%s1 + $0x2f0] sm:$0xf]
    %v3552 = vld [vmem:[%s1 + $0x2f4] sm:$0xf]
    %v3553 = vld [vmem:[%s1 + $0x2f8] sm:$0xf]
    %v3554 = vld [vmem:[%s1 + $0x2fc] sm:$0xf]
    %v3555 = vld [vmem:[%s1 + $0x300] sm:$0xf]
    %v3556 = vunpack.c.l.b16 %v3505
    %v3557 = vunpack.c.l.b16 %v3515
    %v3558 = vunpack.c.l.b16 %v3529
    %v3559 = vunpack.c.l.b16 %v3539
    %v3560 = vpack.c.b16 %v3557, %v3556
    %v3561 = vpack.c.b16 %v3559, %v3558
    %v3580 = vunpack.c.l.b16 %v3540
    %v3581 = vunpack.c.l.b16 %v3541
    %v3582 = vunpack.c.l.b16 %v3542
    %v3583 = vunpack.c.l.b16 %v3543
    %v3584 = vunpack.c.l.b16 %v3544
    %v3585 = vunpack.c.l.b16 %v3545
    %v3586 = vunpack.c.l.b16 %v3546
    %v3587 = vunpack.c.l.b16 %v3547
    %v3588 = vunpack.c.l.b16 %v3548
    %v3589 = vunpack.c.l.b16 %v3549
    %v3590 = vunpack.c.l.b16 %v3550
    %v3591 = vunpack.c.l.b16 %v3551
    %v3592 = vunpack.c.l.b16 %v3552
    %v3593 = vunpack.c.l.b16 %v3553
    %v3594 = vunpack.c.l.b16 %v3554
    %v3595 = vunpack.c.l.b16 %v3555
    %v3596 = vpack.c.b16 %v3581, %v3580
    %v3597 = vpack.c.b16 %v3583, %v3582
    %v3598 = vpack.c.b16 %v3585, %v3584
    %v3599 = vpack.c.b16 %v3587, %v3586
    %v3600 = vpack.c.b16 %v3589, %v3588
    %v3601 = vpack.c.b16 %v3591, %v3590
    %v3602 = vpack.c.b16 %v3593, %v3592
    %v3603 = vpack.c.b16 %v3595, %v3594
    %3612 = vmatprep.subr.bf16.mxu0 0
    %3613 = vmatpush1.bf16.msra.mxu0 %v3596
    %3614 = vmatprep.subr.bf16.mxu0 0
    %3615 = vmatpush1.bf16.msra.mxu0 %v3597
    %3616 = vmatprep.subr.bf16.mxu0 0
    %3617 = vmatpush1.bf16.msra.mxu0 %v3598
    %3618 = vmatprep.subr.bf16.mxu0 0
    %3619 = vmatpush1.bf16.msra.mxu0 %v3599
    %3620 = vmatprep.subr.bf16.mxu0 0
    %3621 = vmatpush1.bf16.msra.mxu0 %v3600
    %3622 = vmatprep.subr.bf16.mxu0 0
    %3623 = vmatpush1.bf16.msra.mxu0 %v3601
    %3624 = vmatprep.subr.bf16.mxu0 0
    %3625 = vmatpush1.bf16.msra.mxu0 %v3602
    %3626 = vmatprep.subr.bf16.mxu0 0
    %3627 = vmatpush1.bf16.msra.mxu0 %v3603
    %3628 = vmatprep.subr.bf16.mxu0 0
    %3629 = vmatpush1.bf16.msra.mxu0 0
    %3630 = vmatprep.subr.bf16.mxu0 0
    %3631 = vmatpush1.bf16.msra.mxu0 0
    %3632 = vmatprep.subr.bf16.mxu0 0
    %3633 = vmatpush1.bf16.msra.mxu0 0
    %3634 = vmatprep.subr.bf16.mxu0 0
    %3635 = vmatpush1.bf16.msra.mxu0 0
    %3636 = vmatprep.subr.bf16.mxu0 0
    %3637 = vmatpush1.bf16.msra.mxu0 0
    %3638 = vmatprep.subr.bf16.mxu0 0
    %3639 = vmatpush1.bf16.msra.mxu0 0
    %3640 = vmatprep.subr.bf16.mxu0 0
    %3641 = vmatpush1.bf16.msra.mxu0 0
    %3642 = vmatprep.subr.bf16.mxu0 0
    %3643 = vmatpush1.bf16.msra.mxu0 0
    %3644 = vmatprep.mubr.bf16.mxu0 0
    %3645 = vmatmul.mubr.bf16.gmra.mrb[0].mxu0 %v3560
    %v3646 = vpop.f32.mrb[0].mxu0
    %v3647 = vadd.f32 0.0, %v3646
    %v3648 = vpop.f32.mrb[0].mxu0
    %v3649 = vpop.f32.mrb[0].mxu0
    %v3650 = vadd.f32 0.0, %v3649
    %v3651 = vpop.f32.mrb[0].mxu0
    %3652 = vmatprep.mubr.bf16.mxu0 0
    %3653 = vmatmul.mubr.bf16.gmra.mrb[0].mxu0 %v3561
    %v3654 = vpop.f32.mrb[0].mxu0
    %v3655 = vadd.f32 0.0, %v3654
    %v3656 = vpop.f32.mrb[0].mxu0
    %v3657 = vpop.f32.mrb[0].mxu0
    %v3658 = vadd.f32 0.0, %v3657
    %v3659 = vpop.f32.mrb[0].mxu0
    %3660 = vdwg.mxu0
    %v3661 = vadd.f32 %v3485, %v3647
    %v3662 = vadd.f32 %v3485, %v3650
    %v3663 = vadd.f32 %v3485, %v3655
    %v3664 = vadd.f32 %v3485, %v3658
    %v3665 = vld [vmem:[#allocation2] sm:$0xe]
    %v3666 = vld [vmem:[#allocation2 + $0xc] sm:$0xe]
    %v3673 = vrot.slane %v3665, 5
    %v3674 = vrot.slane %v3673, 4
    %v3675 = vrot.slane %v3487, 5
    %v3676 = vsel %vm464, %v3674, %v3675
    %v3677 = vrot.slane %v3675, 4
    %v3678 = vrot.slane %v3488, 5
    %v3679 = vsel %vm464, %v3677, %v3678
    %v3680 = vrot.slane %v3666, 5
    %v3681 = vrot.slane %v3680, 4
    %v3682 = vrot.slane %v3490, 5
    %v3683 = vsel %vm464, %v3681, %v3682
    %v3684 = vrot.slane %v3682, 4
    %v3685 = vrot.slane %v3491, 5
    %v3686 = vsel %vm464, %v3684, %v3685
    %v3687 = vld [vmem:[%s1 + $0x304] sm:$0xf]
    %v3688 = vld [vmem:[%s1 + $0x308] sm:$0xf]
    %v3689 = vld [vmem:[%s1 + $0x30c] sm:$0xf]
    %v3690 = vld [vmem:[%s1 + $0x310] sm:$0xf]
    %v3691 = vld [vmem:[%s1 + $0x314] sm:$0xf]
    %v3692 = vld [vmem:[%s1 + $0x318] sm:$0xf]
    %v3693 = vld [vmem:[%s1 + $0x31c] sm:$0xf]
    %v3694 = vld [vmem:[%s1 + $0x320] sm:$0xf]
    %v3695 = vld [vmem:[%s1 + $0x324] sm:$0xf]
    %v3696 = vld [vmem:[%s1 + $0x328] sm:$0xf]
    %v3697 = vld [vmem:[%s1 + $0x32c] sm:$0xf]
    %v3698 = vld [vmem:[%s1 + $0x330] sm:$0xf]
    %v3699 = vld [vmem:[%s1 + $0x334] sm:$0xf]
    %v3700 = vld [vmem:[%s1 + $0x338] sm:$0xf]
    %v3701 = vld [vmem:[%s1 + $0x33c] sm:$0xf]
    %v3702 = vld [vmem:[%s1 + $0x340] sm:$0xf]
    %v3703 = vunpack.c.l.b16 %v3676
    %v3704 = vunpack.c.l.b16 %v3679
    %v3705 = vunpack.c.l.b16 %v3683
    %v3706 = vunpack.c.l.b16 %v3686
    %v3707 = vpack.c.b16 %v3704, %v3703
    %v3708 = vpack.c.b16 %v3706, %v3705
    %v3727 = vunpack.c.l.b16 %v3687
    %v3728 = vunpack.c.l.b16 %v3688
    %v3729 = vunpack.c.l.b16 %v3689
    %v3730 = vunpack.c.l.b16 %v3690
    %v3731 = vunpack.c.l.b16 %v3691
    %v3732 = vunpack.c.l.b16 %v3692
    %v3733 = vunpack.c.l.b16 %v3693
    %v3734 = vunpack.c.l.b16 %v3694
    %v3735 = vunpack.c.l.b16 %v3695
    %v3736 = vunpack.c.l.b16 %v3696
    %v3737 = vunpack.c.l.b16 %v3697
    %v3738 = vunpack.c.l.b16 %v3698
    %v3739 = vunpack.c.l.b16 %v3699
    %v3740 = vunpack.c.l.b16 %v3700
    %v3741 = vunpack.c.l.b16 %v3701
    %v3742 = vunpack.c.l.b16 %v3702
    %v3743 = vpack.c.b16 %v3728, %v3727
    %v3744 = vpack.c.b16 %v3730, %v3729
    %v3745 = vpack.c.b16 %v3732, %v3731
    %v3746 = vpack.c.b16 %v3734, %v3733
    %v3747 = vpack.c.b16 %v3736, %v3735
    %v3748 = vpack.c.b16 %v3738, %v3737
    %v3749 = vpack.c.b16 %v3740, %v3739
    %v3750 = vpack.c.b16 %v3742, %v3741
    %3759 = vmatprep.subr.bf16.mxu0 0
    %3760 = vmatpush1.bf16.msra.mxu0 %v3743
    %3761 = vmatprep.subr.bf16.mxu0 0
    %3762 = vmatpush1.bf16.msra.mxu0 %v3744
    %3763 = vmatprep.subr.bf16.mxu0 0
    %3764 = vmatpush1.bf16.msra.mxu0 %v3745
    %3765 = vmatprep.subr.bf16.mxu0 0
    %3766 = vmatpush1.bf16.msra.mxu0 %v3746
    %3767 = vmatprep.subr.bf16.mxu0 0
    %3768 = vmatpush1.bf16.msra.mxu0 %v3747
    %3769 = vmatprep.subr.bf16.mxu0 0
    %3770 = vmatpush1.bf16.msra.mxu0 %v3748
    %3771 = vmatprep.subr.bf16.mxu0 0
    %3772 = vmatpush1.bf16.msra.mxu0 %v3749
    %3773 = vmatprep.subr.bf16.mxu0 0
    %3774 = vmatpush1.bf16.msra.mxu0 %v3750
    %3775 = vmatprep.subr.bf16.mxu0 0
    %3776 = vmatpush1.bf16.msra.mxu0 0
    %3777 = vmatprep.subr.bf16.mxu0 0
    %3778 = vmatpush1.bf16.msra.mxu0 0
    %3779 = vmatprep.subr.bf16.mxu0 0
    %3780 = vmatpush1.bf16.msra.mxu0 0
    %3781 = vmatprep.subr.bf16.mxu0 0
    %3782 = vmatpush1.bf16.msra.mxu0 0
    %3783 = vmatprep.subr.bf16.mxu0 0
    %3784 = vmatpush1.bf16.msra.mxu0 0
    %3785 = vmatprep.subr.bf16.mxu0 0
    %3786 = vmatpush1.bf16.msra.mxu0 0
    %3787 = vmatprep.subr.bf16.mxu0 0
    %3788 = vmatpush1.bf16.msra.mxu0 0
    %3789 = vmatprep.subr.bf16.mxu0 0
    %3790 = vmatpush1.bf16.msra.mxu0 0
    %3791 = vmatprep.mubr.bf16.mxu0 0
    %3792 = vmatmul.mubr.bf16.gmra.mrb[0].mxu0 %v3707
    %v3793 = vpop.f32.mrb[0].mxu0
    %v3794 = vadd.f32 0.0, %v3793
    %v3795 = vpop.f32.mrb[0].mxu0
    %v3796 = vpop.f32.mrb[0].mxu0
    %v3797 = vadd.f32 0.0, %v3796
    %v3798 = vpop.f32.mrb[0].mxu0
    %3799 = vmatprep.mubr.bf16.mxu0 0
    %3800 = vmatmul.mubr.bf16.gmra.mrb[0].mxu0 %v3708
    %v3801 = vpop.f32.mrb[0].mxu0
    %v3802 = vadd.f32 0.0, %v3801
    %v3803 = vpop.f32.mrb[0].mxu0
    %v3804 = vpop.f32.mrb[0].mxu0
    %v3805 = vadd.f32 0.0, %v3804
    %v3806 = vpop.f32.mrb[0].mxu0
    %3807 = vdwg.mxu0
    %v3808 = vadd.f32 %v3661, %v3794
    %v3809 = vadd.f32 %v3662, %v3797
    %v3810 = vadd.f32 %v3663, %v3802
    %v3811 = vadd.f32 %v3664, %v3805
    %v3812 = vld [vmem:[#allocation2 + $0x8] sm:$0x3]
    %v3813 = vld [vmem:[#allocation2 + $0x14] sm:$0x3]
    %v3815 = vshrl.u32 %v3665, 16
    %v3817 = vrot.slane %v3815, 5
    %v3818 = vshll.u32 %v3665, 16
    %v3820 = vrot.slane %v3818, 6
    %v3821 = vor.u32 %v3817, %v3820
    %v3822 = vrot.slane %v3821, 4
    %v3823 = vrot.slane %v3506, 5
    %v3824 = vrot.slane %v3502, 6
    %v3825 = vor.u32 %v3823, %v3824
    %v3826 = vsel %vm580, %v3822, %v3825
    %v3827 = vrot.slane %v3825, 4
    %v3829 = vshrl.u32 %v3812, 16
    %v3831 = vrot.slane %v3829, 5
    %v3832 = vshll.u32 %v3812, 16
    %v3834 = vrot.slane %v3832, 6
    %v3835 = vor.u32 %v3831, %v3834
    %v3836 = vsel %vm580, %v3827, %v3835
    %v3838 = vshrl.u32 %v3666, 16
    %v3840 = vrot.slane %v3838, 5
    %v3841 = vshll.u32 %v3666, 16
    %v3843 = vrot.slane %v3841, 6
    %v3844 = vor.u32 %v3840, %v3843
    %v3845 = vrot.slane %v3844, 4
    %v3846 = vrot.slane %v3530, 5
    %v3847 = vrot.slane %v3526, 6
    %v3848 = vor.u32 %v3846, %v3847
    %v3849 = vsel %vm580, %v3845, %v3848
    %v3850 = vrot.slane %v3848, 4
    %v3852 = vshrl.u32 %v3813, 16
    %v3854 = vrot.slane %v3852, 5
    %v3855 = vshll.u32 %v3813, 16
    %v3857 = vrot.slane %v3855, 6
    %v3858 = vor.u32 %v3854, %v3857
    %v3859 = vsel %vm580, %v3850, %v3858
    %v3860 = vld [vmem:[%s1 + $0x344] sm:$0xf]
    %v3861 = vld [vmem:[%s1 + $0x348] sm:$0xf]
    %v3862 = vld [vmem:[%s1 + $0x34c] sm:$0xf]
    %v3863 = vld [vmem:[%s1 + $0x350] sm:$0xf]
    %v3864 = vld [vmem:[%s1 + $0x354] sm:$0xf]
    %v3865 = vld [vmem:[%s1 + $0x358] sm:$0xf]
    %v3866 = vld [vmem:[%s1 + $0x35c] sm:$0xf]
    %v3867 = vld [vmem:[%s1 + $0x360] sm:$0xf]
    %v3868 = vld [vmem:[%s1 + $0x364] sm:$0xf]
    %v3869 = vld [vmem:[%s1 + $0x368] sm:$0xf]
    %v3870 = vld [vmem:[%s1 + $0x36c] sm:$0xf]
    %v3871 = vld [vmem:[%s1 + $0x370] sm:$0xf]
    %v3872 = vld [vmem:[%s1 + $0x374] sm:$0xf]
    %v3873 = vld [vmem:[%s1 + $0x378] sm:$0xf]
    %v3874 = vld [vmem:[%s1 + $0x37c] sm:$0xf]
    %v3875 = vld [vmem:[%s1 + $0x380] sm:$0xf]
    %v3876 = vunpack.c.l.b16 %v3826
    %v3877 = vunpack.c.l.b16 %v3836
    %v3878 = vunpack.c.l.b16 %v3849
    %v3879 = vunpack.c.l.b16 %v3859
    %v3880 = vpack.c.b16 %v3877, %v3876
    %v3881 = vpack.c.b16 %v3879, %v3878
    %v3900 = vunpack.c.l.b16 %v3860
    %v3901 = vunpack.c.l.b16 %v3861
    %v3902 = vunpack.c.l.b16 %v3862
    %v3903 = vunpack.c.l.b16 %v3863
    %v3904 = vunpack.c.l.b16 %v3864
    %v3905 = vunpack.c.l.b16 %v3865
    %v3906 = vunpack.c.l.b16 %v3866
    %v3907 = vunpack.c.l.b16 %v3867
    %v3908 = vunpack.c.l.b16 %v3868
    %v3909 = vunpack.c.l.b16 %v3869
    %v3910 = vunpack.c.l.b16 %v3870
    %v3911 = vunpack.c.l.b16 %v3871
    %v3912 = vunpack.c.l.b16 %v3872
    %v3913 = vunpack.c.l.b16 %v3873
    %v3914 = vunpack.c.l.b16 %v3874
    %v3915 = vunpack.c.l.b16 %v3875
    %v3916 = vpack.c.b16 %v3901, %v3900
    %v3917 = vpack.c.b16 %v3903, %v3902
    %v3918 = vpack.c.b16 %v3905, %v3904
    %v3919 = vpack.c.b16 %v3907, %v3906
    %v3920 = vpack.c.b16 %v3909, %v3908
    %v3921 = vpack.c.b16 %v3911, %v3910
    %v3922 = vpack.c.b16 %v3913, %v3912
    %v3923 = vpack.c.b16 %v3915, %v3914
    %3932 = vmatprep.subr.bf16.mxu0 0
    %3933 = vmatpush1.bf16.msra.mxu0 %v3916
    %3934 = vmatprep.subr.bf16.mxu0 0
    %3935 = vmatpush1.bf16.msra.mxu0 %v3917
    %3936 = vmatprep.subr.bf16.mxu0 0
    %3937 = vmatpush1.bf16.msra.mxu0 %v3918
    %3938 = vmatprep.subr.bf16.mxu0 0
    %3939 = vmatpush1.bf16.msra.mxu0 %v3919
    %3940 = vmatprep.subr.bf16.mxu0 0
    %3941 = vmatpush1.bf16.msra.mxu0 %v3920
    %3942 = vmatprep.subr.bf16.mxu0 0
    %3943 = vmatpush1.bf16.msra.mxu0 %v3921
    %3944 = vmatprep.subr.bf16.mxu0 0
    %3945 = vmatpush1.bf16.msra.mxu0 %v3922
    %3946 = vmatprep.subr.bf16.mxu0 0
    %3947 = vmatpush1.bf16.msra.mxu0 %v3923
    %3948 = vmatprep.subr.bf16.mxu0 0
    %3949 = vmatpush1.bf16.msra.mxu0 0
    %3950 = vmatprep.subr.bf16.mxu0 0
    %3951 = vmatpush1.bf16.msra.mxu0 0
    %3952 = vmatprep.subr.bf16.mxu0 0
    %3953 = vmatpush1.bf16.msra.mxu0 0
    %3954 = vmatprep.subr.bf16.mxu0 0
    %3955 = vmatpush1.bf16.msra.mxu0 0
    %3956 = vmatprep.subr.bf16.mxu0 0
    %3957 = vmatpush1.bf16.msra.mxu0 0
    %3958 = vmatprep.subr.bf16.mxu0 0
    %3959 = vmatpush1.bf16.msra.mxu0 0
    %3960 = vmatprep.subr.bf16.mxu0 0
    %3961 = vmatpush1.bf16.msra.mxu0 0
    %3962 = vmatprep.subr.bf16.mxu0 0
    %3963 = vmatpush1.bf16.msra.mxu0 0
    %3964 = vmatprep.mubr.bf16.mxu0 0
    %3965 = vmatmul.mubr.bf16.gmra.mrb[0].mxu0 %v3880
    %v3966 = vpop.f32.mrb[0].mxu0
    %v3967 = vadd.f32 0.0, %v3966
    %v3968 = vpop.f32.mrb[0].mxu0
    %v3969 = vpop.f32.mrb[0].mxu0
    %v3970 = vadd.f32 0.0, %v3969
    %v3971 = vpop.f32.mrb[0].mxu0
    %3972 = vmatprep.mubr.bf16.mxu0 0
    %3973 = vmatmul.mubr.bf16.gmra.mrb[0].mxu0 %v3881
    %v3974 = vpop.f32.mrb[0].mxu0
    %v3975 = vadd.f32 0.0, %v3974
    %v3976 = vpop.f32.mrb[0].mxu0
    %v3977 = vpop.f32.mrb[0].mxu0
    %v3978 = vadd.f32 0.0, %v3977
    %v3979 = vpop.f32.mrb[0].mxu0
    %3980 = vdwg.mxu0
    %v3981 = vadd.f32 %v3808, %v3967
    %v3982 = vadd.f32 %v3809, %v3970
    %v3983 = vadd.f32 %v3810, %v3975
    %v3984 = vadd.f32 %v3811, %v3978
    %v3985 = vld [vmem:[#allocation2] sm:$0xc]
    %v3986 = vld [vmem:[#allocation2 + $0xc] sm:$0xc]
    %v3991 = vrot.slane %v3985, 6
    %v3992 = vrot.slane %v3991, 4
    %v3993 = vrot.slane %v3487, 6
    %v3994 = vsel %vm731, %v3992, %v3993
    %v3995 = vrot.slane %v3993, 4
    %v3996 = vrot.slane %v3812, 6
    %v3997 = vsel %vm731, %v3995, %v3996
    %v3998 = vrot.slane %v3986, 6
    %v3999 = vrot.slane %v3998, 4
    %v4000 = vrot.slane %v3490, 6
    %v4001 = vsel %vm731, %v3999, %v4000
    %v4002 = vrot.slane %v4000, 4
    %v4003 = vrot.slane %v3813, 6
    %v4004 = vsel %vm731, %v4002, %v4003
    %v4005 = vld [vmem:[%s1 + $0x384] sm:$0xf]
    %v4006 = vld [vmem:[%s1 + $0x388] sm:$0xf]
    %v4007 = vld [vmem:[%s1 + $0x38c] sm:$0xf]
    %v4008 = vld [vmem:[%s1 + $0x390] sm:$0xf]
    %v4009 = vld [vmem:[%s1 + $0x394] sm:$0xf]
    %v4010 = vld [vmem:[%s1 + $0x398] sm:$0xf]
    %v4011 = vld [vmem:[%s1 + $0x39c] sm:$0xf]
    %v4012 = vld [vmem:[%s1 + $0x3a0] sm:$0xf]
    %v4013 = vld [vmem:[%s1 + $0x3a4] sm:$0xf]
    %v4014 = vld [vmem:[%s1 + $0x3a8] sm:$0xf]
    %v4015 = vld [vmem:[%s1 + $0x3ac] sm:$0xf]
    %v4016 = vld [vmem:[%s1 + $0x3b0] sm:$0xf]
    %v4017 = vld [vmem:[%s1 + $0x3b4] sm:$0xf]
    %v4018 = vld [vmem:[%s1 + $0x3b8] sm:$0xf]
    %v4019 = vld [vmem:[%s1 + $0x3bc] sm:$0xf]
    %v4020 = vld [vmem:[%s1 + $0x3c0] sm:$0xf]
    %v4021 = vunpack.c.l.b16 %v3994
    %v4022 = vunpack.c.l.b16 %v3997
    %v4023 = vunpack.c.l.b16 %v4001
    %v4024 = vunpack.c.l.b16 %v4004
    %v4025 = vpack.c.b16 %v4022, %v4021
    %v4026 = vpack.c.b16 %v4024, %v4023
    %v4045 = vunpack.c.l.b16 %v4005
    %v4046 = vunpack.c.l.b16 %v4006
    %v4047 = vunpack.c.l.b16 %v4007
    %v4048 = vunpack.c.l.b16 %v4008
    %v4049 = vunpack.c.l.b16 %v4009
    %v4050 = vunpack.c.l.b16 %v4010
    %v4051 = vunpack.c.l.b16 %v4011
    %v4052 = vunpack.c.l.b16 %v4012
    %v4053 = vunpack.c.l.b16 %v4013
    %v4054 = vunpack.c.l.b16 %v4014
    %v4055 = vunpack.c.l.b16 %v4015
    %v4056 = vunpack.c.l.b16 %v4016
    %v4057 = vunpack.c.l.b16 %v4017
    %v4058 = vunpack.c.l.b16 %v4018
    %v4059 = vunpack.c.l.b16 %v4019
    %v4060 = vunpack.c.l.b16 %v4020
    %v4061 = vpack.c.b16 %v4046, %v4045
    %v4062 = vpack.c.b16 %v4048, %v4047
    %v4063 = vpack.c.b16 %v4050, %v4049
    %v4064 = vpack.c.b16 %v4052, %v4051
    %v4065 = vpack.c.b16 %v4054, %v4053
    %v4066 = vpack.c.b16 %v4056, %v4055
    %v4067 = vpack.c.b16 %v4058, %v4057
    %v4068 = vpack.c.b16 %v4060, %v4059
    %4077 = vmatprep.subr.bf16.mxu0 0
    %4078 = vmatpush1.bf16.msra.mxu0 %v4061
    %4079 = vmatprep.subr.bf16.mxu0 0
    %4080 = vmatpush1.bf16.msra.mxu0 %v4062
    %4081 = vmatprep.subr.bf16.mxu0 0
    %4082 = vmatpush1.bf16.msra.mxu0 %v4063
    %4083 = vmatprep.subr.bf16.mxu0 0
    %4084 = vmatpush1.bf16.msra.mxu0 %v4064
    %4085 = vmatprep.subr.bf16.mxu0 0
    %4086 = vmatpush1.bf16.msra.mxu0 %v4065
    %4087 = vmatprep.subr.bf16.mxu0 0
    %4088 = vmatpush1.bf16.msra.mxu0 %v4066
    %4089 = vmatprep.subr.bf16.mxu0 0
    %4090 = vmatpush1.bf16.msra.mxu0 %v4067
    %4091 = vmatprep.subr.bf16.mxu0 0
    %4092 = vmatpush1.bf16.msra.mxu0 %v4068
    %4093 = vmatprep.subr.bf16.mxu0 0
    %4094 = vmatpush1.bf16.msra.mxu0 0
    %4095 = vmatprep.subr.bf16.mxu0 0
    %4096 = vmatpush1.bf16.msra.mxu0 0
    %4097 = vmatprep.subr.bf16.mxu0 0
    %4098 = vmatpush1.bf16.msra.mxu0 0
    %4099 = vmatprep.subr.bf16.mxu0 0
    %4100 = vmatpush1.bf16.msra.mxu0 0
    %4101 = vmatprep.subr.bf16.mxu0 0
    %4102 = vmatpush1.bf16.msra.mxu0 0
    %4103 = vmatprep.subr.bf16.mxu0 0
    %4104 = vmatpush1.bf16.msra.mxu0 0
    %4105 = vmatprep.subr.bf16.mxu0 0
    %4106 = vmatpush1.bf16.msra.mxu0 0
    %4107 = vmatprep.subr.bf16.mxu0 0
    %4108 = vmatpush1.bf16.msra.mxu0 0
    %4109 = vmatprep.mubr.bf16.mxu0 0
    %4110 = vmatmul.mubr.bf16.gmra.mrb[0].mxu0 %v4025
    %v4111 = vpop.f32.mrb[0].mxu0
    %v4112 = vadd.f32 0.0, %v4111
    %v4113 = vpop.f32.mrb[0].mxu0
    %v4114 = vpop.f32.mrb[0].mxu0
    %v4115 = vadd.f32 0.0, %v4114
    %v4116 = vpop.f32.mrb[0].mxu0
    %4117 = vmatprep.mubr.bf16.mxu0 0
    %4118 = vmatmul.mubr.bf16.gmra.mrb[0].mxu0 %v4026
    %v4119 = vpop.f32.mrb[0].mxu0
    %v4120 = vadd.f32 0.0, %v4119
    %v4121 = vpop.f32.mrb[0].mxu0
    %v4122 = vpop.f32.mrb[0].mxu0
    %v4123 = vadd.f32 0.0, %v4122
    %v4124 = vpop.f32.mrb[0].mxu0
    %4125 = vdwg.mxu0
    %v4126 = vadd.f32 %v3981, %v4112
    %v4127 = vadd.f32 %v3982, %v4115
    %v4128 = vadd.f32 %v3983, %v4120
    %v4129 = vadd.f32 %v3984, %v4123
    %v4130 = vld [vmem:[#allocation2 + $0x8] sm:$0x7]
    %v4131 = vld [vmem:[#allocation2 + $0x14] sm:$0x7]
    %v4133 = vshrl.u32 %v3985, 16
    %v4135 = vrot.slane %v4133, 6
    %v4136 = vshll.u32 %v3985, 16
    %v4138 = vrot.slane %v4136, 7
    %v4139 = vor.u32 %v4135, %v4138
    %v4140 = vrot.slane %v4139, 4
    %v4141 = vrot.slane %v3506, 6
    %v4142 = vrot.slane %v3502, 7
    %v4143 = vor.u32 %v4141, %v4142
    %v4144 = vsel %vm128, %v4140, %v4143
    %v4145 = vrot.slane %v4143, 4
    %v4147 = vshrl.u32 %v4130, 16
    %v4149 = vrot.slane %v4147, 6
    %v4150 = vshll.u32 %v4130, 16
    %v4152 = vrot.slane %v4150, 7
    %v4153 = vor.u32 %v4149, %v4152
    %v4154 = vsel %vm128, %v4145, %v4153
    %v4156 = vshrl.u32 %v3986, 16
    %v4158 = vrot.slane %v4156, 6
    %v4159 = vshll.u32 %v3986, 16
    %v4161 = vrot.slane %v4159, 7
    %v4162 = vor.u32 %v4158, %v4161
    %v4163 = vrot.slane %v4162, 4
    %v4164 = vrot.slane %v3530, 6
    %v4165 = vrot.slane %v3526, 7
    %v4166 = vor.u32 %v4164, %v4165
    %v4167 = vsel %vm128, %v4163, %v4166
    %v4168 = vrot.slane %v4166, 4
    %v4170 = vshrl.u32 %v4131, 16
    %v4172 = vrot.slane %v4170, 6
    %v4173 = vshll.u32 %v4131, 16
    %v4175 = vrot.slane %v4173, 7
    %v4176 = vor.u32 %v4172, %v4175
    %v4177 = vsel %vm128, %v4168, %v4176
    %v4178 = vld [vmem:[%s1 + $0x3c4] sm:$0xf]
    %v4179 = vld [vmem:[%s1 + $0x3c8] sm:$0xf]
    %v4180 = vld [vmem:[%s1 + $0x3cc] sm:$0xf]
    %v4181 = vld [vmem:[%s1 + $0x3d0] sm:$0xf]
    %v4182 = vld [vmem:[%s1 + $0x3d4] sm:$0xf]
    %v4183 = vld [vmem:[%s1 + $0x3d8] sm:$0xf]
    %v4184 = vld [vmem:[%s1 + $0x3dc] sm:$0xf]
    %v4185 = vld [vmem:[%s1 + $0x3e0] sm:$0xf]
    %v4186 = vld [vmem:[%s1 + $0x3e4] sm:$0xf]
    %v4187 = vld [vmem:[%s1 + $0x3e8] sm:$0xf]
    %v4188 = vld [vmem:[%s1 + $0x3ec] sm:$0xf]
    %v4189 = vld [vmem:[%s1 + $0x3f0] sm:$0xf]
    %v4190 = vld [vmem:[%s1 + $0x3f4] sm:$0xf]
    %v4191 = vld [vmem:[%s1 + $0x3f8] sm:$0xf]
    %v4192 = vld [vmem:[%s1 + $0x3fc] sm:$0xf]
    %v4193 = vld [vmem:[%s1 + $0x400] sm:$0xf]
    %v4194 = vunpack.c.l.b16 %v4144
    %v4195 = vunpack.c.l.b16 %v4154
    %v4196 = vunpack.c.l.b16 %v4167
    %v4197 = vunpack.c.l.b16 %v4177
    %v4198 = vpack.c.b16 %v4195, %v4194
    %v4199 = vpack.c.b16 %v4197, %v4196
    %v4218 = vunpack.c.l.b16 %v4178
    %v4219 = vunpack.c.l.b16 %v4179
    %v4220 = vunpack.c.l.b16 %v4180
    %v4221 = vunpack.c.l.b16 %v4181
    %v4222 = vunpack.c.l.b16 %v4182
    %v4223 = vunpack.c.l.b16 %v4183
    %v4224 = vunpack.c.l.b16 %v4184
    %v4225 = vunpack.c.l.b16 %v4185
    %v4226 = vunpack.c.l.b16 %v4186
    %v4227 = vunpack.c.l.b16 %v4187
    %v4228 = vunpack.c.l.b16 %v4188
    %v4229 = vunpack.c.l.b16 %v4189
    %v4230 = vunpack.c.l.b16 %v4190
    %v4231 = vunpack.c.l.b16 %v4191
    %v4232 = vunpack.c.l.b16 %v4192
    %v4233 = vunpack.c.l.b16 %v4193
    %v4234 = vpack.c.b16 %v4219, %v4218
    %v4235 = vpack.c.b16 %v4221, %v4220
    %v4236 = vpack.c.b16 %v4223, %v4222
    %v4237 = vpack.c.b16 %v4225, %v4224
    %v4238 = vpack.c.b16 %v4227, %v4226
    %v4239 = vpack.c.b16 %v4229, %v4228
    %v4240 = vpack.c.b16 %v4231, %v4230
    %v4241 = vpack.c.b16 %v4233, %v4232
    %4250 = vmatprep.subr.bf16.mxu0 0
    %4251 = vmatpush1.bf16.msra.mxu0 %v4234
    %4252 = vmatprep.subr.bf16.mxu0 0
    %4253 = vmatpush1.bf16.msra.mxu0 %v4235
    %4254 = vmatprep.subr.bf16.mxu0 0
    %4255 = vmatpush1.bf16.msra.mxu0 %v4236
    %4256 = vmatprep.subr.bf16.mxu0 0
    %4257 = vmatpush1.bf16.msra.mxu0 %v4237
    %4258 = vmatprep.subr.bf16.mxu0 0
    %4259 = vmatpush1.bf16.msra.mxu0 %v4238
    %4260 = vmatprep.subr.bf16.mxu0 0
    %4261 = vmatpush1.bf16.msra.mxu0 %v4239
    %4262 = vmatprep.subr.bf16.mxu0 0
    %4263 = vmatpush1.bf16.msra.mxu0 %v4240
    %4264 = vmatprep.subr.bf16.mxu0 0
    %4265 = vmatpush1.bf16.msra.mxu0 %v4241
    %4266 = vmatprep.subr.bf16.mxu0 0
    %4267 = vmatpush1.bf16.msra.mxu0 0
    %4268 = vmatprep.subr.bf16.mxu0 0
    %4269 = vmatpush1.bf16.msra.mxu0 0
    %4270 = vmatprep.subr.bf16.mxu0 0
    %4271 = vmatpush1.bf16.msra.mxu0 0
    %4272 = vmatprep.subr.bf16.mxu0 0
    %4273 = vmatpush1.bf16.msra.mxu0 0
    %4274 = vmatprep.subr.bf16.mxu0 0
    %4275 = vmatpush1.bf16.msra.mxu0 0
    %4276 = vmatprep.subr.bf16.mxu0 0
    %4277 = vmatpush1.bf16.msra.mxu0 0
    %4278 = vmatprep.subr.bf16.mxu0 0
    %4279 = vmatpush1.bf16.msra.mxu0 0
    %4280 = vmatprep.subr.bf16.mxu0 0
    %4281 = vmatpush1.bf16.msra.mxu0 0
    %4282 = vmatprep.mubr.bf16.mxu0 0
    %4283 = vmatmul.mubr.bf16.gmra.mrb[0].mxu0 %v4198
    %v4284 = vpop.f32.mrb[0].mxu0
    %v4285 = vadd.f32 0.0, %v4284
    %v4286 = vpop.f32.mrb[0].mxu0
    %v4287 = vpop.f32.mrb[0].mxu0
    %v4288 = vadd.f32 0.0, %v4287
    %v4289 = vpop.f32.mrb[0].mxu0
    %4290 = vmatprep.mubr.bf16.mxu0 0
    %4291 = vmatmul.mubr.bf16.gmra.mrb[0].mxu0 %v4199
    %v4292 = vpop.f32.mrb[0].mxu0
    %v4293 = vadd.f32 0.0, %v4292
    %v4294 = vpop.f32.mrb[0].mxu0
    %v4295 = vpop.f32.mrb[0].mxu0
    %v4296 = vadd.f32 0.0, %v4295
    %v4297 = vpop.f32.mrb[0].mxu0
    %4298 = vdwg.mxu0
    %v4299 = vadd.f32 %v4126, %v4285
    %v4300 = vadd.f32 %v4127, %v4288
    %v4301 = vadd.f32 %v4128, %v4293
    %v4302 = vadd.f32 %v4129, %v4296
    %v4303 = vmax.f32 %v4299, 0.0
    %v4304 = vmax.f32 %v4300, 0.0
    %v4305 = vmax.f32 %v4301, 0.0
    %v4306 = vmax.f32 %v4302, 0.0
    %v4307 = vpack.c.bf16 %v4304, %v4303
    %v4308 = vpack.c.bf16 %v4306, %v4305
    %v4311 = vunpack.c.l.b16 %v4307
    %v4312 = vunpack.c.h.b16 %v4307
    %v4313 = vunpack.c.l.b16 %v4308
    %v4314 = vunpack.c.h.b16 %v4308
    %v4315 = vpack.c.b16 %v4311, %v4311
    %v4316 = vpack.c.b16 %v4312, %v4312
    %v4317 = vpack.c.b16 %v4313, %v4313
    %v4318 = vpack.c.b16 %v4314, %v4314
    %v4320 = vshrl.u32 %v4315, 16
    %v4322 = vrot.slane %v4320, 6
    %v4323 = vshll.u32 %v4315, 16
    %v4325 = vrot.slane %v4323, 7
    %v4326 = vor.u32 %v4322, %v4325
    %v4327 = vrot.slane %v4326, 4
    %v4329 = vshrl.u32 %v4316, 16
    %v4331 = vrot.slane %v4329, 6
    %v4332 = vshll.u32 %v4316, 16
    %v4334 = vrot.slane %v4332, 7
    %v4335 = vor.u32 %v4331, %v4334
    %v4336 = vsel %vm128, %v4327, %v4335
    %v4337 = vrot.slane %v4335, 4
    %v4339 = vshrl.u32 %v4317, 16
    %v4341 = vrot.slane %v4339, 6
    %v4342 = vshll.u32 %v4317, 16
    %v4344 = vrot.slane %v4342, 7
    %v4345 = vor.u32 %v4341, %v4344
    %v4346 = vrot.slane %v4345, 4
    %v4348 = vshrl.u32 %v4318, 16
    %v4350 = vrot.slane %v4348, 6
    %v4351 = vshll.u32 %v4318, 16
    %v4353 = vrot.slane %v4351, 7
    %v4354 = vor.u32 %v4350, %v4353
    %v4355 = vsel %vm128, %v4346, %v4354
    %v4356 = vrot.slane %v4354, 4
    %v4363 = vsel %vm174, %v4326, %v3665
    %4364 = vst [vmem:[#allocation2] sm:$0xe] %v4363
    %4365 = vst [vmem:[#allocation2 + $0x4] sm:$0xf] %v4336
    %v4366 = vld [vmem:[#allocation2 + $0x8] sm:$0x3]
    %v4367 = vsel %vm20, %v4337, %v4366
    %4368 = vst [vmem:[#allocation2 + $0x8] sm:$0x3] %v4367
    %v4369 = vld [vmem:[#allocation2 + $0xc] sm:$0xe]
    %v4370 = vsel %vm174, %v4345, %v4369
    %4371 = vst [vmem:[#allocation2 + $0xc] sm:$0xe] %v4370
    %4372 = vst [vmem:[#allocation2 + $0x10] sm:$0xf] %v4355
    %v4373 = vld [vmem:[#allocation2 + $0x14] sm:$0x3]
    %v4374 = vsel %vm20, %v4356, %v4373
    %4375 = vst [vmem:[#allocation2 + $0x14] sm:$0x3] %v4374
    %v4376 = vlaneseq
    %v4377 = vshrl.u32 %v4376, 7
    %v4378 = vsub.s32 6, %v4377
    %v4379 = vrot.slane %v16, %v4378
    %v4380 = vadd.f32 %v4379, 0.0
    %v4381 = vld [vmem:[#allocation2] sm:$0xe]
    %v4382 = vld [vmem:[#allocation2 + $0x4] sm:$0xf]
    %v4383 = vld [vmem:[#allocation2 + $0x8] sm:$0x1]
    %v4384 = vld [vmem:[#allocation2 + $0xc] sm:$0xe]
    %v4385 = vld [vmem:[#allocation2 + $0x10] sm:$0xf]
    %v4386 = vld [vmem:[#allocation2 + $0x14] sm:$0x1]
    %v4393 = vrot.slane %v4381, 5
    %v4394 = vrot.slane %v4393, 4
    %v4395 = vrot.slane %v4382, 5
    %v4396 = vsel %vm464, %v4394, %v4395
    %v4397 = vrot.slane %v4395, 4
    %v4398 = vrot.slane %v4383, 5
    %v4399 = vsel %vm464, %v4397, %v4398
    %v4400 = vrot.slane %v4384, 5
    %v4401 = vrot.slane %v4400, 4
    %v4402 = vrot.slane %v4385, 5
    %v4403 = vsel %vm464, %v4401, %v4402
    %v4404 = vrot.slane %v4402, 4
    %v4405 = vrot.slane %v4386, 5
    %v4406 = vsel %vm464, %v4404, %v4405
    %v4407 = vld [vmem:[%s1 + $0x404] sm:$0xf]
    %v4408 = vld [vmem:[%s1 + $0x408] sm:$0xf]
    %v4409 = vld [vmem:[%s1 + $0x40c] sm:$0xf]
    %v4410 = vld [vmem:[%s1 + $0x410] sm:$0xf]
    %v4411 = vld [vmem:[%s1 + $0x414] sm:$0xf]
    %v4412 = vld [vmem:[%s1 + $0x418] sm:$0xf]
    %v4413 = vld [vmem:[%s1 + $0x41c] sm:$0xf]
    %v4414 = vld [vmem:[%s1 + $0x420] sm:$0xf]
    %v4415 = vld [vmem:[%s1 + $0x424] sm:$0xf]
    %v4416 = vld [vmem:[%s1 + $0x428] sm:$0xf]
    %v4417 = vld [vmem:[%s1 + $0x42c] sm:$0xf]
    %v4418 = vld [vmem:[%s1 + $0x430] sm:$0xf]
    %v4419 = vld [vmem:[%s1 + $0x434] sm:$0xf]
    %v4420 = vld [vmem:[%s1 + $0x438] sm:$0xf]
    %v4421 = vld [vmem:[%s1 + $0x43c] sm:$0xf]
    %v4422 = vld [vmem:[%s1 + $0x440] sm:$0xf]
    %v4423 = vunpack.c.l.b16 %v4396
    %v4424 = vunpack.c.l.b16 %v4399
    %v4425 = vunpack.c.l.b16 %v4403
    %v4426 = vunpack.c.l.b16 %v4406
    %v4427 = vpack.c.b16 %v4424, %v4423
    %v4428 = vpack.c.b16 %v4426, %v4425
    %v4447 = vunpack.c.l.b16 %v4407
    %v4448 = vunpack.c.l.b16 %v4408
    %v4449 = vunpack.c.l.b16 %v4409
    %v4450 = vunpack.c.l.b16 %v4410
    %v4451 = vunpack.c.l.b16 %v4411
    %v4452 = vunpack.c.l.b16 %v4412
    %v4453 = vunpack.c.l.b16 %v4413
    %v4454 = vunpack.c.l.b16 %v4414
    %v4455 = vunpack.c.l.b16 %v4415
    %v4456 = vunpack.c.l.b16 %v4416
    %v4457 = vunpack.c.l.b16 %v4417
    %v4458 = vunpack.c.l.b16 %v4418
    %v4459 = vunpack.c.l.b16 %v4419
    %v4460 = vunpack.c.l.b16 %v4420
    %v4461 = vunpack.c.l.b16 %v4421
    %v4462 = vunpack.c.l.b16 %v4422
    %v4463 = vpack.c.b16 %v4448, %v4447
    %v4464 = vpack.c.b16 %v4450, %v4449
    %v4465 = vpack.c.b16 %v4452, %v4451
    %v4466 = vpack.c.b16 %v4454, %v4453
    %v4467 = vpack.c.b16 %v4456, %v4455
    %v4468 = vpack.c.b16 %v4458, %v4457
    %v4469 = vpack.c.b16 %v4460, %v4459
    %v4470 = vpack.c.b16 %v4462, %v4461
    %4479 = vmatprep.subr.bf16.mxu0 0
    %4480 = vmatpush1.bf16.msra.mxu0 %v4463
    %4481 = vmatprep.subr.bf16.mxu0 0
    %4482 = vmatpush1.bf16.msra.mxu0 %v4464
    %4483 = vmatprep.subr.bf16.mxu0 0
    %4484 = vmatpush1.bf16.msra.mxu0 %v4465
    %4485 = vmatprep.subr.bf16.mxu0 0
    %4486 = vmatpush1.bf16.msra.mxu0 %v4466
    %4487 = vmatprep.subr.bf16.mxu0 0
    %4488 = vmatpush1.bf16.msra.mxu0 %v4467
    %4489 = vmatprep.subr.bf16.mxu0 0
    %4490 = vmatpush1.bf16.msra.mxu0 %v4468
    %4491 = vmatprep.subr.bf16.mxu0 0
    %4492 = vmatpush1.bf16.msra.mxu0 %v4469
    %4493 = vmatprep.subr.bf16.mxu0 0
    %4494 = vmatpush1.bf16.msra.mxu0 %v4470
    %4495 = vmatprep.subr.bf16.mxu0 0
    %4496 = vmatpush1.bf16.msra.mxu0 0
    %4497 = vmatprep.subr.bf16.mxu0 0
    %4498 = vmatpush1.bf16.msra.mxu0 0
    %4499 = vmatprep.subr.bf16.mxu0 0
    %4500 = vmatpush1.bf16.msra.mxu0 0
    %4501 = vmatprep.subr.bf16.mxu0 0
    %4502 = vmatpush1.bf16.msra.mxu0 0
    %4503 = vmatprep.subr.bf16.mxu0 0
    %4504 = vmatpush1.bf16.msra.mxu0 0
    %4505 = vmatprep.subr.bf16.mxu0 0
    %4506 = vmatpush1.bf16.msra.mxu0 0
    %4507 = vmatprep.subr.bf16.mxu0 0
    %4508 = vmatpush1.bf16.msra.mxu0 0
    %4509 = vmatprep.subr.bf16.mxu0 0
    %4510 = vmatpush1.bf16.msra.mxu0 0
    %4511 = vmatprep.mubr.bf16.mxu0 0
    %4512 = vmatmul.mubr.bf16.gmra.mrb[0].mxu0 %v4427
    %v4513 = vpop.f32.mrb[0].mxu0
    %v4514 = vadd.f32 0.0, %v4513
    %v4515 = vpop.f32.mrb[0].mxu0
    %v4516 = vpop.f32.mrb[0].mxu0
    %v4517 = vadd.f32 0.0, %v4516
    %v4518 = vpop.f32.mrb[0].mxu0
    %4519 = vmatprep.mubr.bf16.mxu0 0
    %4520 = vmatmul.mubr.bf16.gmra.mrb[0].mxu0 %v4428
    %v4521 = vpop.f32.mrb[0].mxu0
    %v4522 = vadd.f32 0.0, %v4521
    %v4523 = vpop.f32.mrb[0].mxu0
    %v4524 = vpop.f32.mrb[0].mxu0
    %v4525 = vadd.f32 0.0, %v4524
    %v4526 = vpop.f32.mrb[0].mxu0
    %4527 = vdwg.mxu0
    %v4528 = vadd.f32 %v4380, %v4514
    %v4529 = vadd.f32 %v4380, %v4517
    %v4530 = vadd.f32 %v4380, %v4522
    %v4531 = vadd.f32 %v4380, %v4525
    %v4532 = vld [vmem:[#allocation2 + $0x8] sm:$0x3]
    %v4533 = vld [vmem:[#allocation2 + $0x14] sm:$0x3]
    %v4535 = vshrl.u32 %v4381, 16
    %v4537 = vrot.slane %v4535, 5
    %v4538 = vshll.u32 %v4381, 16
    %v4540 = vrot.slane %v4538, 6
    %v4541 = vor.u32 %v4537, %v4540
    %v4542 = vrot.slane %v4541, 4
    %v4544 = vshrl.u32 %v4382, 16
    %v4546 = vrot.slane %v4544, 5
    %v4547 = vshll.u32 %v4382, 16
    %v4549 = vrot.slane %v4547, 6
    %v4550 = vor.u32 %v4546, %v4549
    %v4551 = vsel %vm580, %v4542, %v4550
    %v4552 = vrot.slane %v4550, 4
    %v4554 = vshrl.u32 %v4532, 16
    %v4556 = vrot.slane %v4554, 5
    %v4557 = vshll.u32 %v4532, 16
    %v4559 = vrot.slane %v4557, 6
    %v4560 = vor.u32 %v4556, %v4559
    %v4561 = vsel %vm580, %v4552, %v4560
    %v4563 = vshrl.u32 %v4384, 16
    %v4565 = vrot.slane %v4563, 5
    %v4566 = vshll.u32 %v4384, 16
    %v4568 = vrot.slane %v4566, 6
    %v4569 = vor.u32 %v4565, %v4568
    %v4570 = vrot.slane %v4569, 4
    %v4572 = vshrl.u32 %v4385, 16
    %v4574 = vrot.slane %v4572, 5
    %v4575 = vshll.u32 %v4385, 16
    %v4577 = vrot.slane %v4575, 6
    %v4578 = vor.u32 %v4574, %v4577
    %v4579 = vsel %vm580, %v4570, %v4578
    %v4580 = vrot.slane %v4578, 4
    %v4582 = vshrl.u32 %v4533, 16
    %v4584 = vrot.slane %v4582, 5
    %v4585 = vshll.u32 %v4533, 16
    %v4587 = vrot.slane %v4585, 6
    %v4588 = vor.u32 %v4584, %v4587
    %v4589 = vsel %vm580, %v4580, %v4588
    %v4590 = vld [vmem:[%s1 + $0x444] sm:$0xf]
    %v4591 = vld [vmem:[%s1 + $0x448] sm:$0xf]
    %v4592 = vld [vmem:[%s1 + $0x44c] sm:$0xf]
    %v4593 = vld [vmem:[%s1 + $0x450] sm:$0xf]
    %v4594 = vld [vmem:[%s1 + $0x454] sm:$0xf]
    %v4595 = vld [vmem:[%s1 + $0x458] sm:$0xf]
    %v4596 = vld [vmem:[%s1 + $0x45c] sm:$0xf]
    %v4597 = vld [vmem:[%s1 + $0x460] sm:$0xf]
    %v4598 = vld [vmem:[%s1 + $0x464] sm:$0xf]
    %v4599 = vld [vmem:[%s1 + $0x468] sm:$0xf]
    %v4600 = vld [vmem:[%s1 + $0x46c] sm:$0xf]
    %v4601 = vld [vmem:[%s1 + $0x470] sm:$0xf]
    %v4602 = vld [vmem:[%s1 + $0x474] sm:$0xf]
    %v4603 = vld [vmem:[%s1 + $0x478] sm:$0xf]
    %v4604 = vld [vmem:[%s1 + $0x47c] sm:$0xf]
    %v4605 = vld [vmem:[%s1 + $0x480] sm:$0xf]
    %v4606 = vunpack.c.l.b16 %v4551
    %v4607 = vunpack.c.l.b16 %v4561
    %v4608 = vunpack.c.l.b16 %v4579
    %v4609 = vunpack.c.l.b16 %v4589
    %v4610 = vpack.c.b16 %v4607, %v4606
    %v4611 = vpack.c.b16 %v4609, %v4608
    %v4630 = vunpack.c.l.b16 %v4590
    %v4631 = vunpack.c.l.b16 %v4591
    %v4632 = vunpack.c.l.b16 %v4592
    %v4633 = vunpack.c.l.b16 %v4593
    %v4634 = vunpack.c.l.b16 %v4594
    %v4635 = vunpack.c.l.b16 %v4595
    %v4636 = vunpack.c.l.b16 %v4596
    %v4637 = vunpack.c.l.b16 %v4597
    %v4638 = vunpack.c.l.b16 %v4598
    %v4639 = vunpack.c.l.b16 %v4599
    %v4640 = vunpack.c.l.b16 %v4600
    %v4641 = vunpack.c.l.b16 %v4601
    %v4642 = vunpack.c.l.b16 %v4602
    %v4643 = vunpack.c.l.b16 %v4603
    %v4644 = vunpack.c.l.b16 %v4604
    %v4645 = vunpack.c.l.b16 %v4605
    %v4646 = vpack.c.b16 %v4631, %v4630
    %v4647 = vpack.c.b16 %v4633, %v4632
    %v4648 = vpack.c.b16 %v4635, %v4634
    %v4649 = vpack.c.b16 %v4637, %v4636
    %v4650 = vpack.c.b16 %v4639, %v4638
    %v4651 = vpack.c.b16 %v4641, %v4640
    %v4652 = vpack.c.b16 %v4643, %v4642
    %v4653 = vpack.c.b16 %v4645, %v4644
    %4662 = vmatprep.subr.bf16.mxu0 0
    %4663 = vmatpush1.bf16.msra.mxu0 %v4646
    %4664 = vmatprep.subr.bf16.mxu0 0
    %4665 = vmatpush1.bf16.msra.mxu0 %v4647
    %4666 = vmatprep.subr.bf16.mxu0 0
    %4667 = vmatpush1.bf16.msra.mxu0 %v4648
    %4668 = vmatprep.subr.bf16.mxu0 0
    %4669 = vmatpush1.bf16.msra.mxu0 %v4649
    %4670 = vmatprep.subr.bf16.mxu0 0
    %4671 = vmatpush1.bf16.msra.mxu0 %v4650
    %4672 = vmatprep.subr.bf16.mxu0 0
    %4673 = vmatpush1.bf16.msra.mxu0 %v4651
    %4674 = vmatprep.subr.bf16.mxu0 0
    %4675 = vmatpush1.bf16.msra.mxu0 %v4652
    %4676 = vmatprep.subr.bf16.mxu0 0
    %4677 = vmatpush1.bf16.msra.mxu0 %v4653
    %4678 = vmatprep.subr.bf16.mxu0 0
    %4679 = vmatpush1.bf16.msra.mxu0 0
    %4680 = vmatprep.subr.bf16.mxu0 0
    %4681 = vmatpush1.bf16.msra.mxu0 0
    %4682 = vmatprep.subr.bf16.mxu0 0
    %4683 = vmatpush1.bf16.msra.mxu0 0
    %4684 = vmatprep.subr.bf16.mxu0 0
    %4685 = vmatpush1.bf16.msra.mxu0 0
    %4686 = vmatprep.subr.bf16.mxu0 0
    %4687 = vmatpush1.bf16.msra.mxu0 0
    %4688 = vmatprep.subr.bf16.mxu0 0
    %4689 = vmatpush1.bf16.msra.mxu0 0
    %4690 = vmatprep.subr.bf16.mxu0 0
    %4691 = vmatpush1.bf16.msra.mxu0 0
    %4692 = vmatprep.subr.bf16.mxu0 0
    %4693 = vmatpush1.bf16.msra.mxu0 0
    %4694 = vmatprep.mubr.bf16.mxu0 0
    %4695 = vmatmul.mubr.bf16.gmra.mrb[0].mxu0 %v4610
    %v4696 = vpop.f32.mrb[0].mxu0
    %v4697 = vadd.f32 0.0, %v4696
    %v4698 = vpop.f32.mrb[0].mxu0
    %v4699 = vpop.f32.mrb[0].mxu0
    %v4700 = vadd.f32 0.0, %v4699
    %v4701 = vpop.f32.mrb[0].mxu0
    %4702 = vmatprep.mubr.bf16.mxu0 0
    %4703 = vmatmul.mubr.bf16.gmra.mrb[0].mxu0 %v4611
    %v4704 = vpop.f32.mrb[0].mxu0
    %v4705 = vadd.f32 0.0, %v4704
    %v4706 = vpop.f32.mrb[0].mxu0
    %v4707 = vpop.f32.mrb[0].mxu0
    %v4708 = vadd.f32 0.0, %v4707
    %v4709 = vpop.f32.mrb[0].mxu0
    %4710 = vdwg.mxu0
    %v4711 = vadd.f32 %v4528, %v4697
    %v4712 = vadd.f32 %v4529, %v4700
    %v4713 = vadd.f32 %v4530, %v4705
    %v4714 = vadd.f32 %v4531, %v4708
    %v4715 = vld [vmem:[#allocation2] sm:$0xc]
    %v4716 = vld [vmem:[#allocation2 + $0xc] sm:$0xc]
    %v4721 = vrot.slane %v4715, 6
    %v4722 = vrot.slane %v4721, 4
    %v4723 = vrot.slane %v4382, 6
    %v4724 = vsel %vm731, %v4722, %v4723
    %v4725 = vrot.slane %v4723, 4
    %v4726 = vrot.slane %v4532, 6
    %v4727 = vsel %vm731, %v4725, %v4726
    %v4728 = vrot.slane %v4716, 6
    %v4729 = vrot.slane %v4728, 4
    %v4730 = vrot.slane %v4385, 6
    %v4731 = vsel %vm731, %v4729, %v4730
    %v4732 = vrot.slane %v4730, 4
    %v4733 = vrot.slane %v4533, 6
    %v4734 = vsel %vm731, %v4732, %v4733
    %v4735 = vld [vmem:[%s1 + $0x484] sm:$0xf]
    %v4736 = vld [vmem:[%s1 + $0x488] sm:$0xf]
    %v4737 = vld [vmem:[%s1 + $0x48c] sm:$0xf]
    %v4738 = vld [vmem:[%s1 + $0x490] sm:$0xf]
    %v4739 = vld [vmem:[%s1 + $0x494] sm:$0xf]
    %v4740 = vld [vmem:[%s1 + $0x498] sm:$0xf]
    %v4741 = vld [vmem:[%s1 + $0x49c] sm:$0xf]
    %v4742 = vld [vmem:[%s1 + $0x4a0] sm:$0xf]
    %v4743 = vld [vmem:[%s1 + $0x4a4] sm:$0xf]
    %v4744 = vld [vmem:[%s1 + $0x4a8] sm:$0xf]
    %v4745 = vld [vmem:[%s1 + $0x4ac] sm:$0xf]
    %v4746 = vld [vmem:[%s1 + $0x4b0] sm:$0xf]
    %v4747 = vld [vmem:[%s1 + $0x4b4] sm:$0xf]
    %v4748 = vld [vmem:[%s1 + $0x4b8] sm:$0xf]
    %v4749 = vld [vmem:[%s1 + $0x4bc] sm:$0xf]
    %v4750 = vld [vmem:[%s1 + $0x4c0] sm:$0xf]
    %v4751 = vunpack.c.l.b16 %v4724
    %v4752 = vunpack.c.l.b16 %v4727
    %v4753 = vunpack.c.l.b16 %v4731
    %v4754 = vunpack.c.l.b16 %v4734
    %v4755 = vpack.c.b16 %v4752, %v4751
    %v4756 = vpack.c.b16 %v4754, %v4753
    %v4775 = vunpack.c.l.b16 %v4735
    %v4776 = vunpack.c.l.b16 %v4736
    %v4777 = vunpack.c.l.b16 %v4737
    %v4778 = vunpack.c.l.b16 %v4738
    %v4779 = vunpack.c.l.b16 %v4739
    %v4780 = vunpack.c.l.b16 %v4740
    %v4781 = vunpack.c.l.b16 %v4741
    %v4782 = vunpack.c.l.b16 %v4742
    %v4783 = vunpack.c.l.b16 %v4743
    %v4784 = vunpack.c.l.b16 %v4744
    %v4785 = vunpack.c.l.b16 %v4745
    %v4786 = vunpack.c.l.b16 %v4746
    %v4787 = vunpack.c.l.b16 %v4747
    %v4788 = vunpack.c.l.b16 %v4748
    %v4789 = vunpack.c.l.b16 %v4749
    %v4790 = vunpack.c.l.b16 %v4750
    %v4791 = vpack.c.b16 %v4776, %v4775
    %v4792 = vpack.c.b16 %v4778, %v4777
    %v4793 = vpack.c.b16 %v4780, %v4779
    %v4794 = vpack.c.b16 %v4782, %v4781
    %v4795 = vpack.c.b16 %v4784, %v4783
    %v4796 = vpack.c.b16 %v4786, %v4785
    %v4797 = vpack.c.b16 %v4788, %v4787
    %v4798 = vpack.c.b16 %v4790, %v4789
    %4807 = vmatprep.subr.bf16.mxu0 0
    %4808 = vmatpush1.bf16.msra.mxu0 %v4791
    %4809 = vmatprep.subr.bf16.mxu0 0
    %4810 = vmatpush1.bf16.msra.mxu0 %v4792
    %4811 = vmatprep.subr.bf16.mxu0 0
    %4812 = vmatpush1.bf16.msra.mxu0 %v4793
    %4813 = vmatprep.subr.bf16.mxu0 0
    %4814 = vmatpush1.bf16.msra.mxu0 %v4794
    %4815 = vmatprep.subr.bf16.mxu0 0
    %4816 = vmatpush1.bf16.msra.mxu0 %v4795
    %4817 = vmatprep.subr.bf16.mxu0 0
    %4818 = vmatpush1.bf16.msra.mxu0 %v4796
    %4819 = vmatprep.subr.bf16.mxu0 0
    %4820 = vmatpush1.bf16.msra.mxu0 %v4797
    %4821 = vmatprep.subr.bf16.mxu0 0
    %4822 = vmatpush1.bf16.msra.mxu0 %v4798
    %4823 = vmatprep.subr.bf16.mxu0 0
    %4824 = vmatpush1.bf16.msra.mxu0 0
    %4825 = vmatprep.subr.bf16.mxu0 0
    %4826 = vmatpush1.bf16.msra.mxu0 0
    %4827 = vmatprep.subr.bf16.mxu0 0
    %4828 = vmatpush1.bf16.msra.mxu0 0
    %4829 = vmatprep.subr.bf16.mxu0 0
    %4830 = vmatpush1.bf16.msra.mxu0 0
    %4831 = vmatprep.subr.bf16.mxu0 0
    %4832 = vmatpush1.bf16.msra.mxu0 0
    %4833 = vmatprep.subr.bf16.mxu0 0
    %4834 = vmatpush1.bf16.msra.mxu0 0
    %4835 = vmatprep.subr.bf16.mxu0 0
    %4836 = vmatpush1.bf16.msra.mxu0 0
    %4837 = vmatprep.subr.bf16.mxu0 0
    %4838 = vmatpush1.bf16.msra.mxu0 0
    %4839 = vmatprep.mubr.bf16.mxu0 0
    %4840 = vmatmul.mubr.bf16.gmra.mrb[0].mxu0 %v4755
    %v4841 = vpop.f32.mrb[0].mxu0
    %v4842 = vadd.f32 0.0, %v4841
    %v4843 = vpop.f32.mrb[0].mxu0
    %v4844 = vpop.f32.mrb[0].mxu0
    %v4845 = vadd.f32 0.0, %v4844
    %v4846 = vpop.f32.mrb[0].mxu0
    %4847 = vmatprep.mubr.bf16.mxu0 0
    %4848 = vmatmul.mubr.bf16.gmra.mrb[0].mxu0 %v4756
    %v4849 = vpop.f32.mrb[0].mxu0
    %v4850 = vadd.f32 0.0, %v4849
    %v4851 = vpop.f32.mrb[0].mxu0
    %v4852 = vpop.f32.mrb[0].mxu0
    %v4853 = vadd.f32 0.0, %v4852
    %v4854 = vpop.f32.mrb[0].mxu0
    %4855 = vdwg.mxu0
    %v4856 = vadd.f32 %v4711, %v4842
    %v4857 = vadd.f32 %v4712, %v4845
    %v4858 = vadd.f32 %v4713, %v4850
    %v4859 = vadd.f32 %v4714, %v4853
    %v4860 = vadd.f32 %v4856, %v2423
    %v4861 = vadd.f32 %v4857, %v2426
    %v4862 = vadd.f32 %v4858, %v2431
    %v4863 = vadd.f32 %v4859, %v2434
    %v4864 = vmax.f32 %v4860, 0.0
    %v4865 = vmax.f32 %v4861, 0.0
    %v4866 = vmax.f32 %v4862, 0.0
    %v4867 = vmax.f32 %v4863, 0.0
    %v4868 = vpack.c.bf16 %v4865, %v4864
    %v4869 = vpack.c.bf16 %v4867, %v4866
    %v4872 = vunpack.c.l.b16 %v4868
    %v4873 = vunpack.c.h.b16 %v4868
    %v4874 = vunpack.c.l.b16 %v4869
    %v4875 = vunpack.c.h.b16 %v4869
    %v4876 = vpack.c.b16 %v4872, %v4872
    %v4877 = vpack.c.b16 %v4873, %v4873
    %v4878 = vpack.c.b16 %v4874, %v4874
    %v4879 = vpack.c.b16 %v4875, %v4875
    %v4881 = vshrl.u32 %v4876, 16
    %v4883 = vrot.slane %v4881, 6
    %v4884 = vshll.u32 %v4876, 16
    %v4886 = vrot.slane %v4884, 7
    %v4887 = vor.u32 %v4883, %v4886
    %v4888 = vrot.slane %v4887, 4
    %v4890 = vshrl.u32 %v4877, 16
    %v4892 = vrot.slane %v4890, 6
    %v4893 = vshll.u32 %v4877, 16
    %v4895 = vrot.slane %v4893, 7
    %v4896 = vor.u32 %v4892, %v4895
    %v4897 = vsel %vm128, %v4888, %v4896
    %v4898 = vrot.slane %v4896, 4
    %v4900 = vshrl.u32 %v4878, 16
    %v4902 = vrot.slane %v4900, 6
    %v4903 = vshll.u32 %v4878, 16
    %v4905 = vrot.slane %v4903, 7
    %v4906 = vor.u32 %v4902, %v4905
    %v4907 = vrot.slane %v4906, 4
    %v4909 = vshrl.u32 %v4879, 16
    %v4911 = vrot.slane %v4909, 6
    %v4912 = vshll.u32 %v4879, 16
    %v4914 = vrot.slane %v4912, 7
    %v4915 = vor.u32 %v4911, %v4914
    %v4916 = vsel %vm128, %v4907, %v4915
    %v4917 = vrot.slane %v4915, 4
    %v4924 = vsel %vm174, %v4887, %v4381
    %4925 = vst [vmem:[#allocation2] sm:$0xe] %v4924
    %4926 = vst [vmem:[#allocation2 + $0x4] sm:$0xf] %v4897
    %v4927 = vld [vmem:[#allocation2 + $0x8] sm:$0x3]
    %v4928 = vsel %vm20, %v4898, %v4927
    %4929 = vst [vmem:[#allocation2 + $0x8] sm:$0x3] %v4928
    %v4930 = vld [vmem:[#allocation2 + $0xc] sm:$0xe]
    %v4931 = vsel %vm174, %v4906, %v4930
    %4932 = vst [vmem:[#allocation2 + $0xc] sm:$0xe] %v4931
    %4933 = vst [vmem:[#allocation2 + $0x10] sm:$0xf] %v4916
    %v4934 = vld [vmem:[#allocation2 + $0x14] sm:$0x3]
    %v4935 = vsel %vm20, %v4917, %v4934
    %4936 = vst [vmem:[#allocation2 + $0x14] sm:$0x3] %v4935
    %v4937 = vlaneseq
    %v4938 = vshrl.u32 %v4937, 7
    %v4939 = vsub.s32 0, %v4938
    %v4940 = vrot.slane %v17, %v4939
    %v4941 = vadd.f32 %v4940, 0.0
    %v4942 = vld [vmem:[#allocation2] sm:$0xf]
    %v4943 = vld [vmem:[#allocation2 + $0x4] sm:$0xf]
    %v4944 = vld [vmem:[#allocation2 + $0xc] sm:$0xf]
    %v4945 = vld [vmem:[#allocation2 + $0x10] sm:$0xf]
    %v4946 = vld [vmem:[%s1 + $0x4e4] sm:$0xf]
    %v4947 = vld [vmem:[%s1 + $0x4e8] sm:$0xf]
    %v4948 = vld [vmem:[%s1 + $0x4ec] sm:$0xf]
    %v4949 = vld [vmem:[%s1 + $0x4f0] sm:$0xf]
    %v4950 = vld [vmem:[%s1 + $0x4f4] sm:$0xf]
    %v4951 = vld [vmem:[%s1 + $0x4f8] sm:$0xf]
    %v4952 = vld [vmem:[%s1 + $0x4fc] sm:$0xf]
    %v4953 = vld [vmem:[%s1 + $0x500] sm:$0xf]
    %v4954 = vld [vmem:[%s1 + $0x504] sm:$0xf]
    %v4955 = vld [vmem:[%s1 + $0x508] sm:$0xf]
    %v4956 = vld [vmem:[%s1 + $0x50c] sm:$0xf]
    %v4957 = vld [vmem:[%s1 + $0x510] sm:$0xf]
    %v4958 = vld [vmem:[%s1 + $0x514] sm:$0xf]
    %v4959 = vld [vmem:[%s1 + $0x518] sm:$0xf]
    %v4960 = vld [vmem:[%s1 + $0x51c] sm:$0xf]
    %v4961 = vld [vmem:[%s1 + $0x520] sm:$0xf]
    %v4966 = vunpack.c.l.b16 %v4942
    %v4967 = vunpack.c.l.b16 %v4943
    %v4968 = vunpack.c.l.b16 %v4944
    %v4969 = vunpack.c.l.b16 %v4945
    %v4970 = vpack.c.b16 %v4967, %v4966
    %v4971 = vpack.c.b16 %v4969, %v4968
    %v4990 = vunpack.c.l.b16 %v4946
    %v4991 = vunpack.c.l.b16 %v4947
    %v4992 = vunpack.c.l.b16 %v4948
    %v4993 = vunpack.c.l.b16 %v4949
    %v4994 = vunpack.c.l.b16 %v4950
    %v4995 = vunpack.c.l.b16 %v4951
    %v4996 = vunpack.c.l.b16 %v4952
    %v4997 = vunpack.c.l.b16 %v4953
    %v4998 = vunpack.c.l.b16 %v4954
    %v4999 = vunpack.c.l.b16 %v4955
    %v5000 = vunpack.c.l.b16 %v4956
    %v5001 = vunpack.c.l.b16 %v4957
    %v5002 = vunpack.c.l.b16 %v4958
    %v5003 = vunpack.c.l.b16 %v4959
    %v5004 = vunpack.c.l.b16 %v4960
    %v5005 = vunpack.c.l.b16 %v4961
    %v5006 = vpack.c.b16 %v4991, %v4990
    %v5007 = vpack.c.b16 %v4993, %v4992
    %v5008 = vpack.c.b16 %v4995, %v4994
    %v5009 = vpack.c.b16 %v4997, %v4996
    %v5010 = vpack.c.b16 %v4999, %v4998
    %v5011 = vpack.c.b16 %v5001, %v5000
    %v5012 = vpack.c.b16 %v5003, %v5002
    %v5013 = vpack.c.b16 %v5005, %v5004
    %5022 = vmatprep.subr.bf16.mxu0 0
    %5023 = vmatpush1.bf16.msra.mxu0 %v5006
    %5024 = vmatprep.subr.bf16.mxu0 0
    %5025 = vmatpush1.bf16.msra.mxu0 %v5007
    %5026 = vmatprep.subr.bf16.mxu0 0
    %5027 = vmatpush1.bf16.msra.mxu0 %v5008
    %5028 = vmatprep.subr.bf16.mxu0 0
    %5029 = vmatpush1.bf16.msra.mxu0 %v5009
    %5030 = vmatprep.subr.bf16.mxu0 0
    %5031 = vmatpush1.bf16.msra.mxu0 %v5010
    %5032 = vmatprep.subr.bf16.mxu0 0
    %5033 = vmatpush1.bf16.msra.mxu0 %v5011
    %5034 = vmatprep.subr.bf16.mxu0 0
    %5035 = vmatpush1.bf16.msra.mxu0 %v5012
    %5036 = vmatprep.subr.bf16.mxu0 0
    %5037 = vmatpush1.bf16.msra.mxu0 %v5013
    %5038 = vmatprep.subr.bf16.mxu0 0
    %5039 = vmatpush1.bf16.msra.mxu0 0
    %5040 = vmatprep.subr.bf16.mxu0 0
    %5041 = vmatpush1.bf16.msra.mxu0 0
    %5042 = vmatprep.subr.bf16.mxu0 0
    %5043 = vmatpush1.bf16.msra.mxu0 0
    %5044 = vmatprep.subr.bf16.mxu0 0
    %5045 = vmatpush1.bf16.msra.mxu0 0
    %5046 = vmatprep.subr.bf16.mxu0 0
    %5047 = vmatpush1.bf16.msra.mxu0 0
    %5048 = vmatprep.subr.bf16.mxu0 0
    %5049 = vmatpush1.bf16.msra.mxu0 0
    %5050 = vmatprep.subr.bf16.mxu0 0
    %5051 = vmatpush1.bf16.msra.mxu0 0
    %5052 = vmatprep.subr.bf16.mxu0 0
    %5053 = vmatpush1.bf16.msra.mxu0 0
    %5054 = vmatprep.mubr.bf16.mxu0 0
    %5055 = vmatmul.mubr.bf16.gmra.mrb[0].mxu0 %v4970
    %v5056 = vpop.f32.mrb[0].mxu0
    %v5057 = vadd.f32 0.0, %v5056
    %v5058 = vpop.f32.mrb[0].mxu0
    %v5059 = vpop.f32.mrb[0].mxu0
    %v5060 = vadd.f32 0.0, %v5059
    %v5061 = vpop.f32.mrb[0].mxu0
    %5062 = vmatprep.mubr.bf16.mxu0 0
    %5063 = vmatmul.mubr.bf16.gmra.mrb[0].mxu0 %v4971
    %v5064 = vpop.f32.mrb[0].mxu0
    %v5065 = vadd.f32 0.0, %v5064
    %v5066 = vpop.f32.mrb[0].mxu0
    %v5067 = vpop.f32.mrb[0].mxu0
    %v5068 = vadd.f32 0.0, %v5067
    %v5069 = vpop.f32.mrb[0].mxu0
    %5070 = vdwg.mxu0
    %v5071 = vadd.f32 %v4941, %v5057
    %v5072 = vadd.f32 %v4941, %v5060
    %v5073 = vadd.f32 %v4941, %v5065
    %v5074 = vadd.f32 %v4941, %v5068
    %v5075 = vld [vmem:[#allocation2] sm:$0xf]
    %v5076 = vld [vmem:[#allocation2 + $0x4] sm:$0xf]
    %v5077 = vld [vmem:[#allocation2 + $0x8] sm:$0x1]
    %v5078 = vld [vmem:[#allocation2 + $0xc] sm:$0xf]
    %v5079 = vld [vmem:[#allocation2 + $0x10] sm:$0xf]
    %v5080 = vld [vmem:[#allocation2 + $0x14] sm:$0x1]
    %v5082 = vshrl.u32 %v5075, 16
    %v5084 = vrot.slane %v5082, 4
    %v5085 = vshll.u32 %v5075, 16
    %v5087 = vrot.slane %v5085, 5
    %v5088 = vor.u32 %v5084, %v5087
    %v5089 = vrot.slane %v5088, 4
    %v5091 = vshll.u32 %v5076, 16
    %v5093 = vrot.slane %v5091, 5
    %v5094 = vsel %vm308, %v5089, %v5093
    %v5095 = vshrl.u32 %v5076, 16
    %v5097 = vrot.slane %v5095, 4
    %v5098 = vor.u32 %v5097, %v5093
    %v5099 = vrot.slane %v5098, 4
    %v5101 = vshll.u32 %v5077, 16
    %v5103 = vrot.slane %v5101, 5
    %v5104 = vsel %vm308, %v5099, %v5103
    %v5106 = vshrl.u32 %v5078, 16
    %v5108 = vrot.slane %v5106, 4
    %v5109 = vshll.u32 %v5078, 16
    %v5111 = vrot.slane %v5109, 5
    %v5112 = vor.u32 %v5108, %v5111
    %v5113 = vrot.slane %v5112, 4
    %v5115 = vshll.u32 %v5079, 16
    %v5117 = vrot.slane %v5115, 5
    %v5118 = vsel %vm308, %v5113, %v5117
    %v5119 = vshrl.u32 %v5079, 16
    %v5121 = vrot.slane %v5119, 4
    %v5122 = vor.u32 %v5121, %v5117
    %v5123 = vrot.slane %v5122, 4
    %v5125 = vshll.u32 %v5080, 16
    %v5127 = vrot.slane %v5125, 5
    %v5128 = vsel %vm308, %v5123, %v5127
    %v5129 = vld [vmem:[%s1 + $0x524] sm:$0xf]
    %v5130 = vld [vmem:[%s1 + $0x528] sm:$0xf]
    %v5131 = vld [vmem:[%s1 + $0x52c] sm:$0xf]
    %v5132 = vld [vmem:[%s1 + $0x530] sm:$0xf]
    %v5133 = vld [vmem:[%s1 + $0x534] sm:$0xf]
    %v5134 = vld [vmem:[%s1 + $0x538] sm:$0xf]
    %v5135 = vld [vmem:[%s1 + $0x53c] sm:$0xf]
    %v5136 = vld [vmem:[%s1 + $0x540] sm:$0xf]
    %v5137 = vld [vmem:[%s1 + $0x544] sm:$0xf]
    %v5138 = vld [vmem:[%s1 + $0x548] sm:$0xf]
    %v5139 = vld [vmem:[%s1 + $0x54c] sm:$0xf]
    %v5140 = vld [vmem:[%s1 + $0x550] sm:$0xf]
    %v5141 = vld [vmem:[%s1 + $0x554] sm:$0xf]
    %v5142 = vld [vmem:[%s1 + $0x558] sm:$0xf]
    %v5143 = vld [vmem:[%s1 + $0x55c] sm:$0xf]
    %v5144 = vld [vmem:[%s1 + $0x560] sm:$0xf]
    %v5145 = vunpack.c.l.b16 %v5094
    %v5146 = vunpack.c.l.b16 %v5104
    %v5147 = vunpack.c.l.b16 %v5118
    %v5148 = vunpack.c.l.b16 %v5128
    %v5149 = vpack.c.b16 %v5146, %v5145
    %v5150 = vpack.c.b16 %v5148, %v5147
    %v5169 = vunpack.c.l.b16 %v5129
    %v5170 = vunpack.c.l.b16 %v5130
    %v5171 = vunpack.c.l.b16 %v5131
    %v5172 = vunpack.c.l.b16 %v5132
    %v5173 = vunpack.c.l.b16 %v5133
    %v5174 = vunpack.c.l.b16 %v5134
    %v5175 = vunpack.c.l.b16 %v5135
    %v5176 = vunpack.c.l.b16 %v5136
    %v5177 = vunpack.c.l.b16 %v5137
    %v5178 = vunpack.c.l.b16 %v5138
    %v5179 = vunpack.c.l.b16 %v5139
    %v5180 = vunpack.c.l.b16 %v5140
    %v5181 = vunpack.c.l.b16 %v5141
    %v5182 = vunpack.c.l.b16 %v5142
    %v5183 = vunpack.c.l.b16 %v5143
    %v5184 = vunpack.c.l.b16 %v5144
    %v5185 = vpack.c.b16 %v5170, %v5169
    %v5186 = vpack.c.b16 %v5172, %v5171
    %v5187 = vpack.c.b16 %v5174, %v5173
    %v5188 = vpack.c.b16 %v5176, %v5175
    %v5189 = vpack.c.b16 %v5178, %v5177
    %v5190 = vpack.c.b16 %v5180, %v5179
    %v5191 = vpack.c.b16 %v5182, %v5181
    %v5192 = vpack.c.b16 %v5184, %v5183
    %5201 = vmatprep.subr.bf16.mxu0 0
    %5202 = vmatpush1.bf16.msra.mxu0 %v5185
    %5203 = vmatprep.subr.bf16.mxu0 0
    %5204 = vmatpush1.bf16.msra.mxu0 %v5186
    %5205 = vmatprep.subr.bf16.mxu0 0
    %5206 = vmatpush1.bf16.msra.mxu0 %v5187
    %5207 = vmatprep.subr.bf16.mxu0 0
    %5208 = vmatpush1.bf16.msra.mxu0 %v5188
    %5209 = vmatprep.subr.bf16.mxu0 0
    %5210 = vmatpush1.bf16.msra.mxu0 %v5189
    %5211 = vmatprep.subr.bf16.mxu0 0
    %5212 = vmatpush1.bf16.msra.mxu0 %v5190
    %5213 = vmatprep.subr.bf16.mxu0 0
    %5214 = vmatpush1.bf16.msra.mxu0 %v5191
    %5215 = vmatprep.subr.bf16.mxu0 0
    %5216 = vmatpush1.bf16.msra.mxu0 %v5192
    %5217 = vmatprep.subr.bf16.mxu0 0
    %5218 = vmatpush1.bf16.msra.mxu0 0
    %5219 = vmatprep.subr.bf16.mxu0 0
    %5220 = vmatpush1.bf16.msra.mxu0 0
    %5221 = vmatprep.subr.bf16.mxu0 0
    %5222 = vmatpush1.bf16.msra.mxu0 0
    %5223 = vmatprep.subr.bf16.mxu0 0
    %5224 = vmatpush1.bf16.msra.mxu0 0
    %5225 = vmatprep.subr.bf16.mxu0 0
    %5226 = vmatpush1.bf16.msra.mxu0 0
    %5227 = vmatprep.subr.bf16.mxu0 0
    %5228 = vmatpush1.bf16.msra.mxu0 0
    %5229 = vmatprep.subr.bf16.mxu0 0
    %5230 = vmatpush1.bf16.msra.mxu0 0
    %5231 = vmatprep.subr.bf16.mxu0 0
    %5232 = vmatpush1.bf16.msra.mxu0 0
    %5233 = vmatprep.mubr.bf16.mxu0 0
    %5234 = vmatmul.mubr.bf16.gmra.mrb[0].mxu0 %v5149
    %v5235 = vpop.f32.mrb[0].mxu0
    %v5236 = vadd.f32 0.0, %v5235
    %v5237 = vpop.f32.mrb[0].mxu0
    %v5238 = vpop.f32.mrb[0].mxu0
    %v5239 = vadd.f32 0.0, %v5238
    %v5240 = vpop.f32.mrb[0].mxu0
    %5241 = vmatprep.mubr.bf16.mxu0 0
    %5242 = vmatmul.mubr.bf16.gmra.mrb[0].mxu0 %v5150
    %v5243 = vpop.f32.mrb[0].mxu0
    %v5244 = vadd.f32 0.0, %v5243
    %v5245 = vpop.f32.mrb[0].mxu0
    %v5246 = vpop.f32.mrb[0].mxu0
    %v5247 = vadd.f32 0.0, %v5246
    %v5248 = vpop.f32.mrb[0].mxu0
    %5249 = vdwg.mxu0
    %v5250 = vadd.f32 %v5071, %v5236
    %v5251 = vadd.f32 %v5072, %v5239
    %v5252 = vadd.f32 %v5073, %v5244
    %v5253 = vadd.f32 %v5074, %v5247
    %v5254 = vld [vmem:[#allocation2] sm:$0xe]
    %v5255 = vld [vmem:[#allocation2 + $0xc] sm:$0xe]
    %v5262 = vrot.slane %v5254, 5
    %v5263 = vrot.slane %v5262, 4
    %v5264 = vrot.slane %v5076, 5
    %v5265 = vsel %vm464, %v5263, %v5264
    %v5266 = vrot.slane %v5264, 4
    %v5267 = vrot.slane %v5077, 5
    %v5268 = vsel %vm464, %v5266, %v5267
    %v5269 = vrot.slane %v5255, 5
    %v5270 = vrot.slane %v5269, 4
    %v5271 = vrot.slane %v5079, 5
    %v5272 = vsel %vm464, %v5270, %v5271
    %v5273 = vrot.slane %v5271, 4
    %v5274 = vrot.slane %v5080, 5
    %v5275 = vsel %vm464, %v5273, %v5274
    %v5276 = vld [vmem:[%s1 + $0x564] sm:$0xf]
    %v5277 = vld [vmem:[%s1 + $0x568] sm:$0xf]
    %v5278 = vld [vmem:[%s1 + $0x56c] sm:$0xf]
    %v5279 = vld [vmem:[%s1 + $0x570] sm:$0xf]
    %v5280 = vld [vmem:[%s1 + $0x574] sm:$0xf]
    %v5281 = vld [vmem:[%s1 + $0x578] sm:$0xf]
    %v5282 = vld [vmem:[%s1 + $0x57c] sm:$0xf]
    %v5283 = vld [vmem:[%s1 + $0x580] sm:$0xf]
    %v5284 = vld [vmem:[%s1 + $0x584] sm:$0xf]
    %v5285 = vld [vmem:[%s1 + $0x588] sm:$0xf]
    %v5286 = vld [vmem:[%s1 + $0x58c] sm:$0xf]
    %v5287 = vld [vmem:[%s1 + $0x590] sm:$0xf]
    %v5288 = vld [vmem:[%s1 + $0x594] sm:$0xf]
    %v5289 = vld [vmem:[%s1 + $0x598] sm:$0xf]
    %v5290 = vld [vmem:[%s1 + $0x59c] sm:$0xf]
    %v5291 = vld [vmem:[%s1 + $0x5a0] sm:$0xf]
    %v5292 = vunpack.c.l.b16 %v5265
    %v5293 = vunpack.c.l.b16 %v5268
    %v5294 = vunpack.c.l.b16 %v5272
    %v5295 = vunpack.c.l.b16 %v5275
    %v5296 = vpack.c.b16 %v5293, %v5292
    %v5297 = vpack.c.b16 %v5295, %v5294
    %v5316 = vunpack.c.l.b16 %v5276
    %v5317 = vunpack.c.l.b16 %v5277
    %v5318 = vunpack.c.l.b16 %v5278
    %v5319 = vunpack.c.l.b16 %v5279
    %v5320 = vunpack.c.l.b16 %v5280
    %v5321 = vunpack.c.l.b16 %v5281
    %v5322 = vunpack.c.l.b16 %v5282
    %v5323 = vunpack.c.l.b16 %v5283
    %v5324 = vunpack.c.l.b16 %v5284
    %v5325 = vunpack.c.l.b16 %v5285
    %v5326 = vunpack.c.l.b16 %v5286
    %v5327 = vunpack.c.l.b16 %v5287
    %v5328 = vunpack.c.l.b16 %v5288
    %v5329 = vunpack.c.l.b16 %v5289
    %v5330 = vunpack.c.l.b16 %v5290
    %v5331 = vunpack.c.l.b16 %v5291
    %v5332 = vpack.c.b16 %v5317, %v5316
    %v5333 = vpack.c.b16 %v5319, %v5318
    %v5334 = vpack.c.b16 %v5321, %v5320
    %v5335 = vpack.c.b16 %v5323, %v5322
    %v5336 = vpack.c.b16 %v5325, %v5324
    %v5337 = vpack.c.b16 %v5327, %v5326
    %v5338 = vpack.c.b16 %v5329, %v5328
    %v5339 = vpack.c.b16 %v5331, %v5330
    %5348 = vmatprep.subr.bf16.mxu0 0
    %5349 = vmatpush1.bf16.msra.mxu0 %v5332
    %5350 = vmatprep.subr.bf16.mxu0 0
    %5351 = vmatpush1.bf16.msra.mxu0 %v5333
    %5352 = vmatprep.subr.bf16.mxu0 0
    %5353 = vmatpush1.bf16.msra.mxu0 %v5334
    %5354 = vmatprep.subr.bf16.mxu0 0
    %5355 = vmatpush1.bf16.msra.mxu0 %v5335
    %5356 = vmatprep.subr.bf16.mxu0 0
    %5357 = vmatpush1.bf16.msra.mxu0 %v5336
    %5358 = vmatprep.subr.bf16.mxu0 0
    %5359 = vmatpush1.bf16.msra.mxu0 %v5337
    %5360 = vmatprep.subr.bf16.mxu0 0
    %5361 = vmatpush1.bf16.msra.mxu0 %v5338
    %5362 = vmatprep.subr.bf16.mxu0 0
    %5363 = vmatpush1.bf16.msra.mxu0 %v5339
    %5364 = vmatprep.subr.bf16.mxu0 0
    %5365 = vmatpush1.bf16.msra.mxu0 0
    %5366 = vmatprep.subr.bf16.mxu0 0
    %5367 = vmatpush1.bf16.msra.mxu0 0
    %5368 = vmatprep.subr.bf16.mxu0 0
    %5369 = vmatpush1.bf16.msra.mxu0 0
    %5370 = vmatprep.subr.bf16.mxu0 0
    %5371 = vmatpush1.bf16.msra.mxu0 0
    %5372 = vmatprep.subr.bf16.mxu0 0
    %5373 = vmatpush1.bf16.msra.mxu0 0
    %5374 = vmatprep.subr.bf16.mxu0 0
    %5375 = vmatpush1.bf16.msra.mxu0 0
    %5376 = vmatprep.subr.bf16.mxu0 0
    %5377 = vmatpush1.bf16.msra.mxu0 0
    %5378 = vmatprep.subr.bf16.mxu0 0
    %5379 = vmatpush1.bf16.msra.mxu0 0
    %5380 = vmatprep.mubr.bf16.mxu0 0
    %5381 = vmatmul.mubr.bf16.gmra.mrb[0].mxu0 %v5296
    %v5382 = vpop.f32.mrb[0].mxu0
    %v5383 = vadd.f32 0.0, %v5382
    %v5384 = vpop.f32.mrb[0].mxu0
    %v5385 = vpop.f32.mrb[0].mxu0
    %v5386 = vadd.f32 0.0, %v5385
    %v5387 = vpop.f32.mrb[0].mxu0
    %5388 = vmatprep.mubr.bf16.mxu0 0
    %5389 = vmatmul.mubr.bf16.gmra.mrb[0].mxu0 %v5297
    %v5390 = vpop.f32.mrb[0].mxu0
    %v5391 = vadd.f32 0.0, %v5390
    %v5392 = vpop.f32.mrb[0].mxu0
    %v5393 = vpop.f32.mrb[0].mxu0
    %v5394 = vadd.f32 0.0, %v5393
    %v5395 = vpop.f32.mrb[0].mxu0
    %5396 = vdwg.mxu0
    %v5397 = vadd.f32 %v5250, %v5383
    %v5398 = vadd.f32 %v5251, %v5386
    %v5399 = vadd.f32 %v5252, %v5391
    %v5400 = vadd.f32 %v5253, %v5394
    %v5401 = vld [vmem:[#allocation2 + $0x8] sm:$0x3]
    %v5402 = vld [vmem:[#allocation2 + $0x14] sm:$0x3]
    %v5404 = vshrl.u32 %v5254, 16
    %v5406 = vrot.slane %v5404, 5
    %v5407 = vshll.u32 %v5254, 16
    %v5409 = vrot.slane %v5407, 6
    %v5410 = vor.u32 %v5406, %v5409
    %v5411 = vrot.slane %v5410, 4
    %v5412 = vrot.slane %v5095, 5
    %v5413 = vrot.slane %v5091, 6
    %v5414 = vor.u32 %v5412, %v5413
    %v5415 = vsel %vm580, %v5411, %v5414
    %v5416 = vrot.slane %v5414, 4
    %v5418 = vshrl.u32 %v5401, 16
    %v5420 = vrot.slane %v5418, 5
    %v5421 = vshll.u32 %v5401, 16
    %v5423 = vrot.slane %v5421, 6
    %v5424 = vor.u32 %v5420, %v5423
    %v5425 = vsel %vm580, %v5416, %v5424
    %v5427 = vshrl.u32 %v5255, 16
    %v5429 = vrot.slane %v5427, 5
    %v5430 = vshll.u32 %v5255, 16
    %v5432 = vrot.slane %v5430, 6
    %v5433 = vor.u32 %v5429, %v5432
    %v5434 = vrot.slane %v5433, 4
    %v5435 = vrot.slane %v5119, 5
    %v5436 = vrot.slane %v5115, 6
    %v5437 = vor.u32 %v5435, %v5436
    %v5438 = vsel %vm580, %v5434, %v5437
    %v5439 = vrot.slane %v5437, 4
    %v5441 = vshrl.u32 %v5402, 16
    %v5443 = vrot.slane %v5441, 5
    %v5444 = vshll.u32 %v5402, 16
    %v5446 = vrot.slane %v5444, 6
    %v5447 = vor.u32 %v5443, %v5446
    %v5448 = vsel %vm580, %v5439, %v5447
    %v5449 = vld [vmem:[%s1 + $0x5a4] sm:$0xf]
    %v5450 = vld [vmem:[%s1 + $0x5a8] sm:$0xf]
    %v5451 = vld [vmem:[%s1 + $0x5ac] sm:$0xf]
    %v5452 = vld [vmem:[%s1 + $0x5b0] sm:$0xf]
    %v5453 = vld [vmem:[%s1 + $0x5b4] sm:$0xf]
    %v5454 = vld [vmem:[%s1 + $0x5b8] sm:$0xf]
    %v5455 = vld [vmem:[%s1 + $0x5bc] sm:$0xf]
    %v5456 = vld [vmem:[%s1 + $0x5c0] sm:$0xf]
    %v5457 = vld [vmem:[%s1 + $0x5c4] sm:$0xf]
    %v5458 = vld [vmem:[%s1 + $0x5c8] sm:$0xf]
    %v5459 = vld [vmem:[%s1 + $0x5cc] sm:$0xf]
    %v5460 = vld [vmem:[%s1 + $0x5d0] sm:$0xf]
    %v5461 = vld [vmem:[%s1 + $0x5d4] sm:$0xf]
    %v5462 = vld [vmem:[%s1 + $0x5d8] sm:$0xf]
    %v5463 = vld [vmem:[%s1 + $0x5dc] sm:$0xf]
    %v5464 = vld [vmem:[%s1 + $0x5e0] sm:$0xf]
    %v5465 = vunpack.c.l.b16 %v5415
    %v5466 = vunpack.c.l.b16 %v5425
    %v5467 = vunpack.c.l.b16 %v5438
    %v5468 = vunpack.c.l.b16 %v5448
    %v5469 = vpack.c.b16 %v5466, %v5465
    %v5470 = vpack.c.b16 %v5468, %v5467
    %v5489 = vunpack.c.l.b16 %v5449
    %v5490 = vunpack.c.l.b16 %v5450
    %v5491 = vunpack.c.l.b16 %v5451
    %v5492 = vunpack.c.l.b16 %v5452
    %v5493 = vunpack.c.l.b16 %v5453
    %v5494 = vunpack.c.l.b16 %v5454
    %v5495 = vunpack.c.l.b16 %v5455
    %v5496 = vunpack.c.l.b16 %v5456
    %v5497 = vunpack.c.l.b16 %v5457
    %v5498 = vunpack.c.l.b16 %v5458
    %v5499 = vunpack.c.l.b16 %v5459
    %v5500 = vunpack.c.l.b16 %v5460
    %v5501 = vunpack.c.l.b16 %v5461
    %v5502 = vunpack.c.l.b16 %v5462
    %v5503 = vunpack.c.l.b16 %v5463
    %v5504 = vunpack.c.l.b16 %v5464
    %v5505 = vpack.c.b16 %v5490, %v5489
    %v5506 = vpack.c.b16 %v5492, %v5491
    %v5507 = vpack.c.b16 %v5494, %v5493
    %v5508 = vpack.c.b16 %v5496, %v5495
    %v5509 = vpack.c.b16 %v5498, %v5497
    %v5510 = vpack.c.b16 %v5500, %v5499
    %v5511 = vpack.c.b16 %v5502, %v5501
    %v5512 = vpack.c.b16 %v5504, %v5503
    %5521 = vmatprep.subr.bf16.mxu0 0
    %5522 = vmatpush1.bf16.msra.mxu0 %v5505
    %5523 = vmatprep.subr.bf16.mxu0 0
    %5524 = vmatpush1.bf16.msra.mxu0 %v5506
    %5525 = vmatprep.subr.bf16.mxu0 0
    %5526 = vmatpush1.bf16.msra.mxu0 %v5507
    %5527 = vmatprep.subr.bf16.mxu0 0
    %5528 = vmatpush1.bf16.msra.mxu0 %v5508
    %5529 = vmatprep.subr.bf16.mxu0 0
    %5530 = vmatpush1.bf16.msra.mxu0 %v5509
    %5531 = vmatprep.subr.bf16.mxu0 0
    %5532 = vmatpush1.bf16.msra.mxu0 %v5510
    %5533 = vmatprep.subr.bf16.mxu0 0
    %5534 = vmatpush1.bf16.msra.mxu0 %v5511
    %5535 = vmatprep.subr.bf16.mxu0 0
    %5536 = vmatpush1.bf16.msra.mxu0 %v5512
    %5537 = vmatprep.subr.bf16.mxu0 0
    %5538 = vmatpush1.bf16.msra.mxu0 0
    %5539 = vmatprep.subr.bf16.mxu0 0
    %5540 = vmatpush1.bf16.msra.mxu0 0
    %5541 = vmatprep.subr.bf16.mxu0 0
    %5542 = vmatpush1.bf16.msra.mxu0 0
    %5543 = vmatprep.subr.bf16.mxu0 0
    %5544 = vmatpush1.bf16.msra.mxu0 0
    %5545 = vmatprep.subr.bf16.mxu0 0
    %5546 = vmatpush1.bf16.msra.mxu0 0
    %5547 = vmatprep.subr.bf16.mxu0 0
    %5548 = vmatpush1.bf16.msra.mxu0 0
    %5549 = vmatprep.subr.bf16.mxu0 0
    %5550 = vmatpush1.bf16.msra.mxu0 0
    %5551 = vmatprep.subr.bf16.mxu0 0
    %5552 = vmatpush1.bf16.msra.mxu0 0
    %5553 = vmatprep.mubr.bf16.mxu0 0
    %5554 = vmatmul.mubr.bf16.gmra.mrb[0].mxu0 %v5469
    %v5555 = vpop.f32.mrb[0].mxu0
    %v5556 = vadd.f32 0.0, %v5555
    %v5557 = vpop.f32.mrb[0].mxu0
    %v5558 = vpop.f32.mrb[0].mxu0
    %v5559 = vadd.f32 0.0, %v5558
    %v5560 = vpop.f32.mrb[0].mxu0
    %5561 = vmatprep.mubr.bf16.mxu0 0
    %5562 = vmatmul.mubr.bf16.gmra.mrb[0].mxu0 %v5470
    %v5563 = vpop.f32.mrb[0].mxu0
    %v5564 = vadd.f32 0.0, %v5563
    %v5565 = vpop.f32.mrb[0].mxu0
    %v5566 = vpop.f32.mrb[0].mxu0
    %v5567 = vadd.f32 0.0, %v5566
    %v5568 = vpop.f32.mrb[0].mxu0
    %5569 = vdwg.mxu0
    %v5570 = vadd.f32 %v5397, %v5556
    %v5571 = vadd.f32 %v5398, %v5559
    %v5572 = vadd.f32 %v5399, %v5564
    %v5573 = vadd.f32 %v5400, %v5567
    %v5574 = vld [vmem:[#allocation2] sm:$0xc]
    %v5575 = vld [vmem:[#allocation2 + $0xc] sm:$0xc]
    %v5580 = vrot.slane %v5574, 6
    %v5581 = vrot.slane %v5580, 4
    %v5582 = vrot.slane %v5076, 6
    %v5583 = vsel %vm731, %v5581, %v5582
    %v5584 = vrot.slane %v5582, 4
    %v5585 = vrot.slane %v5401, 6
    %v5586 = vsel %vm731, %v5584, %v5585
    %v5587 = vrot.slane %v5575, 6
    %v5588 = vrot.slane %v5587, 4
    %v5589 = vrot.slane %v5079, 6
    %v5590 = vsel %vm731, %v5588, %v5589
    %v5591 = vrot.slane %v5589, 4
    %v5592 = vrot.slane %v5402, 6
    %v5593 = vsel %vm731, %v5591, %v5592
    %v5594 = vld [vmem:[%s1 + $0x5e4] sm:$0xf]
    %v5595 = vld [vmem:[%s1 + $0x5e8] sm:$0xf]
    %v5596 = vld [vmem:[%s1 + $0x5ec] sm:$0xf]
    %v5597 = vld [vmem:[%s1 + $0x5f0] sm:$0xf]
    %v5598 = vld [vmem:[%s1 + $0x5f4] sm:$0xf]
    %v5599 = vld [vmem:[%s1 + $0x5f8] sm:$0xf]
    %v5600 = vld [vmem:[%s1 + $0x5fc] sm:$0xf]
    %v5601 = vld [vmem:[%s1 + $0x600] sm:$0xf]
    %v5602 = vld [vmem:[%s1 + $0x604] sm:$0xf]
    %v5603 = vld [vmem:[%s1 + $0x608] sm:$0xf]
    %v5604 = vld [vmem:[%s1 + $0x60c] sm:$0xf]
    %v5605 = vld [vmem:[%s1 + $0x610] sm:$0xf]
    %v5606 = vld [vmem:[%s1 + $0x614] sm:$0xf]
    %v5607 = vld [vmem:[%s1 + $0x618] sm:$0xf]
    %v5608 = vld [vmem:[%s1 + $0x61c] sm:$0xf]
    %v5609 = vld [vmem:[%s1 + $0x620] sm:$0xf]
    %v5610 = vunpack.c.l.b16 %v5583
    %v5611 = vunpack.c.l.b16 %v5586
    %v5612 = vunpack.c.l.b16 %v5590
    %v5613 = vunpack.c.l.b16 %v5593
    %v5614 = vpack.c.b16 %v5611, %v5610
    %v5615 = vpack.c.b16 %v5613, %v5612
    %v5634 = vunpack.c.l.b16 %v5594
    %v5635 = vunpack.c.l.b16 %v5595
    %v5636 = vunpack.c.l.b16 %v5596
    %v5637 = vunpack.c.l.b16 %v5597
    %v5638 = vunpack.c.l.b16 %v5598
    %v5639 = vunpack.c.l.b16 %v5599
    %v5640 = vunpack.c.l.b16 %v5600
    %v5641 = vunpack.c.l.b16 %v5601
    %v5642 = vunpack.c.l.b16 %v5602
    %v5643 = vunpack.c.l.b16 %v5603
    %v5644 = vunpack.c.l.b16 %v5604
    %v5645 = vunpack.c.l.b16 %v5605
    %v5646 = vunpack.c.l.b16 %v5606
    %v5647 = vunpack.c.l.b16 %v5607
    %v5648 = vunpack.c.l.b16 %v5608
    %v5649 = vunpack.c.l.b16 %v5609
    %v5650 = vpack.c.b16 %v5635, %v5634
    %v5651 = vpack.c.b16 %v5637, %v5636
    %v5652 = vpack.c.b16 %v5639, %v5638
    %v5653 = vpack.c.b16 %v5641, %v5640
    %v5654 = vpack.c.b16 %v5643, %v5642
    %v5655 = vpack.c.b16 %v5645, %v5644
    %v5656 = vpack.c.b16 %v5647, %v5646
    %v5657 = vpack.c.b16 %v5649, %v5648
    %5666 = vmatprep.subr.bf16.mxu0 0
    %5667 = vmatpush1.bf16.msra.mxu0 %v5650
    %5668 = vmatprep.subr.bf16.mxu0 0
    %5669 = vmatpush1.bf16.msra.mxu0 %v5651
    %5670 = vmatprep.subr.bf16.mxu0 0
    %5671 = vmatpush1.bf16.msra.mxu0 %v5652
    %5672 = vmatprep.subr.bf16.mxu0 0
    %5673 = vmatpush1.bf16.msra.mxu0 %v5653
    %5674 = vmatprep.subr.bf16.mxu0 0
    %5675 = vmatpush1.bf16.msra.mxu0 %v5654
    %5676 = vmatprep.subr.bf16.mxu0 0
    %5677 = vmatpush1.bf16.msra.mxu0 %v5655
    %5678 = vmatprep.subr.bf16.mxu0 0
    %5679 = vmatpush1.bf16.msra.mxu0 %v5656
    %5680 = vmatprep.subr.bf16.mxu0 0
    %5681 = vmatpush1.bf16.msra.mxu0 %v5657
    %5682 = vmatprep.subr.bf16.mxu0 0
    %5683 = vmatpush1.bf16.msra.mxu0 0
    %5684 = vmatprep.subr.bf16.mxu0 0
    %5685 = vmatpush1.bf16.msra.mxu0 0
    %5686 = vmatprep.subr.bf16.mxu0 0
    %5687 = vmatpush1.bf16.msra.mxu0 0
    %5688 = vmatprep.subr.bf16.mxu0 0
    %5689 = vmatpush1.bf16.msra.mxu0 0
    %5690 = vmatprep.subr.bf16.mxu0 0
    %5691 = vmatpush1.bf16.msra.mxu0 0
    %5692 = vmatprep.subr.bf16.mxu0 0
    %5693 = vmatpush1.bf16.msra.mxu0 0
    %5694 = vmatprep.subr.bf16.mxu0 0
    %5695 = vmatpush1.bf16.msra.mxu0 0
    %5696 = vmatprep.subr.bf16.mxu0 0
    %5697 = vmatpush1.bf16.msra.mxu0 0
    %5698 = vmatprep.mubr.bf16.mxu0 0
    %5699 = vmatmul.mubr.bf16.gmra.mrb[0].mxu0 %v5614
    %v5700 = vpop.f32.mrb[0].mxu0
    %v5701 = vadd.f32 0.0, %v5700
    %v5702 = vpop.f32.mrb[0].mxu0
    %v5703 = vpop.f32.mrb[0].mxu0
    %v5704 = vadd.f32 0.0, %v5703
    %v5705 = vpop.f32.mrb[0].mxu0
    %5706 = vmatprep.mubr.bf16.mxu0 0
    %5707 = vmatmul.mubr.bf16.gmra.mrb[0].mxu0 %v5615
    %v5708 = vpop.f32.mrb[0].mxu0
    %v5709 = vadd.f32 0.0, %v5708
    %v5710 = vpop.f32.mrb[0].mxu0
    %v5711 = vpop.f32.mrb[0].mxu0
    %v5712 = vadd.f32 0.0, %v5711
    %v5713 = vpop.f32.mrb[0].mxu0
    %5714 = vdwg.mxu0
    %v5715 = vadd.f32 %v5570, %v5701
    %v5716 = vadd.f32 %v5571, %v5704
    %v5717 = vadd.f32 %v5572, %v5709
    %v5718 = vadd.f32 %v5573, %v5712
    %v5719 = vld [vmem:[#allocation2 + $0x8] sm:$0x7]
    %v5720 = vld [vmem:[#allocation2 + $0x14] sm:$0x7]
    %v5722 = vshrl.u32 %v5574, 16
    %v5724 = vrot.slane %v5722, 6
    %v5725 = vshll.u32 %v5574, 16
    %v5727 = vrot.slane %v5725, 7
    %v5728 = vor.u32 %v5724, %v5727
    %v5729 = vrot.slane %v5728, 4
    %v5730 = vrot.slane %v5095, 6
    %v5731 = vrot.slane %v5091, 7
    %v5732 = vor.u32 %v5730, %v5731
    %v5733 = vsel %vm128, %v5729, %v5732
    %v5734 = vrot.slane %v5732, 4
    %v5736 = vshrl.u32 %v5719, 16
    %v5738 = vrot.slane %v5736, 6
    %v5739 = vshll.u32 %v5719, 16
    %v5741 = vrot.slane %v5739, 7
    %v5742 = vor.u32 %v5738, %v5741
    %v5743 = vsel %vm128, %v5734, %v5742
    %v5745 = vshrl.u32 %v5575, 16
    %v5747 = vrot.slane %v5745, 6
    %v5748 = vshll.u32 %v5575, 16
    %v5750 = vrot.slane %v5748, 7
    %v5751 = vor.u32 %v5747, %v5750
    %v5752 = vrot.slane %v5751, 4
    %v5753 = vrot.slane %v5119, 6
    %v5754 = vrot.slane %v5115, 7
    %v5755 = vor.u32 %v5753, %v5754
    %v5756 = vsel %vm128, %v5752, %v5755
    %v5757 = vrot.slane %v5755, 4
    %v5759 = vshrl.u32 %v5720, 16
    %v5761 = vrot.slane %v5759, 6
    %v5762 = vshll.u32 %v5720, 16
    %v5764 = vrot.slane %v5762, 7
    %v5765 = vor.u32 %v5761, %v5764
    %v5766 = vsel %vm128, %v5757, %v5765
    %v5767 = vld [vmem:[%s1 + $0x624] sm:$0xf]
    %v5768 = vld [vmem:[%s1 + $0x628] sm:$0xf]
    %v5769 = vld [vmem:[%s1 + $0x62c] sm:$0xf]
    %v5770 = vld [vmem:[%s1 + $0x630] sm:$0xf]
    %v5771 = vld [vmem:[%s1 + $0x634] sm:$0xf]
    %v5772 = vld [vmem:[%s1 + $0x638] sm:$0xf]
    %v5773 = vld [vmem:[%s1 + $0x63c] sm:$0xf]
    %v5774 = vld [vmem:[%s1 + $0x640] sm:$0xf]
    %v5775 = vld [vmem:[%s1 + $0x644] sm:$0xf]
    %v5776 = vld [vmem:[%s1 + $0x648] sm:$0xf]
    %v5777 = vld [vmem:[%s1 + $0x64c] sm:$0xf]
    %v5778 = vld [vmem:[%s1 + $0x650] sm:$0xf]
    %v5779 = vld [vmem:[%s1 + $0x654] sm:$0xf]
    %v5780 = vld [vmem:[%s1 + $0x658] sm:$0xf]
    %v5781 = vld [vmem:[%s1 + $0x65c] sm:$0xf]
    %v5782 = vld [vmem:[%s1 + $0x660] sm:$0xf]
    %v5783 = vunpack.c.l.b16 %v5733
    %v5784 = vunpack.c.l.b16 %v5743
    %v5785 = vunpack.c.l.b16 %v5756
    %v5786 = vunpack.c.l.b16 %v5766
    %v5787 = vpack.c.b16 %v5784, %v5783
    %v5788 = vpack.c.b16 %v5786, %v5785
    %v5807 = vunpack.c.l.b16 %v5767
    %v5808 = vunpack.c.l.b16 %v5768
    %v5809 = vunpack.c.l.b16 %v5769
    %v5810 = vunpack.c.l.b16 %v5770
    %v5811 = vunpack.c.l.b16 %v5771
    %v5812 = vunpack.c.l.b16 %v5772
    %v5813 = vunpack.c.l.b16 %v5773
    %v5814 = vunpack.c.l.b16 %v5774
    %v5815 = vunpack.c.l.b16 %v5775
    %v5816 = vunpack.c.l.b16 %v5776
    %v5817 = vunpack.c.l.b16 %v5777
    %v5818 = vunpack.c.l.b16 %v5778
    %v5819 = vunpack.c.l.b16 %v5779
    %v5820 = vunpack.c.l.b16 %v5780
    %v5821 = vunpack.c.l.b16 %v5781
    %v5822 = vunpack.c.l.b16 %v5782
    %v5823 = vpack.c.b16 %v5808, %v5807
    %v5824 = vpack.c.b16 %v5810, %v5809
    %v5825 = vpack.c.b16 %v5812, %v5811
    %v5826 = vpack.c.b16 %v5814, %v5813
    %v5827 = vpack.c.b16 %v5816, %v5815
    %v5828 = vpack.c.b16 %v5818, %v5817
    %v5829 = vpack.c.b16 %v5820, %v5819
    %v5830 = vpack.c.b16 %v5822, %v5821
    %5839 = vmatprep.subr.bf16.mxu0 0
    %5840 = vmatpush1.bf16.msra.mxu0 %v5823
    %5841 = vmatprep.subr.bf16.mxu0 0
    %5842 = vmatpush1.bf16.msra.mxu0 %v5824
    %5843 = vmatprep.subr.bf16.mxu0 0
    %5844 = vmatpush1.bf16.msra.mxu0 %v5825
    %5845 = vmatprep.subr.bf16.mxu0 0
    %5846 = vmatpush1.bf16.msra.mxu0 %v5826
    %5847 = vmatprep.subr.bf16.mxu0 0
    %5848 = vmatpush1.bf16.msra.mxu0 %v5827
    %5849 = vmatprep.subr.bf16.mxu0 0
    %5850 = vmatpush1.bf16.msra.mxu0 %v5828
    %5851 = vmatprep.subr.bf16.mxu0 0
    %5852 = vmatpush1.bf16.msra.mxu0 %v5829
    %5853 = vmatprep.subr.bf16.mxu0 0
    %5854 = vmatpush1.bf16.msra.mxu0 %v5830
    %5855 = vmatprep.subr.bf16.mxu0 0
    %5856 = vmatpush1.bf16.msra.mxu0 0
    %5857 = vmatprep.subr.bf16.mxu0 0
    %5858 = vmatpush1.bf16.msra.mxu0 0
    %5859 = vmatprep.subr.bf16.mxu0 0
    %5860 = vmatpush1.bf16.msra.mxu0 0
    %5861 = vmatprep.subr.bf16.mxu0 0
    %5862 = vmatpush1.bf16.msra.mxu0 0
    %5863 = vmatprep.subr.bf16.mxu0 0
    %5864 = vmatpush1.bf16.msra.mxu0 0
    %5865 = vmatprep.subr.bf16.mxu0 0
    %5866 = vmatpush1.bf16.msra.mxu0 0
    %5867 = vmatprep.subr.bf16.mxu0 0
    %5868 = vmatpush1.bf16.msra.mxu0 0
    %5869 = vmatprep.subr.bf16.mxu0 0
    %5870 = vmatpush1.bf16.msra.mxu0 0
    %5871 = vmatprep.mubr.bf16.mxu0 0
    %5872 = vmatmul.mubr.bf16.gmra.mrb[0].mxu0 %v5787
    %v5873 = vpop.f32.mrb[0].mxu0
    %v5874 = vadd.f32 0.0, %v5873
    %v5875 = vpop.f32.mrb[0].mxu0
    %v5876 = vpop.f32.mrb[0].mxu0
    %v5877 = vadd.f32 0.0, %v5876
    %v5878 = vpop.f32.mrb[0].mxu0
    %5879 = vmatprep.mubr.bf16.mxu0 0
    %5880 = vmatmul.mubr.bf16.gmra.mrb[0].mxu0 %v5788
    %v5881 = vpop.f32.mrb[0].mxu0
    %v5882 = vadd.f32 0.0, %v5881
    %v5883 = vpop.f32.mrb[0].mxu0
    %v5884 = vpop.f32.mrb[0].mxu0
    %v5885 = vadd.f32 0.0, %v5884
    %v5886 = vpop.f32.mrb[0].mxu0
    %5887 = vdwg.mxu0
    %v5888 = vadd.f32 %v5715, %v5874
    %v5889 = vadd.f32 %v5716, %v5877
    %v5890 = vadd.f32 %v5717, %v5882
    %v5891 = vadd.f32 %v5718, %v5885
    %v5892 = vld [vmem:[#allocation2] sm:$0x8]
    %v5893 = vld [vmem:[#allocation2 + $0xc] sm:$0x8]
    %v5898 = vrot.slane %v5892, 7
    %v5899 = vrot.slane %v5898, 4
    %v5900 = vrot.slane %v5076, 7
    %v5901 = vsel %vm996, %v5899, %v5900
    %v5902 = vrot.slane %v5900, 4
    %v5903 = vrot.slane %v5719, 7
    %v5904 = vsel %vm996, %v5902, %v5903
    %v5905 = vrot.slane %v5893, 7
    %v5906 = vrot.slane %v5905, 4
    %v5907 = vrot.slane %v5079, 7
    %v5908 = vsel %vm996, %v5906, %v5907
    %v5909 = vrot.slane %v5907, 4
    %v5910 = vrot.slane %v5720, 7
    %v5911 = vsel %vm996, %v5909, %v5910
    %v5912 = vld [vmem:[%s1 + $0x664] sm:$0xf]
    %v5913 = vld [vmem:[%s1 + $0x668] sm:$0xf]
    %v5914 = vld [vmem:[%s1 + $0x66c] sm:$0xf]
    %v5915 = vld [vmem:[%s1 + $0x670] sm:$0xf]
    %v5916 = vld [vmem:[%s1 + $0x674] sm:$0xf]
    %v5917 = vld [vmem:[%s1 + $0x678] sm:$0xf]
    %v5918 = vld [vmem:[%s1 + $0x67c] sm:$0xf]
    %v5919 = vld [vmem:[%s1 + $0x680] sm:$0xf]
    %v5920 = vld [vmem:[%s1 + $0x684] sm:$0xf]
    %v5921 = vld [vmem:[%s1 + $0x688] sm:$0xf]
    %v5922 = vld [vmem:[%s1 + $0x68c] sm:$0xf]
    %v5923 = vld [vmem:[%s1 + $0x690] sm:$0xf]
    %v5924 = vld [vmem:[%s1 + $0x694] sm:$0xf]
    %v5925 = vld [vmem:[%s1 + $0x698] sm:$0xf]
    %v5926 = vld [vmem:[%s1 + $0x69c] sm:$0xf]
    %v5927 = vld [vmem:[%s1 + $0x6a0] sm:$0xf]
    %v5928 = vunpack.c.l.b16 %v5901
    %v5929 = vunpack.c.l.b16 %v5904
    %v5930 = vunpack.c.l.b16 %v5908
    %v5931 = vunpack.c.l.b16 %v5911
    %v5932 = vpack.c.b16 %v5929, %v5928
    %v5933 = vpack.c.b16 %v5931, %v5930
    %v5952 = vunpack.c.l.b16 %v5912
    %v5953 = vunpack.c.l.b16 %v5913
    %v5954 = vunpack.c.l.b16 %v5914
    %v5955 = vunpack.c.l.b16 %v5915
    %v5956 = vunpack.c.l.b16 %v5916
    %v5957 = vunpack.c.l.b16 %v5917
    %v5958 = vunpack.c.l.b16 %v5918
    %v5959 = vunpack.c.l.b16 %v5919
    %v5960 = vunpack.c.l.b16 %v5920
    %v5961 = vunpack.c.l.b16 %v5921
    %v5962 = vunpack.c.l.b16 %v5922
    %v5963 = vunpack.c.l.b16 %v5923
    %v5964 = vunpack.c.l.b16 %v5924
    %v5965 = vunpack.c.l.b16 %v5925
    %v5966 = vunpack.c.l.b16 %v5926
    %v5967 = vunpack.c.l.b16 %v5927
    %v5968 = vpack.c.b16 %v5953, %v5952
    %v5969 = vpack.c.b16 %v5955, %v5954
    %v5970 = vpack.c.b16 %v5957, %v5956
    %v5971 = vpack.c.b16 %v5959, %v5958
    %v5972 = vpack.c.b16 %v5961, %v5960
    %v5973 = vpack.c.b16 %v5963, %v5962
    %v5974 = vpack.c.b16 %v5965, %v5964
    %v5975 = vpack.c.b16 %v5967, %v5966
    %5984 = vmatprep.subr.bf16.mxu0 0
    %5985 = vmatpush1.bf16.msra.mxu0 %v5968
    %5986 = vmatprep.subr.bf16.mxu0 0
    %5987 = vmatpush1.bf16.msra.mxu0 %v5969
    %5988 = vmatprep.subr.bf16.mxu0 0
    %5989 = vmatpush1.bf16.msra.mxu0 %v5970
    %5990 = vmatprep.subr.bf16.mxu0 0
    %5991 = vmatpush1.bf16.msra.mxu0 %v5971
    %5992 = vmatprep.subr.bf16.mxu0 0
    %5993 = vmatpush1.bf16.msra.mxu0 %v5972
    %5994 = vmatprep.subr.bf16.mxu0 0
    %5995 = vmatpush1.bf16.msra.mxu0 %v5973
    %5996 = vmatprep.subr.bf16.mxu0 0
    %5997 = vmatpush1.bf16.msra.mxu0 %v5974
    %5998 = vmatprep.subr.bf16.mxu0 0
    %5999 = vmatpush1.bf16.msra.mxu0 %v5975
    %6000 = vmatprep.subr.bf16.mxu0 0
    %6001 = vmatpush1.bf16.msra.mxu0 0
    %6002 = vmatprep.subr.bf16.mxu0 0
    %6003 = vmatpush1.bf16.msra.mxu0 0
    %6004 = vmatprep.subr.bf16.mxu0 0
    %6005 = vmatpush1.bf16.msra.mxu0 0
    %6006 = vmatprep.subr.bf16.mxu0 0
    %6007 = vmatpush1.bf16.msra.mxu0 0
    %6008 = vmatprep.subr.bf16.mxu0 0
    %6009 = vmatpush1.bf16.msra.mxu0 0
    %6010 = vmatprep.subr.bf16.mxu0 0
    %6011 = vmatpush1.bf16.msra.mxu0 0
    %6012 = vmatprep.subr.bf16.mxu0 0
    %6013 = vmatpush1.bf16.msra.mxu0 0
    %6014 = vmatprep.subr.bf16.mxu0 0
    %6015 = vmatpush1.bf16.msra.mxu0 0
    %6016 = vmatprep.mubr.bf16.mxu0 0
    %6017 = vmatmul.mubr.bf16.gmra.mrb[0].mxu0 %v5932
    %v6018 = vpop.f32.mrb[0].mxu0
    %v6019 = vadd.f32 0.0, %v6018
    %v6020 = vpop.f32.mrb[0].mxu0
    %v6021 = vpop.f32.mrb[0].mxu0
    %v6022 = vadd.f32 0.0, %v6021
    %v6023 = vpop.f32.mrb[0].mxu0
    %6024 = vmatprep.mubr.bf16.mxu0 0
    %6025 = vmatmul.mubr.bf16.gmra.mrb[0].mxu0 %v5933
    %v6026 = vpop.f32.mrb[0].mxu0
    %v6027 = vadd.f32 0.0, %v6026
    %v6028 = vpop.f32.mrb[0].mxu0
    %v6029 = vpop.f32.mrb[0].mxu0
    %v6030 = vadd.f32 0.0, %v6029
    %v6031 = vpop.f32.mrb[0].mxu0
    %6032 = vdwg.mxu0
    %v6033 = vadd.f32 %v5888, %v6019
    %v6034 = vadd.f32 %v5889, %v6022
    %v6035 = vadd.f32 %v5890, %v6027
    %v6036 = vadd.f32 %v5891, %v6030
    %v6037 = vmax.f32 %v6033, 0.0
    %v6038 = vmax.f32 %v6034, 0.0
    %v6039 = vmax.f32 %v6035, 0.0
    %v6040 = vmax.f32 %v6036, 0.0
    %v6041 = vpack.c.bf16 %v6038, %v6037
    %v6042 = vpack.c.bf16 %v6040, %v6039
    %v6045 = vunpack.c.l.b16 %v6041
    %v6046 = vunpack.c.h.b16 %v6041
    %v6047 = vunpack.c.l.b16 %v6042
    %v6048 = vunpack.c.h.b16 %v6042
    %v6049 = vpack.c.b16 %v6045, %v6045
    %v6050 = vpack.c.b16 %v6046, %v6046
    %v6051 = vpack.c.b16 %v6047, %v6047
    %v6052 = vpack.c.b16 %v6048, %v6048
    %v6054 = vshrl.u32 %v6049, 16
    %v6056 = vrot.slane %v6054, 6
    %v6057 = vshll.u32 %v6049, 16
    %v6059 = vrot.slane %v6057, 7
    %v6060 = vor.u32 %v6056, %v6059
    %v6061 = vrot.slane %v6060, 4
    %v6063 = vshrl.u32 %v6050, 16
    %v6065 = vrot.slane %v6063, 6
    %v6066 = vshll.u32 %v6050, 16
    %v6068 = vrot.slane %v6066, 7
    %v6069 = vor.u32 %v6065, %v6068
    %v6070 = vsel %vm128, %v6061, %v6069
    %v6071 = vrot.slane %v6069, 4
    %v6073 = vshrl.u32 %v6051, 16
    %v6075 = vrot.slane %v6073, 6
    %v6076 = vshll.u32 %v6051, 16
    %v6078 = vrot.slane %v6076, 7
    %v6079 = vor.u32 %v6075, %v6078
    %v6080 = vrot.slane %v6079, 4
    %v6082 = vshrl.u32 %v6052, 16
    %v6084 = vrot.slane %v6082, 6
    %v6085 = vshll.u32 %v6052, 16
    %v6087 = vrot.slane %v6085, 7
    %v6088 = vor.u32 %v6084, %v6087
    %v6089 = vsel %vm128, %v6080, %v6088
    %v6090 = vrot.slane %v6088, 4
    %v6097 = vsel %vm174, %v6060, %v5254
    %6098 = vst [vmem:[#allocation2] sm:$0xe] %v6097
    %6099 = vst [vmem:[#allocation2 + $0x4] sm:$0xf] %v6070
    %v6100 = vld [vmem:[#allocation2 + $0x8] sm:$0x3]
    %v6101 = vsel %vm20, %v6071, %v6100
    %6102 = vst [vmem:[#allocation2 + $0x8] sm:$0x3] %v6101
    %v6103 = vld [vmem:[#allocation2 + $0xc] sm:$0xe]
    %v6104 = vsel %vm174, %v6079, %v6103
    %6105 = vst [vmem:[#allocation2 + $0xc] sm:$0xe] %v6104
    %6106 = vst [vmem:[#allocation2 + $0x10] sm:$0xf] %v6089
    %v6107 = vld [vmem:[#allocation2 + $0x14] sm:$0x3]
    %v6108 = vsel %vm20, %v6090, %v6107
    %6109 = vst [vmem:[#allocation2 + $0x14] sm:$0x3] %v6108
    %v6110 = vlaneseq
    %v6111 = vshrl.u32 %v6110, 7
    %v6112 = vsub.s32 1, %v6111
    %v6113 = vrot.slane %v17, %v6112
    %v6114 = vadd.f32 %v6113, 0.0
    %v6115 = vld [vmem:[#allocation2] sm:$0xf]
    %v6116 = vld [vmem:[#allocation2 + $0x4] sm:$0xf]
    %v6117 = vld [vmem:[#allocation2 + $0x8] sm:$0x1]
    %v6118 = vld [vmem:[#allocation2 + $0xc] sm:$0xf]
    %v6119 = vld [vmem:[#allocation2 + $0x10] sm:$0xf]
    %v6120 = vld [vmem:[#allocation2 + $0x14] sm:$0x1]
    %v6122 = vshrl.u32 %v6115, 16
    %v6124 = vrot.slane %v6122, 4
    %v6125 = vshll.u32 %v6115, 16
    %v6127 = vrot.slane %v6125, 5
    %v6128 = vor.u32 %v6124, %v6127
    %v6129 = vrot.slane %v6128, 4
    %v6131 = vshll.u32 %v6116, 16
    %v6133 = vrot.slane %v6131, 5
    %v6134 = vsel %vm308, %v6129, %v6133
    %v6135 = vshrl.u32 %v6116, 16
    %v6137 = vrot.slane %v6135, 4
    %v6138 = vor.u32 %v6137, %v6133
    %v6139 = vrot.slane %v6138, 4
    %v6141 = vshll.u32 %v6117, 16
    %v6143 = vrot.slane %v6141, 5
    %v6144 = vsel %vm308, %v6139, %v6143
    %v6146 = vshrl.u32 %v6118, 16
    %v6148 = vrot.slane %v6146, 4
    %v6149 = vshll.u32 %v6118, 16
    %v6151 = vrot.slane %v6149, 5
    %v6152 = vor.u32 %v6148, %v6151
    %v6153 = vrot.slane %v6152, 4
    %v6155 = vshll.u32 %v6119, 16
    %v6157 = vrot.slane %v6155, 5
    %v6158 = vsel %vm308, %v6153, %v6157
    %v6159 = vshrl.u32 %v6119, 16
    %v6161 = vrot.slane %v6159, 4
    %v6162 = vor.u32 %v6161, %v6157
    %v6163 = vrot.slane %v6162, 4
    %v6165 = vshll.u32 %v6120, 16
    %v6167 = vrot.slane %v6165, 5
    %v6168 = vsel %vm308, %v6163, %v6167
    %v6169 = vld [vmem:[%s1 + $0x6a4] sm:$0xf]
    %v6170 = vld [vmem:[%s1 + $0x6a8] sm:$0xf]
    %v6171 = vld [vmem:[%s1 + $0x6ac] sm:$0xf]
    %v6172 = vld [vmem:[%s1 + $0x6b0] sm:$0xf]
    %v6173 = vld [vmem:[%s1 + $0x6b4] sm:$0xf]
    %v6174 = vld [vmem:[%s1 + $0x6b8] sm:$0xf]
    %v6175 = vld [vmem:[%s1 + $0x6bc] sm:$0xf]
    %v6176 = vld [vmem:[%s1 + $0x6c0] sm:$0xf]
    %v6177 = vld [vmem:[%s1 + $0x6c4] sm:$0xf]
    %v6178 = vld [vmem:[%s1 + $0x6c8] sm:$0xf]
    %v6179 = vld [vmem:[%s1 + $0x6cc] sm:$0xf]
    %v6180 = vld [vmem:[%s1 + $0x6d0] sm:$0xf]
    %v6181 = vld [vmem:[%s1 + $0x6d4] sm:$0xf]
    %v6182 = vld [vmem:[%s1 + $0x6d8] sm:$0xf]
    %v6183 = vld [vmem:[%s1 + $0x6dc] sm:$0xf]
    %v6184 = vld [vmem:[%s1 + $0x6e0] sm:$0xf]
    %v6185 = vunpack.c.l.b16 %v6134
    %v6186 = vunpack.c.l.b16 %v6144
    %v6187 = vunpack.c.l.b16 %v6158
    %v6188 = vunpack.c.l.b16 %v6168
    %v6189 = vpack.c.b16 %v6186, %v6185
    %v6190 = vpack.c.b16 %v6188, %v6187
    %v6209 = vunpack.c.l.b16 %v6169
    %v6210 = vunpack.c.l.b16 %v6170
    %v6211 = vunpack.c.l.b16 %v6171
    %v6212 = vunpack.c.l.b16 %v6172
    %v6213 = vunpack.c.l.b16 %v6173
    %v6214 = vunpack.c.l.b16 %v6174
    %v6215 = vunpack.c.l.b16 %v6175
    %v6216 = vunpack.c.l.b16 %v6176
    %v6217 = vunpack.c.l.b16 %v6177
    %v6218 = vunpack.c.l.b16 %v6178
    %v6219 = vunpack.c.l.b16 %v6179
    %v6220 = vunpack.c.l.b16 %v6180
    %v6221 = vunpack.c.l.b16 %v6181
    %v6222 = vunpack.c.l.b16 %v6182
    %v6223 = vunpack.c.l.b16 %v6183
    %v6224 = vunpack.c.l.b16 %v6184
    %v6225 = vpack.c.b16 %v6210, %v6209
    %v6226 = vpack.c.b16 %v6212, %v6211
    %v6227 = vpack.c.b16 %v6214, %v6213
    %v6228 = vpack.c.b16 %v6216, %v6215
    %v6229 = vpack.c.b16 %v6218, %v6217
    %v6230 = vpack.c.b16 %v6220, %v6219
    %v6231 = vpack.c.b16 %v6222, %v6221
    %v6232 = vpack.c.b16 %v6224, %v6223
    %6241 = vmatprep.subr.bf16.mxu0 0
    %6242 = vmatpush1.bf16.msra.mxu0 %v6225
    %6243 = vmatprep.subr.bf16.mxu0 0
    %6244 = vmatpush1.bf16.msra.mxu0 %v6226
    %6245 = vmatprep.subr.bf16.mxu0 0
    %6246 = vmatpush1.bf16.msra.mxu0 %v6227
    %6247 = vmatprep.subr.bf16.mxu0 0
    %6248 = vmatpush1.bf16.msra.mxu0 %v6228
    %6249 = vmatprep.subr.bf16.mxu0 0
    %6250 = vmatpush1.bf16.msra.mxu0 %v6229
    %6251 = vmatprep.subr.bf16.mxu0 0
    %6252 = vmatpush1.bf16.msra.mxu0 %v6230
    %6253 = vmatprep.subr.bf16.mxu0 0
    %6254 = vmatpush1.bf16.msra.mxu0 %v6231
    %6255 = vmatprep.subr.bf16.mxu0 0
    %6256 = vmatpush1.bf16.msra.mxu0 %v6232
    %6257 = vmatprep.subr.bf16.mxu0 0
    %6258 = vmatpush1.bf16.msra.mxu0 0
    %6259 = vmatprep.subr.bf16.mxu0 0
    %6260 = vmatpush1.bf16.msra.mxu0 0
    %6261 = vmatprep.subr.bf16.mxu0 0
    %6262 = vmatpush1.bf16.msra.mxu0 0
    %6263 = vmatprep.subr.bf16.mxu0 0
    %6264 = vmatpush1.bf16.msra.mxu0 0
    %6265 = vmatprep.subr.bf16.mxu0 0
    %6266 = vmatpush1.bf16.msra.mxu0 0
    %6267 = vmatprep.subr.bf16.mxu0 0
    %6268 = vmatpush1.bf16.msra.mxu0 0
    %6269 = vmatprep.subr.bf16.mxu0 0
    %6270 = vmatpush1.bf16.msra.mxu0 0
    %6271 = vmatprep.subr.bf16.mxu0 0
    %6272 = vmatpush1.bf16.msra.mxu0 0
    %6273 = vmatprep.mubr.bf16.mxu0 0
    %6274 = vmatmul.mubr.bf16.gmra.mrb[0].mxu0 %v6189
    %v6275 = vpop.f32.mrb[0].mxu0
    %v6276 = vadd.f32 0.0, %v6275
    %v6277 = vpop.f32.mrb[0].mxu0
    %v6278 = vpop.f32.mrb[0].mxu0
    %v6279 = vadd.f32 0.0, %v6278
    %v6280 = vpop.f32.mrb[0].mxu0
    %6281 = vmatprep.mubr.bf16.mxu0 0
    %6282 = vmatmul.mubr.bf16.gmra.mrb[0].mxu0 %v6190
    %v6283 = vpop.f32.mrb[0].mxu0
    %v6284 = vadd.f32 0.0, %v6283
    %v6285 = vpop.f32.mrb[0].mxu0
    %v6286 = vpop.f32.mrb[0].mxu0
    %v6287 = vadd.f32 0.0, %v6286
    %v6288 = vpop.f32.mrb[0].mxu0
    %6289 = vdwg.mxu0
    %v6290 = vadd.f32 %v6114, %v6276
    %v6291 = vadd.f32 %v6114, %v6279
    %v6292 = vadd.f32 %v6114, %v6284
    %v6293 = vadd.f32 %v6114, %v6287
    %v6294 = vld [vmem:[#allocation2] sm:$0xe]
    %v6295 = vld [vmem:[#allocation2 + $0xc] sm:$0xe]
    %v6302 = vrot.slane %v6294, 5
    %v6303 = vrot.slane %v6302, 4
    %v6304 = vrot.slane %v6116, 5
    %v6305 = vsel %vm464, %v6303, %v6304
    %v6306 = vrot.slane %v6304, 4
    %v6307 = vrot.slane %v6117, 5
    %v6308 = vsel %vm464, %v6306, %v6307
    %v6309 = vrot.slane %v6295, 5
    %v6310 = vrot.slane %v6309, 4
    %v6311 = vrot.slane %v6119, 5
    %v6312 = vsel %vm464, %v6310, %v6311
    %v6313 = vrot.slane %v6311, 4
    %v6314 = vrot.slane %v6120, 5
    %v6315 = vsel %vm464, %v6313, %v6314
    %v6316 = vld [vmem:[%s1 + $0x6e4] sm:$0xf]
    %v6317 = vld [vmem:[%s1 + $0x6e8] sm:$0xf]
    %v6318 = vld [vmem:[%s1 + $0x6ec] sm:$0xf]
    %v6319 = vld [vmem:[%s1 + $0x6f0] sm:$0xf]
    %v6320 = vld [vmem:[%s1 + $0x6f4] sm:$0xf]
    %v6321 = vld [vmem:[%s1 + $0x6f8] sm:$0xf]
    %v6322 = vld [vmem:[%s1 + $0x6fc] sm:$0xf]
    %v6323 = vld [vmem:[%s1 + $0x700] sm:$0xf]
    %v6324 = vld [vmem:[%s1 + $0x704] sm:$0xf]
    %v6325 = vld [vmem:[%s1 + $0x708] sm:$0xf]
    %v6326 = vld [vmem:[%s1 + $0x70c] sm:$0xf]
    %v6327 = vld [vmem:[%s1 + $0x710] sm:$0xf]
    %v6328 = vld [vmem:[%s1 + $0x714] sm:$0xf]
    %v6329 = vld [vmem:[%s1 + $0x718] sm:$0xf]
    %v6330 = vld [vmem:[%s1 + $0x71c] sm:$0xf]
    %v6331 = vld [vmem:[%s1 + $0x720] sm:$0xf]
    %v6332 = vunpack.c.l.b16 %v6305
    %v6333 = vunpack.c.l.b16 %v6308
    %v6334 = vunpack.c.l.b16 %v6312
    %v6335 = vunpack.c.l.b16 %v6315
    %v6336 = vpack.c.b16 %v6333, %v6332
    %v6337 = vpack.c.b16 %v6335, %v6334
    %v6356 = vunpack.c.l.b16 %v6316
    %v6357 = vunpack.c.l.b16 %v6317
    %v6358 = vunpack.c.l.b16 %v6318
    %v6359 = vunpack.c.l.b16 %v6319
    %v6360 = vunpack.c.l.b16 %v6320
    %v6361 = vunpack.c.l.b16 %v6321
    %v6362 = vunpack.c.l.b16 %v6322
    %v6363 = vunpack.c.l.b16 %v6323
    %v6364 = vunpack.c.l.b16 %v6324
    %v6365 = vunpack.c.l.b16 %v6325
    %v6366 = vunpack.c.l.b16 %v6326
    %v6367 = vunpack.c.l.b16 %v6327
    %v6368 = vunpack.c.l.b16 %v6328
    %v6369 = vunpack.c.l.b16 %v6329
    %v6370 = vunpack.c.l.b16 %v6330
    %v6371 = vunpack.c.l.b16 %v6331
    %v6372 = vpack.c.b16 %v6357, %v6356
    %v6373 = vpack.c.b16 %v6359, %v6358
    %v6374 = vpack.c.b16 %v6361, %v6360
    %v6375 = vpack.c.b16 %v6363, %v6362
    %v6376 = vpack.c.b16 %v6365, %v6364
    %v6377 = vpack.c.b16 %v6367, %v6366
    %v6378 = vpack.c.b16 %v6369, %v6368
    %v6379 = vpack.c.b16 %v6371, %v6370
    %6388 = vmatprep.subr.bf16.mxu0 0
    %6389 = vmatpush1.bf16.msra.mxu0 %v6372
    %6390 = vmatprep.subr.bf16.mxu0 0
    %6391 = vmatpush1.bf16.msra.mxu0 %v6373
    %6392 = vmatprep.subr.bf16.mxu0 0
    %6393 = vmatpush1.bf16.msra.mxu0 %v6374
    %6394 = vmatprep.subr.bf16.mxu0 0
    %6395 = vmatpush1.bf16.msra.mxu0 %v6375
    %6396 = vmatprep.subr.bf16.mxu0 0
    %6397 = vmatpush1.bf16.msra.mxu0 %v6376
    %6398 = vmatprep.subr.bf16.mxu0 0
    %6399 = vmatpush1.bf16.msra.mxu0 %v6377
    %6400 = vmatprep.subr.bf16.mxu0 0
    %6401 = vmatpush1.bf16.msra.mxu0 %v6378
    %6402 = vmatprep.subr.bf16.mxu0 0
    %6403 = vmatpush1.bf16.msra.mxu0 %v6379
    %6404 = vmatprep.subr.bf16.mxu0 0
    %6405 = vmatpush1.bf16.msra.mxu0 0
    %6406 = vmatprep.subr.bf16.mxu0 0
    %6407 = vmatpush1.bf16.msra.mxu0 0
    %6408 = vmatprep.subr.bf16.mxu0 0
    %6409 = vmatpush1.bf16.msra.mxu0 0
    %6410 = vmatprep.subr.bf16.mxu0 0
    %6411 = vmatpush1.bf16.msra.mxu0 0
    %6412 = vmatprep.subr.bf16.mxu0 0
    %6413 = vmatpush1.bf16.msra.mxu0 0
    %6414 = vmatprep.subr.bf16.mxu0 0
    %6415 = vmatpush1.bf16.msra.mxu0 0
    %6416 = vmatprep.subr.bf16.mxu0 0
    %6417 = vmatpush1.bf16.msra.mxu0 0
    %6418 = vmatprep.subr.bf16.mxu0 0
    %6419 = vmatpush1.bf16.msra.mxu0 0
    %6420 = vmatprep.mubr.bf16.mxu0 0
    %6421 = vmatmul.mubr.bf16.gmra.mrb[0].mxu0 %v6336
    %v6422 = vpop.f32.mrb[0].mxu0
    %v6423 = vadd.f32 0.0, %v6422
    %v6424 = vpop.f32.mrb[0].mxu0
    %v6425 = vpop.f32.mrb[0].mxu0
    %v6426 = vadd.f32 0.0, %v6425
    %v6427 = vpop.f32.mrb[0].mxu0
    %6428 = vmatprep.mubr.bf16.mxu0 0
    %6429 = vmatmul.mubr.bf16.gmra.mrb[0].mxu0 %v6337
    %v6430 = vpop.f32.mrb[0].mxu0
    %v6431 = vadd.f32 0.0, %v6430
    %v6432 = vpop.f32.mrb[0].mxu0
    %v6433 = vpop.f32.mrb[0].mxu0
    %v6434 = vadd.f32 0.0, %v6433
    %v6435 = vpop.f32.mrb[0].mxu0
    %6436 = vdwg.mxu0
    %v6437 = vadd.f32 %v6290, %v6423
    %v6438 = vadd.f32 %v6291, %v6426
    %v6439 = vadd.f32 %v6292, %v6431
    %v6440 = vadd.f32 %v6293, %v6434
    %v6441 = vld [vmem:[#allocation2 + $0x8] sm:$0x3]
    %v6442 = vld [vmem:[#allocation2 + $0x14] sm:$0x3]
    %v6444 = vshrl.u32 %v6294, 16
    %v6446 = vrot.slane %v6444, 5
    %v6447 = vshll.u32 %v6294, 16
    %v6449 = vrot.slane %v6447, 6
    %v6450 = vor.u32 %v6446, %v6449
    %v6451 = vrot.slane %v6450, 4
    %v6452 = vrot.slane %v6135, 5
    %v6453 = vrot.slane %v6131, 6
    %v6454 = vor.u32 %v6452, %v6453
    %v6455 = vsel %vm580, %v6451, %v6454
    %v6456 = vrot.slane %v6454, 4
    %v6458 = vshrl.u32 %v6441, 16
    %v6460 = vrot.slane %v6458, 5
    %v6461 = vshll.u32 %v6441, 16
    %v6463 = vrot.slane %v6461, 6
    %v6464 = vor.u32 %v6460, %v6463
    %v6465 = vsel %vm580, %v6456, %v6464
    %v6467 = vshrl.u32 %v6295, 16
    %v6469 = vrot.slane %v6467, 5
    %v6470 = vshll.u32 %v6295, 16
    %v6472 = vrot.slane %v6470, 6
    %v6473 = vor.u32 %v6469, %v6472
    %v6474 = vrot.slane %v6473, 4
    %v6475 = vrot.slane %v6159, 5
    %v6476 = vrot.slane %v6155, 6
    %v6477 = vor.u32 %v6475, %v6476
    %v6478 = vsel %vm580, %v6474, %v6477
    %v6479 = vrot.slane %v6477, 4
    %v6481 = vshrl.u32 %v6442, 16
    %v6483 = vrot.slane %v6481, 5
    %v6484 = vshll.u32 %v6442, 16
    %v6486 = vrot.slane %v6484, 6
    %v6487 = vor.u32 %v6483, %v6486
    %v6488 = vsel %vm580, %v6479, %v6487
    %v6489 = vld [vmem:[%s1 + $0x724] sm:$0xf]
    %v6490 = vld [vmem:[%s1 + $0x728] sm:$0xf]
    %v6491 = vld [vmem:[%s1 + $0x72c] sm:$0xf]
    %v6492 = vld [vmem:[%s1 + $0x730] sm:$0xf]
    %v6493 = vld [vmem:[%s1 + $0x734] sm:$0xf]
    %v6494 = vld [vmem:[%s1 + $0x738] sm:$0xf]
    %v6495 = vld [vmem:[%s1 + $0x73c] sm:$0xf]
    %v6496 = vld [vmem:[%s1 + $0x740] sm:$0xf]
    %v6497 = vld [vmem:[%s1 + $0x744] sm:$0xf]
    %v6498 = vld [vmem:[%s1 + $0x748] sm:$0xf]
    %v6499 = vld [vmem:[%s1 + $0x74c] sm:$0xf]
    %v6500 = vld [vmem:[%s1 + $0x750] sm:$0xf]
    %v6501 = vld [vmem:[%s1 + $0x754] sm:$0xf]
    %v6502 = vld [vmem:[%s1 + $0x758] sm:$0xf]
    %v6503 = vld [vmem:[%s1 + $0x75c] sm:$0xf]
    %v6504 = vld [vmem:[%s1 + $0x760] sm:$0xf]
    %v6505 = vunpack.c.l.b16 %v6455
    %v6506 = vunpack.c.l.b16 %v6465
    %v6507 = vunpack.c.l.b16 %v6478
    %v6508 = vunpack.c.l.b16 %v6488
    %v6509 = vpack.c.b16 %v6506, %v6505
    %v6510 = vpack.c.b16 %v6508, %v6507
    %v6529 = vunpack.c.l.b16 %v6489
    %v6530 = vunpack.c.l.b16 %v6490
    %v6531 = vunpack.c.l.b16 %v6491
    %v6532 = vunpack.c.l.b16 %v6492
    %v6533 = vunpack.c.l.b16 %v6493
    %v6534 = vunpack.c.l.b16 %v6494
    %v6535 = vunpack.c.l.b16 %v6495
    %v6536 = vunpack.c.l.b16 %v6496
    %v6537 = vunpack.c.l.b16 %v6497
    %v6538 = vunpack.c.l.b16 %v6498
    %v6539 = vunpack.c.l.b16 %v6499
    %v6540 = vunpack.c.l.b16 %v6500
    %v6541 = vunpack.c.l.b16 %v6501
    %v6542 = vunpack.c.l.b16 %v6502
    %v6543 = vunpack.c.l.b16 %v6503
    %v6544 = vunpack.c.l.b16 %v6504
    %v6545 = vpack.c.b16 %v6530, %v6529
    %v6546 = vpack.c.b16 %v6532, %v6531
    %v6547 = vpack.c.b16 %v6534, %v6533
    %v6548 = vpack.c.b16 %v6536, %v6535
    %v6549 = vpack.c.b16 %v6538, %v6537
    %v6550 = vpack.c.b16 %v6540, %v6539
    %v6551 = vpack.c.b16 %v6542, %v6541
    %v6552 = vpack.c.b16 %v6544, %v6543
    %6561 = vmatprep.subr.bf16.mxu0 0
    %6562 = vmatpush1.bf16.msra.mxu0 %v6545
    %6563 = vmatprep.subr.bf16.mxu0 0
    %6564 = vmatpush1.bf16.msra.mxu0 %v6546
    %6565 = vmatprep.subr.bf16.mxu0 0
    %6566 = vmatpush1.bf16.msra.mxu0 %v6547
    %6567 = vmatprep.subr.bf16.mxu0 0
    %6568 = vmatpush1.bf16.msra.mxu0 %v6548
    %6569 = vmatprep.subr.bf16.mxu0 0
    %6570 = vmatpush1.bf16.msra.mxu0 %v6549
    %6571 = vmatprep.subr.bf16.mxu0 0
    %6572 = vmatpush1.bf16.msra.mxu0 %v6550
    %6573 = vmatprep.subr.bf16.mxu0 0
    %6574 = vmatpush1.bf16.msra.mxu0 %v6551
    %6575 = vmatprep.subr.bf16.mxu0 0
    %6576 = vmatpush1.bf16.msra.mxu0 %v6552
    %6577 = vmatprep.subr.bf16.mxu0 0
    %6578 = vmatpush1.bf16.msra.mxu0 0
    %6579 = vmatprep.subr.bf16.mxu0 0
    %6580 = vmatpush1.bf16.msra.mxu0 0
    %6581 = vmatprep.subr.bf16.mxu0 0
    %6582 = vmatpush1.bf16.msra.mxu0 0
    %6583 = vmatprep.subr.bf16.mxu0 0
    %6584 = vmatpush1.bf16.msra.mxu0 0
    %6585 = vmatprep.subr.bf16.mxu0 0
    %6586 = vmatpush1.bf16.msra.mxu0 0
    %6587 = vmatprep.subr.bf16.mxu0 0
    %6588 = vmatpush1.bf16.msra.mxu0 0
    %6589 = vmatprep.subr.bf16.mxu0 0
    %6590 = vmatpush1.bf16.msra.mxu0 0
    %6591 = vmatprep.subr.bf16.mxu0 0
    %6592 = vmatpush1.bf16.msra.mxu0 0
    %6593 = vmatprep.mubr.bf16.mxu0 0
    %6594 = vmatmul.mubr.bf16.gmra.mrb[0].mxu0 %v6509
    %v6595 = vpop.f32.mrb[0].mxu0
    %v6596 = vadd.f32 0.0, %v6595
    %v6597 = vpop.f32.mrb[0].mxu0
    %v6598 = vpop.f32.mrb[0].mxu0
    %v6599 = vadd.f32 0.0, %v6598
    %v6600 = vpop.f32.mrb[0].mxu0
    %6601 = vmatprep.mubr.bf16.mxu0 0
    %6602 = vmatmul.mubr.bf16.gmra.mrb[0].mxu0 %v6510
    %v6603 = vpop.f32.mrb[0].mxu0
    %v6604 = vadd.f32 0.0, %v6603
    %v6605 = vpop.f32.mrb[0].mxu0
    %v6606 = vpop.f32.mrb[0].mxu0
    %v6607 = vadd.f32 0.0, %v6606
    %v6608 = vpop.f32.mrb[0].mxu0
    %6609 = vdwg.mxu0
    %v6610 = vadd.f32 %v6437, %v6596
    %v6611 = vadd.f32 %v6438, %v6599
    %v6612 = vadd.f32 %v6439, %v6604
    %v6613 = vadd.f32 %v6440, %v6607
    %v6614 = vld [vmem:[#allocation2] sm:$0xc]
    %v6615 = vld [vmem:[#allocation2 + $0xc] sm:$0xc]
    %v6620 = vrot.slane %v6614, 6
    %v6621 = vrot.slane %v6620, 4
    %v6622 = vrot.slane %v6116, 6
    %v6623 = vsel %vm731, %v6621, %v6622
    %v6624 = vrot.slane %v6622, 4
    %v6625 = vrot.slane %v6441, 6
    %v6626 = vsel %vm731, %v6624, %v6625
    %v6627 = vrot.slane %v6615, 6
    %v6628 = vrot.slane %v6627, 4
    %v6629 = vrot.slane %v6119, 6
    %v6630 = vsel %vm731, %v6628, %v6629
    %v6631 = vrot.slane %v6629, 4
    %v6632 = vrot.slane %v6442, 6
    %v6633 = vsel %vm731, %v6631, %v6632
    %v6634 = vld [vmem:[%s1 + $0x764] sm:$0xf]
    %v6635 = vld [vmem:[%s1 + $0x768] sm:$0xf]
    %v6636 = vld [vmem:[%s1 + $0x76c] sm:$0xf]
    %v6637 = vld [vmem:[%s1 + $0x770] sm:$0xf]
    %v6638 = vld [vmem:[%s1 + $0x774] sm:$0xf]
    %v6639 = vld [vmem:[%s1 + $0x778] sm:$0xf]
    %v6640 = vld [vmem:[%s1 + $0x77c] sm:$0xf]
    %v6641 = vld [vmem:[%s1 + $0x780] sm:$0xf]
    %v6642 = vld [vmem:[%s1 + $0x784] sm:$0xf]
    %v6643 = vld [vmem:[%s1 + $0x788] sm:$0xf]
    %v6644 = vld [vmem:[%s1 + $0x78c] sm:$0xf]
    %v6645 = vld [vmem:[%s1 + $0x790] sm:$0xf]
    %v6646 = vld [vmem:[%s1 + $0x794] sm:$0xf]
    %v6647 = vld [vmem:[%s1 + $0x798] sm:$0xf]
    %v6648 = vld [vmem:[%s1 + $0x79c] sm:$0xf]
    %v6649 = vld [vmem:[%s1 + $0x7a0] sm:$0xf]
    %v6650 = vunpack.c.l.b16 %v6623
    %v6651 = vunpack.c.l.b16 %v6626
    %v6652 = vunpack.c.l.b16 %v6630
    %v6653 = vunpack.c.l.b16 %v6633
    %v6654 = vpack.c.b16 %v6651, %v6650
    %v6655 = vpack.c.b16 %v6653, %v6652
    %v6674 = vunpack.c.l.b16 %v6634
    %v6675 = vunpack.c.l.b16 %v6635
    %v6676 = vunpack.c.l.b16 %v6636
    %v6677 = vunpack.c.l.b16 %v6637
    %v6678 = vunpack.c.l.b16 %v6638
    %v6679 = vunpack.c.l.b16 %v6639
    %v6680 = vunpack.c.l.b16 %v6640
    %v6681 = vunpack.c.l.b16 %v6641
    %v6682 = vunpack.c.l.b16 %v6642
    %v6683 = vunpack.c.l.b16 %v6643
    %v6684 = vunpack.c.l.b16 %v6644
    %v6685 = vunpack.c.l.b16 %v6645
    %v6686 = vunpack.c.l.b16 %v6646
    %v6687 = vunpack.c.l.b16 %v6647
    %v6688 = vunpack.c.l.b16 %v6648
    %v6689 = vunpack.c.l.b16 %v6649
    %v6690 = vpack.c.b16 %v6675, %v6674
    %v6691 = vpack.c.b16 %v6677, %v6676
    %v6692 = vpack.c.b16 %v6679, %v6678
    %v6693 = vpack.c.b16 %v6681, %v6680
    %v6694 = vpack.c.b16 %v6683, %v6682
    %v6695 = vpack.c.b16 %v6685, %v6684
    %v6696 = vpack.c.b16 %v6687, %v6686
    %v6697 = vpack.c.b16 %v6689, %v6688
    %6706 = vmatprep.subr.bf16.mxu0 0
    %6707 = vmatpush1.bf16.msra.mxu0 %v6690
    %6708 = vmatprep.subr.bf16.mxu0 0
    %6709 = vmatpush1.bf16.msra.mxu0 %v6691
    %6710 = vmatprep.subr.bf16.mxu0 0
    %6711 = vmatpush1.bf16.msra.mxu0 %v6692
    %6712 = vmatprep.subr.bf16.mxu0 0
    %6713 = vmatpush1.bf16.msra.mxu0 %v6693
    %6714 = vmatprep.subr.bf16.mxu0 0
    %6715 = vmatpush1.bf16.msra.mxu0 %v6694
    %6716 = vmatprep.subr.bf16.mxu0 0
    %6717 = vmatpush1.bf16.msra.mxu0 %v6695
    %6718 = vmatprep.subr.bf16.mxu0 0
    %6719 = vmatpush1.bf16.msra.mxu0 %v6696
    %6720 = vmatprep.subr.bf16.mxu0 0
    %6721 = vmatpush1.bf16.msra.mxu0 %v6697
    %6722 = vmatprep.subr.bf16.mxu0 0
    %6723 = vmatpush1.bf16.msra.mxu0 0
    %6724 = vmatprep.subr.bf16.mxu0 0
    %6725 = vmatpush1.bf16.msra.mxu0 0
    %6726 = vmatprep.subr.bf16.mxu0 0
    %6727 = vmatpush1.bf16.msra.mxu0 0
    %6728 = vmatprep.subr.bf16.mxu0 0
    %6729 = vmatpush1.bf16.msra.mxu0 0
    %6730 = vmatprep.subr.bf16.mxu0 0
    %6731 = vmatpush1.bf16.msra.mxu0 0
    %6732 = vmatprep.subr.bf16.mxu0 0
    %6733 = vmatpush1.bf16.msra.mxu0 0
    %6734 = vmatprep.subr.bf16.mxu0 0
    %6735 = vmatpush1.bf16.msra.mxu0 0
    %6736 = vmatprep.subr.bf16.mxu0 0
    %6737 = vmatpush1.bf16.msra.mxu0 0
    %6738 = vmatprep.mubr.bf16.mxu0 0
    %6739 = vmatmul.mubr.bf16.gmra.mrb[0].mxu0 %v6654
    %v6740 = vpop.f32.mrb[0].mxu0
    %v6741 = vadd.f32 0.0, %v6740
    %v6742 = vpop.f32.mrb[0].mxu0
    %v6743 = vpop.f32.mrb[0].mxu0
    %v6744 = vadd.f32 0.0, %v6743
    %v6745 = vpop.f32.mrb[0].mxu0
    %6746 = vmatprep.mubr.bf16.mxu0 0
    %6747 = vmatmul.mubr.bf16.gmra.mrb[0].mxu0 %v6655
    %v6748 = vpop.f32.mrb[0].mxu0
    %v6749 = vadd.f32 0.0, %v6748
    %v6750 = vpop.f32.mrb[0].mxu0
    %v6751 = vpop.f32.mrb[0].mxu0
    %v6752 = vadd.f32 0.0, %v6751
    %v6753 = vpop.f32.mrb[0].mxu0
    %6754 = vdwg.mxu0
    %v6755 = vadd.f32 %v6610, %v6741
    %v6756 = vadd.f32 %v6611, %v6744
    %v6757 = vadd.f32 %v6612, %v6749
    %v6758 = vadd.f32 %v6613, %v6752
    %v6759 = vld [vmem:[#allocation2 + $0x8] sm:$0x7]
    %v6760 = vld [vmem:[#allocation2 + $0x14] sm:$0x7]
    %v6762 = vshrl.u32 %v6614, 16
    %v6764 = vrot.slane %v6762, 6
    %v6765 = vshll.u32 %v6614, 16
    %v6767 = vrot.slane %v6765, 7
    %v6768 = vor.u32 %v6764, %v6767
    %v6769 = vrot.slane %v6768, 4
    %v6770 = vrot.slane %v6135, 6
    %v6771 = vrot.slane %v6131, 7
    %v6772 = vor.u32 %v6770, %v6771
    %v6773 = vsel %vm128, %v6769, %v6772
    %v6774 = vrot.slane %v6772, 4
    %v6776 = vshrl.u32 %v6759, 16
    %v6778 = vrot.slane %v6776, 6
    %v6779 = vshll.u32 %v6759, 16
    %v6781 = vrot.slane %v6779, 7
    %v6782 = vor.u32 %v6778, %v6781
    %v6783 = vsel %vm128, %v6774, %v6782
    %v6785 = vshrl.u32 %v6615, 16
    %v6787 = vrot.slane %v6785, 6
    %v6788 = vshll.u32 %v6615, 16
    %v6790 = vrot.slane %v6788, 7
    %v6791 = vor.u32 %v6787, %v6790
    %v6792 = vrot.slane %v6791, 4
    %v6793 = vrot.slane %v6159, 6
    %v6794 = vrot.slane %v6155, 7
    %v6795 = vor.u32 %v6793, %v6794
    %v6796 = vsel %vm128, %v6792, %v6795
    %v6797 = vrot.slane %v6795, 4
    %v6799 = vshrl.u32 %v6760, 16
    %v6801 = vrot.slane %v6799, 6
    %v6802 = vshll.u32 %v6760, 16
    %v6804 = vrot.slane %v6802, 7
    %v6805 = vor.u32 %v6801, %v6804
    %v6806 = vsel %vm128, %v6797, %v6805
    %v6807 = vld [vmem:[%s1 + $0x7a4] sm:$0xf]
    %v6808 = vld [vmem:[%s1 + $0x7a8] sm:$0xf]
    %v6809 = vld [vmem:[%s1 + $0x7ac] sm:$0xf]
    %v6810 = vld [vmem:[%s1 + $0x7b0] sm:$0xf]
    %v6811 = vld [vmem:[%s1 + $0x7b4] sm:$0xf]
    %v6812 = vld [vmem:[%s1 + $0x7b8] sm:$0xf]
    %v6813 = vld [vmem:[%s1 + $0x7bc] sm:$0xf]
    %v6814 = vld [vmem:[%s1 + $0x7c0] sm:$0xf]
    %v6815 = vld [vmem:[%s1 + $0x7c4] sm:$0xf]
    %v6816 = vld [vmem:[%s1 + $0x7c8] sm:$0xf]
    %v6817 = vld [vmem:[%s1 + $0x7cc] sm:$0xf]
    %v6818 = vld [vmem:[%s1 + $0x7d0] sm:$0xf]
    %v6819 = vld [vmem:[%s1 + $0x7d4] sm:$0xf]
    %v6820 = vld [vmem:[%s1 + $0x7d8] sm:$0xf]
    %v6821 = vld [vmem:[%s1 + $0x7dc] sm:$0xf]
    %v6822 = vld [vmem:[%s1 + $0x7e0] sm:$0xf]
    %v6823 = vunpack.c.l.b16 %v6773
    %v6824 = vunpack.c.l.b16 %v6783
    %v6825 = vunpack.c.l.b16 %v6796
    %v6826 = vunpack.c.l.b16 %v6806
    %v6827 = vpack.c.b16 %v6824, %v6823
    %v6828 = vpack.c.b16 %v6826, %v6825
    %v6847 = vunpack.c.l.b16 %v6807
    %v6848 = vunpack.c.l.b16 %v6808
    %v6849 = vunpack.c.l.b16 %v6809
    %v6850 = vunpack.c.l.b16 %v6810
    %v6851 = vunpack.c.l.b16 %v6811
    %v6852 = vunpack.c.l.b16 %v6812
    %v6853 = vunpack.c.l.b16 %v6813
    %v6854 = vunpack.c.l.b16 %v6814
    %v6855 = vunpack.c.l.b16 %v6815
    %v6856 = vunpack.c.l.b16 %v6816
    %v6857 = vunpack.c.l.b16 %v6817
    %v6858 = vunpack.c.l.b16 %v6818
    %v6859 = vunpack.c.l.b16 %v6819
    %v6860 = vunpack.c.l.b16 %v6820
    %v6861 = vunpack.c.l.b16 %v6821
    %v6862 = vunpack.c.l.b16 %v6822
    %v6863 = vpack.c.b16 %v6848, %v6847
    %v6864 = vpack.c.b16 %v6850, %v6849
    %v6865 = vpack.c.b16 %v6852, %v6851
    %v6866 = vpack.c.b16 %v6854, %v6853
    %v6867 = vpack.c.b16 %v6856, %v6855
    %v6868 = vpack.c.b16 %v6858, %v6857
    %v6869 = vpack.c.b16 %v6860, %v6859
    %v6870 = vpack.c.b16 %v6862, %v6861
    %6879 = vmatprep.subr.bf16.mxu0 0
    %6880 = vmatpush1.bf16.msra.mxu0 %v6863
    %6881 = vmatprep.subr.bf16.mxu0 0
    %6882 = vmatpush1.bf16.msra.mxu0 %v6864
    %6883 = vmatprep.subr.bf16.mxu0 0
    %6884 = vmatpush1.bf16.msra.mxu0 %v6865
    %6885 = vmatprep.subr.bf16.mxu0 0
    %6886 = vmatpush1.bf16.msra.mxu0 %v6866
    %6887 = vmatprep.subr.bf16.mxu0 0
    %6888 = vmatpush1.bf16.msra.mxu0 %v6867
    %6889 = vmatprep.subr.bf16.mxu0 0
    %6890 = vmatpush1.bf16.msra.mxu0 %v6868
    %6891 = vmatprep.subr.bf16.mxu0 0
    %6892 = vmatpush1.bf16.msra.mxu0 %v6869
    %6893 = vmatprep.subr.bf16.mxu0 0
    %6894 = vmatpush1.bf16.msra.mxu0 %v6870
    %6895 = vmatprep.subr.bf16.mxu0 0
    %6896 = vmatpush1.bf16.msra.mxu0 0
    %6897 = vmatprep.subr.bf16.mxu0 0
    %6898 = vmatpush1.bf16.msra.mxu0 0
    %6899 = vmatprep.subr.bf16.mxu0 0
    %6900 = vmatpush1.bf16.msra.mxu0 0
    %6901 = vmatprep.subr.bf16.mxu0 0
    %6902 = vmatpush1.bf16.msra.mxu0 0
    %6903 = vmatprep.subr.bf16.mxu0 0
    %6904 = vmatpush1.bf16.msra.mxu0 0
    %6905 = vmatprep.subr.bf16.mxu0 0
    %6906 = vmatpush1.bf16.msra.mxu0 0
    %6907 = vmatprep.subr.bf16.mxu0 0
    %6908 = vmatpush1.bf16.msra.mxu0 0
    %6909 = vmatprep.subr.bf16.mxu0 0
    %6910 = vmatpush1.bf16.msra.mxu0 0
    %6911 = vmatprep.mubr.bf16.mxu0 0
    %6912 = vmatmul.mubr.bf16.gmra.mrb[0].mxu0 %v6827
    %v6913 = vpop.f32.mrb[0].mxu0
    %v6914 = vadd.f32 0.0, %v6913
    %v6915 = vpop.f32.mrb[0].mxu0
    %v6916 = vpop.f32.mrb[0].mxu0
    %v6917 = vadd.f32 0.0, %v6916
    %v6918 = vpop.f32.mrb[0].mxu0
    %6919 = vmatprep.mubr.bf16.mxu0 0
    %6920 = vmatmul.mubr.bf16.gmra.mrb[0].mxu0 %v6828
    %v6921 = vpop.f32.mrb[0].mxu0
    %v6922 = vadd.f32 0.0, %v6921
    %v6923 = vpop.f32.mrb[0].mxu0
    %v6924 = vpop.f32.mrb[0].mxu0
    %v6925 = vadd.f32 0.0, %v6924
    %v6926 = vpop.f32.mrb[0].mxu0
    %6927 = vdwg.mxu0
    %v6928 = vadd.f32 %v6755, %v6914
    %v6929 = vadd.f32 %v6756, %v6917
    %v6930 = vadd.f32 %v6757, %v6922
    %v6931 = vadd.f32 %v6758, %v6925
    %v6932 = vmax.f32 %v6928, 0.0
    %v6933 = vmax.f32 %v6929, 0.0
    %v6934 = vmax.f32 %v6930, 0.0
    %v6935 = vmax.f32 %v6931, 0.0
    %v6936 = vpack.c.bf16 %v6933, %v6932
    %v6937 = vpack.c.bf16 %v6935, %v6934
    %v6940 = vunpack.c.l.b16 %v6936
    %v6941 = vunpack.c.h.b16 %v6936
    %v6942 = vunpack.c.l.b16 %v6937
    %v6943 = vunpack.c.h.b16 %v6937
    %v6944 = vpack.c.b16 %v6940, %v6940
    %v6945 = vpack.c.b16 %v6941, %v6941
    %v6946 = vpack.c.b16 %v6942, %v6942
    %v6947 = vpack.c.b16 %v6943, %v6943
    %v6949 = vshrl.u32 %v6944, 16
    %v6951 = vrot.slane %v6949, 6
    %v6952 = vshll.u32 %v6944, 16
    %v6954 = vrot.slane %v6952, 7
    %v6955 = vor.u32 %v6951, %v6954
    %v6956 = vrot.slane %v6955, 4
    %v6958 = vshrl.u32 %v6945, 16
    %v6960 = vrot.slane %v6958, 6
    %v6961 = vshll.u32 %v6945, 16
    %v6963 = vrot.slane %v6961, 7
    %v6964 = vor.u32 %v6960, %v6963
    %v6965 = vsel %vm128, %v6956, %v6964
    %v6966 = vrot.slane %v6964, 4
    %v6968 = vshrl.u32 %v6946, 16
    %v6970 = vrot.slane %v6968, 6
    %v6971 = vshll.u32 %v6946, 16
    %v6973 = vrot.slane %v6971, 7
    %v6974 = vor.u32 %v6970, %v6973
    %v6975 = vrot.slane %v6974, 4
    %v6977 = vshrl.u32 %v6947, 16
    %v6979 = vrot.slane %v6977, 6
    %v6980 = vshll.u32 %v6947, 16
    %v6982 = vrot.slane %v6980, 7
    %v6983 = vor.u32 %v6979, %v6982
    %v6984 = vsel %vm128, %v6975, %v6983
    %v6985 = vrot.slane %v6983, 4
    %v6992 = vsel %vm174, %v6955, %v6294
    %6993 = vst [vmem:[#allocation2] sm:$0xe] %v6992
    %6994 = vst [vmem:[#allocation2 + $0x4] sm:$0xf] %v6965
    %v6995 = vld [vmem:[#allocation2 + $0x8] sm:$0x3]
    %v6996 = vsel %vm20, %v6966, %v6995
    %6997 = vst [vmem:[#allocation2 + $0x8] sm:$0x3] %v6996
    %v6998 = vld [vmem:[#allocation2 + $0xc] sm:$0xe]
    %v6999 = vsel %vm174, %v6974, %v6998
    %7000 = vst [vmem:[#allocation2 + $0xc] sm:$0xe] %v6999
    %7001 = vst [vmem:[#allocation2 + $0x10] sm:$0xf] %v6984
    %v7002 = vld [vmem:[#allocation2 + $0x14] sm:$0x3]
    %v7003 = vsel %vm20, %v6985, %v7002
    %7004 = vst [vmem:[#allocation2 + $0x14] sm:$0x3] %v7003
    %v7005 = vlaneseq
    %v7006 = vshrl.u32 %v7005, 7
    %v7007 = vsub.s32 2, %v7006
    %v7008 = vrot.slane %v17, %v7007
    %v7009 = vadd.f32 %v7008, 0.0
    %v7010 = vld [vmem:[#allocation2] sm:$0xe]
    %v7011 = vld [vmem:[#allocation2 + $0x4] sm:$0xf]
    %v7012 = vld [vmem:[#allocation2 + $0x8] sm:$0x1]
    %v7013 = vld [vmem:[#allocation2 + $0xc] sm:$0xe]
    %v7014 = vld [vmem:[#allocation2 + $0x10] sm:$0xf]
    %v7015 = vld [vmem:[#allocation2 + $0x14] sm:$0x1]
    %v7022 = vrot.slane %v7010, 5
    %v7023 = vrot.slane %v7022, 4
    %v7024 = vrot.slane %v7011, 5
    %v7025 = vsel %vm464, %v7023, %v7024
    %v7026 = vrot.slane %v7024, 4
    %v7027 = vrot.slane %v7012, 5
    %v7028 = vsel %vm464, %v7026, %v7027
    %v7029 = vrot.slane %v7013, 5
    %v7030 = vrot.slane %v7029, 4
    %v7031 = vrot.slane %v7014, 5
    %v7032 = vsel %vm464, %v7030, %v7031
    %v7033 = vrot.slane %v7031, 4
    %v7034 = vrot.slane %v7015, 5
    %v7035 = vsel %vm464, %v7033, %v7034
    %v7036 = vld [vmem:[%s1 + $0x7e4] sm:$0xf]
    %v7037 = vld [vmem:[%s1 + $0x7e8] sm:$0xf]
    %v7038 = vld [vmem:[%s1 + $0x7ec] sm:$0xf]
    %v7039 = vld [vmem:[%s1 + $0x7f0] sm:$0xf]
    %v7040 = vld [vmem:[%s1 + $0x7f4] sm:$0xf]
    %v7041 = vld [vmem:[%s1 + $0x7f8] sm:$0xf]
    %v7042 = vld [vmem:[%s1 + $0x7fc] sm:$0xf]
    %v7043 = vld [vmem:[%s1 + $0x800] sm:$0xf]
    %v7044 = vld [vmem:[%s1 + $0x804] sm:$0xf]
    %v7045 = vld [vmem:[%s1 + $0x808] sm:$0xf]
    %v7046 = vld [vmem:[%s1 + $0x80c] sm:$0xf]
    %v7047 = vld [vmem:[%s1 + $0x810] sm:$0xf]
    %v7048 = vld [vmem:[%s1 + $0x814] sm:$0xf]
    %v7049 = vld [vmem:[%s1 + $0x818] sm:$0xf]
    %v7050 = vld [vmem:[%s1 + $0x81c] sm:$0xf]
    %v7051 = vld [vmem:[%s1 + $0x820] sm:$0xf]
    %v7052 = vunpack.c.l.b16 %v7025
    %v7053 = vunpack.c.l.b16 %v7028
    %v7054 = vunpack.c.l.b16 %v7032
    %v7055 = vunpack.c.l.b16 %v7035
    %v7056 = vpack.c.b16 %v7053, %v7052
    %v7057 = vpack.c.b16 %v7055, %v7054
    %v7076 = vunpack.c.l.b16 %v7036
    %v7077 = vunpack.c.l.b16 %v7037
    %v7078 = vunpack.c.l.b16 %v7038
    %v7079 = vunpack.c.l.b16 %v7039
    %v7080 = vunpack.c.l.b16 %v7040
    %v7081 = vunpack.c.l.b16 %v7041
    %v7082 = vunpack.c.l.b16 %v7042
    %v7083 = vunpack.c.l.b16 %v7043
    %v7084 = vunpack.c.l.b16 %v7044
    %v7085 = vunpack.c.l.b16 %v7045
    %v7086 = vunpack.c.l.b16 %v7046
    %v7087 = vunpack.c.l.b16 %v7047
    %v7088 = vunpack.c.l.b16 %v7048
    %v7089 = vunpack.c.l.b16 %v7049
    %v7090 = vunpack.c.l.b16 %v7050
    %v7091 = vunpack.c.l.b16 %v7051
    %v7092 = vpack.c.b16 %v7077, %v7076
    %v7093 = vpack.c.b16 %v7079, %v7078
    %v7094 = vpack.c.b16 %v7081, %v7080
    %v7095 = vpack.c.b16 %v7083, %v7082
    %v7096 = vpack.c.b16 %v7085, %v7084
    %v7097 = vpack.c.b16 %v7087, %v7086
    %v7098 = vpack.c.b16 %v7089, %v7088
    %v7099 = vpack.c.b16 %v7091, %v7090
    %7108 = vmatprep.subr.bf16.mxu0 0
    %7109 = vmatpush1.bf16.msra.mxu0 %v7092
    %7110 = vmatprep.subr.bf16.mxu0 0
    %7111 = vmatpush1.bf16.msra.mxu0 %v7093
    %7112 = vmatprep.subr.bf16.mxu0 0
    %7113 = vmatpush1.bf16.msra.mxu0 %v7094
    %7114 = vmatprep.subr.bf16.mxu0 0
    %7115 = vmatpush1.bf16.msra.mxu0 %v7095
    %7116 = vmatprep.subr.bf16.mxu0 0
    %7117 = vmatpush1.bf16.msra.mxu0 %v7096
    %7118 = vmatprep.subr.bf16.mxu0 0
    %7119 = vmatpush1.bf16.msra.mxu0 %v7097
    %7120 = vmatprep.subr.bf16.mxu0 0
    %7121 = vmatpush1.bf16.msra.mxu0 %v7098
    %7122 = vmatprep.subr.bf16.mxu0 0
    %7123 = vmatpush1.bf16.msra.mxu0 %v7099
    %7124 = vmatprep.subr.bf16.mxu0 0
    %7125 = vmatpush1.bf16.msra.mxu0 0
    %7126 = vmatprep.subr.bf16.mxu0 0
    %7127 = vmatpush1.bf16.msra.mxu0 0
    %7128 = vmatprep.subr.bf16.mxu0 0
    %7129 = vmatpush1.bf16.msra.mxu0 0
    %7130 = vmatprep.subr.bf16.mxu0 0
    %7131 = vmatpush1.bf16.msra.mxu0 0
    %7132 = vmatprep.subr.bf16.mxu0 0
    %7133 = vmatpush1.bf16.msra.mxu0 0
    %7134 = vmatprep.subr.bf16.mxu0 0
    %7135 = vmatpush1.bf16.msra.mxu0 0
    %7136 = vmatprep.subr.bf16.mxu0 0
    %7137 = vmatpush1.bf16.msra.mxu0 0
    %7138 = vmatprep.subr.bf16.mxu0 0
    %7139 = vmatpush1.bf16.msra.mxu0 0
    %7140 = vmatprep.mubr.bf16.mxu0 0
    %7141 = vmatmul.mubr.bf16.gmra.mrb[0].mxu0 %v7056
    %v7142 = vpop.f32.mrb[0].mxu0
    %v7143 = vadd.f32 0.0, %v7142
    %v7144 = vpop.f32.mrb[0].mxu0
    %v7145 = vpop.f32.mrb[0].mxu0
    %v7146 = vadd.f32 0.0, %v7145
    %v7147 = vpop.f32.mrb[0].mxu0
    %7148 = vmatprep.mubr.bf16.mxu0 0
    %7149 = vmatmul.mubr.bf16.gmra.mrb[0].mxu0 %v7057
    %v7150 = vpop.f32.mrb[0].mxu0
    %v7151 = vadd.f32 0.0, %v7150
    %v7152 = vpop.f32.mrb[0].mxu0
    %v7153 = vpop.f32.mrb[0].mxu0
    %v7154 = vadd.f32 0.0, %v7153
    %v7155 = vpop.f32.mrb[0].mxu0
    %7156 = vdwg.mxu0
    %v7157 = vadd.f32 %v7009, %v7143
    %v7158 = vadd.f32 %v7009, %v7146
    %v7159 = vadd.f32 %v7009, %v7151
    %v7160 = vadd.f32 %v7009, %v7154
    %v7161 = vld [vmem:[#allocation2 + $0x8] sm:$0x3]
    %v7162 = vld [vmem:[#allocation2 + $0x14] sm:$0x3]
    %v7164 = vshrl.u32 %v7010, 16
    %v7166 = vrot.slane %v7164, 5
    %v7167 = vshll.u32 %v7010, 16
    %v7169 = vrot.slane %v7167, 6
    %v7170 = vor.u32 %v7166, %v7169
    %v7171 = vrot.slane %v7170, 4
    %v7173 = vshrl.u32 %v7011, 16
    %v7175 = vrot.slane %v7173, 5
    %v7176 = vshll.u32 %v7011, 16
    %v7178 = vrot.slane %v7176, 6
    %v7179 = vor.u32 %v7175, %v7178
    %v7180 = vsel %vm580, %v7171, %v7179
    %v7181 = vrot.slane %v7179, 4
    %v7183 = vshrl.u32 %v7161, 16
    %v7185 = vrot.slane %v7183, 5
    %v7186 = vshll.u32 %v7161, 16
    %v7188 = vrot.slane %v7186, 6
    %v7189 = vor.u32 %v7185, %v7188
    %v7190 = vsel %vm580, %v7181, %v7189
    %v7192 = vshrl.u32 %v7013, 16
    %v7194 = vrot.slane %v7192, 5
    %v7195 = vshll.u32 %v7013, 16
    %v7197 = vrot.slane %v7195, 6
    %v7198 = vor.u32 %v7194, %v7197
    %v7199 = vrot.slane %v7198, 4
    %v7201 = vshrl.u32 %v7014, 16
    %v7203 = vrot.slane %v7201, 5
    %v7204 = vshll.u32 %v7014, 16
    %v7206 = vrot.slane %v7204, 6
    %v7207 = vor.u32 %v7203, %v7206
    %v7208 = vsel %vm580, %v7199, %v7207
    %v7209 = vrot.slane %v7207, 4
    %v7211 = vshrl.u32 %v7162, 16
    %v7213 = vrot.slane %v7211, 5
    %v7214 = vshll.u32 %v7162, 16
    %v7216 = vrot.slane %v7214, 6
    %v7217 = vor.u32 %v7213, %v7216
    %v7218 = vsel %vm580, %v7209, %v7217
    %v7219 = vld [vmem:[%s1 + $0x824] sm:$0xf]
    %v7220 = vld [vmem:[%s1 + $0x828] sm:$0xf]
    %v7221 = vld [vmem:[%s1 + $0x82c] sm:$0xf]
    %v7222 = vld [vmem:[%s1 + $0x830] sm:$0xf]
    %v7223 = vld [vmem:[%s1 + $0x834] sm:$0xf]
    %v7224 = vld [vmem:[%s1 + $0x838] sm:$0xf]
    %v7225 = vld [vmem:[%s1 + $0x83c] sm:$0xf]
    %v7226 = vld [vmem:[%s1 + $0x840] sm:$0xf]
    %v7227 = vld [vmem:[%s1 + $0x844] sm:$0xf]
    %v7228 = vld [vmem:[%s1 + $0x848] sm:$0xf]
    %v7229 = vld [vmem:[%s1 + $0x84c] sm:$0xf]
    %v7230 = vld [vmem:[%s1 + $0x850] sm:$0xf]
    %v7231 = vld [vmem:[%s1 + $0x854] sm:$0xf]
    %v7232 = vld [vmem:[%s1 + $0x858] sm:$0xf]
    %v7233 = vld [vmem:[%s1 + $0x85c] sm:$0xf]
    %v7234 = vld [vmem:[%s1 + $0x860] sm:$0xf]
    %v7235 = vunpack.c.l.b16 %v7180
    %v7236 = vunpack.c.l.b16 %v7190
    %v7237 = vunpack.c.l.b16 %v7208
    %v7238 = vunpack.c.l.b16 %v7218
    %v7239 = vpack.c.b16 %v7236, %v7235
    %v7240 = vpack.c.b16 %v7238, %v7237
    %v7259 = vunpack.c.l.b16 %v7219
    %v7260 = vunpack.c.l.b16 %v7220
    %v7261 = vunpack.c.l.b16 %v7221
    %v7262 = vunpack.c.l.b16 %v7222
    %v7263 = vunpack.c.l.b16 %v7223
    %v7264 = vunpack.c.l.b16 %v7224
    %v7265 = vunpack.c.l.b16 %v7225
    %v7266 = vunpack.c.l.b16 %v7226
    %v7267 = vunpack.c.l.b16 %v7227
    %v7268 = vunpack.c.l.b16 %v7228
    %v7269 = vunpack.c.l.b16 %v7229
    %v7270 = vunpack.c.l.b16 %v7230
    %v7271 = vunpack.c.l.b16 %v7231
    %v7272 = vunpack.c.l.b16 %v7232
    %v7273 = vunpack.c.l.b16 %v7233
    %v7274 = vunpack.c.l.b16 %v7234
    %v7275 = vpack.c.b16 %v7260, %v7259
    %v7276 = vpack.c.b16 %v7262, %v7261
    %v7277 = vpack.c.b16 %v7264, %v7263
    %v7278 = vpack.c.b16 %v7266, %v7265
    %v7279 = vpack.c.b16 %v7268, %v7267
    %v7280 = vpack.c.b16 %v7270, %v7269
    %v7281 = vpack.c.b16 %v7272, %v7271
    %v7282 = vpack.c.b16 %v7274, %v7273
    %7291 = vmatprep.subr.bf16.mxu0 0
    %7292 = vmatpush1.bf16.msra.mxu0 %v7275
    %7293 = vmatprep.subr.bf16.mxu0 0
    %7294 = vmatpush1.bf16.msra.mxu0 %v7276
    %7295 = vmatprep.subr.bf16.mxu0 0
    %7296 = vmatpush1.bf16.msra.mxu0 %v7277
    %7297 = vmatprep.subr.bf16.mxu0 0
    %7298 = vmatpush1.bf16.msra.mxu0 %v7278
    %7299 = vmatprep.subr.bf16.mxu0 0
    %7300 = vmatpush1.bf16.msra.mxu0 %v7279
    %7301 = vmatprep.subr.bf16.mxu0 0
    %7302 = vmatpush1.bf16.msra.mxu0 %v7280
    %7303 = vmatprep.subr.bf16.mxu0 0
    %7304 = vmatpush1.bf16.msra.mxu0 %v7281
    %7305 = vmatprep.subr.bf16.mxu0 0
    %7306 = vmatpush1.bf16.msra.mxu0 %v7282
    %7307 = vmatprep.subr.bf16.mxu0 0
    %7308 = vmatpush1.bf16.msra.mxu0 0
    %7309 = vmatprep.subr.bf16.mxu0 0
    %7310 = vmatpush1.bf16.msra.mxu0 0
    %7311 = vmatprep.subr.bf16.mxu0 0
    %7312 = vmatpush1.bf16.msra.mxu0 0
    %7313 = vmatprep.subr.bf16.mxu0 0
    %7314 = vmatpush1.bf16.msra.mxu0 0
    %7315 = vmatprep.subr.bf16.mxu0 0
    %7316 = vmatpush1.bf16.msra.mxu0 0
    %7317 = vmatprep.subr.bf16.mxu0 0
    %7318 = vmatpush1.bf16.msra.mxu0 0
    %7319 = vmatprep.subr.bf16.mxu0 0
    %7320 = vmatpush1.bf16.msra.mxu0 0
    %7321 = vmatprep.subr.bf16.mxu0 0
    %7322 = vmatpush1.bf16.msra.mxu0 0
    %7323 = vmatprep.mubr.bf16.mxu0 0
    %7324 = vmatmul.mubr.bf16.gmra.mrb[0].mxu0 %v7239
    %v7325 = vpop.f32.mrb[0].mxu0
    %v7326 = vadd.f32 0.0, %v7325
    %v7327 = vpop.f32.mrb[0].mxu0
    %v7328 = vpop.f32.mrb[0].mxu0
    %v7329 = vadd.f32 0.0, %v7328
    %v7330 = vpop.f32.mrb[0].mxu0
    %7331 = vmatprep.mubr.bf16.mxu0 0
    %7332 = vmatmul.mubr.bf16.gmra.mrb[0].mxu0 %v7240
    %v7333 = vpop.f32.mrb[0].mxu0
    %v7334 = vadd.f32 0.0, %v7333
    %v7335 = vpop.f32.mrb[0].mxu0
    %v7336 = vpop.f32.mrb[0].mxu0
    %v7337 = vadd.f32 0.0, %v7336
    %v7338 = vpop.f32.mrb[0].mxu0
    %7339 = vdwg.mxu0
    %v7340 = vadd.f32 %v7157, %v7326
    %v7341 = vadd.f32 %v7158, %v7329
    %v7342 = vadd.f32 %v7159, %v7334
    %v7343 = vadd.f32 %v7160, %v7337
    %v7344 = vld [vmem:[#allocation2] sm:$0xc]
    %v7345 = vld [vmem:[#allocation2 + $0xc] sm:$0xc]
    %v7350 = vrot.slane %v7344, 6
    %v7351 = vrot.slane %v7350, 4
    %v7352 = vrot.slane %v7011, 6
    %v7353 = vsel %vm731, %v7351, %v7352
    %v7354 = vrot.slane %v7352, 4
    %v7355 = vrot.slane %v7161, 6
    %v7356 = vsel %vm731, %v7354, %v7355
    %v7357 = vrot.slane %v7345, 6
    %v7358 = vrot.slane %v7357, 4
    %v7359 = vrot.slane %v7014, 6
    %v7360 = vsel %vm731, %v7358, %v7359
    %v7361 = vrot.slane %v7359, 4
    %v7362 = vrot.slane %v7162, 6
    %v7363 = vsel %vm731, %v7361, %v7362
    %v7364 = vld [vmem:[%s1 + $0x864] sm:$0xf]
    %v7365 = vld [vmem:[%s1 + $0x868] sm:$0xf]
    %v7366 = vld [vmem:[%s1 + $0x86c] sm:$0xf]
    %v7367 = vld [vmem:[%s1 + $0x870] sm:$0xf]
    %v7368 = vld [vmem:[%s1 + $0x874] sm:$0xf]
    %v7369 = vld [vmem:[%s1 + $0x878] sm:$0xf]
    %v7370 = vld [vmem:[%s1 + $0x87c] sm:$0xf]
    %v7371 = vld [vmem:[%s1 + $0x880] sm:$0xf]
    %v7372 = vld [vmem:[%s1 + $0x884] sm:$0xf]
    %v7373 = vld [vmem:[%s1 + $0x888] sm:$0xf]
    %v7374 = vld [vmem:[%s1 + $0x88c] sm:$0xf]
    %v7375 = vld [vmem:[%s1 + $0x890] sm:$0xf]
    %v7376 = vld [vmem:[%s1 + $0x894] sm:$0xf]
    %v7377 = vld [vmem:[%s1 + $0x898] sm:$0xf]
    %v7378 = vld [vmem:[%s1 + $0x89c] sm:$0xf]
    %v7379 = vld [vmem:[%s1 + $0x8a0] sm:$0xf]
    %v7380 = vunpack.c.l.b16 %v7353
    %v7381 = vunpack.c.l.b16 %v7356
    %v7382 = vunpack.c.l.b16 %v7360
    %v7383 = vunpack.c.l.b16 %v7363
    %v7384 = vpack.c.b16 %v7381, %v7380
    %v7385 = vpack.c.b16 %v7383, %v7382
    %v7404 = vunpack.c.l.b16 %v7364
    %v7405 = vunpack.c.l.b16 %v7365
    %v7406 = vunpack.c.l.b16 %v7366
    %v7407 = vunpack.c.l.b16 %v7367
    %v7408 = vunpack.c.l.b16 %v7368
    %v7409 = vunpack.c.l.b16 %v7369
    %v7410 = vunpack.c.l.b16 %v7370
    %v7411 = vunpack.c.l.b16 %v7371
    %v7412 = vunpack.c.l.b16 %v7372
    %v7413 = vunpack.c.l.b16 %v7373
    %v7414 = vunpack.c.l.b16 %v7374
    %v7415 = vunpack.c.l.b16 %v7375
    %v7416 = vunpack.c.l.b16 %v7376
    %v7417 = vunpack.c.l.b16 %v7377
    %v7418 = vunpack.c.l.b16 %v7378
    %v7419 = vunpack.c.l.b16 %v7379
    %v7420 = vpack.c.b16 %v7405, %v7404
    %v7421 = vpack.c.b16 %v7407, %v7406
    %v7422 = vpack.c.b16 %v7409, %v7408
    %v7423 = vpack.c.b16 %v7411, %v7410
    %v7424 = vpack.c.b16 %v7413, %v7412
    %v7425 = vpack.c.b16 %v7415, %v7414
    %v7426 = vpack.c.b16 %v7417, %v7416
    %v7427 = vpack.c.b16 %v7419, %v7418
    %7436 = vmatprep.subr.bf16.mxu0 0
    %7437 = vmatpush1.bf16.msra.mxu0 %v7420
    %7438 = vmatprep.subr.bf16.mxu0 0
    %7439 = vmatpush1.bf16.msra.mxu0 %v7421
    %7440 = vmatprep.subr.bf16.mxu0 0
    %7441 = vmatpush1.bf16.msra.mxu0 %v7422
    %7442 = vmatprep.subr.bf16.mxu0 0
    %7443 = vmatpush1.bf16.msra.mxu0 %v7423
    %7444 = vmatprep.subr.bf16.mxu0 0
    %7445 = vmatpush1.bf16.msra.mxu0 %v7424
    %7446 = vmatprep.subr.bf16.mxu0 0
    %7447 = vmatpush1.bf16.msra.mxu0 %v7425
    %7448 = vmatprep.subr.bf16.mxu0 0
    %7449 = vmatpush1.bf16.msra.mxu0 %v7426
    %7450 = vmatprep.subr.bf16.mxu0 0
    %7451 = vmatpush1.bf16.msra.mxu0 %v7427
    %7452 = vmatprep.subr.bf16.mxu0 0
    %7453 = vmatpush1.bf16.msra.mxu0 0
    %7454 = vmatprep.subr.bf16.mxu0 0
    %7455 = vmatpush1.bf16.msra.mxu0 0
    %7456 = vmatprep.subr.bf16.mxu0 0
    %7457 = vmatpush1.bf16.msra.mxu0 0
    %7458 = vmatprep.subr.bf16.mxu0 0
    %7459 = vmatpush1.bf16.msra.mxu0 0
    %7460 = vmatprep.subr.bf16.mxu0 0
    %7461 = vmatpush1.bf16.msra.mxu0 0
    %7462 = vmatprep.subr.bf16.mxu0 0
    %7463 = vmatpush1.bf16.msra.mxu0 0
    %7464 = vmatprep.subr.bf16.mxu0 0
    %7465 = vmatpush1.bf16.msra.mxu0 0
    %7466 = vmatprep.subr.bf16.mxu0 0
    %7467 = vmatpush1.bf16.msra.mxu0 0
    %7468 = vmatprep.mubr.bf16.mxu0 0
    %7469 = vmatmul.mubr.bf16.gmra.mrb[0].mxu0 %v7384
    %v7470 = vpop.f32.mrb[0].mxu0
    %v7471 = vadd.f32 0.0, %v7470
    %v7472 = vpop.f32.mrb[0].mxu0
    %v7473 = vpop.f32.mrb[0].mxu0
    %v7474 = vadd.f32 0.0, %v7473
    %v7475 = vpop.f32.mrb[0].mxu0
    %7476 = vmatprep.mubr.bf16.mxu0 0
    %7477 = vmatmul.mubr.bf16.gmra.mrb[0].mxu0 %v7385
    %v7478 = vpop.f32.mrb[0].mxu0
    %v7479 = vadd.f32 0.0, %v7478
    %v7480 = vpop.f32.mrb[0].mxu0
    %v7481 = vpop.f32.mrb[0].mxu0
    %v7482 = vadd.f32 0.0, %v7481
    %v7483 = vpop.f32.mrb[0].mxu0
    %7484 = vdwg.mxu0
    %v7485 = vadd.f32 %v7340, %v7471
    %v7486 = vadd.f32 %v7341, %v7474
    %v7487 = vadd.f32 %v7342, %v7479
    %v7488 = vadd.f32 %v7343, %v7482
    %v7489 = vadd.f32 %v7485, %v4864
    %v7490 = vadd.f32 %v7486, %v4865
    %v7491 = vadd.f32 %v7487, %v4866
    %v7492 = vadd.f32 %v7488, %v4867
    %v7493 = vmax.f32 %v7489, 0.0
    %v7494 = vmax.f32 %v7490, 0.0
    %v7495 = vmax.f32 %v7491, 0.0
    %v7496 = vmax.f32 %v7492, 0.0
    %v7497 = vadd.f32 %v7493, %v7494
    %v7498 = vrot.slane %v7497, 4
    %v7499 = vadd.f32 %v7497, %v7498
    %v7500 = vrot.slane %v7499, 2
    %v7501 = vadd.f32 %v7499, %v7500
    %v7502 = vrot.slane %v7501, 1
    %v7503 = vadd.f32 %v7501, %v7502
    %v7504 = vadd.f32 %v7495, %v7496
    %v7505 = vrot.slane %v7504, 4
    %v7506 = vadd.f32 %v7504, %v7505
    %v7507 = vrot.slane %v7506, 2
    %v7508 = vadd.f32 %v7506, %v7507
    %v7509 = vrot.slane %v7508, 1
    %v7510 = vadd.f32 %v7508, %v7509
    %v7511 = vrcp.pop 16.0
    %v7512 = vmul.f32 %v7503, %v7511
    %v7513 = vmul.f32 %v7510, %v7511
    %v7514 = vpack.c.bf16 %v7512, %v7512
    %v7515 = vpack.c.bf16 %v7513, %v7513
    %v7516 = vld [vmem:[%s1 + $0x8a4] sm:$0xf]
    %v7517 = vld [vmem:[%s1 + $0x8a8] sm:$0xf]
    %v7518 = vld [vmem:[%s1 + $0x8ac] sm:$0xf]
    %v7519 = vld [vmem:[%s1 + $0x8b0] sm:$0xf]
    %v7520 = vld [vmem:[%s1 + $0x8b4] sm:$0xf]
    %v7521 = vld [vmem:[%s1 + $0x8b8] sm:$0xf]
    %v7522 = vld [vmem:[%s1 + $0x8bc] sm:$0xf]
    %v7523 = vld [vmem:[%s1 + $0x8c0] sm:$0xf]
    %v7524 = vld [vmem:[%s1 + $0x8c4] sm:$0xf]
    %v7525 = vld [vmem:[%s1 + $0x8c8] sm:$0xf]
    %v7526 = vld [vmem:[%s1 + $0x8cc] sm:$0xf]
    %v7527 = vld [vmem:[%s1 + $0x8d0] sm:$0xf]
    %v7528 = vld [vmem:[%s1 + $0x8d4] sm:$0xf]
    %v7529 = vld [vmem:[%s1 + $0x8d8] sm:$0xf]
    %v7530 = vld [vmem:[%s1 + $0x8dc] sm:$0xf]
    %v7531 = vld [vmem:[%s1 + $0x8e0] sm:$0xf]
    %v7532 = vlaneseq
    %v7533 = vshrl.u32 %v7532, 7
    %v7534 = vsub.s32 3, %v7533
    %v7535 = vrot.slane %v17, %v7534
    %v7538 = vunpack.c.l.b16 %v7514
    %v7539 = vunpack.c.l.b16 %v7515
    %vm7540 = vcmask 1041409
    %v7541 = vsel %vm7540, %v7539, %v7538
    %v7542 = vpack.c.b16 %v7541, %v7541
    %v7560 = vunpack.c.l.b16 %v7516
    %v7561 = vunpack.c.l.b16 %v7517
    %v7562 = vunpack.c.l.b16 %v7518
    %v7563 = vunpack.c.l.b16 %v7519
    %v7564 = vunpack.c.l.b16 %v7520
    %v7565 = vunpack.c.l.b16 %v7521
    %v7566 = vunpack.c.l.b16 %v7522
    %v7567 = vunpack.c.l.b16 %v7523
    %v7568 = vunpack.c.l.b16 %v7524
    %v7569 = vunpack.c.l.b16 %v7525
    %v7570 = vunpack.c.l.b16 %v7526
    %v7571 = vunpack.c.l.b16 %v7527
    %v7572 = vunpack.c.l.b16 %v7528
    %v7573 = vunpack.c.l.b16 %v7529
    %v7574 = vunpack.c.l.b16 %v7530
    %v7575 = vunpack.c.l.b16 %v7531
    %v7576 = vpack.c.b16 %v7561, %v7560
    %v7577 = vpack.c.b16 %v7563, %v7562
    %v7578 = vpack.c.b16 %v7565, %v7564
    %v7579 = vpack.c.b16 %v7567, %v7566
    %v7580 = vpack.c.b16 %v7569, %v7568
    %v7581 = vpack.c.b16 %v7571, %v7570
    %v7582 = vpack.c.b16 %v7573, %v7572
    %v7583 = vpack.c.b16 %v7575, %v7574
    %7592 = vmatprep.subr.bf16.mxu0 0
    %7593 = vmatpush1.bf16.msra.mxu0 %v7576
    %7594 = vmatprep.subr.bf16.mxu0 0
    %7595 = vmatpush1.bf16.msra.mxu0 %v7577
    %7596 = vmatprep.subr.bf16.mxu0 0
    %7597 = vmatpush1.bf16.msra.mxu0 %v7578
    %7598 = vmatprep.subr.bf16.mxu0 0
    %7599 = vmatpush1.bf16.msra.mxu0 %v7579
    %7600 = vmatprep.subr.bf16.mxu0 0
    %7601 = vmatpush1.bf16.msra.mxu0 %v7580
    %7602 = vmatprep.subr.bf16.mxu0 0
    %7603 = vmatpush1.bf16.msra.mxu0 %v7581
    %7604 = vmatprep.subr.bf16.mxu0 0
    %7605 = vmatpush1.bf16.msra.mxu0 %v7582
    %7606 = vmatprep.subr.bf16.mxu0 0
    %7607 = vmatpush1.bf16.msra.mxu0 %v7583
    %7608 = vmatprep.subr.bf16.mxu0 0
    %7609 = vmatpush1.bf16.msra.mxu0 0
    %7610 = vmatprep.subr.bf16.mxu0 0
    %7611 = vmatpush1.bf16.msra.mxu0 0
    %7612 = vmatprep.subr.bf16.mxu0 0
    %7613 = vmatpush1.bf16.msra.mxu0 0
    %7614 = vmatprep.subr.bf16.mxu0 0
    %7615 = vmatpush1.bf16.msra.mxu0 0
    %7616 = vmatprep.subr.bf16.mxu0 0
    %7617 = vmatpush1.bf16.msra.mxu0 0
    %7618 = vmatprep.subr.bf16.mxu0 0
    %7619 = vmatpush1.bf16.msra.mxu0 0
    %7620 = vmatprep.subr.bf16.mxu0 0
    %7621 = vmatpush1.bf16.msra.mxu0 0
    %7622 = vmatprep.subr.bf16.mxu0 0
    %7623 = vmatpush1.bf16.msra.mxu0 0
    %7624 = vmatprep.mubr.bf16.mxu0 0
    %7625 = vmatmul.mubr.bf16.gmra.mrb[0].mxu0 %v7542
    %v7626 = vpop.f32.mrb[0].mxu0
    %v7627 = vadd.f32 %v7535, %v7626
    %v7628 = vpop.f32.mrb[0].mxu0
    %v7629 = vpop.f32.mrb[0].mxu0
    %v7630 = vpop.f32.mrb[0].mxu0
    %7631 = vdwg.mxu0
    %v7632 = vmax.f32 %v7627, 0.0
    %v7633 = vpack.c.bf16 %v7632, %v7632
    %v7634 = vld [vmem:[%s1 + $0x8e4] sm:$0xf]
    %v7635 = vld [vmem:[%s1 + $0x8e8] sm:$0xf]
    %v7636 = vld [vmem:[%s1 + $0x8ec] sm:$0xf]
    %v7637 = vld [vmem:[%s1 + $0x8f0] sm:$0xf]
    %v7638 = vld [vmem:[%s1 + $0x8f4] sm:$0xf]
    %v7639 = vld [vmem:[%s1 + $0x8f8] sm:$0xf]
    %v7640 = vld [vmem:[%s1 + $0x8fc] sm:$0xf]
    %v7641 = vld [vmem:[%s1 + $0x900] sm:$0xf]
    %v7642 = vld [vmem:[%s1 + $0x904] sm:$0xf]
    %v7643 = vld [vmem:[%s1 + $0x908] sm:$0xf]
    %v7644 = vld [vmem:[%s1 + $0x90c] sm:$0xf]
    %v7645 = vld [vmem:[%s1 + $0x910] sm:$0xf]
    %v7646 = vld [vmem:[%s1 + $0x914] sm:$0xf]
    %v7647 = vld [vmem:[%s1 + $0x918] sm:$0xf]
    %v7648 = vld [vmem:[%s1 + $0x91c] sm:$0xf]
    %v7649 = vld [vmem:[%s1 + $0x920] sm:$0xf]
    %v7650 = vlaneseq
    %v7651 = vshrl.u32 %v7650, 7
    %v7652 = vsub.s32 4, %v7651
    %v7653 = vrot.slane %v17, %v7652
    %v7670 = vunpack.c.l.b16 %v7634
    %v7671 = vunpack.c.l.b16 %v7635
    %v7672 = vunpack.c.l.b16 %v7636
    %v7673 = vunpack.c.l.b16 %v7637
    %v7674 = vunpack.c.l.b16 %v7638
    %v7675 = vunpack.c.l.b16 %v7639
    %v7676 = vunpack.c.l.b16 %v7640
    %v7677 = vunpack.c.l.b16 %v7641
    %v7678 = vunpack.c.l.b16 %v7642
    %v7679 = vunpack.c.l.b16 %v7643
    %v7680 = vunpack.c.l.b16 %v7644
    %v7681 = vunpack.c.l.b16 %v7645
    %v7682 = vunpack.c.l.b16 %v7646
    %v7683 = vunpack.c.l.b16 %v7647
    %v7684 = vunpack.c.l.b16 %v7648
    %v7685 = vunpack.c.l.b16 %v7649
    %v7686 = vpack.c.b16 %v7671, %v7670
    %v7687 = vpack.c.b16 %v7673, %v7672
    %v7688 = vpack.c.b16 %v7675, %v7674
    %v7689 = vpack.c.b16 %v7677, %v7676
    %v7690 = vpack.c.b16 %v7679, %v7678
    %v7691 = vpack.c.b16 %v7681, %v7680
    %v7692 = vpack.c.b16 %v7683, %v7682
    %v7693 = vpack.c.b16 %v7685, %v7684
    %7702 = vmatprep.subr.bf16.mxu0 0
    %7703 = vmatpush1.bf16.msra.mxu0 %v7686
    %7704 = vmatprep.subr.bf16.mxu0 0
    %7705 = vmatpush1.bf16.msra.mxu0 %v7687
    %7706 = vmatprep.subr.bf16.mxu0 0
    %7707 = vmatpush1.bf16.msra.mxu0 %v7688
    %7708 = vmatprep.subr.bf16.mxu0 0
    %7709 = vmatpush1.bf16.msra.mxu0 %v7689
    %7710 = vmatprep.subr.bf16.mxu0 0
    %7711 = vmatpush1.bf16.msra.mxu0 %v7690
    %7712 = vmatprep.subr.bf16.mxu0 0
    %7713 = vmatpush1.bf16.msra.mxu0 %v7691
    %7714 = vmatprep.subr.bf16.mxu0 0
    %7715 = vmatpush1.bf16.msra.mxu0 %v7692
    %7716 = vmatprep.subr.bf16.mxu0 0
    %7717 = vmatpush1.bf16.msra.mxu0 %v7693
    %7718 = vmatprep.subr.bf16.mxu0 0
    %7719 = vmatpush1.bf16.msra.mxu0 0
    %7720 = vmatprep.subr.bf16.mxu0 0
    %7721 = vmatpush1.bf16.msra.mxu0 0
    %7722 = vmatprep.subr.bf16.mxu0 0
    %7723 = vmatpush1.bf16.msra.mxu0 0
    %7724 = vmatprep.subr.bf16.mxu0 0
    %7725 = vmatpush1.bf16.msra.mxu0 0
    %7726 = vmatprep.subr.bf16.mxu0 0
    %7727 = vmatpush1.bf16.msra.mxu0 0
    %7728 = vmatprep.subr.bf16.mxu0 0
    %7729 = vmatpush1.bf16.msra.mxu0 0
    %7730 = vmatprep.subr.bf16.mxu0 0
    %7731 = vmatpush1.bf16.msra.mxu0 0
    %7732 = vmatprep.subr.bf16.mxu0 0
    %7733 = vmatpush1.bf16.msra.mxu0 0
    %7734 = vmatprep.mubr.bf16.mxu0 0
    %7735 = vmatmul.mubr.bf16.gmra.mrb[0].mxu0 %v7633
    %v7736 = vpop.f32.mrb[0].mxu0
    %v7737 = vadd.f32 %v7653, %v7736
    %v7738 = vpop.f32.mrb[0].mxu0
    %v7739 = vpop.f32.mrb[0].mxu0
    %v7740 = vpop.f32.mrb[0].mxu0
    %7741 = vdwg.mxu0
    %v7742 = vmax.f32 %v7737, 0.0
    %v7743 = vpack.c.bf16 %v7742, %v7742
    %v7744 = vld [vmem:[%s1 + $0x924] sm:$0xf]
    %v7745 = vld [vmem:[%s1 + $0x928] sm:$0xf]
    %v7746 = vld [vmem:[%s1 + $0x92c] sm:$0xf]
    %v7747 = vld [vmem:[%s1 + $0x930] sm:$0xf]
    %v7748 = vld [vmem:[%s1 + $0x934] sm:$0xf]
    %v7749 = vld [vmem:[%s1 + $0x938] sm:$0xf]
    %v7750 = vld [vmem:[%s1 + $0x93c] sm:$0xf]
    %v7751 = vld [vmem:[%s1 + $0x940] sm:$0xf]
    %v7752 = vld [vmem:[%s1 + $0x944] sm:$0xf]
    %v7753 = vld [vmem:[%s1 + $0x948] sm:$0xf]
    %v7754 = vld [vmem:[%s1 + $0x94c] sm:$0xf]
    %v7755 = vld [vmem:[%s1 + $0x950] sm:$0xf]
    %v7756 = vld [vmem:[%s1 + $0x954] sm:$0xf]
    %v7757 = vld [vmem:[%s1 + $0x958] sm:$0xf]
    %v7758 = vld [vmem:[%s1 + $0x95c] sm:$0xf]
    %v7759 = vld [vmem:[%s1 + $0x960] sm:$0xf]
    %v7760 = vlaneseq
    %v7761 = vshrl.u32 %v7760, 7
    %v7762 = vsub.s32 5, %v7761
    %v7763 = vrot.slane %v17, %v7762
    %v7780 = vunpack.c.l.b16 %v7744
    %v7781 = vunpack.c.l.b16 %v7745
    %v7782 = vunpack.c.l.b16 %v7746
    %v7783 = vunpack.c.l.b16 %v7747
    %v7784 = vunpack.c.l.b16 %v7748
    %v7785 = vunpack.c.l.b16 %v7749
    %v7786 = vunpack.c.l.b16 %v7750
    %v7787 = vunpack.c.l.b16 %v7751
    %v7788 = vunpack.c.l.b16 %v7752
    %v7789 = vunpack.c.l.b16 %v7753
    %v7790 = vunpack.c.l.b16 %v7754
    %v7791 = vunpack.c.l.b16 %v7755
    %v7792 = vunpack.c.l.b16 %v7756
    %v7793 = vunpack.c.l.b16 %v7757
    %v7794 = vunpack.c.l.b16 %v7758
    %v7795 = vunpack.c.l.b16 %v7759
    %v7796 = vpack.c.b16 %v7781, %v7780
    %v7797 = vpack.c.b16 %v7783, %v7782
    %v7798 = vpack.c.b16 %v7785, %v7784
    %v7799 = vpack.c.b16 %v7787, %v7786
    %v7800 = vpack.c.b16 %v7789, %v7788
    %v7801 = vpack.c.b16 %v7791, %v7790
    %v7802 = vpack.c.b16 %v7793, %v7792
    %v7803 = vpack.c.b16 %v7795, %v7794
    %7812 = vmatprep.subr.bf16.mxu0 0
    %7813 = vmatpush1.bf16.msra.mxu0 %v7796
    %7814 = vmatprep.subr.bf16.mxu0 0
    %7815 = vmatpush1.bf16.msra.mxu0 %v7797
    %7816 = vmatprep.subr.bf16.mxu0 0
    %7817 = vmatpush1.bf16.msra.mxu0 %v7798
    %7818 = vmatprep.subr.bf16.mxu0 0
    %7819 = vmatpush1.bf16.msra.mxu0 %v7799
    %7820 = vmatprep.subr.bf16.mxu0 0
    %7821 = vmatpush1.bf16.msra.mxu0 %v7800
    %7822 = vmatprep.subr.bf16.mxu0 0
    %7823 = vmatpush1.bf16.msra.mxu0 %v7801
    %7824 = vmatprep.subr.bf16.mxu0 0
    %7825 = vmatpush1.bf16.msra.mxu0 %v7802
    %7826 = vmatprep.subr.bf16.mxu0 0
    %7827 = vmatpush1.bf16.msra.mxu0 %v7803
    %7828 = vmatprep.subr.bf16.mxu0 0
    %7829 = vmatpush1.bf16.msra.mxu0 0
    %7830 = vmatprep.subr.bf16.mxu0 0
    %7831 = vmatpush1.bf16.msra.mxu0 0
    %7832 = vmatprep.subr.bf16.mxu0 0
    %7833 = vmatpush1.bf16.msra.mxu0 0
    %7834 = vmatprep.subr.bf16.mxu0 0
    %7835 = vmatpush1.bf16.msra.mxu0 0
    %7836 = vmatprep.subr.bf16.mxu0 0
    %7837 = vmatpush1.bf16.msra.mxu0 0
    %7838 = vmatprep.subr.bf16.mxu0 0
    %7839 = vmatpush1.bf16.msra.mxu0 0
    %7840 = vmatprep.subr.bf16.mxu0 0
    %7841 = vmatpush1.bf16.msra.mxu0 0
    %7842 = vmatprep.subr.bf16.mxu0 0
    %7843 = vmatpush1.bf16.msra.mxu0 0
    %7844 = vmatprep.mubr.bf16.mxu0 0
    %7845 = vmatmul.mubr.bf16.gmra.mrb[0].mxu0 %v7633
    %v7846 = vpop.f32.mrb[0].mxu0
    %v7847 = vadd.f32 %v7763, %v7846
    %v7848 = vpop.f32.mrb[0].mxu0
    %v7849 = vpop.f32.mrb[0].mxu0
    %v7850 = vpop.f32.mrb[0].mxu0
    %7851 = vdwg.mxu0
    %v7852 = vmax.f32 %v7847, 0.0
    %v7853 = vpack.c.bf16 %v7852, %v7852
    %v7854 = vld [vmem:[%s1 + $0x964] sm:$0xf]
    %v7855 = vld [vmem:[%s1 + $0x968] sm:$0xf]
    %v7856 = vld [vmem:[%s1 + $0x96c] sm:$0xf]
    %v7857 = vld [vmem:[%s1 + $0x970] sm:$0xf]
    %v7858 = vld [vmem:[%s1 + $0x974] sm:$0xf]
    %v7859 = vld [vmem:[%s1 + $0x978] sm:$0xf]
    %v7860 = vld [vmem:[%s1 + $0x97c] sm:$0xf]
    %v7861 = vld [vmem:[%s1 + $0x980] sm:$0xf]
    %v7862 = vld [vmem:[%s1 + $0x984] sm:$0xf]
    %v7863 = vld [vmem:[%s1 + $0x988] sm:$0xf]
    %v7864 = vld [vmem:[%s1 + $0x98c] sm:$0xf]
    %v7865 = vld [vmem:[%s1 + $0x990] sm:$0xf]
    %v7866 = vld [vmem:[%s1 + $0x994] sm:$0xf]
    %v7867 = vld [vmem:[%s1 + $0x998] sm:$0xf]
    %v7868 = vld [vmem:[%s1 + $0x99c] sm:$0xf]
    %v7869 = vld [vmem:[%s1 + $0x9a0] sm:$0xf]
    %v7870 = vld [vmem:[%s1 + $0x9a4] sm:$0xf]
    %v7871 = vld [vmem:[%s1 + $0x9a8] sm:$0xf]
    %v7872 = vld [vmem:[%s1 + $0x9ac] sm:$0xf]
    %v7873 = vld [vmem:[%s1 + $0x9b0] sm:$0xf]
    %v7874 = vld [vmem:[%s1 + $0x9b4] sm:$0xf]
    %v7875 = vld [vmem:[%s1 + $0x9b8] sm:$0xf]
    %v7876 = vld [vmem:[%s1 + $0x9bc] sm:$0xf]
    %v7877 = vld [vmem:[%s1 + $0x9c0] sm:$0xf]
    %v7878 = vld [vmem:[%s1 + $0x9c4] sm:$0xf]
    %v7879 = vld [vmem:[%s1 + $0x9c8] sm:$0xf]
    %v7880 = vld [vmem:[%s1 + $0x9cc] sm:$0xf]
    %v7881 = vld [vmem:[%s1 + $0x9d0] sm:$0xf]
    %v7882 = vld [vmem:[%s1 + $0x9d4] sm:$0xf]
    %v7883 = vld [vmem:[%s1 + $0x9d8] sm:$0xf]
    %v7884 = vld [vmem:[%s1 + $0x9dc] sm:$0xf]
    %v7885 = vld [vmem:[%s1 + $0x9e0] sm:$0xf]
    %v7902 = vunpack.c.l.b16 %v7870
    %v7903 = vunpack.c.l.b16 %v7871
    %v7904 = vunpack.c.l.b16 %v7872
    %v7905 = vunpack.c.l.b16 %v7873
    %v7906 = vunpack.c.l.b16 %v7874
    %v7907 = vunpack.c.l.b16 %v7875
    %v7908 = vunpack.c.l.b16 %v7876
    %v7909 = vunpack.c.l.b16 %v7877
    %v7910 = vunpack.c.l.b16 %v7878
    %v7911 = vunpack.c.l.b16 %v7879
    %v7912 = vunpack.c.l.b16 %v7880
    %v7913 = vunpack.c.l.b16 %v7881
    %v7914 = vunpack.c.l.b16 %v7882
    %v7915 = vunpack.c.l.b16 %v7883
    %v7916 = vunpack.c.l.b16 %v7884
    %v7917 = vunpack.c.l.b16 %v7885
    %v7918 = vpack.c.b16 %v7903, %v7902
    %v7919 = vpack.c.b16 %v7905, %v7904
    %v7920 = vpack.c.b16 %v7907, %v7906
    %v7921 = vpack.c.b16 %v7909, %v7908
    %v7922 = vpack.c.b16 %v7911, %v7910
    %v7923 = vpack.c.b16 %v7913, %v7912
    %v7924 = vpack.c.b16 %v7915, %v7914
    %v7925 = vpack.c.b16 %v7917, %v7916
    %7934 = vmatprep.subr.bf16.mxu0 0
    %7935 = vmatpush1.bf16.msra.mxu0 %v7918
    %7936 = vmatprep.subr.bf16.mxu0 0
    %7937 = vmatpush1.bf16.msra.mxu0 %v7919
    %7938 = vmatprep.subr.bf16.mxu0 0
    %7939 = vmatpush1.bf16.msra.mxu0 %v7920
    %7940 = vmatprep.subr.bf16.mxu0 0
    %7941 = vmatpush1.bf16.msra.mxu0 %v7921
    %7942 = vmatprep.subr.bf16.mxu0 0
    %7943 = vmatpush1.bf16.msra.mxu0 %v7922
    %7944 = vmatprep.subr.bf16.mxu0 0
    %7945 = vmatpush1.bf16.msra.mxu0 %v7923
    %7946 = vmatprep.subr.bf16.mxu0 0
    %7947 = vmatpush1.bf16.msra.mxu0 %v7924
    %7948 = vmatprep.subr.bf16.mxu0 0
    %7949 = vmatpush1.bf16.msra.mxu0 %v7925
    %7950 = vmatprep.subr.bf16.mxu0 0
    %7951 = vmatpush1.bf16.msra.mxu0 0
    %7952 = vmatprep.subr.bf16.mxu0 0
    %7953 = vmatpush1.bf16.msra.mxu0 0
    %7954 = vmatprep.subr.bf16.mxu0 0
    %7955 = vmatpush1.bf16.msra.mxu0 0
    %7956 = vmatprep.subr.bf16.mxu0 0
    %7957 = vmatpush1.bf16.msra.mxu0 0
    %7958 = vmatprep.subr.bf16.mxu0 0
    %7959 = vmatpush1.bf16.msra.mxu0 0
    %7960 = vmatprep.subr.bf16.mxu0 0
    %7961 = vmatpush1.bf16.msra.mxu0 0
    %7962 = vmatprep.subr.bf16.mxu0 0
    %7963 = vmatpush1.bf16.msra.mxu0 0
    %7964 = vmatprep.subr.bf16.mxu0 0
    %7965 = vmatpush1.bf16.msra.mxu0 0
    %7966 = vmatprep.mubr.bf16.mxu0 0
    %7967 = vmatmul.mubr.bf16.gmra.mrb[0].mxu0 %v7853
    %v7968 = vpop.f32.mrb[0].mxu0
    %v7969 = vadd.f32 0.0, %v7968
    %v7970 = vpop.f32.mrb[0].mxu0
    %v7971 = vpop.f32.mrb[0].mxu0
    %v7972 = vpop.f32.mrb[0].mxu0
    %7973 = vdwg.mxu0
    %v7990 = vunpack.c.l.b16 %v7854
    %v7991 = vunpack.c.l.b16 %v7855
    %v7992 = vunpack.c.l.b16 %v7856
    %v7993 = vunpack.c.l.b16 %v7857
    %v7994 = vunpack.c.l.b16 %v7858
    %v7995 = vunpack.c.l.b16 %v7859
    %v7996 = vunpack.c.l.b16 %v7860
    %v7997 = vunpack.c.l.b16 %v7861
    %v7998 = vunpack.c.l.b16 %v7862
    %v7999 = vunpack.c.l.b16 %v7863
    %v8000 = vunpack.c.l.b16 %v7864
    %v8001 = vunpack.c.l.b16 %v7865
    %v8002 = vunpack.c.l.b16 %v7866
    %v8003 = vunpack.c.l.b16 %v7867
    %v8004 = vunpack.c.l.b16 %v7868
    %v8005 = vunpack.c.l.b16 %v7869
    %v8006 = vpack.c.b16 %v7991, %v7990
    %v8007 = vpack.c.b16 %v7993, %v7992
    %v8008 = vpack.c.b16 %v7995, %v7994
    %v8009 = vpack.c.b16 %v7997, %v7996
    %v8010 = vpack.c.b16 %v7999, %v7998
    %v8011 = vpack.c.b16 %v8001, %v8000
    %v8012 = vpack.c.b16 %v8003, %v8002
    %v8013 = vpack.c.b16 %v8005, %v8004
    %8022 = vmatprep.subr.bf16.mxu0 0
    %8023 = vmatpush1.bf16.msra.mxu0 %v8006
    %8024 = vmatprep.subr.bf16.mxu0 0
    %8025 = vmatpush1.bf16.msra.mxu0 %v8007
    %8026 = vmatprep.subr.bf16.mxu0 0
    %8027 = vmatpush1.bf16.msra.mxu0 %v8008
    %8028 = vmatprep.subr.bf16.mxu0 0
    %8029 = vmatpush1.bf16.msra.mxu0 %v8009
    %8030 = vmatprep.subr.bf16.mxu0 0
    %8031 = vmatpush1.bf16.msra.mxu0 %v8010
    %8032 = vmatprep.subr.bf16.mxu0 0
    %8033 = vmatpush1.bf16.msra.mxu0 %v8011
    %8034 = vmatprep.subr.bf16.mxu0 0
    %8035 = vmatpush1.bf16.msra.mxu0 %v8012
    %8036 = vmatprep.subr.bf16.mxu0 0
    %8037 = vmatpush1.bf16.msra.mxu0 %v8013
    %8038 = vmatprep.subr.bf16.mxu0 0
    %8039 = vmatpush1.bf16.msra.mxu0 0
    %8040 = vmatprep.subr.bf16.mxu0 0
    %8041 = vmatpush1.bf16.msra.mxu0 0
    %8042 = vmatprep.subr.bf16.mxu0 0
    %8043 = vmatpush1.bf16.msra.mxu0 0
    %8044 = vmatprep.subr.bf16.mxu0 0
    %8045 = vmatpush1.bf16.msra.mxu0 0
    %8046 = vmatprep.subr.bf16.mxu0 0
    %8047 = vmatpush1.bf16.msra.mxu0 0
    %8048 = vmatprep.subr.bf16.mxu0 0
    %8049 = vmatpush1.bf16.msra.mxu0 0
    %8050 = vmatprep.subr.bf16.mxu0 0
    %8051 = vmatpush1.bf16.msra.mxu0 0
    %8052 = vmatprep.subr.bf16.mxu0 0
    %8053 = vmatpush1.bf16.msra.mxu0 0
    %8054 = vmatprep.mubr.bf16.mxu0 0
    %8055 = vmatmul.mubr.bf16.gmra.mrb[0].mxu0 %v7743
    %v8056 = vpop.f32.mrb[0].mxu0
    %v8057 = vadd.f32 %v7969, %v8056
    %v8058 = vpop.f32.mrb[0].mxu0
    %v8059 = vpop.f32.mrb[0].mxu0
    %v8060 = vpop.f32.mrb[0].mxu0
    %8061 = vdwg.mxu0
    %v8062 = vlaneseq
    %v8063 = vshrl.u32 %v8062, 7
    %v8064 = vsub.s32 6, %v8063
    %v8065 = vrot.slane %v17, %v8064
    %v8066 = vadd.f32 %v8057, %v8065
    %8067 = vst [vmem:[#allocation3] sm:$0x3] %v8066
    // Predicated region
    $region14: #{resnet1d_forward.1} parent=1 // pred_check
      _
    $region15: #{resnet1d_forward.1} parent=1 // pred_check_branch
      %8069 = sbr.rel (0) target = $region17
    $region16: #{resnet1d_forward.1} parent=1 // pred_region
      %s8071 = ssub.s32 32, 32
      %8072 = vsyncadd [#allocation4], %s8071
      %s8074 = sshll.u32 [#allocation3], 4
      %s8075 = int_to_ptr.vmem [resolvable:$true] %s8074
      %8077 = dma.vmem_to_hbm [thread:$0]  %s8075, 32, %s3, [#allocation4]
    $region17: #{resnet1d_forward.1} parent=1 // pred_fallthru
      _
    // Predicated region
    $region18: #{resnet1d_forward.1} parent=1 // pred_check
      _
    $region19: #{resnet1d_forward.1} parent=1 // pred_check_branch
      %8079 = sbr.rel (0) target = $region21
    $region20: #{resnet1d_forward.1} parent=1 // pred_region
      %8080 = dma.done [#allocation4], 32
    $region21: #{resnet1d_forward.1} parent=1 // pred_fallthru
      _
    %8081 = vsyncpa [#allocation4], 1

</llo_original>
